<compile_context>
chip_gen: v7x
topology: tpu7x:2x2x1
jax: 0.10.0
libtpu: 0.0.40
codegen_flags: <defaults>
</compile_context>

<pallas_src>
import functools

import jax
import jax.numpy as jnp
import numpy as np
from jax.experimental import pallas as pl
from jax.experimental.pallas import tpu as pltpu

MXU_DTYPE = jnp.bfloat16
M_TILE_MAX = 256     # rows per output tile (multiple of 16 for bf16 sublanes)
K_TILE_MAX = 2048    # K tiling only kicks in for fc1 (K=10240); convs fit one K block


def _round_up(x, m):
    return (x + m - 1) // m * m


def _cdiv(a, b):
    return (a + b - 1) // b


def _choose_m_tiling(m):
    if m <= M_TILE_MAX:
        return _round_up(max(m, 1), 16), 1
    n_m = _cdiv(m, M_TILE_MAX)
    tm = _round_up(_cdiv(m, n_m), 16)
    return tm, n_m


def _choose_k_tiling(k):
    kp = _round_up(k, 128)
    if kp <= K_TILE_MAX:
        return kp, kp, 1
    kp = _round_up(k, K_TILE_MAX)
    return kp, K_TILE_MAX, kp // K_TILE_MAX


# ---------------------------------------------------------------------------
# Conv GEMM kernel: out = relu(x @ w)   (single K block, no bias)
# Grid = (n_m "parallel",)
# ---------------------------------------------------------------------------
def _conv_gemm_relu_kernel(x_ref, w_ref, o_ref):
    o_ref[...] = jnp.maximum(
        jnp.dot(x_ref[...], w_ref[...], preferred_element_type=jnp.float32),
        0.0)


def conv_gemm_relu(col, w_packed, cout):
    """relu(col @ w).  col:(M,K) bf16, w_packed:(Kp,Np) bf16 -> (M,cout) f32."""
    M, K = col.shape
    Kp, Np = w_packed.shape
    assert Kp >= K and Kp % 128 == 0
    tm, n_m = _choose_m_tiling(M)
    Mp = tm * n_m

    xp = col.astype(MXU_DTYPE)
    if (Mp, Kp) != (M, K):
        xp = jnp.pad(xp, ((0, Mp - M), (0, Kp - K)))

    out = pl.pallas_call(
        _conv_gemm_relu_kernel,
        out_shape=jax.ShapeDtypeStruct((Mp, Np), jnp.float32),
        grid=(n_m,),
        in_specs=[
            pl.BlockSpec((tm, Kp), lambda m: (m, 0)),
            pl.BlockSpec((Kp, Np), lambda m: (0, 0)),
        ],
        out_specs=pl.BlockSpec((tm, Np), lambda m: (m, 0)),
        compiler_params=pltpu.CompilerParams(
            dimension_semantics=("parallel",)),
    )(xp, w_packed)
    return out[:M, :cout]


# ---------------------------------------------------------------------------
# Fused FC head: out = relu(feat @ W1 + b1) @ W2 + b2 in ONE kernel.
# Grid = (n_m "parallel", n_k "arbitrary"); fc1 accumulates in an f32 VMEM
# scratch; the last K step runs bias+ReLU and the small fc2 matmul.
# ---------------------------------------------------------------------------
def _fc_head_kernel(x_ref, w1_ref, b1_ref, w2_ref, b2_ref, o_ref, acc_ref, *,
                    n_k):
    k = pl.program_id(1)

    @pl.when(k == 0)
    def _():
        acc_ref[...] = jnp.zeros_like(acc_ref)

    acc_ref[...] += jnp.dot(x_ref[...], w1_ref[...],
                            preferred_element_type=jnp.float32)

    @pl.when(k == n_k - 1)
    def _():
        h = jnp.maximum(acc_ref[...] + b1_ref[...], 0.0)
        o_ref[...] = jnp.dot(h.astype(MXU_DTYPE), w2_ref[...],
                             preferred_element_type=jnp.float32) + b2_ref[...]


def fc_head(feat, w1p, b1p, w2p, b2p, num_classes):
    M, K = feat.shape
    Kp, tk, n_k = _choose_k_tiling(K)
    K1p, N1p = w1p.shape
    K2p, N2p = w2p.shape
    assert K1p == Kp and K2p == N1p
    assert b1p.shape == (1, N1p) and b2p.shape == (1, N2p)

    tm, n_m = _choose_m_tiling(M)
    Mp = tm * n_m

    xp = feat.astype(MXU_DTYPE)
    if (Mp, Kp) != (M, K):
        xp = jnp.pad(xp, ((0, Mp - M), (0, Kp - K)))

    out = pl.pallas_call(
        functools.partial(_fc_head_kernel, n_k=n_k),
        out_shape=jax.ShapeDtypeStruct((Mp, N2p), jnp.float32),
        grid=(n_m, n_k),
        in_specs=[
            pl.BlockSpec((tm, tk), lambda m, k: (m, k)),
            pl.BlockSpec((tk, N1p), lambda m, k: (k, 0)),
            pl.BlockSpec((1, N1p), lambda m, k: (0, 0)),
            pl.BlockSpec((N1p, N2p), lambda m, k: (0, 0)),
            pl.BlockSpec((1, N2p), lambda m, k: (0, 0)),
        ],
        out_specs=pl.BlockSpec((tm, N2p), lambda m, k: (m, 0)),
        scratch_shapes=[pltpu.VMEM((tm, N1p), jnp.float32)],
        compiler_params=pltpu.CompilerParams(
            dimension_semantics=("parallel", "arbitrary")),
    )(xp, w1p, b1p, w2p, b2p)
    return out[:M, :num_classes]


# ---------------------------------------------------------------------------
# im2col (XLA glue): NHWC input -> (N*Ho*Wo, kh*kw*C) bf16 column matrix.
# ---------------------------------------------------------------------------
def _im2col(x_nhwc, kh, kw, stride, pad):
    x_nhwc = x_nhwc.astype(MXU_DTYPE)
    N, H, W, C = x_nhwc.shape
    if pad:
        x_nhwc = jnp.pad(x_nhwc, ((0, 0), (pad, pad), (pad, pad), (0, 0)))
    Ho = (H + 2 * pad - kh) // stride + 1
    Wo = (W + 2 * pad - kw) // stride + 1
    cols = []
    for i in range(kh):
        for j in range(kw):
            patch = x_nhwc[:, i:i + (Ho - 1) * stride + 1:stride,
                              j:j + (Wo - 1) * stride + 1:stride, :]
            cols.append(patch)                       # (N, Ho, Wo, C)
    col = jnp.concatenate(cols, axis=-1).reshape(N * Ho * Wo, kh * kw * C)
    return col, (N, Ho, Wo)


# ---------------------------------------------------------------------------
# Model config / weight packing / forward.
# ---------------------------------------------------------------------------
CONV_LAYERS = [
    # name, cin, cout, stride, pad  (all 3x3, bias=False in the torch module)
    ('conv1', 20, 32, 1, 1),
    ('conv2', 32, 64, 2, 1),
    ('conv3', 64, 128, 1, 0),
    ('conv4', 128, 192, 1, 0),
    ('conv5', 192, 256, 1, 0),
]
FC1_IN = 256 * 5 * 4 * 2
FC1_OUT = 256


def pack_params(params, num_classes):
    """Pre-pack weights once: matmul layout, (Kp, Np) padding, bf16 cast."""
    packed = {}
    for name, cin, cout, _, _ in CONV_LAYERS:
        w = params[name]                                        # (cout, cin, 3, 3)
        K = 9 * cin
        Kp, _, n_k = _choose_k_tiling(K)
        assert n_k == 1                                         # convs: one K block
        Np = _round_up(cout, 128)
        # rows ordered (i, j, ci) to match im2col column order.
        w_mat = jnp.transpose(w, (2, 3, 1, 0)).reshape(K, cout)
        packed[name] = jnp.zeros((Kp, Np), MXU_DTYPE).at[:K, :cout].set(
            w_mat.astype(MXU_DTYPE))

    K1p, _, _ = _choose_k_tiling(FC1_IN)
    N1p = _round_up(FC1_OUT, 128)
    w1p = jnp.zeros((K1p, N1p), MXU_DTYPE).at[:FC1_IN, :FC1_OUT].set(
        params['fc1_w'].T.astype(MXU_DTYPE))
    b1p = jnp.zeros((1, N1p), jnp.float32).at[0, :FC1_OUT].set(
        params['fc1_b'].astype(jnp.float32))

    N2p = _round_up(num_classes, 128)
    w2p = jnp.zeros((N1p, N2p), MXU_DTYPE).at[:FC1_OUT, :num_classes].set(
        params['fc2_w'].T.astype(MXU_DTYPE))
    b2p = jnp.zeros((1, N2p), jnp.float32).at[0, :num_classes].set(
        params['fc2_b'].astype(jnp.float32))

    packed['fc1'] = (w1p, b1p)
    packed['fc2'] = (w2p, b2p)
    return packed


def cnn_xy_forward(x, packed, *, num_classes):
    # x: (N, 21, 20, 20) torch-layout input.
    # torch x-branch: permute(0,2,1,3) -> NCHW (N,20,21,20) == NHWC (N,21,20,20)
    xb = jnp.transpose(x, (0, 1, 3, 2))
    # torch y-branch: permute(0,3,2,1) -> NCHW (N,20,20,21) == NHWC (N,20,21,20)
    yb = jnp.transpose(x, (0, 2, 1, 3))

    ts = [xb, yb]
    for name, _, cout, stride, pad in CONV_LAYERS:
        cols, shapes = [], []
        for t in ts:
            col, shp = _im2col(t, 3, 3, stride, pad)
            cols.append(col)
            shapes.append(shp)
        # fuse both branches along M -> one Pallas matmul per layer.
        out = conv_gemm_relu(jnp.concatenate(cols, axis=0), packed[name], cout)
        new_ts, off = [], 0
        for (N, Ho, Wo) in shapes:
            m = N * Ho * Wo
            new_ts.append(out[off:off + m].reshape(N, Ho, Wo, cout))
            off += m
        ts = new_ts
    xb, yb = ts                                   # (N,5,4,256), (N,4,5,256)

    # torch .view(-1, 256*5*4) flattens NCHW with C slowest -> go back to NCHW.
    xf = jnp.transpose(xb, (0, 3, 1, 2)).reshape(xb.shape[0], -1)
    yf = jnp.transpose(yb, (0, 3, 1, 2)).reshape(yb.shape[0], -1)
    feat = jnp.concatenate([xf, yf], axis=1)      # (N, 10240)

    w1p, b1p = packed['fc1']
    w2p, b2p = packed['fc2']
    return fc_head(feat, w1p, b1p, w2p, b2p, num_classes)


# ---------------------------------------------------------------------------
# Deterministic parameter init (same shapes as the torch module's __init__).
# ---------------------------------------------------------------------------
def init_params(key, num_classes):
    shapes = {
        'conv1': (32, 20, 3, 3),
        'conv2': (64, 32, 3, 3),
        'conv3': (128, 64, 3, 3),
        'conv4': (192, 128, 3, 3),
        'conv5': (256, 192, 3, 3),
        'fc1_w': (256, FC1_IN),
        'fc2_w': (num_classes, 256),
    }
    params = {}
    keys = jax.random.split(key, len(shapes) + 2)
    for i, (name, shp) in enumerate(shapes.items()):
        fan_in = int(np.prod(shp[1:]))
        params[name] = (jax.random.normal(keys[i], shp, jnp.float32)
                        * (1.0 / np.sqrt(fan_in)))
    params['fc1_b'] = jax.random.normal(keys[-2], (256,), jnp.float32) * 0.01
    params['fc2_b'] = jax.random.normal(keys[-1], (num_classes,),
                                        jnp.float32) * 0.01
    return params


# ---------------------------------------------------------------------------
# Pure-JAX reference.  emulate_bf16=True rounds every MXU input to bf16 (exact
# in f32), matching the kernel's bf16-input / f32-accumulate arithmetic.
# ---------------------------------------------------------------------------
def reference_forward(x, params, *, emulate_bf16):
    def q(t):
        return t.astype(jnp.bfloat16).astype(jnp.float32) if emulate_bf16 else t

    def conv(t, w, stride, pad):
        w_hwio = jnp.transpose(w, (2, 3, 1, 0))
        o = jax.lax.conv_general_dilated(
            q(t), q(w_hwio), window_strides=(stride, stride),
            padding=[(pad, pad), (pad, pad)],
            dimension_numbers=('NHWC', 'HWIO', 'NHWC'),
            preferred_element_type=jnp.float32)
        return jnp.maximum(o, 0.0)

    def stack(t):
        for name, _, _, stride, pad in CONV_LAYERS:
            t = conv(t, params[name], stride, pad)
        return t

    xb = stack(jnp.transpose(x, (0, 1, 3, 2)))
    yb = stack(jnp.transpose(x, (0, 2, 1, 3)))
    xf = jnp.transpose(xb, (0, 3, 1, 2)).reshape(xb.shape[0], -1)
    yf = jnp.transpose(yb, (0, 3, 1, 2)).reshape(yb.shape[0], -1)
    feat = jnp.concatenate([xf, yf], axis=1)
    h = jnp.maximum(
        jnp.dot(q(feat), q(params['fc1_w'].T),
                preferred_element_type=jnp.float32) + params['fc1_b'], 0.0)
    return (jnp.dot(q(h), q(params['fc2_w'].T),
                    preferred_element_type=jnp.float32) + params['fc2_b'])


if __name__ == "__main__":
    key = jax.random.PRNGKey(0)
    k_x, k_p = jax.random.split(key)
    num_classes = 10
    batch = 2

    # Shape forced by the module's fc layer (256*5*4 features per branch).
    x = jax.random.normal(k_x, (batch, 21, 20, 20), jnp.float32)
    params = init_params(k_p, num_classes)
    packed = pack_params(params, num_classes)   # one-time packing, off hot path

    fwd = jax.jit(functools.partial(cnn_xy_forward, num_classes=num_classes))
    out = jax.block_until_ready(fwd(x, packed))
    assert out.shape == (batch, num_classes)

    # Structural correctness: reference using the same bf16-input / f32-acc
    # arithmetic must match tightly (only f32 reduction-order differences).
    ref_bf16 = reference_forward(x, params, emulate_bf16=True)
    err_bf16 = float(jnp.max(jnp.abs(out - ref_bf16)))
    assert err_bf16 < 5e-3, err_bf16

    # Precision sanity vs full-f32 reference (loose: bf16 MXU inputs).
    ref_f32 = reference_forward(x, params, emulate_bf16=False)
    err_f32 = float(jnp.max(jnp.abs(out - ref_f32)))
    assert err_f32 < 0.25, err_f32

    print("KERNEL_OK")
</pallas_src>

<mosaic_0001>
module attributes {stable_mosaic.version = 11 : i64} {
  func.func @_conv_gemm_relu_kernel(%arg0: i32, %arg1: memref<240x256xbf16, #tpu.memory_space<vmem>>, %arg2: memref<256x128xbf16, #tpu.memory_space<vmem>>, %arg3: memref<240x128xf32, #tpu.memory_space<vmem>>) attributes {dimension_semantics = [#tpu.dimension_semantics<parallel>], iteration_bounds = array<i64: 7>, scalar_prefetch = 0 : i64, scratch_operands = 0 : i64, tpu.core_type = #tpu.core_type<tc>, window_params = [{transform_indices = @transform_0, window_bounds = array<i64: 240, 256>}, {pipeline_mode = #tpu.pipeline_mode<synchronous>, transform_indices = @transform_1, window_bounds = array<i64: 256, 128>}, {transform_indices = @transform_2, window_bounds = array<i64: 240, 128>}]} {
    %c0 = arith.constant 0 : index
    %c0_0 = arith.constant 0 : index
    %0 = vector.load %arg1[%c0, %c0_0] : memref<240x256xbf16, #tpu.memory_space<vmem>>, vector<240x256xbf16>
    %c0_1 = arith.constant 0 : index
    %c0_2 = arith.constant 0 : index
    %1 = vector.load %arg2[%c0_1, %c0_2] : memref<256x128xbf16, #tpu.memory_space<vmem>>, vector<256x128xbf16>
    %cst = arith.constant dense<0.000000e+00> : vector<240x128xf32>
    %2 = tpu.matmul %0, %1, %cst {dimension_numbers = #tpu.dot_dimension_numbers<[1], [0], [0], [1], [0, 0, 1, 1], [], []>} : vector<240x256xbf16>, vector<256x128xbf16>, vector<240x128xf32> -> vector<240x128xf32>
    %cst_3 = arith.constant 0.000000e+00 : f32
    %3 = vector.broadcast %cst_3 : f32 to vector<240x128xf32>
    %4 = arith.maximumf %2, %3 : vector<240x128xf32>
    %c0_4 = arith.constant 0 : index
    %c0_5 = arith.constant 0 : index
    %5 = vector.load %arg3[%c0_4, %c0_5] : memref<240x128xf32, #tpu.memory_space<vmem>>, vector<240x128xf32>
    tpu.vector_store %arg3[%c0_4, %c0_5], %4 {strides = array<i32>} : memref<240x128xf32, #tpu.memory_space<vmem>>, vector<240x128xf32>,
    return
  }
  func.func @transform_0(%arg0: i32) -> (i32, i32) {
    %c0_i32 = arith.constant 0 : i32
    %c0_i32_0 = arith.constant 0 : i32
    return %arg0, %c0_i32 : i32, i32
  }
  func.func @transform_1(%arg0: i32) -> (i32, i32) {
    %c0_i32 = arith.constant 0 : i32
    %c0_i32_0 = arith.constant 0 : i32
    %c0_i32_1 = arith.constant 0 : i32
    return %c0_i32, %c0_i32_0 : i32, i32
  }
  func.func @transform_2(%arg0: i32) -> (i32, i32) {
    %c0_i32 = arith.constant 0 : i32
    %c0_i32_0 = arith.constant 0 : i32
    return %arg0, %c0_i32 : i32, i32
  }
}

module attributes {stable_mosaic.version = 11 : i64} {
  func.func @_conv_gemm_relu_kernel(%arg0: i32, %arg1: memref<224x384xbf16, #tpu.memory_space<vmem>>, %arg2: memref<384x128xbf16, #tpu.memory_space<vmem>>, %arg3: memref<224x128xf32, #tpu.memory_space<vmem>>) attributes {dimension_semantics = [#tpu.dimension_semantics<parallel>], iteration_bounds = array<i64: 2>, scalar_prefetch = 0 : i64, scratch_operands = 0 : i64, tpu.core_type = #tpu.core_type<tc>, window_params = [{transform_indices = @transform_0, window_bounds = array<i64: 224, 384>}, {pipeline_mode = #tpu.pipeline_mode<synchronous>, transform_indices = @transform_1, window_bounds = array<i64: 384, 128>}, {transform_indices = @transform_2, window_bounds = array<i64: 224, 128>}]} {
    %c0 = arith.constant 0 : index
    %c0_0 = arith.constant 0 : index
    %0 = vector.load %arg1[%c0, %c0_0] : memref<224x384xbf16, #tpu.memory_space<vmem>>, vector<224x384xbf16>
    %c0_1 = arith.constant 0 : index
    %c0_2 = arith.constant 0 : index
    %1 = vector.load %arg2[%c0_1, %c0_2] : memref<384x128xbf16, #tpu.memory_space<vmem>>, vector<384x128xbf16>
    %cst = arith.constant dense<0.000000e+00> : vector<224x128xf32>
    %2 = tpu.matmul %0, %1, %cst {dimension_numbers = #tpu.dot_dimension_numbers<[1], [0], [0], [1], [0, 0, 1, 1], [], []>} : vector<224x384xbf16>, vector<384x128xbf16>, vector<224x128xf32> -> vector<224x128xf32>
    %cst_3 = arith.constant 0.000000e+00 : f32
    %3 = vector.broadcast %cst_3 : f32 to vector<224x128xf32>
    %4 = arith.maximumf %2, %3 : vector<224x128xf32>
    %c0_4 = arith.constant 0 : index
    %c0_5 = arith.constant 0 : index
    %5 = vector.load %arg3[%c0_4, %c0_5] : memref<224x128xf32, #tpu.memory_space<vmem>>, vector<224x128xf32>
    tpu.vector_store %arg3[%c0_4, %c0_5], %4 {strides = array<i32>} : memref<224x128xf32, #tpu.memory_space<vmem>>, vector<224x128xf32>,
    return
  }
  func.func @transform_0(%arg0: i32) -> (i32, i32) {
    %c0_i32 = arith.constant 0 : i32
    %c0_i32_0 = arith.constant 0 : i32
    return %arg0, %c0_i32 : i32, i32
  }
  func.func @transform_1(%arg0: i32) -> (i32, i32) {
    %c0_i32 = arith.constant 0 : i32
    %c0_i32_0 = arith.constant 0 : i32
    %c0_i32_1 = arith.constant 0 : i32
    return %c0_i32, %c0_i32_0 : i32, i32
  }
  func.func @transform_2(%arg0: i32) -> (i32, i32) {
    %c0_i32 = arith.constant 0 : i32
    %c0_i32_0 = arith.constant 0 : i32
    return %arg0, %c0_i32 : i32, i32
  }
}

module attributes {stable_mosaic.version = 11 : i64} {
  func.func @_conv_gemm_relu_kernel(%arg0: i32, %arg1: memref<144x640xbf16, #tpu.memory_space<vmem>>, %arg2: memref<640x128xbf16, #tpu.memory_space<vmem>>, %arg3: memref<144x128xf32, #tpu.memory_space<vmem>>) attributes {dimension_semantics = [#tpu.dimension_semantics<parallel>], iteration_bounds = array<i64: 2>, scalar_prefetch = 0 : i64, scratch_operands = 0 : i64, tpu.core_type = #tpu.core_type<tc>, window_params = [{transform_indices = @transform_0, window_bounds = array<i64: 144, 640>}, {pipeline_mode = #tpu.pipeline_mode<synchronous>, transform_indices = @transform_1, window_bounds = array<i64: 640, 128>}, {transform_indices = @transform_2, window_bounds = array<i64: 144, 128>}]} {
    %c0 = arith.constant 0 : index
    %c0_0 = arith.constant 0 : index
    %0 = vector.load %arg1[%c0, %c0_0] : memref<144x640xbf16, #tpu.memory_space<vmem>>, vector<144x640xbf16>
    %c0_1 = arith.constant 0 : index
    %c0_2 = arith.constant 0 : index
    %1 = vector.load %arg2[%c0_1, %c0_2] : memref<640x128xbf16, #tpu.memory_space<vmem>>, vector<640x128xbf16>
    %cst = arith.constant dense<0.000000e+00> : vector<144x128xf32>
    %2 = tpu.matmul %0, %1, %cst {dimension_numbers = #tpu.dot_dimension_numbers<[1], [0], [0], [1], [0, 0, 1, 1], [], []>} : vector<144x640xbf16>, vector<640x128xbf16>, vector<144x128xf32> -> vector<144x128xf32>
    %cst_3 = arith.constant 0.000000e+00 : f32
    %3 = vector.broadcast %cst_3 : f32 to vector<144x128xf32>
    %4 = arith.maximumf %2, %3 : vector<144x128xf32>
    %c0_4 = arith.constant 0 : index
    %c0_5 = arith.constant 0 : index
    %5 = vector.load %arg3[%c0_4, %c0_5] : memref<144x128xf32, #tpu.memory_space<vmem>>, vector<144x128xf32>
    tpu.vector_store %arg3[%c0_4, %c0_5], %4 {strides = array<i32>} : memref<144x128xf32, #tpu.memory_space<vmem>>, vector<144x128xf32>,
    return
  }
  func.func @transform_0(%arg0: i32) -> (i32, i32) {
    %c0_i32 = arith.constant 0 : i32
    %c0_i32_0 = arith.constant 0 : i32
    return %arg0, %c0_i32 : i32, i32
  }
  func.func @transform_1(%arg0: i32) -> (i32, i32) {
    %c0_i32 = arith.constant 0 : i32
    %c0_i32_0 = arith.constant 0 : i32
    %c0_i32_1 = arith.constant 0 : i32
    return %c0_i32, %c0_i32_0 : i32, i32
  }
  func.func @transform_2(%arg0: i32) -> (i32, i32) {
    %c0_i32 = arith.constant 0 : i32
    %c0_i32_0 = arith.constant 0 : i32
    return %arg0, %c0_i32 : i32, i32
  }
}

module attributes {stable_mosaic.version = 11 : i64} {
  func.func @_conv_gemm_relu_kernel(%arg0: i32, %arg1: memref<176x1152xbf16, #tpu.memory_space<vmem>>, %arg2: memref<1152x256xbf16, #tpu.memory_space<vmem>>, %arg3: memref<176x256xf32, #tpu.memory_space<vmem>>) attributes {dimension_semantics = [#tpu.dimension_semantics<parallel>], iteration_bounds = array<i64: 1>, scalar_prefetch = 0 : i64, scratch_operands = 0 : i64, tpu.core_type = #tpu.core_type<tc>, window_params = [{transform_indices = @transform_0, window_bounds = array<i64: 176, 1152>}, {pipeline_mode = #tpu.pipeline_mode<synchronous>, transform_indices = @transform_1, window_bounds = array<i64: 1152, 256>}, {transform_indices = @transform_2, window_bounds = array<i64: 176, 256>}]} {
    %c0 = arith.constant 0 : index
    %c0_0 = arith.constant 0 : index
    %0 = vector.load %arg1[%c0, %c0_0] : memref<176x1152xbf16, #tpu.memory_space<vmem>>, vector<176x1152xbf16>
    %c0_1 = arith.constant 0 : index
    %c0_2 = arith.constant 0 : index
    %1 = vector.load %arg2[%c0_1, %c0_2] : memref<1152x256xbf16, #tpu.memory_space<vmem>>, vector<1152x256xbf16>
    %cst = arith.constant dense<0.000000e+00> : vector<176x256xf32>
    %2 = tpu.matmul %0, %1, %cst {dimension_numbers = #tpu.dot_dimension_numbers<[1], [0], [0], [1], [0, 0, 1, 1], [], []>} : vector<176x1152xbf16>, vector<1152x256xbf16>, vector<176x256xf32> -> vector<176x256xf32>
    %cst_3 = arith.constant 0.000000e+00 : f32
    %3 = vector.broadcast %cst_3 : f32 to vector<176x256xf32>
    %4 = arith.maximumf %2, %3 : vector<176x256xf32>
    %c0_4 = arith.constant 0 : index
    %c0_5 = arith.constant 0 : index
    %5 = vector.load %arg3[%c0_4, %c0_5] : memref<176x256xf32, #tpu.memory_space<vmem>>, vector<176x256xf32>
    tpu.vector_store %arg3[%c0_4, %c0_5], %4 {strides = array<i32>} : memref<176x256xf32, #tpu.memory_space<vmem>>, vector<176x256xf32>,
    return
  }
  func.func @transform_0(%arg0: i32) -> (i32, i32) {
    %c0_i32 = arith.constant 0 : i32
    %c0_i32_0 = arith.constant 0 : i32
    return %arg0, %c0_i32 : i32, i32
  }
  func.func @transform_1(%arg0: i32) -> (i32, i32) {
    %c0_i32 = arith.constant 0 : i32
    %c0_i32_0 = arith.constant 0 : i32
    %c0_i32_1 = arith.constant 0 : i32
    return %c0_i32, %c0_i32_0 : i32, i32
  }
  func.func @transform_2(%arg0: i32) -> (i32, i32) {
    %c0_i32 = arith.constant 0 : i32
    %c0_i32_0 = arith.constant 0 : i32
    return %arg0, %c0_i32 : i32, i32
  }
}

module attributes {stable_mosaic.version = 11 : i64} {
  func.func @_conv_gemm_relu_kernel(%arg0: i32, %arg1: memref<80x1792xbf16, #tpu.memory_space<vmem>>, %arg2: memref<1792x256xbf16, #tpu.memory_space<vmem>>, %arg3: memref<80x256xf32, #tpu.memory_space<vmem>>) attributes {dimension_semantics = [#tpu.dimension_semantics<parallel>], iteration_bounds = array<i64: 1>, scalar_prefetch = 0 : i64, scratch_operands = 0 : i64, tpu.core_type = #tpu.core_type<tc>, window_params = [{transform_indices = @transform_0, window_bounds = array<i64: 80, 1792>}, {pipeline_mode = #tpu.pipeline_mode<synchronous>, transform_indices = @transform_1, window_bounds = array<i64: 1792, 256>}, {transform_indices = @transform_2, window_bounds = array<i64: 80, 256>}]} {
    %c0 = arith.constant 0 : index
    %c0_0 = arith.constant 0 : index
    %0 = vector.load %arg1[%c0, %c0_0] : memref<80x1792xbf16, #tpu.memory_space<vmem>>, vector<80x1792xbf16>
    %c0_1 = arith.constant 0 : index
    %c0_2 = arith.constant 0 : index
    %1 = vector.load %arg2[%c0_1, %c0_2] : memref<1792x256xbf16, #tpu.memory_space<vmem>>, vector<1792x256xbf16>
    %cst = arith.constant dense<0.000000e+00> : vector<80x256xf32>
    %2 = tpu.matmul %0, %1, %cst {dimension_numbers = #tpu.dot_dimension_numbers<[1], [0], [0], [1], [0, 0, 1, 1], [], []>} : vector<80x1792xbf16>, vector<1792x256xbf16>, vector<80x256xf32> -> vector<80x256xf32>
    %cst_3 = arith.constant 0.000000e+00 : f32
    %3 = vector.broadcast %cst_3 : f32 to vector<80x256xf32>
    %4 = arith.maximumf %2, %3 : vector<80x256xf32>
    %c0_4 = arith.constant 0 : index
    %c0_5 = arith.constant 0 : index
    %5 = vector.load %arg3[%c0_4, %c0_5] : memref<80x256xf32, #tpu.memory_space<vmem>>, vector<80x256xf32>
    tpu.vector_store %arg3[%c0_4, %c0_5], %4 {strides = array<i32>} : memref<80x256xf32, #tpu.memory_space<vmem>>, vector<80x256xf32>,
    return
  }
  func.func @transform_0(%arg0: i32) -> (i32, i32) {
    %c0_i32 = arith.constant 0 : i32
    %c0_i32_0 = arith.constant 0 : i32
    return %arg0, %c0_i32 : i32, i32
  }
  func.func @transform_1(%arg0: i32) -> (i32, i32) {
    %c0_i32 = arith.constant 0 : i32
    %c0_i32_0 = arith.constant 0 : i32
    %c0_i32_1 = arith.constant 0 : i32
    return %c0_i32, %c0_i32_0 : i32, i32
  }
  func.func @transform_2(%arg0: i32) -> (i32, i32) {
    %c0_i32 = arith.constant 0 : i32
    %c0_i32_0 = arith.constant 0 : i32
    return %arg0, %c0_i32 : i32, i32
  }
}

module attributes {stable_mosaic.version = 11 : i64} {
  func.func @_fc_head_kernel(%arg0: i32, %arg1: i32, %arg2: memref<16x2048xbf16, #tpu.memory_space<vmem>>, %arg3: memref<2048x256xbf16, #tpu.memory_space<vmem>>, %arg4: memref<1x256xf32, #tpu.memory_space<vmem>>, %arg5: memref<256x128xbf16, #tpu.memory_space<vmem>>, %arg6: memref<1x128xf32, #tpu.memory_space<vmem>>, %arg7: memref<16x128xf32, #tpu.memory_space<vmem>>, %arg8: memref<16x256xf32, #tpu.memory_space<vmem>>) attributes {dimension_semantics = [#tpu.dimension_semantics<parallel>, #tpu.dimension_semantics<arbitrary>], iteration_bounds = array<i64: 1, 5>, scalar_prefetch = 0 : i64, scratch_operands = 1 : i64, tpu.core_type = #tpu.core_type<tc>, window_params = [{transform_indices = @transform_0, window_bounds = array<i64: 16, 2048>}, {transform_indices = @transform_1, window_bounds = array<i64: 2048, 256>}, {pipeline_mode = #tpu.pipeline_mode<synchronous>, transform_indices = @transform_2, window_bounds = array<i64: 1, 256>}, {pipeline_mode = #tpu.pipeline_mode<synchronous>, transform_indices = @transform_3, window_bounds = array<i64: 256, 128>}, {pipeline_mode = #tpu.pipeline_mode<synchronous>, transform_indices = @transform_4, window_bounds = array<i64: 1, 128>}, {transform_indices = @transform_5, window_bounds = array<i64: 16, 128>}]} {
    %c0_i32 = arith.constant 0 : i32
    %0 = arith.cmpi eq, %arg1, %c0_i32 : i32
    %1 = arith.extui %0 : i1 to i32
    %c0_i32_0 = arith.constant 0 : i32
    %2 = arith.cmpi ne, %1, %c0_i32_0 : i32
    scf.if %2 {
      %cst_9 = arith.constant 0.000000e+00 : f32
      %12 = vector.broadcast %cst_9 : f32 to vector<16x256xf32>
      %c0_10 = arith.constant 0 : index
      %c0_11 = arith.constant 0 : index
      %13 = vector.load %arg8[%c0_10, %c0_11] : memref<16x256xf32, #tpu.memory_space<vmem>>, vector<16x256xf32>
      tpu.vector_store %arg8[%c0_10, %c0_11], %12 {strides = array<i32>} : memref<16x256xf32, #tpu.memory_space<vmem>>, vector<16x256xf32>,
    } else {
    }
    %c0 = arith.constant 0 : index
    %c0_1 = arith.constant 0 : index
    %3 = vector.load %arg8[%c0, %c0_1] : memref<16x256xf32, #tpu.memory_space<vmem>>, vector<16x256xf32>
    %c0_2 = arith.constant 0 : index
    %c0_3 = arith.constant 0 : index
    %4 = vector.load %arg2[%c0_2, %c0_3] : memref<16x2048xbf16, #tpu.memory_space<vmem>>, vector<16x2048xbf16>
    %c0_4 = arith.constant 0 : index
    %c0_5 = arith.constant 0 : index
    %5 = vector.load %arg3[%c0_4, %c0_5] : memref<2048x256xbf16, #tpu.memory_space<vmem>>, vector<2048x256xbf16>
    %cst = arith.constant dense<0.000000e+00> : vector<16x256xf32>
    %6 = tpu.matmul %4, %5, %cst {dimension_numbers = #tpu.dot_dimension_numbers<[1], [0], [0], [1], [0, 0, 1, 1], [], []>} : vector<16x2048xbf16>, vector<2048x256xbf16>, vector<16x256xf32> -> vector<16x256xf32>
    %7 = arith.addf %3, %6 : vector<16x256xf32>
    %c0_6 = arith.constant 0 : index
    %c0_7 = arith.constant 0 : index
    %8 = vector.load %arg8[%c0_6, %c0_7] : memref<16x256xf32, #tpu.memory_space<vmem>>, vector<16x256xf32>
    tpu.vector_store %arg8[%c0_6, %c0_7], %7 {strides = array<i32>} : memref<16x256xf32, #tpu.memory_space<vmem>>, vector<16x256xf32>,
    %c4_i32 = arith.constant 4 : i32
    %9 = arith.cmpi eq, %arg1, %c4_i32 : i32
    %10 = arith.extui %9 : i1 to i32
    %c0_i32_8 = arith.constant 0 : i32
    %11 = arith.cmpi ne, %10, %c0_i32_8 : i32
    scf.if %11 {
      %c0_9 = arith.constant 0 : index
      %c0_10 = arith.constant 0 : index
      %12 = vector.load %arg8[%c0_9, %c0_10] : memref<16x256xf32, #tpu.memory_space<vmem>>, vector<16x256xf32>
      %c0_11 = arith.constant 0 : index
      %c0_12 = arith.constant 0 : index
      %13 = vector.load %arg4[%c0_11, %c0_12] : memref<1x256xf32, #tpu.memory_space<vmem>>, vector<1x256xf32>
      %14 = vector.broadcast %13 : vector<1x256xf32> to vector<16x256xf32>
      %15 = arith.addf %12, %14 : vector<16x256xf32>
      %cst_13 = arith.constant 0.000000e+00 : f32
      %16 = vector.broadcast %cst_13 : f32 to vector<16x256xf32>
      %17 = arith.maximumf %15, %16 : vector<16x256xf32>
      %18 = arith.truncf %17 : vector<16x256xf32> to vector<16x256xbf16>
      %c0_14 = arith.constant 0 : index
      %c0_15 = arith.constant 0 : index
      %19 = vector.load %arg5[%c0_14, %c0_15] : memref<256x128xbf16, #tpu.memory_space<vmem>>, vector<256x128xbf16>
      %cst_16 = arith.constant dense<0.000000e+00> : vector<16x128xf32>
      %20 = tpu.matmul %18, %19, %cst_16 {dimension_numbers = #tpu.dot_dimension_numbers<[1], [0], [0], [1], [0, 0, 1, 1], [], []>} : vector<16x256xbf16>, vector<256x128xbf16>, vector<16x128xf32> -> vector<16x128xf32>
      %c0_17 = arith.constant 0 : index
      %c0_18 = arith.constant 0 : index
      %21 = vector.load %arg6[%c0_17, %c0_18] : memref<1x128xf32, #tpu.memory_space<vmem>>, vector<1x128xf32>
      %22 = vector.broadcast %21 : vector<1x128xf32> to vector<16x128xf32>
      %23 = arith.addf %20, %22 : vector<16x128xf32>
      %c0_19 = arith.constant 0 : index
      %c0_20 = arith.constant 0 : index
      %24 = vector.load %arg7[%c0_19, %c0_20] : memref<16x128xf32, #tpu.memory_space<vmem>>, vector<16x128xf32>
      tpu.vector_store %arg7[%c0_19, %c0_20], %23 {strides = array<i32>} : memref<16x128xf32, #tpu.memory_space<vmem>>, vector<16x128xf32>,
    } else {
    }
    return
  }
  func.func @transform_0(%arg0: i32, %arg1: i32) -> (i32, i32) {
    %c0_i32 = arith.constant 0 : i32
    return %arg0, %arg1 : i32, i32
  }
  func.func @transform_1(%arg0: i32, %arg1: i32) -> (i32, i32) {
    %c0_i32 = arith.constant 0 : i32
    %c0_i32_0 = arith.constant 0 : i32
    return %arg1, %c0_i32 : i32, i32
  }
  func.func @transform_2(%arg0: i32, %arg1: i32) -> (i32, i32) {
    %c0_i32 = arith.constant 0 : i32
    %c0_i32_0 = arith.constant 0 : i32
    %c0_i32_1 = arith.constant 0 : i32
    return %c0_i32, %c0_i32_0 : i32, i32
  }
  func.func @transform_3(%arg0: i32, %arg1: i32) -> (i32, i32) {
    %c0_i32 = arith.constant 0 : i32
    %c0_i32_0 = arith.constant 0 : i32
    %c0_i32_1 = arith.constant 0 : i32
    return %c0_i32, %c0_i32_0 : i32, i32
  }
  func.func @transform_4(%arg0: i32, %arg1: i32) -> (i32, i32) {
    %c0_i32 = arith.constant 0 : i32
    %c0_i32_0 = arith.constant 0 : i32
    %c0_i32_1 = arith.constant 0 : i32
    return %c0_i32, %c0_i32_0 : i32, i32
  }
  func.func @transform_5(%arg0: i32, %arg1: i32) -> (i32, i32) {
    %c0_i32 = arith.constant 0 : i32
    %c0_i32_0 = arith.constant 0 : i32
    return %arg0, %c0_i32 : i32, i32
  }
}

</mosaic_0001>

<llo_original>
// kernel: cnn_xy_forward.6
$region0: #{cnn_xy_forward.6}
  #allocation0 [shape = 'u32[]', space=smem, size = 0x4, offset = 0x4, fixed_abs, tag = 'smem constant byte address 0x4 - core index']
  #allocation1 [shape = 'u32[144,128]{1,0:T(1,128)}', space=vmem, size = 0x12000, scoped, tag = 'internal scratch']
  %s0 = inlined_call_operand.vmem [shape: bf16[1680,256], index: 0, kind: input, shape index: {}]
  %s1 = inlined_call_operand.vmem [shape: bf16[256,128], index: 1, kind: input, shape index: {}]
  %s2 = inlined_call_operand.vmem [shape: f32[1680,128], index: 2, kind: output, shape index: {}]
  %s3 = sld [smem:[#allocation0]]
  $region41: #{cnn_xy_forward.6} parent=0
    _
  %s5 = ssub.s32 1, %s3
  %s6 = scalar_select 0, %s5, %s3
  loop: start=0, step=1, limit=9
  $region2: #{cnn_xy_forward.6} parent=0 // loop_pre_header
    _
  $region3: #{cnn_xy_forward.6} parent=0 // loop_header
    %s8 = sphi 0, %s12
    %p9 = scmp.ge.s32.totalorder %s8, 9
    %s18 = sphi 0, %s20
    %s21 = sphi 0, %s18
    %s22 = sphi 0, %s21
    %s38 = sphi 0, %s22
    %s42 = sphi 0, %s42
    %s44 = sphi 0, %s42
    %s45 = sphi 0, %s44
    %s59 = sphi 0, %s45
    %s65 = sphi 0, %s67
    %s68 = sphi 0, %s65
    %s69 = sphi 0, %s68
    %s85 = sphi 0, %s69
  $region4: #{cnn_xy_forward.6} parent=0 // loop_header_branch
    %11 = sbr.rel (%p9) target = $region8
  $region5: #{cnn_xy_forward.6} parent=0 // loop_body
    %s13 = ssub.s32 %s8, 1
    %s14 = ssub.s32 %s8, 2
    %s15 = sadd.s32 %s8, 1
    %s16 = ssub.s32 %s8, %s15
    %p17 = scmp.eq.s32.totalorder %s16, 0
    %s19 = sadd.s32 %s18, 1
    %s20 = scalar_select %p17, %s18, %s19
    %p23 = pneg %p17
    %p24 = scmp.eq.s32.totalorder %s8, 6
    %p25 = por %p23, %p24
    %p26 = scmp.ne.s32.totalorder %s18, %s21
    %p27 = scmp.eq.s32.totalorder %s8, 0
    %p28 = por %p26, %p27
    %p29 = scmp.ne.s32.totalorder %s18, %s21
    %p30 = scmp.eq.s32.totalorder %s13, 6
    %p31 = por %p29, %p30
    %p32 = scmp.ne.s32.totalorder %s21, %s22
    %p33 = scmp.eq.s32.totalorder %s13, 0
    %p34 = por %p32, %p33
    %p35 = scmp.ne.s32.totalorder %s21, %s22
    %p36 = scmp.eq.s32.totalorder %s14, 6
    %p37 = por %p35, %p36
    %p39 = scmp.ne.s32.totalorder %s22, %s38
    %p40 = scmp.eq.s32.totalorder %s14, 0
    %p41 = por %p39, %p40
    %s43 = sadd.s32 %s42, 1
    %p46 = scmp.eq.s32.totalorder %s8, 6
    %p47 = scmp.ne.s32.totalorder %s42, %s44
    %p48 = scmp.eq.s32.totalorder %s8, 0
    %p49 = por %p47, %p48
    %p50 = scmp.ne.s32.totalorder %s42, %s44
    %p51 = scmp.eq.s32.totalorder %s13, 6
    %p52 = por %p50, %p51
    %p53 = scmp.ne.s32.totalorder %s44, %s45
    %p54 = scmp.eq.s32.totalorder %s13, 0
    %p55 = por %p53, %p54
    %p56 = scmp.ne.s32.totalorder %s44, %s45
    %p57 = scmp.eq.s32.totalorder %s14, 6
    %p58 = por %p56, %p57
    %p60 = scmp.ne.s32.totalorder %s45, %s59
    %p61 = scmp.eq.s32.totalorder %s14, 0
    %p62 = por %p60, %p61
    %s63 = ssub.s32 %s8, %s15
    %p64 = scmp.eq.s32.totalorder %s63, 0
    %s66 = sadd.s32 %s65, 1
    %s67 = scalar_select %p64, %s65, %s66
    %p70 = pneg %p64
    %p71 = scmp.eq.s32.totalorder %s8, 6
    %p72 = por %p70, %p71
    %p73 = scmp.ne.s32.totalorder %s65, %s68
    %p74 = scmp.eq.s32.totalorder %s8, 0
    %p75 = por %p73, %p74
    %p76 = scmp.ne.s32.totalorder %s65, %s68
    %p77 = scmp.eq.s32.totalorder %s13, 6
    %p78 = por %p76, %p77
    %p79 = scmp.ne.s32.totalorder %s68, %s69
    %p80 = scmp.eq.s32.totalorder %s13, 0
    %p81 = por %p79, %p80
    %p82 = scmp.ne.s32.totalorder %s68, %s69
    %p83 = scmp.eq.s32.totalorder %s14, 6
    %p84 = por %p82, %p83
    %p86 = scmp.ne.s32.totalorder %s69, %s85
    %p87 = scmp.eq.s32.totalorder %s14, 0
    %p88 = por %p86, %p87
    %p89 = scmp.le.s32.totalorder 1, %s8
    %p90 = scmp.lt.s32.totalorder %s8, 8
    %p91 = pnand %p89, %p90
    %p92 = pneg %p91
    // Predicated region
    $region9: #{cnn_xy_forward.6} parent=5 // pred_check
      _
    $region10: #{cnn_xy_forward.6} parent=5 // pred_check_branch
      %94 = sbr.rel (%p91) target = $region12
    $region11: #{cnn_xy_forward.6} parent=5 // pred_region
      %s95 = ssub.s32 %s8, 1
      // Predicated region
      $region13: #{cnn_xy_forward.6} parent=11 // pred_check
        %p96 = pneg %p55
      $region14: #{cnn_xy_forward.6} parent=11 // pred_check_branch
        %98 = sbr.rel (%p96) target = $region16
      $region15: #{cnn_xy_forward.6} parent=11 // pred_region
        _
      $region16: #{cnn_xy_forward.6} parent=11 // pred_fallthru
        _
    $region12: #{cnn_xy_forward.6} parent=5 // pred_fallthru
      _
    %p99 = scmp.lt.s32.totalorder %s8, 7
    // Predicated region
    $region17: #{cnn_xy_forward.6} parent=5 // pred_check
      %p100 = pneg %p99
    $region18: #{cnn_xy_forward.6} parent=5 // pred_check_branch
      %102 = sbr.rel (%p100) target = $region20
    $region19: #{cnn_xy_forward.6} parent=5 // pred_region
      // Predicated region
      $region21: #{cnn_xy_forward.6} parent=19 // pred_check
        %p103 = pneg %p28
      $region22: #{cnn_xy_forward.6} parent=19 // pred_check_branch
        %105 = sbr.rel (%p103) target = $region24
      $region23: #{cnn_xy_forward.6} parent=19 // pred_region
        %s106 = smul.u32 30, %s8
        %p107 = scmp.lt.s32.totalorder %s106, 209
        %s108 = scalar_select %p107, %s106, 209
        %s109 = smul.addr %s108, 2
        %s110 = smul.addr %s109, 4
        %s111 = scalar_lea.vmem %s0, %s110
        %s112 = smul.u32 30, %s8
      $region24: #{cnn_xy_forward.6} parent=19 // pred_fallthru
        _
    $region20: #{cnn_xy_forward.6} parent=5 // pred_fallthru
      _
    %p113 = scmp.le.s32.totalorder 1, %s8
    %p114 = scmp.lt.s32.totalorder %s8, 8
    %p115 = pnand %p113, %p114
    %p116 = pneg %p115
    // Predicated region
    $region25: #{cnn_xy_forward.6} parent=5 // pred_check
      _
    $region26: #{cnn_xy_forward.6} parent=5 // pred_check_branch
      %118 = sbr.rel (%p115) target = $region28
    $region27: #{cnn_xy_forward.6} parent=5 // pred_region
      %s119 = ssub.s32 %s8, 1
      %s120 = smul.u32 30, %s13
      %p121 = scmp.lt.s32.totalorder %s120, 209
      %s122 = scalar_select %p121, %s120, 209
      %s123 = smul.addr %s122, 2
      %s124 = smul.addr %s123, 4
      %s125 = scalar_lea.vmem %s0, %s124
      %p126 = pneg %p34
      %p127 = pneg %p31
      %p128 = pneg %p55
      %p129 = pneg %p52
      %p130 = pneg %p81
      %p131 = pneg %p78
      %s132 = smul.u32 30, %s13
      %p133 = scmp.lt.s32.totalorder %s132, 209
      %s134 = scalar_select %p133, %s132, 209
      %s135 = smul.addr %s134, 8
      %s136 = scalar_lea.vmem %s2, %s135
      %s137 = smul.u32 30, %s13
      %p138 = scmp.lt.s32.totalorder %s137, 209
      %s139 = scalar_select %p138, %s137, 209
      %s140 = smul.addr %s139, 2
      %s141 = smul.addr %s140, 4
      %s142 = scalar_lea.vmem %s0, %s141
      %s143 = smul.u32 30, %s13
      %s144 = smul.u32 30, %s13
      %p145 = scmp.lt.s32.totalorder %s144, 209
      %s146 = scalar_select %p145, %s144, 209
      %s147 = smul.addr %s146, 8
      %s148 = scalar_lea.vmem %s2, %s147
      %s149 = smul.u32 30, %s13
      %v151 = vld [vmem:[%s142] sm:$0xff]
      %v152 = vld [vmem:[%s142 + $0x8] sm:$0xff]
      %v153 = vld [vmem:[%s142 + $0x10] sm:$0xff]
      %v154 = vld [vmem:[%s142 + $0x18] sm:$0xff]
      %v155 = vld [vmem:[%s142 + $0x20] sm:$0xff]
      %v156 = vld [vmem:[%s142 + $0x28] sm:$0xff]
      %v157 = vld [vmem:[%s142 + $0x30] sm:$0xff]
      %v158 = vld [vmem:[%s142 + $0x38] sm:$0xff]
      %v159 = vld [vmem:[%s142 + $0x40] sm:$0xff]
      %v160 = vld [vmem:[%s142 + $0x48] sm:$0xff]
      %v161 = vld [vmem:[%s142 + $0x50] sm:$0xff]
      %v162 = vld [vmem:[%s142 + $0x58] sm:$0xff]
      %v163 = vld [vmem:[%s142 + $0x60] sm:$0xff]
      %v164 = vld [vmem:[%s142 + $0x68] sm:$0xff]
      %v165 = vld [vmem:[%s142 + $0x70] sm:$0xff]
      %v166 = vld [vmem:[%s142 + $0x78] sm:$0xff]
      %v167 = vld [vmem:[%s142 + $0x80] sm:$0xff]
      %v168 = vld [vmem:[%s142 + $0x88] sm:$0xff]
      %v169 = vld [vmem:[%s142 + $0x90] sm:$0xff]
      %v170 = vld [vmem:[%s142 + $0x98] sm:$0xff]
      %v171 = vld [vmem:[%s142 + $0xa0] sm:$0xff]
      %v172 = vld [vmem:[%s142 + $0xa8] sm:$0xff]
      %v173 = vld [vmem:[%s142 + $0xb0] sm:$0xff]
      %v174 = vld [vmem:[%s142 + $0xb8] sm:$0xff]
      %v175 = vld [vmem:[%s142 + $0xc0] sm:$0xff]
      %v176 = vld [vmem:[%s142 + $0xc8] sm:$0xff]
      %v177 = vld [vmem:[%s142 + $0xd0] sm:$0xff]
      %v178 = vld [vmem:[%s142 + $0xd8] sm:$0xff]
      %v179 = vld [vmem:[%s142 + $0xe0] sm:$0xff]
      %v180 = vld [vmem:[%s142 + $0xe8] sm:$0xff]
      %v181 = vld [vmem:[%s1] sm:$0xf]
      %v182 = vld [vmem:[%s1 + $0x4] sm:$0xf]
      %v183 = vld [vmem:[%s1 + $0x8] sm:$0xf]
      %v184 = vld [vmem:[%s1 + $0xc] sm:$0xf]
      %v185 = vld [vmem:[%s1 + $0x10] sm:$0xf]
      %v186 = vld [vmem:[%s1 + $0x14] sm:$0xf]
      %v187 = vld [vmem:[%s1 + $0x18] sm:$0xf]
      %v188 = vld [vmem:[%s1 + $0x1c] sm:$0xf]
      %v189 = vld [vmem:[%s1 + $0x20] sm:$0xf]
      %v190 = vld [vmem:[%s1 + $0x24] sm:$0xf]
      %v191 = vld [vmem:[%s1 + $0x28] sm:$0xf]
      %v192 = vld [vmem:[%s1 + $0x2c] sm:$0xf]
      %v193 = vld [vmem:[%s1 + $0x30] sm:$0xf]
      %v194 = vld [vmem:[%s1 + $0x34] sm:$0xf]
      %v195 = vld [vmem:[%s1 + $0x38] sm:$0xf]
      %v196 = vld [vmem:[%s1 + $0x3c] sm:$0xf]
      %v197 = vld [vmem:[%s1 + $0x40] sm:$0xf]
      %v198 = vld [vmem:[%s1 + $0x44] sm:$0xf]
      %v199 = vld [vmem:[%s1 + $0x48] sm:$0xf]
      %v200 = vld [vmem:[%s1 + $0x4c] sm:$0xf]
      %v201 = vld [vmem:[%s1 + $0x50] sm:$0xf]
      %v202 = vld [vmem:[%s1 + $0x54] sm:$0xf]
      %v203 = vld [vmem:[%s1 + $0x58] sm:$0xf]
      %v204 = vld [vmem:[%s1 + $0x5c] sm:$0xf]
      %v205 = vld [vmem:[%s1 + $0x60] sm:$0xf]
      %v206 = vld [vmem:[%s1 + $0x64] sm:$0xf]
      %v207 = vld [vmem:[%s1 + $0x68] sm:$0xf]
      %v208 = vld [vmem:[%s1 + $0x6c] sm:$0xf]
      %v209 = vld [vmem:[%s1 + $0x70] sm:$0xf]
      %v210 = vld [vmem:[%s1 + $0x74] sm:$0xf]
      %v211 = vld [vmem:[%s1 + $0x78] sm:$0xf]
      %v212 = vld [vmem:[%s1 + $0x7c] sm:$0xf]
      %v243 = vunpack.c.l.b16 %v151
      %v244 = vunpack.c.h.b16 %v151
      %v245 = vunpack.c.l.b16 %v152
      %v246 = vunpack.c.h.b16 %v152
      %v247 = vunpack.c.l.b16 %v153
      %v248 = vunpack.c.h.b16 %v153
      %v249 = vunpack.c.l.b16 %v154
      %v250 = vunpack.c.h.b16 %v154
      %v251 = vunpack.c.l.b16 %v155
      %v252 = vunpack.c.h.b16 %v155
      %v253 = vunpack.c.l.b16 %v156
      %v254 = vunpack.c.h.b16 %v156
      %v255 = vunpack.c.l.b16 %v157
      %v256 = vunpack.c.h.b16 %v157
      %v257 = vunpack.c.l.b16 %v158
      %v258 = vunpack.c.h.b16 %v158
      %v259 = vunpack.c.l.b16 %v159
      %v260 = vunpack.c.h.b16 %v159
      %v261 = vunpack.c.l.b16 %v160
      %v262 = vunpack.c.h.b16 %v160
      %v263 = vunpack.c.l.b16 %v161
      %v264 = vunpack.c.h.b16 %v161
      %v265 = vunpack.c.l.b16 %v162
      %v266 = vunpack.c.h.b16 %v162
      %v267 = vunpack.c.l.b16 %v163
      %v268 = vunpack.c.h.b16 %v163
      %v269 = vunpack.c.l.b16 %v164
      %v270 = vunpack.c.h.b16 %v164
      %v271 = vunpack.c.l.b16 %v165
      %v272 = vunpack.c.h.b16 %v165
      %v273 = vunpack.c.l.b16 %v166
      %v274 = vunpack.c.h.b16 %v166
      %v275 = vunpack.c.l.b16 %v167
      %v276 = vunpack.c.h.b16 %v167
      %v277 = vunpack.c.l.b16 %v168
      %v278 = vunpack.c.h.b16 %v168
      %v279 = vunpack.c.l.b16 %v169
      %v280 = vunpack.c.h.b16 %v169
      %v281 = vunpack.c.l.b16 %v170
      %v282 = vunpack.c.h.b16 %v170
      %v283 = vunpack.c.l.b16 %v171
      %v284 = vunpack.c.h.b16 %v171
      %v285 = vunpack.c.l.b16 %v172
      %v286 = vunpack.c.h.b16 %v172
      %v287 = vunpack.c.l.b16 %v173
      %v288 = vunpack.c.h.b16 %v173
      %v289 = vunpack.c.l.b16 %v174
      %v290 = vunpack.c.h.b16 %v174
      %v291 = vunpack.c.l.b16 %v175
      %v292 = vunpack.c.h.b16 %v175
      %v293 = vunpack.c.l.b16 %v176
      %v294 = vunpack.c.h.b16 %v176
      %v295 = vunpack.c.l.b16 %v177
      %v296 = vunpack.c.h.b16 %v177
      %v297 = vunpack.c.l.b16 %v178
      %v298 = vunpack.c.h.b16 %v178
      %v299 = vunpack.c.l.b16 %v179
      %v300 = vunpack.c.h.b16 %v179
      %v301 = vunpack.c.l.b16 %v180
      %v302 = vunpack.c.h.b16 %v180
      %v303 = vpack.c.b16 %v245, %v243
      %v304 = vpack.c.b16 %v246, %v244
      %v305 = vpack.c.b16 %v249, %v247
      %v306 = vpack.c.b16 %v250, %v248
      %v307 = vpack.c.b16 %v253, %v251
      %v308 = vpack.c.b16 %v254, %v252
      %v309 = vpack.c.b16 %v257, %v255
      %v310 = vpack.c.b16 %v258, %v256
      %v311 = vpack.c.b16 %v261, %v259
      %v312 = vpack.c.b16 %v262, %v260
      %v313 = vpack.c.b16 %v265, %v263
      %v314 = vpack.c.b16 %v266, %v264
      %v315 = vpack.c.b16 %v269, %v267
      %v316 = vpack.c.b16 %v270, %v268
      %v317 = vpack.c.b16 %v273, %v271
      %v318 = vpack.c.b16 %v274, %v272
      %v319 = vpack.c.b16 %v277, %v275
      %v320 = vpack.c.b16 %v278, %v276
      %v321 = vpack.c.b16 %v281, %v279
      %v322 = vpack.c.b16 %v282, %v280
      %v323 = vpack.c.b16 %v285, %v283
      %v324 = vpack.c.b16 %v286, %v284
      %v325 = vpack.c.b16 %v289, %v287
      %v326 = vpack.c.b16 %v290, %v288
      %v327 = vpack.c.b16 %v293, %v291
      %v328 = vpack.c.b16 %v294, %v292
      %v329 = vpack.c.b16 %v297, %v295
      %v330 = vpack.c.b16 %v298, %v296
      %v331 = vpack.c.b16 %v301, %v299
      %v332 = vpack.c.b16 %v302, %v300
      %v395 = vunpack.c.l.b16 %v181
      %v396 = vunpack.c.l.b16 %v182
      %v397 = vunpack.c.l.b16 %v183
      %v398 = vunpack.c.l.b16 %v184
      %v399 = vunpack.c.l.b16 %v185
      %v400 = vunpack.c.l.b16 %v186
      %v401 = vunpack.c.l.b16 %v187
      %v402 = vunpack.c.l.b16 %v188
      %v403 = vunpack.c.l.b16 %v189
      %v404 = vunpack.c.l.b16 %v190
      %v405 = vunpack.c.l.b16 %v191
      %v406 = vunpack.c.l.b16 %v192
      %v407 = vunpack.c.l.b16 %v193
      %v408 = vunpack.c.l.b16 %v194
      %v409 = vunpack.c.l.b16 %v195
      %v410 = vunpack.c.l.b16 %v196
      %v411 = vunpack.c.l.b16 %v197
      %v412 = vunpack.c.l.b16 %v198
      %v413 = vunpack.c.l.b16 %v199
      %v414 = vunpack.c.l.b16 %v200
      %v415 = vunpack.c.l.b16 %v201
      %v416 = vunpack.c.l.b16 %v202
      %v417 = vunpack.c.l.b16 %v203
      %v418 = vunpack.c.l.b16 %v204
      %v419 = vunpack.c.l.b16 %v205
      %v420 = vunpack.c.l.b16 %v206
      %v421 = vunpack.c.l.b16 %v207
      %v422 = vunpack.c.l.b16 %v208
      %v423 = vunpack.c.l.b16 %v209
      %v424 = vunpack.c.l.b16 %v210
      %v425 = vunpack.c.l.b16 %v211
      %v426 = vunpack.c.l.b16 %v212
      %v427 = vpack.c.b16 %v396, %v395
      %v428 = vpack.c.b16 %v398, %v397
      %v429 = vpack.c.b16 %v400, %v399
      %v430 = vpack.c.b16 %v402, %v401
      %v431 = vpack.c.b16 %v404, %v403
      %v432 = vpack.c.b16 %v406, %v405
      %v433 = vpack.c.b16 %v408, %v407
      %v434 = vpack.c.b16 %v410, %v409
      %v435 = vpack.c.b16 %v412, %v411
      %v436 = vpack.c.b16 %v414, %v413
      %v437 = vpack.c.b16 %v416, %v415
      %v438 = vpack.c.b16 %v418, %v417
      %v439 = vpack.c.b16 %v420, %v419
      %v440 = vpack.c.b16 %v422, %v421
      %v441 = vpack.c.b16 %v424, %v423
      %v442 = vpack.c.b16 %v426, %v425
      %459 = vmatprep.subr.bf16.mxu0 0
      %460 = vmatpush1.bf16.msra.mxu0 %v427
      %461 = vmatprep.subr.bf16.mxu0 0
      %462 = vmatpush1.bf16.msra.mxu0 %v428
      %463 = vmatprep.subr.bf16.mxu0 0
      %464 = vmatpush1.bf16.msra.mxu0 %v429
      %465 = vmatprep.subr.bf16.mxu0 0
      %466 = vmatpush1.bf16.msra.mxu0 %v430
      %467 = vmatprep.subr.bf16.mxu0 0
      %468 = vmatpush1.bf16.msra.mxu0 %v431
      %469 = vmatprep.subr.bf16.mxu0 0
      %470 = vmatpush1.bf16.msra.mxu0 %v432
      %471 = vmatprep.subr.bf16.mxu0 0
      %472 = vmatpush1.bf16.msra.mxu0 %v433
      %473 = vmatprep.subr.bf16.mxu0 0
      %474 = vmatpush1.bf16.msra.mxu0 %v434
      %475 = vmatprep.subr.bf16.mxu0 0
      %476 = vmatpush1.bf16.msra.mxu0 %v435
      %477 = vmatprep.subr.bf16.mxu0 0
      %478 = vmatpush1.bf16.msra.mxu0 %v436
      %479 = vmatprep.subr.bf16.mxu0 0
      %480 = vmatpush1.bf16.msra.mxu0 %v437
      %481 = vmatprep.subr.bf16.mxu0 0
      %482 = vmatpush1.bf16.msra.mxu0 %v438
      %483 = vmatprep.subr.bf16.mxu0 0
      %484 = vmatpush1.bf16.msra.mxu0 %v439
      %485 = vmatprep.subr.bf16.mxu0 0
      %486 = vmatpush1.bf16.msra.mxu0 %v440
      %487 = vmatprep.subr.bf16.mxu0 0
      %488 = vmatpush1.bf16.msra.mxu0 %v441
      %489 = vmatprep.subr.bf16.mxu0 0
      %490 = vmatpush1.bf16.msra.mxu0 %v442
      %491 = vmatprep.mubr.bf16.mxu0 %v304
      %492 = vmatmul.mubr.bf16.gmra.mrb[0].mxu0 %v303
      %v493 = vpop.f32.mrb[0].mxu0
      %v494 = vadd.f32 0.0, %v493
      %v495 = vpop.f32.mrb[0].mxu0
      %v496 = vpop.f32.mrb[0].mxu0
      %v497 = vadd.f32 0.0, %v496
      %v498 = vpop.f32.mrb[0].mxu0
      %499 = vmatprep.mubr.bf16.mxu0 %v306
      %500 = vmatmul.mubr.bf16.gmra.mrb[0].mxu0 %v305
      %v501 = vpop.f32.mrb[0].mxu0
      %v502 = vadd.f32 0.0, %v501
      %v503 = vpop.f32.mrb[0].mxu0
      %v504 = vpop.f32.mrb[0].mxu0
      %v505 = vadd.f32 0.0, %v504
      %v506 = vpop.f32.mrb[0].mxu0
      %507 = vmatprep.mubr.bf16.mxu0 %v308
      %508 = vmatmul.mubr.bf16.gmra.mrb[0].mxu0 %v307
      %v509 = vpop.f32.mrb[0].mxu0
      %v510 = vadd.f32 0.0, %v509
      %v511 = vpop.f32.mrb[0].mxu0
      %v512 = vpop.f32.mrb[0].mxu0
      %v513 = vadd.f32 0.0, %v512
      %v514 = vpop.f32.mrb[0].mxu0
      %515 = vmatprep.mubr.bf16.mxu0 %v310
      %516 = vmatmul.mubr.bf16.gmra.mrb[0].mxu0 %v309
      %v517 = vpop.f32.mrb[0].mxu0
      %v518 = vadd.f32 0.0, %v517
      %v519 = vpop.f32.mrb[0].mxu0
      %v520 = vpop.f32.mrb[0].mxu0
      %v521 = vadd.f32 0.0, %v520
      %v522 = vpop.f32.mrb[0].mxu0
      %523 = vmatprep.mubr.bf16.mxu0 %v312
      %524 = vmatmul.mubr.bf16.gmra.mrb[0].mxu0 %v311
      %v525 = vpop.f32.mrb[0].mxu0
      %v526 = vadd.f32 0.0, %v525
      %v527 = vpop.f32.mrb[0].mxu0
      %v528 = vpop.f32.mrb[0].mxu0
      %v529 = vadd.f32 0.0, %v528
      %v530 = vpop.f32.mrb[0].mxu0
      %531 = vmatprep.mubr.bf16.mxu0 %v314
      %532 = vmatmul.mubr.bf16.gmra.mrb[0].mxu0 %v313
      %v533 = vpop.f32.mrb[0].mxu0
      %v534 = vadd.f32 0.0, %v533
      %v535 = vpop.f32.mrb[0].mxu0
      %v536 = vpop.f32.mrb[0].mxu0
      %v537 = vadd.f32 0.0, %v536
      %v538 = vpop.f32.mrb[0].mxu0
      %539 = vmatprep.mubr.bf16.mxu0 %v316
      %540 = vmatmul.mubr.bf16.gmra.mrb[0].mxu0 %v315
      %v541 = vpop.f32.mrb[0].mxu0
      %v542 = vadd.f32 0.0, %v541
      %v543 = vpop.f32.mrb[0].mxu0
      %v544 = vpop.f32.mrb[0].mxu0
      %v545 = vadd.f32 0.0, %v544
      %v546 = vpop.f32.mrb[0].mxu0
      %547 = vmatprep.mubr.bf16.mxu0 %v318
      %548 = vmatmul.mubr.bf16.gmra.mrb[0].mxu0 %v317
      %v549 = vpop.f32.mrb[0].mxu0
      %v550 = vadd.f32 0.0, %v549
      %v551 = vpop.f32.mrb[0].mxu0
      %v552 = vpop.f32.mrb[0].mxu0
      %v553 = vadd.f32 0.0, %v552
      %v554 = vpop.f32.mrb[0].mxu0
      %555 = vmatprep.mubr.bf16.mxu0 %v320
      %556 = vmatmul.mubr.bf16.gmra.mrb[0].mxu0 %v319
      %v557 = vpop.f32.mrb[0].mxu0
      %v558 = vadd.f32 0.0, %v557
      %v559 = vpop.f32.mrb[0].mxu0
      %v560 = vpop.f32.mrb[0].mxu0
      %v561 = vadd.f32 0.0, %v560
      %v562 = vpop.f32.mrb[0].mxu0
      %563 = vmatprep.mubr.bf16.mxu0 %v322
      %564 = vmatmul.mubr.bf16.gmra.mrb[0].mxu0 %v321
      %v565 = vpop.f32.mrb[0].mxu0
      %v566 = vadd.f32 0.0, %v565
      %v567 = vpop.f32.mrb[0].mxu0
      %v568 = vpop.f32.mrb[0].mxu0
      %v569 = vadd.f32 0.0, %v568
      %v570 = vpop.f32.mrb[0].mxu0
      %571 = vmatprep.mubr.bf16.mxu0 %v324
      %572 = vmatmul.mubr.bf16.gmra.mrb[0].mxu0 %v323
      %v573 = vpop.f32.mrb[0].mxu0
      %v574 = vadd.f32 0.0, %v573
      %v575 = vpop.f32.mrb[0].mxu0
      %v576 = vpop.f32.mrb[0].mxu0
      %v577 = vadd.f32 0.0, %v576
      %v578 = vpop.f32.mrb[0].mxu0
      %579 = vmatprep.mubr.bf16.mxu0 %v326
      %580 = vmatmul.mubr.bf16.gmra.mrb[0].mxu0 %v325
      %v581 = vpop.f32.mrb[0].mxu0
      %v582 = vadd.f32 0.0, %v581
      %v583 = vpop.f32.mrb[0].mxu0
      %v584 = vpop.f32.mrb[0].mxu0
      %v585 = vadd.f32 0.0, %v584
      %v586 = vpop.f32.mrb[0].mxu0
      %587 = vmatprep.mubr.bf16.mxu0 %v328
      %588 = vmatmul.mubr.bf16.gmra.mrb[0].mxu0 %v327
      %v589 = vpop.f32.mrb[0].mxu0
      %v590 = vadd.f32 0.0, %v589
      %v591 = vpop.f32.mrb[0].mxu0
      %v592 = vpop.f32.mrb[0].mxu0
      %v593 = vadd.f32 0.0, %v592
      %v594 = vpop.f32.mrb[0].mxu0
      %595 = vmatprep.mubr.bf16.mxu0 %v330
      %596 = vmatmul.mubr.bf16.gmra.mrb[0].mxu0 %v329
      %v597 = vpop.f32.mrb[0].mxu0
      %v598 = vadd.f32 0.0, %v597
      %v599 = vpop.f32.mrb[0].mxu0
      %v600 = vpop.f32.mrb[0].mxu0
      %v601 = vadd.f32 0.0, %v600
      %v602 = vpop.f32.mrb[0].mxu0
      %603 = vmatprep.mubr.bf16.mxu0 %v332
      %604 = vmatmul.mubr.bf16.gmra.mrb[0].mxu0 %v331
      %v605 = vpop.f32.mrb[0].mxu0
      %v606 = vadd.f32 0.0, %v605
      %v607 = vpop.f32.mrb[0].mxu0
      %v608 = vpop.f32.mrb[0].mxu0
      %v609 = vadd.f32 0.0, %v608
      %v610 = vpop.f32.mrb[0].mxu0
      %611 = vdwg.mxu0
      %v612 = vmax.f32 %v494, 0.0
      %v613 = vmax.f32 %v497, 0.0
      %v614 = vmax.f32 %v502, 0.0
      %v615 = vmax.f32 %v505, 0.0
      %v616 = vmax.f32 %v510, 0.0
      %v617 = vmax.f32 %v513, 0.0
      %v618 = vmax.f32 %v518, 0.0
      %v619 = vmax.f32 %v521, 0.0
      %v620 = vmax.f32 %v526, 0.0
      %v621 = vmax.f32 %v529, 0.0
      %v622 = vmax.f32 %v534, 0.0
      %v623 = vmax.f32 %v537, 0.0
      %v624 = vmax.f32 %v542, 0.0
      %v625 = vmax.f32 %v545, 0.0
      %v626 = vmax.f32 %v550, 0.0
      %v627 = vmax.f32 %v553, 0.0
      %v628 = vmax.f32 %v558, 0.0
      %v629 = vmax.f32 %v561, 0.0
      %v630 = vmax.f32 %v566, 0.0
      %v631 = vmax.f32 %v569, 0.0
      %v632 = vmax.f32 %v574, 0.0
      %v633 = vmax.f32 %v577, 0.0
      %v634 = vmax.f32 %v582, 0.0
      %v635 = vmax.f32 %v585, 0.0
      %v636 = vmax.f32 %v590, 0.0
      %v637 = vmax.f32 %v593, 0.0
      %v638 = vmax.f32 %v598, 0.0
      %v639 = vmax.f32 %v601, 0.0
      %v640 = vmax.f32 %v606, 0.0
      %v641 = vmax.f32 %v609, 0.0
      %642 = vst [vmem:[%s148] sm:$0xff] %v612
      %643 = vst [vmem:[%s148 + $0x8] sm:$0xff] %v613
      %644 = vst [vmem:[%s148 + $0x10] sm:$0xff] %v614
      %645 = vst [vmem:[%s148 + $0x18] sm:$0xff] %v615
      %646 = vst [vmem:[%s148 + $0x20] sm:$0xff] %v616
      %647 = vst [vmem:[%s148 + $0x28] sm:$0xff] %v617
      %648 = vst [vmem:[%s148 + $0x30] sm:$0xff] %v618
      %649 = vst [vmem:[%s148 + $0x38] sm:$0xff] %v619
      %650 = vst [vmem:[%s148 + $0x40] sm:$0xff] %v620
      %651 = vst [vmem:[%s148 + $0x48] sm:$0xff] %v621
      %652 = vst [vmem:[%s148 + $0x50] sm:$0xff] %v622
      %653 = vst [vmem:[%s148 + $0x58] sm:$0xff] %v623
      %654 = vst [vmem:[%s148 + $0x60] sm:$0xff] %v624
      %655 = vst [vmem:[%s148 + $0x68] sm:$0xff] %v625
      %656 = vst [vmem:[%s148 + $0x70] sm:$0xff] %v626
      %657 = vst [vmem:[%s148 + $0x78] sm:$0xff] %v627
      %658 = vst [vmem:[%s148 + $0x80] sm:$0xff] %v628
      %659 = vst [vmem:[%s148 + $0x88] sm:$0xff] %v629
      %660 = vst [vmem:[%s148 + $0x90] sm:$0xff] %v630
      %661 = vst [vmem:[%s148 + $0x98] sm:$0xff] %v631
      %662 = vst [vmem:[%s148 + $0xa0] sm:$0xff] %v632
      %663 = vst [vmem:[%s148 + $0xa8] sm:$0xff] %v633
      %664 = vst [vmem:[%s148 + $0xb0] sm:$0xff] %v634
      %665 = vst [vmem:[%s148 + $0xb8] sm:$0xff] %v635
      %666 = vst [vmem:[%s148 + $0xc0] sm:$0xff] %v636
      %667 = vst [vmem:[%s148 + $0xc8] sm:$0xff] %v637
      %668 = vst [vmem:[%s148 + $0xd0] sm:$0xff] %v638
      %669 = vst [vmem:[%s148 + $0xd8] sm:$0xff] %v639
      %670 = vst [vmem:[%s148 + $0xe0] sm:$0xff] %v640
      %671 = vst [vmem:[%s148 + $0xe8] sm:$0xff] %v641
      %s672 = smul.u32 30, %s13
      %p673 = scmp.lt.s32.totalorder %s672, 209
      %s674 = scalar_select %p673, %s672, 209
      %s675 = smul.addr %s674, 8
      %s676 = scalar_lea.vmem %s2, %s675
      // Predicated region
      $region29: #{cnn_xy_forward.6} parent=27 // pred_check
        %p677 = pneg %p78
      $region30: #{cnn_xy_forward.6} parent=27 // pred_check_branch
        %679 = sbr.rel (%p677) target = $region32
      $region31: #{cnn_xy_forward.6} parent=27 // pred_region
        %s680 = smul.u32 30, %s13
      $region32: #{cnn_xy_forward.6} parent=27 // pred_fallthru
        _
    $region28: #{cnn_xy_forward.6} parent=5 // pred_fallthru
      _
    %p681 = scmp.le.s32.totalorder 2, %s8
    // Predicated region
    $region33: #{cnn_xy_forward.6} parent=5 // pred_check
      %p682 = pneg %p681
    $region34: #{cnn_xy_forward.6} parent=5 // pred_check_branch
      %684 = sbr.rel (%p682) target = $region36
    $region35: #{cnn_xy_forward.6} parent=5 // pred_region
      %s685 = ssub.s32 %s8, 2
      // Predicated region
      $region37: #{cnn_xy_forward.6} parent=35 // pred_check
        %p686 = pneg %p84
      $region38: #{cnn_xy_forward.6} parent=35 // pred_check_branch
        %688 = sbr.rel (%p686) target = $region40
      $region39: #{cnn_xy_forward.6} parent=35 // pred_region
        %s689 = smul.u32 30, %s14
        %p690 = scmp.lt.s32.totalorder %s689, 209
        %s691 = scalar_select %p690, %s689, 209
        %s692 = smul.addr %s691, 8
        %s693 = scalar_lea.vmem %s2, %s692
      $region40: #{cnn_xy_forward.6} parent=35 // pred_fallthru
        _
    $region36: #{cnn_xy_forward.6} parent=5 // pred_fallthru
      _
  $region6: #{cnn_xy_forward.6} parent=0 // loop_footer
    %s12 = sadd.s32 1, %s8
  $region7: #{cnn_xy_forward.6} parent=0 // loop_footer_branch
    %7 = sbr.rel target = $region3
  $region8: #{cnn_xy_forward.6} parent=0 // loop_exit
    _

// kernel: cnn_xy_forward.7
$region0: #{cnn_xy_forward.7}
  #allocation0 [shape = 'u32[]', space=smem, size = 0x4, offset = 0x4, fixed_abs, tag = 'smem constant byte address 0x4 - core index']
  #allocation1 [shape = 'u32[144,128]{1,0:T(1,128)}', space=vmem, size = 0x12000, scoped, tag = 'internal scratch']
  %s0 = inlined_call_operand.vmem [shape: bf16[448,384], index: 0, kind: input, shape index: {}]
  %s1 = inlined_call_operand.vmem [shape: bf16[384,128], index: 1, kind: input, shape index: {}]
  %s2 = inlined_call_operand.vmem [shape: f32[448,128], index: 2, kind: output, shape index: {}]
  %s3 = sld [smem:[#allocation0]]
  $region41: #{cnn_xy_forward.7} parent=0
    _
  %s5 = ssub.s32 1, %s3
  %s6 = scalar_select 0, %s5, %s3
  loop: start=0, step=1, limit=4
  $region2: #{cnn_xy_forward.7} parent=0 // loop_pre_header
    _
  $region3: #{cnn_xy_forward.7} parent=0 // loop_header
    %s8 = sphi 0, %s12
    %p9 = scmp.ge.s32.totalorder %s8, 4
    %s18 = sphi 0, %s20
    %s21 = sphi 0, %s18
    %s22 = sphi 0, %s21
    %s38 = sphi 0, %s22
    %s42 = sphi 0, %s42
    %s44 = sphi 0, %s42
    %s45 = sphi 0, %s44
    %s59 = sphi 0, %s45
    %s65 = sphi 0, %s67
    %s68 = sphi 0, %s65
    %s69 = sphi 0, %s68
    %s85 = sphi 0, %s69
  $region4: #{cnn_xy_forward.7} parent=0 // loop_header_branch
    %11 = sbr.rel (%p9) target = $region8
  $region5: #{cnn_xy_forward.7} parent=0 // loop_body
    %s13 = ssub.s32 %s8, 1
    %s14 = ssub.s32 %s8, 2
    %s15 = sadd.s32 %s8, 1
    %s16 = ssub.s32 %s8, %s15
    %p17 = scmp.eq.s32.totalorder %s16, 0
    %s19 = sadd.s32 %s18, 1
    %s20 = scalar_select %p17, %s18, %s19
    %p23 = pneg %p17
    %p24 = scmp.eq.s32.totalorder %s8, 1
    %p25 = por %p23, %p24
    %p26 = scmp.ne.s32.totalorder %s18, %s21
    %p27 = scmp.eq.s32.totalorder %s8, 0
    %p28 = por %p26, %p27
    %p29 = scmp.ne.s32.totalorder %s18, %s21
    %p30 = scmp.eq.s32.totalorder %s13, 1
    %p31 = por %p29, %p30
    %p32 = scmp.ne.s32.totalorder %s21, %s22
    %p33 = scmp.eq.s32.totalorder %s13, 0
    %p34 = por %p32, %p33
    %p35 = scmp.ne.s32.totalorder %s21, %s22
    %p36 = scmp.eq.s32.totalorder %s14, 1
    %p37 = por %p35, %p36
    %p39 = scmp.ne.s32.totalorder %s22, %s38
    %p40 = scmp.eq.s32.totalorder %s14, 0
    %p41 = por %p39, %p40
    %s43 = sadd.s32 %s42, 1
    %p46 = scmp.eq.s32.totalorder %s8, 1
    %p47 = scmp.ne.s32.totalorder %s42, %s44
    %p48 = scmp.eq.s32.totalorder %s8, 0
    %p49 = por %p47, %p48
    %p50 = scmp.ne.s32.totalorder %s42, %s44
    %p51 = scmp.eq.s32.totalorder %s13, 1
    %p52 = por %p50, %p51
    %p53 = scmp.ne.s32.totalorder %s44, %s45
    %p54 = scmp.eq.s32.totalorder %s13, 0
    %p55 = por %p53, %p54
    %p56 = scmp.ne.s32.totalorder %s44, %s45
    %p57 = scmp.eq.s32.totalorder %s14, 1
    %p58 = por %p56, %p57
    %p60 = scmp.ne.s32.totalorder %s45, %s59
    %p61 = scmp.eq.s32.totalorder %s14, 0
    %p62 = por %p60, %p61
    %s63 = ssub.s32 %s8, %s15
    %p64 = scmp.eq.s32.totalorder %s63, 0
    %s66 = sadd.s32 %s65, 1
    %s67 = scalar_select %p64, %s65, %s66
    %p70 = pneg %p64
    %p71 = scmp.eq.s32.totalorder %s8, 1
    %p72 = por %p70, %p71
    %p73 = scmp.ne.s32.totalorder %s65, %s68
    %p74 = scmp.eq.s32.totalorder %s8, 0
    %p75 = por %p73, %p74
    %p76 = scmp.ne.s32.totalorder %s65, %s68
    %p77 = scmp.eq.s32.totalorder %s13, 1
    %p78 = por %p76, %p77
    %p79 = scmp.ne.s32.totalorder %s68, %s69
    %p80 = scmp.eq.s32.totalorder %s13, 0
    %p81 = por %p79, %p80
    %p82 = scmp.ne.s32.totalorder %s68, %s69
    %p83 = scmp.eq.s32.totalorder %s14, 1
    %p84 = por %p82, %p83
    %p86 = scmp.ne.s32.totalorder %s69, %s85
    %p87 = scmp.eq.s32.totalorder %s14, 0
    %p88 = por %p86, %p87
    %p89 = scmp.le.s32.totalorder 1, %s8
    %p90 = scmp.lt.s32.totalorder %s8, 3
    %p91 = pnand %p89, %p90
    %p92 = pneg %p91
    // Predicated region
    $region9: #{cnn_xy_forward.7} parent=5 // pred_check
      _
    $region10: #{cnn_xy_forward.7} parent=5 // pred_check_branch
      %94 = sbr.rel (%p91) target = $region12
    $region11: #{cnn_xy_forward.7} parent=5 // pred_region
      %s95 = ssub.s32 %s8, 1
      // Predicated region
      $region13: #{cnn_xy_forward.7} parent=11 // pred_check
        %p96 = pneg %p55
      $region14: #{cnn_xy_forward.7} parent=11 // pred_check_branch
        %98 = sbr.rel (%p96) target = $region16
      $region15: #{cnn_xy_forward.7} parent=11 // pred_region
        _
      $region16: #{cnn_xy_forward.7} parent=11 // pred_fallthru
        _
    $region12: #{cnn_xy_forward.7} parent=5 // pred_fallthru
      _
    %p99 = scmp.lt.s32.totalorder %s8, 2
    // Predicated region
    $region17: #{cnn_xy_forward.7} parent=5 // pred_check
      %p100 = pneg %p99
    $region18: #{cnn_xy_forward.7} parent=5 // pred_check_branch
      %102 = sbr.rel (%p100) target = $region20
    $region19: #{cnn_xy_forward.7} parent=5 // pred_region
      // Predicated region
      $region21: #{cnn_xy_forward.7} parent=19 // pred_check
        %p103 = pneg %p28
      $region22: #{cnn_xy_forward.7} parent=19 // pred_check_branch
        %105 = sbr.rel (%p103) target = $region24
      $region23: #{cnn_xy_forward.7} parent=19 // pred_region
        %s106 = smul.u32 28, %s8
        %p107 = scmp.lt.s32.totalorder %s106, 55
        %s108 = scalar_select %p107, %s106, 55
        %s109 = smul.addr %s108, 3
        %s110 = smul.addr %s109, 4
        %s111 = scalar_lea.vmem %s0, %s110
        %s112 = smul.u32 28, %s8
      $region24: #{cnn_xy_forward.7} parent=19 // pred_fallthru
        _
    $region20: #{cnn_xy_forward.7} parent=5 // pred_fallthru
      _
    %p113 = scmp.le.s32.totalorder 1, %s8
    %p114 = scmp.lt.s32.totalorder %s8, 3
    %p115 = pnand %p113, %p114
    %p116 = pneg %p115
    // Predicated region
    $region25: #{cnn_xy_forward.7} parent=5 // pred_check
      _
    $region26: #{cnn_xy_forward.7} parent=5 // pred_check_branch
      %118 = sbr.rel (%p115) target = $region28
    $region27: #{cnn_xy_forward.7} parent=5 // pred_region
      %s119 = ssub.s32 %s8, 1
      %s120 = smul.u32 28, %s13
      %p121 = scmp.lt.s32.totalorder %s120, 55
      %s122 = scalar_select %p121, %s120, 55
      %s123 = smul.addr %s122, 3
      %s124 = smul.addr %s123, 4
      %s125 = scalar_lea.vmem %s0, %s124
      %p126 = pneg %p34
      %p127 = pneg %p31
      %p128 = pneg %p55
      %p129 = pneg %p52
      %p130 = pneg %p81
      %p131 = pneg %p78
      %s132 = smul.u32 28, %s13
      %p133 = scmp.lt.s32.totalorder %s132, 55
      %s134 = scalar_select %p133, %s132, 55
      %s135 = smul.addr %s134, 8
      %s136 = scalar_lea.vmem %s2, %s135
      %s137 = smul.u32 28, %s13
      %p138 = scmp.lt.s32.totalorder %s137, 55
      %s139 = scalar_select %p138, %s137, 55
      %s140 = smul.addr %s139, 3
      %s141 = smul.addr %s140, 4
      %s142 = scalar_lea.vmem %s0, %s141
      %s143 = smul.u32 28, %s13
      %s144 = smul.u32 28, %s13
      %p145 = scmp.lt.s32.totalorder %s144, 55
      %s146 = scalar_select %p145, %s144, 55
      %s147 = smul.addr %s146, 8
      %s148 = scalar_lea.vmem %s2, %s147
      %s149 = smul.u32 28, %s13
      %v151 = vld [vmem:[%s142] sm:$0xff]
      %v152 = vld [vmem:[%s142 + $0x8] sm:$0xf]
      %v153 = vld [vmem:[%s142 + $0xc] sm:$0xff]
      %v154 = vld [vmem:[%s142 + $0x14] sm:$0xf]
      %v155 = vld [vmem:[%s142 + $0x18] sm:$0xff]
      %v156 = vld [vmem:[%s142 + $0x20] sm:$0xf]
      %v157 = vld [vmem:[%s142 + $0x24] sm:$0xff]
      %v158 = vld [vmem:[%s142 + $0x2c] sm:$0xf]
      %v159 = vld [vmem:[%s142 + $0x30] sm:$0xff]
      %v160 = vld [vmem:[%s142 + $0x38] sm:$0xf]
      %v161 = vld [vmem:[%s142 + $0x3c] sm:$0xff]
      %v162 = vld [vmem:[%s142 + $0x44] sm:$0xf]
      %v163 = vld [vmem:[%s142 + $0x48] sm:$0xff]
      %v164 = vld [vmem:[%s142 + $0x50] sm:$0xf]
      %v165 = vld [vmem:[%s142 + $0x54] sm:$0xff]
      %v166 = vld [vmem:[%s142 + $0x5c] sm:$0xf]
      %v167 = vld [vmem:[%s142 + $0x60] sm:$0xff]
      %v168 = vld [vmem:[%s142 + $0x68] sm:$0xf]
      %v169 = vld [vmem:[%s142 + $0x6c] sm:$0xff]
      %v170 = vld [vmem:[%s142 + $0x74] sm:$0xf]
      %v171 = vld [vmem:[%s142 + $0x78] sm:$0xff]
      %v172 = vld [vmem:[%s142 + $0x80] sm:$0xf]
      %v173 = vld [vmem:[%s142 + $0x84] sm:$0xff]
      %v174 = vld [vmem:[%s142 + $0x8c] sm:$0xf]
      %v175 = vld [vmem:[%s142 + $0x90] sm:$0xff]
      %v176 = vld [vmem:[%s142 + $0x98] sm:$0xf]
      %v177 = vld [vmem:[%s142 + $0x9c] sm:$0xff]
      %v178 = vld [vmem:[%s142 + $0xa4] sm:$0xf]
      %v179 = vld [vmem:[%s142 + $0xa8] sm:$0xff]
      %v180 = vld [vmem:[%s142 + $0xb0] sm:$0xf]
      %v181 = vld [vmem:[%s142 + $0xb4] sm:$0xff]
      %v182 = vld [vmem:[%s142 + $0xbc] sm:$0xf]
      %v183 = vld [vmem:[%s142 + $0xc0] sm:$0xff]
      %v184 = vld [vmem:[%s142 + $0xc8] sm:$0xf]
      %v185 = vld [vmem:[%s142 + $0xcc] sm:$0xff]
      %v186 = vld [vmem:[%s142 + $0xd4] sm:$0xf]
      %v187 = vld [vmem:[%s142 + $0xd8] sm:$0xff]
      %v188 = vld [vmem:[%s142 + $0xe0] sm:$0xf]
      %v189 = vld [vmem:[%s142 + $0xe4] sm:$0xff]
      %v190 = vld [vmem:[%s142 + $0xec] sm:$0xf]
      %v191 = vld [vmem:[%s142 + $0xf0] sm:$0xff]
      %v192 = vld [vmem:[%s142 + $0xf8] sm:$0xf]
      %v193 = vld [vmem:[%s142 + $0xfc] sm:$0xff]
      %v194 = vld [vmem:[%s142 + $0x104] sm:$0xf]
      %v195 = vld [vmem:[%s142 + $0x108] sm:$0xff]
      %v196 = vld [vmem:[%s142 + $0x110] sm:$0xf]
      %v197 = vld [vmem:[%s142 + $0x114] sm:$0xff]
      %v198 = vld [vmem:[%s142 + $0x11c] sm:$0xf]
      %v199 = vld [vmem:[%s142 + $0x120] sm:$0xff]
      %v200 = vld [vmem:[%s142 + $0x128] sm:$0xf]
      %v201 = vld [vmem:[%s142 + $0x12c] sm:$0xff]
      %v202 = vld [vmem:[%s142 + $0x134] sm:$0xf]
      %v203 = vld [vmem:[%s142 + $0x138] sm:$0xff]
      %v204 = vld [vmem:[%s142 + $0x140] sm:$0xf]
      %v205 = vld [vmem:[%s142 + $0x144] sm:$0xff]
      %v206 = vld [vmem:[%s142 + $0x14c] sm:$0xf]
      %v207 = vld [vmem:[%s1] sm:$0xf]
      %v208 = vld [vmem:[%s1 + $0x4] sm:$0xf]
      %v209 = vld [vmem:[%s1 + $0x8] sm:$0xf]
      %v210 = vld [vmem:[%s1 + $0xc] sm:$0xf]
      %v211 = vld [vmem:[%s1 + $0x10] sm:$0xf]
      %v212 = vld [vmem:[%s1 + $0x14] sm:$0xf]
      %v213 = vld [vmem:[%s1 + $0x18] sm:$0xf]
      %v214 = vld [vmem:[%s1 + $0x1c] sm:$0xf]
      %v215 = vld [vmem:[%s1 + $0x20] sm:$0xf]
      %v216 = vld [vmem:[%s1 + $0x24] sm:$0xf]
      %v217 = vld [vmem:[%s1 + $0x28] sm:$0xf]
      %v218 = vld [vmem:[%s1 + $0x2c] sm:$0xf]
      %v219 = vld [vmem:[%s1 + $0x30] sm:$0xf]
      %v220 = vld [vmem:[%s1 + $0x34] sm:$0xf]
      %v221 = vld [vmem:[%s1 + $0x38] sm:$0xf]
      %v222 = vld [vmem:[%s1 + $0x3c] sm:$0xf]
      %v223 = vld [vmem:[%s1 + $0x40] sm:$0xf]
      %v224 = vld [vmem:[%s1 + $0x44] sm:$0xf]
      %v225 = vld [vmem:[%s1 + $0x48] sm:$0xf]
      %v226 = vld [vmem:[%s1 + $0x4c] sm:$0xf]
      %v227 = vld [vmem:[%s1 + $0x50] sm:$0xf]
      %v228 = vld [vmem:[%s1 + $0x54] sm:$0xf]
      %v229 = vld [vmem:[%s1 + $0x58] sm:$0xf]
      %v230 = vld [vmem:[%s1 + $0x5c] sm:$0xf]
      %v231 = vld [vmem:[%s1 + $0x60] sm:$0xf]
      %v232 = vld [vmem:[%s1 + $0x64] sm:$0xf]
      %v233 = vld [vmem:[%s1 + $0x68] sm:$0xf]
      %v234 = vld [vmem:[%s1 + $0x6c] sm:$0xf]
      %v235 = vld [vmem:[%s1 + $0x70] sm:$0xf]
      %v236 = vld [vmem:[%s1 + $0x74] sm:$0xf]
      %v237 = vld [vmem:[%s1 + $0x78] sm:$0xf]
      %v238 = vld [vmem:[%s1 + $0x7c] sm:$0xf]
      %v239 = vld [vmem:[%s1 + $0x80] sm:$0xf]
      %v240 = vld [vmem:[%s1 + $0x84] sm:$0xf]
      %v241 = vld [vmem:[%s1 + $0x88] sm:$0xf]
      %v242 = vld [vmem:[%s1 + $0x8c] sm:$0xf]
      %v243 = vld [vmem:[%s1 + $0x90] sm:$0xf]
      %v244 = vld [vmem:[%s1 + $0x94] sm:$0xf]
      %v245 = vld [vmem:[%s1 + $0x98] sm:$0xf]
      %v246 = vld [vmem:[%s1 + $0x9c] sm:$0xf]
      %v247 = vld [vmem:[%s1 + $0xa0] sm:$0xf]
      %v248 = vld [vmem:[%s1 + $0xa4] sm:$0xf]
      %v249 = vld [vmem:[%s1 + $0xa8] sm:$0xf]
      %v250 = vld [vmem:[%s1 + $0xac] sm:$0xf]
      %v251 = vld [vmem:[%s1 + $0xb0] sm:$0xf]
      %v252 = vld [vmem:[%s1 + $0xb4] sm:$0xf]
      %v253 = vld [vmem:[%s1 + $0xb8] sm:$0xf]
      %v254 = vld [vmem:[%s1 + $0xbc] sm:$0xf]
      %v311 = vunpack.c.l.b16 %v151
      %v312 = vunpack.c.h.b16 %v151
      %v313 = vunpack.c.l.b16 %v152
      %v314 = vunpack.c.l.b16 %v153
      %v315 = vunpack.c.h.b16 %v153
      %v316 = vunpack.c.l.b16 %v154
      %v317 = vunpack.c.l.b16 %v155
      %v318 = vunpack.c.h.b16 %v155
      %v319 = vunpack.c.l.b16 %v156
      %v320 = vunpack.c.l.b16 %v157
      %v321 = vunpack.c.h.b16 %v157
      %v322 = vunpack.c.l.b16 %v158
      %v323 = vunpack.c.l.b16 %v159
      %v324 = vunpack.c.h.b16 %v159
      %v325 = vunpack.c.l.b16 %v160
      %v326 = vunpack.c.l.b16 %v161
      %v327 = vunpack.c.h.b16 %v161
      %v328 = vunpack.c.l.b16 %v162
      %v329 = vunpack.c.l.b16 %v163
      %v330 = vunpack.c.h.b16 %v163
      %v331 = vunpack.c.l.b16 %v164
      %v332 = vunpack.c.l.b16 %v165
      %v333 = vunpack.c.h.b16 %v165
      %v334 = vunpack.c.l.b16 %v166
      %v335 = vunpack.c.l.b16 %v167
      %v336 = vunpack.c.h.b16 %v167
      %v337 = vunpack.c.l.b16 %v168
      %v338 = vunpack.c.l.b16 %v169
      %v339 = vunpack.c.h.b16 %v169
      %v340 = vunpack.c.l.b16 %v170
      %v341 = vunpack.c.l.b16 %v171
      %v342 = vunpack.c.h.b16 %v171
      %v343 = vunpack.c.l.b16 %v172
      %v344 = vunpack.c.l.b16 %v173
      %v345 = vunpack.c.h.b16 %v173
      %v346 = vunpack.c.l.b16 %v174
      %v347 = vunpack.c.l.b16 %v175
      %v348 = vunpack.c.h.b16 %v175
      %v349 = vunpack.c.l.b16 %v176
      %v350 = vunpack.c.l.b16 %v177
      %v351 = vunpack.c.h.b16 %v177
      %v352 = vunpack.c.l.b16 %v178
      %v353 = vunpack.c.l.b16 %v179
      %v354 = vunpack.c.h.b16 %v179
      %v355 = vunpack.c.l.b16 %v180
      %v356 = vunpack.c.l.b16 %v181
      %v357 = vunpack.c.h.b16 %v181
      %v358 = vunpack.c.l.b16 %v182
      %v359 = vunpack.c.l.b16 %v183
      %v360 = vunpack.c.h.b16 %v183
      %v361 = vunpack.c.l.b16 %v184
      %v362 = vunpack.c.l.b16 %v185
      %v363 = vunpack.c.h.b16 %v185
      %v364 = vunpack.c.l.b16 %v186
      %v365 = vunpack.c.l.b16 %v187
      %v366 = vunpack.c.h.b16 %v187
      %v367 = vunpack.c.l.b16 %v188
      %v368 = vunpack.c.l.b16 %v189
      %v369 = vunpack.c.h.b16 %v189
      %v370 = vunpack.c.l.b16 %v190
      %v371 = vunpack.c.l.b16 %v191
      %v372 = vunpack.c.h.b16 %v191
      %v373 = vunpack.c.l.b16 %v192
      %v374 = vunpack.c.l.b16 %v193
      %v375 = vunpack.c.h.b16 %v193
      %v376 = vunpack.c.l.b16 %v194
      %v377 = vunpack.c.l.b16 %v195
      %v378 = vunpack.c.h.b16 %v195
      %v379 = vunpack.c.l.b16 %v196
      %v380 = vunpack.c.l.b16 %v197
      %v381 = vunpack.c.h.b16 %v197
      %v382 = vunpack.c.l.b16 %v198
      %v383 = vunpack.c.l.b16 %v199
      %v384 = vunpack.c.h.b16 %v199
      %v385 = vunpack.c.l.b16 %v200
      %v386 = vunpack.c.l.b16 %v201
      %v387 = vunpack.c.h.b16 %v201
      %v388 = vunpack.c.l.b16 %v202
      %v389 = vunpack.c.l.b16 %v203
      %v390 = vunpack.c.h.b16 %v203
      %v391 = vunpack.c.l.b16 %v204
      %v392 = vunpack.c.l.b16 %v205
      %v393 = vunpack.c.h.b16 %v205
      %v394 = vunpack.c.l.b16 %v206
      %v395 = vpack.c.b16 %v314, %v311
      %v396 = vpack.c.b16 %v315, %v312
      %v397 = vpack.c.b16 %v316, %v313
      %v398 = vpack.c.b16 %v320, %v317
      %v399 = vpack.c.b16 %v321, %v318
      %v400 = vpack.c.b16 %v322, %v319
      %v401 = vpack.c.b16 %v326, %v323
      %v402 = vpack.c.b16 %v327, %v324
      %v403 = vpack.c.b16 %v328, %v325
      %v404 = vpack.c.b16 %v332, %v329
      %v405 = vpack.c.b16 %v333, %v330
      %v406 = vpack.c.b16 %v334, %v331
      %v407 = vpack.c.b16 %v338, %v335
      %v408 = vpack.c.b16 %v339, %v336
      %v409 = vpack.c.b16 %v340, %v337
      %v410 = vpack.c.b16 %v344, %v341
      %v411 = vpack.c.b16 %v345, %v342
      %v412 = vpack.c.b16 %v346, %v343
      %v413 = vpack.c.b16 %v350, %v347
      %v414 = vpack.c.b16 %v351, %v348
      %v415 = vpack.c.b16 %v352, %v349
      %v416 = vpack.c.b16 %v356, %v353
      %v417 = vpack.c.b16 %v357, %v354
      %v418 = vpack.c.b16 %v358, %v355
      %v419 = vpack.c.b16 %v362, %v359
      %v420 = vpack.c.b16 %v363, %v360
      %v421 = vpack.c.b16 %v364, %v361
      %v422 = vpack.c.b16 %v368, %v365
      %v423 = vpack.c.b16 %v369, %v366
      %v424 = vpack.c.b16 %v370, %v367
      %v425 = vpack.c.b16 %v374, %v371
      %v426 = vpack.c.b16 %v375, %v372
      %v427 = vpack.c.b16 %v376, %v373
      %v428 = vpack.c.b16 %v380, %v377
      %v429 = vpack.c.b16 %v381, %v378
      %v430 = vpack.c.b16 %v382, %v379
      %v431 = vpack.c.b16 %v386, %v383
      %v432 = vpack.c.b16 %v387, %v384
      %v433 = vpack.c.b16 %v388, %v385
      %v434 = vpack.c.b16 %v392, %v389
      %v435 = vpack.c.b16 %v393, %v390
      %v436 = vpack.c.b16 %v394, %v391
      %v527 = vunpack.c.l.b16 %v207
      %v528 = vunpack.c.l.b16 %v208
      %v529 = vunpack.c.l.b16 %v209
      %v530 = vunpack.c.l.b16 %v210
      %v531 = vunpack.c.l.b16 %v211
      %v532 = vunpack.c.l.b16 %v212
      %v533 = vunpack.c.l.b16 %v213
      %v534 = vunpack.c.l.b16 %v214
      %v535 = vunpack.c.l.b16 %v215
      %v536 = vunpack.c.l.b16 %v216
      %v537 = vunpack.c.l.b16 %v217
      %v538 = vunpack.c.l.b16 %v218
      %v539 = vunpack.c.l.b16 %v219
      %v540 = vunpack.c.l.b16 %v220
      %v541 = vunpack.c.l.b16 %v221
      %v542 = vunpack.c.l.b16 %v222
      %v543 = vunpack.c.l.b16 %v223
      %v544 = vunpack.c.l.b16 %v224
      %v545 = vunpack.c.l.b16 %v225
      %v546 = vunpack.c.l.b16 %v226
      %v547 = vunpack.c.l.b16 %v227
      %v548 = vunpack.c.l.b16 %v228
      %v549 = vunpack.c.l.b16 %v229
      %v550 = vunpack.c.l.b16 %v230
      %v551 = vunpack.c.l.b16 %v231
      %v552 = vunpack.c.l.b16 %v232
      %v553 = vunpack.c.l.b16 %v233
      %v554 = vunpack.c.l.b16 %v234
      %v555 = vunpack.c.l.b16 %v235
      %v556 = vunpack.c.l.b16 %v236
      %v557 = vunpack.c.l.b16 %v237
      %v558 = vunpack.c.l.b16 %v238
      %v559 = vunpack.c.l.b16 %v239
      %v560 = vunpack.c.l.b16 %v240
      %v561 = vunpack.c.l.b16 %v241
      %v562 = vunpack.c.l.b16 %v242
      %v563 = vunpack.c.l.b16 %v243
      %v564 = vunpack.c.l.b16 %v244
      %v565 = vunpack.c.l.b16 %v245
      %v566 = vunpack.c.l.b16 %v246
      %v567 = vunpack.c.l.b16 %v247
      %v568 = vunpack.c.l.b16 %v248
      %v569 = vunpack.c.l.b16 %v249
      %v570 = vunpack.c.l.b16 %v250
      %v571 = vunpack.c.l.b16 %v251
      %v572 = vunpack.c.l.b16 %v252
      %v573 = vunpack.c.l.b16 %v253
      %v574 = vunpack.c.l.b16 %v254
      %v575 = vpack.c.b16 %v528, %v527
      %v576 = vpack.c.b16 %v530, %v529
      %v577 = vpack.c.b16 %v532, %v531
      %v578 = vpack.c.b16 %v534, %v533
      %v579 = vpack.c.b16 %v536, %v535
      %v580 = vpack.c.b16 %v538, %v537
      %v581 = vpack.c.b16 %v540, %v539
      %v582 = vpack.c.b16 %v542, %v541
      %v583 = vpack.c.b16 %v544, %v543
      %v584 = vpack.c.b16 %v546, %v545
      %v585 = vpack.c.b16 %v548, %v547
      %v586 = vpack.c.b16 %v550, %v549
      %v587 = vpack.c.b16 %v552, %v551
      %v588 = vpack.c.b16 %v554, %v553
      %v589 = vpack.c.b16 %v556, %v555
      %v590 = vpack.c.b16 %v558, %v557
      %v591 = vpack.c.b16 %v560, %v559
      %v592 = vpack.c.b16 %v562, %v561
      %v593 = vpack.c.b16 %v564, %v563
      %v594 = vpack.c.b16 %v566, %v565
      %v595 = vpack.c.b16 %v568, %v567
      %v596 = vpack.c.b16 %v570, %v569
      %v597 = vpack.c.b16 %v572, %v571
      %v598 = vpack.c.b16 %v574, %v573
      %623 = vmatprep.subr.bf16.mxu0 0
      %624 = vmatpush1.bf16.msra.mxu0 %v575
      %625 = vmatprep.subr.bf16.mxu0 0
      %626 = vmatpush1.bf16.msra.mxu0 %v576
      %627 = vmatprep.subr.bf16.mxu0 0
      %628 = vmatpush1.bf16.msra.mxu0 %v577
      %629 = vmatprep.subr.bf16.mxu0 0
      %630 = vmatpush1.bf16.msra.mxu0 %v578
      %631 = vmatprep.subr.bf16.mxu0 0
      %632 = vmatpush1.bf16.msra.mxu0 %v579
      %633 = vmatprep.subr.bf16.mxu0 0
      %634 = vmatpush1.bf16.msra.mxu0 %v580
      %635 = vmatprep.subr.bf16.mxu0 0
      %636 = vmatpush1.bf16.msra.mxu0 %v581
      %637 = vmatprep.subr.bf16.mxu0 0
      %638 = vmatpush1.bf16.msra.mxu0 %v582
      %639 = vmatprep.subr.bf16.mxu0 0
      %640 = vmatpush1.bf16.msra.mxu0 %v583
      %641 = vmatprep.subr.bf16.mxu0 0
      %642 = vmatpush1.bf16.msra.mxu0 %v584
      %643 = vmatprep.subr.bf16.mxu0 0
      %644 = vmatpush1.bf16.msra.mxu0 %v585
      %645 = vmatprep.subr.bf16.mxu0 0
      %646 = vmatpush1.bf16.msra.mxu0 %v586
      %647 = vmatprep.subr.bf16.mxu0 0
      %648 = vmatpush1.bf16.msra.mxu0 %v587
      %649 = vmatprep.subr.bf16.mxu0 0
      %650 = vmatpush1.bf16.msra.mxu0 %v588
      %651 = vmatprep.subr.bf16.mxu0 0
      %652 = vmatpush1.bf16.msra.mxu0 %v589
      %653 = vmatprep.subr.bf16.mxu0 0
      %654 = vmatpush1.bf16.msra.mxu0 %v590
      %655 = vmatprep.mubr.bf16.mxu0 %v396
      %656 = vmatmul.mubr.bf16.gmra.mrb[0].mxu0 %v395
      %v657 = vpop.f32.mrb[0].mxu0
      %v658 = vadd.f32 0.0, %v657
      %v659 = vpop.f32.mrb[0].mxu0
      %v660 = vpop.f32.mrb[0].mxu0
      %v661 = vadd.f32 0.0, %v660
      %v662 = vpop.f32.mrb[0].mxu0
      %663 = vmatprep.mubr.bf16.mxu0 %v399
      %664 = vmatmul.mubr.bf16.gmra.mrb[0].mxu0 %v398
      %v665 = vpop.f32.mrb[0].mxu0
      %v666 = vadd.f32 0.0, %v665
      %v667 = vpop.f32.mrb[0].mxu0
      %v668 = vpop.f32.mrb[0].mxu0
      %v669 = vadd.f32 0.0, %v668
      %v670 = vpop.f32.mrb[0].mxu0
      %671 = vmatprep.mubr.bf16.mxu0 %v402
      %672 = vmatmul.mubr.bf16.gmra.mrb[0].mxu0 %v401
      %v673 = vpop.f32.mrb[0].mxu0
      %v674 = vadd.f32 0.0, %v673
      %v675 = vpop.f32.mrb[0].mxu0
      %v676 = vpop.f32.mrb[0].mxu0
      %v677 = vadd.f32 0.0, %v676
      %v678 = vpop.f32.mrb[0].mxu0
      %679 = vmatprep.mubr.bf16.mxu0 %v405
      %680 = vmatmul.mubr.bf16.gmra.mrb[0].mxu0 %v404
      %v681 = vpop.f32.mrb[0].mxu0
      %v682 = vadd.f32 0.0, %v681
      %v683 = vpop.f32.mrb[0].mxu0
      %v684 = vpop.f32.mrb[0].mxu0
      %v685 = vadd.f32 0.0, %v684
      %v686 = vpop.f32.mrb[0].mxu0
      %687 = vmatprep.mubr.bf16.mxu0 %v408
      %688 = vmatmul.mubr.bf16.gmra.mrb[0].mxu0 %v407
      %v689 = vpop.f32.mrb[0].mxu0
      %v690 = vadd.f32 0.0, %v689
      %v691 = vpop.f32.mrb[0].mxu0
      %v692 = vpop.f32.mrb[0].mxu0
      %v693 = vadd.f32 0.0, %v692
      %v694 = vpop.f32.mrb[0].mxu0
      %695 = vmatprep.mubr.bf16.mxu0 %v411
      %696 = vmatmul.mubr.bf16.gmra.mrb[0].mxu0 %v410
      %v697 = vpop.f32.mrb[0].mxu0
      %v698 = vadd.f32 0.0, %v697
      %v699 = vpop.f32.mrb[0].mxu0
      %v700 = vpop.f32.mrb[0].mxu0
      %v701 = vadd.f32 0.0, %v700
      %v702 = vpop.f32.mrb[0].mxu0
      %703 = vmatprep.mubr.bf16.mxu0 %v414
      %704 = vmatmul.mubr.bf16.gmra.mrb[0].mxu0 %v413
      %v705 = vpop.f32.mrb[0].mxu0
      %v706 = vadd.f32 0.0, %v705
      %v707 = vpop.f32.mrb[0].mxu0
      %v708 = vpop.f32.mrb[0].mxu0
      %v709 = vadd.f32 0.0, %v708
      %v710 = vpop.f32.mrb[0].mxu0
      %711 = vmatprep.mubr.bf16.mxu0 %v417
      %712 = vmatmul.mubr.bf16.gmra.mrb[0].mxu0 %v416
      %v713 = vpop.f32.mrb[0].mxu0
      %v714 = vadd.f32 0.0, %v713
      %v715 = vpop.f32.mrb[0].mxu0
      %v716 = vpop.f32.mrb[0].mxu0
      %v717 = vadd.f32 0.0, %v716
      %v718 = vpop.f32.mrb[0].mxu0
      %719 = vmatprep.mubr.bf16.mxu0 %v420
      %720 = vmatmul.mubr.bf16.gmra.mrb[0].mxu0 %v419
      %v721 = vpop.f32.mrb[0].mxu0
      %v722 = vadd.f32 0.0, %v721
      %v723 = vpop.f32.mrb[0].mxu0
      %v724 = vpop.f32.mrb[0].mxu0
      %v725 = vadd.f32 0.0, %v724
      %v726 = vpop.f32.mrb[0].mxu0
      %727 = vmatprep.mubr.bf16.mxu0 %v423
      %728 = vmatmul.mubr.bf16.gmra.mrb[0].mxu0 %v422
      %v729 = vpop.f32.mrb[0].mxu0
      %v730 = vadd.f32 0.0, %v729
      %v731 = vpop.f32.mrb[0].mxu0
      %v732 = vpop.f32.mrb[0].mxu0
      %v733 = vadd.f32 0.0, %v732
      %v734 = vpop.f32.mrb[0].mxu0
      %735 = vmatprep.mubr.bf16.mxu0 %v426
      %736 = vmatmul.mubr.bf16.gmra.mrb[0].mxu0 %v425
      %v737 = vpop.f32.mrb[0].mxu0
      %v738 = vadd.f32 0.0, %v737
      %v739 = vpop.f32.mrb[0].mxu0
      %v740 = vpop.f32.mrb[0].mxu0
      %v741 = vadd.f32 0.0, %v740
      %v742 = vpop.f32.mrb[0].mxu0
      %743 = vmatprep.mubr.bf16.mxu0 %v429
      %744 = vmatmul.mubr.bf16.gmra.mrb[0].mxu0 %v428
      %v745 = vpop.f32.mrb[0].mxu0
      %v746 = vadd.f32 0.0, %v745
      %v747 = vpop.f32.mrb[0].mxu0
      %v748 = vpop.f32.mrb[0].mxu0
      %v749 = vadd.f32 0.0, %v748
      %v750 = vpop.f32.mrb[0].mxu0
      %751 = vmatprep.mubr.bf16.mxu0 %v432
      %752 = vmatmul.mubr.bf16.gmra.mrb[0].mxu0 %v431
      %v753 = vpop.f32.mrb[0].mxu0
      %v754 = vadd.f32 0.0, %v753
      %v755 = vpop.f32.mrb[0].mxu0
      %v756 = vpop.f32.mrb[0].mxu0
      %v757 = vadd.f32 0.0, %v756
      %v758 = vpop.f32.mrb[0].mxu0
      %759 = vmatprep.mubr.bf16.mxu0 %v435
      %760 = vmatmul.mubr.bf16.gmra.mrb[0].mxu0 %v434
      %v761 = vpop.f32.mrb[0].mxu0
      %v762 = vadd.f32 0.0, %v761
      %v763 = vpop.f32.mrb[0].mxu0
      %v764 = vpop.f32.mrb[0].mxu0
      %v765 = vadd.f32 0.0, %v764
      %v766 = vpop.f32.mrb[0].mxu0
      %767 = vdwg.mxu0
      %768 = vmatprep.subr.bf16.mxu0 0
      %769 = vmatpush1.bf16.msra.mxu0 %v591
      %770 = vmatprep.subr.bf16.mxu0 0
      %771 = vmatpush1.bf16.msra.mxu0 %v592
      %772 = vmatprep.subr.bf16.mxu0 0
      %773 = vmatpush1.bf16.msra.mxu0 %v593
      %774 = vmatprep.subr.bf16.mxu0 0
      %775 = vmatpush1.bf16.msra.mxu0 %v594
      %776 = vmatprep.subr.bf16.mxu0 0
      %777 = vmatpush1.bf16.msra.mxu0 %v595
      %778 = vmatprep.subr.bf16.mxu0 0
      %779 = vmatpush1.bf16.msra.mxu0 %v596
      %780 = vmatprep.subr.bf16.mxu0 0
      %781 = vmatpush1.bf16.msra.mxu0 %v597
      %782 = vmatprep.subr.bf16.mxu0 0
      %783 = vmatpush1.bf16.msra.mxu0 %v598
      %784 = vmatprep.subr.bf16.mxu0 0
      %785 = vmatpush1.bf16.msra.mxu0 0
      %786 = vmatprep.subr.bf16.mxu0 0
      %787 = vmatpush1.bf16.msra.mxu0 0
      %788 = vmatprep.subr.bf16.mxu0 0
      %789 = vmatpush1.bf16.msra.mxu0 0
      %790 = vmatprep.subr.bf16.mxu0 0
      %791 = vmatpush1.bf16.msra.mxu0 0
      %792 = vmatprep.subr.bf16.mxu0 0
      %793 = vmatpush1.bf16.msra.mxu0 0
      %794 = vmatprep.subr.bf16.mxu0 0
      %795 = vmatpush1.bf16.msra.mxu0 0
      %796 = vmatprep.subr.bf16.mxu0 0
      %797 = vmatpush1.bf16.msra.mxu0 0
      %798 = vmatprep.subr.bf16.mxu0 0
      %799 = vmatpush1.bf16.msra.mxu0 0
      %800 = vmatprep.mubr.bf16.mxu0 0
      %801 = vmatmul.mubr.bf16.gmra.mrb[0].mxu0 %v397
      %v802 = vpop.f32.mrb[0].mxu0
      %v803 = vadd.f32 %v658, %v802
      %v804 = vpop.f32.mrb[0].mxu0
      %v805 = vpop.f32.mrb[0].mxu0
      %v806 = vadd.f32 %v661, %v805
      %v807 = vpop.f32.mrb[0].mxu0
      %808 = vmatprep.mubr.bf16.mxu0 0
      %809 = vmatmul.mubr.bf16.gmra.mrb[0].mxu0 %v400
      %v810 = vpop.f32.mrb[0].mxu0
      %v811 = vadd.f32 %v666, %v810
      %v812 = vpop.f32.mrb[0].mxu0
      %v813 = vpop.f32.mrb[0].mxu0
      %v814 = vadd.f32 %v669, %v813
      %v815 = vpop.f32.mrb[0].mxu0
      %816 = vmatprep.mubr.bf16.mxu0 0
      %817 = vmatmul.mubr.bf16.gmra.mrb[0].mxu0 %v403
      %v818 = vpop.f32.mrb[0].mxu0
      %v819 = vadd.f32 %v674, %v818
      %v820 = vpop.f32.mrb[0].mxu0
      %v821 = vpop.f32.mrb[0].mxu0
      %v822 = vadd.f32 %v677, %v821
      %v823 = vpop.f32.mrb[0].mxu0
      %824 = vmatprep.mubr.bf16.mxu0 0
      %825 = vmatmul.mubr.bf16.gmra.mrb[0].mxu0 %v406
      %v826 = vpop.f32.mrb[0].mxu0
      %v827 = vadd.f32 %v682, %v826
      %v828 = vpop.f32.mrb[0].mxu0
      %v829 = vpop.f32.mrb[0].mxu0
      %v830 = vadd.f32 %v685, %v829
      %v831 = vpop.f32.mrb[0].mxu0
      %832 = vmatprep.mubr.bf16.mxu0 0
      %833 = vmatmul.mubr.bf16.gmra.mrb[0].mxu0 %v409
      %v834 = vpop.f32.mrb[0].mxu0
      %v835 = vadd.f32 %v690, %v834
      %v836 = vpop.f32.mrb[0].mxu0
      %v837 = vpop.f32.mrb[0].mxu0
      %v838 = vadd.f32 %v693, %v837
      %v839 = vpop.f32.mrb[0].mxu0
      %840 = vmatprep.mubr.bf16.mxu0 0
      %841 = vmatmul.mubr.bf16.gmra.mrb[0].mxu0 %v412
      %v842 = vpop.f32.mrb[0].mxu0
      %v843 = vadd.f32 %v698, %v842
      %v844 = vpop.f32.mrb[0].mxu0
      %v845 = vpop.f32.mrb[0].mxu0
      %v846 = vadd.f32 %v701, %v845
      %v847 = vpop.f32.mrb[0].mxu0
      %848 = vmatprep.mubr.bf16.mxu0 0
      %849 = vmatmul.mubr.bf16.gmra.mrb[0].mxu0 %v415
      %v850 = vpop.f32.mrb[0].mxu0
      %v851 = vadd.f32 %v706, %v850
      %v852 = vpop.f32.mrb[0].mxu0
      %v853 = vpop.f32.mrb[0].mxu0
      %v854 = vadd.f32 %v709, %v853
      %v855 = vpop.f32.mrb[0].mxu0
      %856 = vmatprep.mubr.bf16.mxu0 0
      %857 = vmatmul.mubr.bf16.gmra.mrb[0].mxu0 %v418
      %v858 = vpop.f32.mrb[0].mxu0
      %v859 = vadd.f32 %v714, %v858
      %v860 = vpop.f32.mrb[0].mxu0
      %v861 = vpop.f32.mrb[0].mxu0
      %v862 = vadd.f32 %v717, %v861
      %v863 = vpop.f32.mrb[0].mxu0
      %864 = vmatprep.mubr.bf16.mxu0 0
      %865 = vmatmul.mubr.bf16.gmra.mrb[0].mxu0 %v421
      %v866 = vpop.f32.mrb[0].mxu0
      %v867 = vadd.f32 %v722, %v866
      %v868 = vpop.f32.mrb[0].mxu0
      %v869 = vpop.f32.mrb[0].mxu0
      %v870 = vadd.f32 %v725, %v869
      %v871 = vpop.f32.mrb[0].mxu0
      %872 = vmatprep.mubr.bf16.mxu0 0
      %873 = vmatmul.mubr.bf16.gmra.mrb[0].mxu0 %v424
      %v874 = vpop.f32.mrb[0].mxu0
      %v875 = vadd.f32 %v730, %v874
      %v876 = vpop.f32.mrb[0].mxu0
      %v877 = vpop.f32.mrb[0].mxu0
      %v878 = vadd.f32 %v733, %v877
      %v879 = vpop.f32.mrb[0].mxu0
      %880 = vmatprep.mubr.bf16.mxu0 0
      %881 = vmatmul.mubr.bf16.gmra.mrb[0].mxu0 %v427
      %v882 = vpop.f32.mrb[0].mxu0
      %v883 = vadd.f32 %v738, %v882
      %v884 = vpop.f32.mrb[0].mxu0
      %v885 = vpop.f32.mrb[0].mxu0
      %v886 = vadd.f32 %v741, %v885
      %v887 = vpop.f32.mrb[0].mxu0
      %888 = vmatprep.mubr.bf16.mxu0 0
      %889 = vmatmul.mubr.bf16.gmra.mrb[0].mxu0 %v430
      %v890 = vpop.f32.mrb[0].mxu0
      %v891 = vadd.f32 %v746, %v890
      %v892 = vpop.f32.mrb[0].mxu0
      %v893 = vpop.f32.mrb[0].mxu0
      %v894 = vadd.f32 %v749, %v893
      %v895 = vpop.f32.mrb[0].mxu0
      %896 = vmatprep.mubr.bf16.mxu0 0
      %897 = vmatmul.mubr.bf16.gmra.mrb[0].mxu0 %v433
      %v898 = vpop.f32.mrb[0].mxu0
      %v899 = vadd.f32 %v754, %v898
      %v900 = vpop.f32.mrb[0].mxu0
      %v901 = vpop.f32.mrb[0].mxu0
      %v902 = vadd.f32 %v757, %v901
      %v903 = vpop.f32.mrb[0].mxu0
      %904 = vmatprep.mubr.bf16.mxu0 0
      %905 = vmatmul.mubr.bf16.gmra.mrb[0].mxu0 %v436
      %v906 = vpop.f32.mrb[0].mxu0
      %v907 = vadd.f32 %v762, %v906
      %v908 = vpop.f32.mrb[0].mxu0
      %v909 = vpop.f32.mrb[0].mxu0
      %v910 = vadd.f32 %v765, %v909
      %v911 = vpop.f32.mrb[0].mxu0
      %912 = vdwg.mxu0
      %v913 = vmax.f32 %v803, 0.0
      %v914 = vmax.f32 %v806, 0.0
      %v915 = vmax.f32 %v811, 0.0
      %v916 = vmax.f32 %v814, 0.0
      %v917 = vmax.f32 %v819, 0.0
      %v918 = vmax.f32 %v822, 0.0
      %v919 = vmax.f32 %v827, 0.0
      %v920 = vmax.f32 %v830, 0.0
      %v921 = vmax.f32 %v835, 0.0
      %v922 = vmax.f32 %v838, 0.0
      %v923 = vmax.f32 %v843, 0.0
      %v924 = vmax.f32 %v846, 0.0
      %v925 = vmax.f32 %v851, 0.0
      %v926 = vmax.f32 %v854, 0.0
      %v927 = vmax.f32 %v859, 0.0
      %v928 = vmax.f32 %v862, 0.0
      %v929 = vmax.f32 %v867, 0.0
      %v930 = vmax.f32 %v870, 0.0
      %v931 = vmax.f32 %v875, 0.0
      %v932 = vmax.f32 %v878, 0.0
      %v933 = vmax.f32 %v883, 0.0
      %v934 = vmax.f32 %v886, 0.0
      %v935 = vmax.f32 %v891, 0.0
      %v936 = vmax.f32 %v894, 0.0
      %v937 = vmax.f32 %v899, 0.0
      %v938 = vmax.f32 %v902, 0.0
      %v939 = vmax.f32 %v907, 0.0
      %v940 = vmax.f32 %v910, 0.0
      %941 = vst [vmem:[%s148] sm:$0xff] %v913
      %942 = vst [vmem:[%s148 + $0x8] sm:$0xff] %v914
      %943 = vst [vmem:[%s148 + $0x10] sm:$0xff] %v915
      %944 = vst [vmem:[%s148 + $0x18] sm:$0xff] %v916
      %945 = vst [vmem:[%s148 + $0x20] sm:$0xff] %v917
      %946 = vst [vmem:[%s148 + $0x28] sm:$0xff] %v918
      %947 = vst [vmem:[%s148 + $0x30] sm:$0xff] %v919
      %948 = vst [vmem:[%s148 + $0x38] sm:$0xff] %v920
      %949 = vst [vmem:[%s148 + $0x40] sm:$0xff] %v921
      %950 = vst [vmem:[%s148 + $0x48] sm:$0xff] %v922
      %951 = vst [vmem:[%s148 + $0x50] sm:$0xff] %v923
      %952 = vst [vmem:[%s148 + $0x58] sm:$0xff] %v924
      %953 = vst [vmem:[%s148 + $0x60] sm:$0xff] %v925
      %954 = vst [vmem:[%s148 + $0x68] sm:$0xff] %v926
      %955 = vst [vmem:[%s148 + $0x70] sm:$0xff] %v927
      %956 = vst [vmem:[%s148 + $0x78] sm:$0xff] %v928
      %957 = vst [vmem:[%s148 + $0x80] sm:$0xff] %v929
      %958 = vst [vmem:[%s148 + $0x88] sm:$0xff] %v930
      %959 = vst [vmem:[%s148 + $0x90] sm:$0xff] %v931
      %960 = vst [vmem:[%s148 + $0x98] sm:$0xff] %v932
      %961 = vst [vmem:[%s148 + $0xa0] sm:$0xff] %v933
      %962 = vst [vmem:[%s148 + $0xa8] sm:$0xff] %v934
      %963 = vst [vmem:[%s148 + $0xb0] sm:$0xff] %v935
      %964 = vst [vmem:[%s148 + $0xb8] sm:$0xff] %v936
      %965 = vst [vmem:[%s148 + $0xc0] sm:$0xff] %v937
      %966 = vst [vmem:[%s148 + $0xc8] sm:$0xff] %v938
      %967 = vst [vmem:[%s148 + $0xd0] sm:$0xff] %v939
      %968 = vst [vmem:[%s148 + $0xd8] sm:$0xff] %v940
      %s969 = smul.u32 28, %s13
      %p970 = scmp.lt.s32.totalorder %s969, 55
      %s971 = scalar_select %p970, %s969, 55
      %s972 = smul.addr %s971, 8
      %s973 = scalar_lea.vmem %s2, %s972
      // Predicated region
      $region29: #{cnn_xy_forward.7} parent=27 // pred_check
        %p974 = pneg %p78
      $region30: #{cnn_xy_forward.7} parent=27 // pred_check_branch
        %976 = sbr.rel (%p974) target = $region32
      $region31: #{cnn_xy_forward.7} parent=27 // pred_region
        %s977 = smul.u32 28, %s13
      $region32: #{cnn_xy_forward.7} parent=27 // pred_fallthru
        _
    $region28: #{cnn_xy_forward.7} parent=5 // pred_fallthru
      _
    %p978 = scmp.le.s32.totalorder 2, %s8
    // Predicated region
    $region33: #{cnn_xy_forward.7} parent=5 // pred_check
      %p979 = pneg %p978
    $region34: #{cnn_xy_forward.7} parent=5 // pred_check_branch
      %981 = sbr.rel (%p979) target = $region36
    $region35: #{cnn_xy_forward.7} parent=5 // pred_region
      %s982 = ssub.s32 %s8, 2
      // Predicated region
      $region37: #{cnn_xy_forward.7} parent=35 // pred_check
        %p983 = pneg %p84
      $region38: #{cnn_xy_forward.7} parent=35 // pred_check_branch
        %985 = sbr.rel (%p983) target = $region40
      $region39: #{cnn_xy_forward.7} parent=35 // pred_region
        %s986 = smul.u32 28, %s14
        %p987 = scmp.lt.s32.totalorder %s986, 55
        %s988 = scalar_select %p987, %s986, 55
        %s989 = smul.addr %s988, 8
        %s990 = scalar_lea.vmem %s2, %s989
      $region40: #{cnn_xy_forward.7} parent=35 // pred_fallthru
        _
    $region36: #{cnn_xy_forward.7} parent=5 // pred_fallthru
      _
  $region6: #{cnn_xy_forward.7} parent=0 // loop_footer
    %s12 = sadd.s32 1, %s8
  $region7: #{cnn_xy_forward.7} parent=0 // loop_footer_branch
    %7 = sbr.rel target = $region3
  $region8: #{cnn_xy_forward.7} parent=0 // loop_exit
    _

// kernel: cnn_xy_forward.8
$region0: #{cnn_xy_forward.8}
  #allocation0 [shape = 'u32[]', space=smem, size = 0x4, offset = 0x4, fixed_abs, tag = 'smem constant byte address 0x4 - core index']
  #allocation1 [shape = 'u32[144,128]{1,0:T(1,128)}', space=vmem, size = 0x12000, scoped, tag = 'internal scratch']
  %s0 = inlined_call_operand.vmem [shape: bf16[288,640], index: 0, kind: input, shape index: {}]
  %s1 = inlined_call_operand.vmem [shape: bf16[640,128], index: 1, kind: input, shape index: {}]
  %s2 = inlined_call_operand.vmem [shape: f32[288,128], index: 2, kind: output, shape index: {}]
  %s3 = sld [smem:[#allocation0]]
  $region41: #{cnn_xy_forward.8} parent=0
    _
  %s5 = ssub.s32 1, %s3
  %s6 = scalar_select 0, %s5, %s3
  loop: start=0, step=1, limit=4
  $region2: #{cnn_xy_forward.8} parent=0 // loop_pre_header
    _
  $region3: #{cnn_xy_forward.8} parent=0 // loop_header
    %s8 = sphi 0, %s12
    %p9 = scmp.ge.s32.totalorder %s8, 4
    %s18 = sphi 0, %s20
    %s21 = sphi 0, %s18
    %s22 = sphi 0, %s21
    %s38 = sphi 0, %s22
    %s42 = sphi 0, %s42
    %s44 = sphi 0, %s42
    %s45 = sphi 0, %s44
    %s59 = sphi 0, %s45
    %s65 = sphi 0, %s67
    %s68 = sphi 0, %s65
    %s69 = sphi 0, %s68
    %s85 = sphi 0, %s69
  $region4: #{cnn_xy_forward.8} parent=0 // loop_header_branch
    %11 = sbr.rel (%p9) target = $region8
  $region5: #{cnn_xy_forward.8} parent=0 // loop_body
    %s13 = ssub.s32 %s8, 1
    %s14 = ssub.s32 %s8, 2
    %s15 = sadd.s32 %s8, 1
    %s16 = ssub.s32 %s8, %s15
    %p17 = scmp.eq.s32.totalorder %s16, 0
    %s19 = sadd.s32 %s18, 1
    %s20 = scalar_select %p17, %s18, %s19
    %p23 = pneg %p17
    %p24 = scmp.eq.s32.totalorder %s8, 1
    %p25 = por %p23, %p24
    %p26 = scmp.ne.s32.totalorder %s18, %s21
    %p27 = scmp.eq.s32.totalorder %s8, 0
    %p28 = por %p26, %p27
    %p29 = scmp.ne.s32.totalorder %s18, %s21
    %p30 = scmp.eq.s32.totalorder %s13, 1
    %p31 = por %p29, %p30
    %p32 = scmp.ne.s32.totalorder %s21, %s22
    %p33 = scmp.eq.s32.totalorder %s13, 0
    %p34 = por %p32, %p33
    %p35 = scmp.ne.s32.totalorder %s21, %s22
    %p36 = scmp.eq.s32.totalorder %s14, 1
    %p37 = por %p35, %p36
    %p39 = scmp.ne.s32.totalorder %s22, %s38
    %p40 = scmp.eq.s32.totalorder %s14, 0
    %p41 = por %p39, %p40
    %s43 = sadd.s32 %s42, 1
    %p46 = scmp.eq.s32.totalorder %s8, 1
    %p47 = scmp.ne.s32.totalorder %s42, %s44
    %p48 = scmp.eq.s32.totalorder %s8, 0
    %p49 = por %p47, %p48
    %p50 = scmp.ne.s32.totalorder %s42, %s44
    %p51 = scmp.eq.s32.totalorder %s13, 1
    %p52 = por %p50, %p51
    %p53 = scmp.ne.s32.totalorder %s44, %s45
    %p54 = scmp.eq.s32.totalorder %s13, 0
    %p55 = por %p53, %p54
    %p56 = scmp.ne.s32.totalorder %s44, %s45
    %p57 = scmp.eq.s32.totalorder %s14, 1
    %p58 = por %p56, %p57
    %p60 = scmp.ne.s32.totalorder %s45, %s59
    %p61 = scmp.eq.s32.totalorder %s14, 0
    %p62 = por %p60, %p61
    %s63 = ssub.s32 %s8, %s15
    %p64 = scmp.eq.s32.totalorder %s63, 0
    %s66 = sadd.s32 %s65, 1
    %s67 = scalar_select %p64, %s65, %s66
    %p70 = pneg %p64
    %p71 = scmp.eq.s32.totalorder %s8, 1
    %p72 = por %p70, %p71
    %p73 = scmp.ne.s32.totalorder %s65, %s68
    %p74 = scmp.eq.s32.totalorder %s8, 0
    %p75 = por %p73, %p74
    %p76 = scmp.ne.s32.totalorder %s65, %s68
    %p77 = scmp.eq.s32.totalorder %s13, 1
    %p78 = por %p76, %p77
    %p79 = scmp.ne.s32.totalorder %s68, %s69
    %p80 = scmp.eq.s32.totalorder %s13, 0
    %p81 = por %p79, %p80
    %p82 = scmp.ne.s32.totalorder %s68, %s69
    %p83 = scmp.eq.s32.totalorder %s14, 1
    %p84 = por %p82, %p83
    %p86 = scmp.ne.s32.totalorder %s69, %s85
    %p87 = scmp.eq.s32.totalorder %s14, 0
    %p88 = por %p86, %p87
    %p89 = scmp.le.s32.totalorder 1, %s8
    %p90 = scmp.lt.s32.totalorder %s8, 3
    %p91 = pnand %p89, %p90
    %p92 = pneg %p91
    // Predicated region
    $region9: #{cnn_xy_forward.8} parent=5 // pred_check
      _
    $region10: #{cnn_xy_forward.8} parent=5 // pred_check_branch
      %94 = sbr.rel (%p91) target = $region12
    $region11: #{cnn_xy_forward.8} parent=5 // pred_region
      %s95 = ssub.s32 %s8, 1
      // Predicated region
      $region13: #{cnn_xy_forward.8} parent=11 // pred_check
        %p96 = pneg %p55
      $region14: #{cnn_xy_forward.8} parent=11 // pred_check_branch
        %98 = sbr.rel (%p96) target = $region16
      $region15: #{cnn_xy_forward.8} parent=11 // pred_region
        _
      $region16: #{cnn_xy_forward.8} parent=11 // pred_fallthru
        _
    $region12: #{cnn_xy_forward.8} parent=5 // pred_fallthru
      _
    %p99 = scmp.lt.s32.totalorder %s8, 2
    // Predicated region
    $region17: #{cnn_xy_forward.8} parent=5 // pred_check
      %p100 = pneg %p99
    $region18: #{cnn_xy_forward.8} parent=5 // pred_check_branch
      %102 = sbr.rel (%p100) target = $region20
    $region19: #{cnn_xy_forward.8} parent=5 // pred_region
      // Predicated region
      $region21: #{cnn_xy_forward.8} parent=19 // pred_check
        %p103 = pneg %p28
      $region22: #{cnn_xy_forward.8} parent=19 // pred_check_branch
        %105 = sbr.rel (%p103) target = $region24
      $region23: #{cnn_xy_forward.8} parent=19 // pred_region
        %s106 = smul.u32 18, %s8
        %p107 = scmp.lt.s32.totalorder %s106, 35
        %s108 = scalar_select %p107, %s106, 35
        %s109 = smul.addr %s108, 5
        %s110 = smul.addr %s109, 4
        %s111 = scalar_lea.vmem %s0, %s110
        %s112 = smul.u32 18, %s8
      $region24: #{cnn_xy_forward.8} parent=19 // pred_fallthru
        _
    $region20: #{cnn_xy_forward.8} parent=5 // pred_fallthru
      _
    %p113 = scmp.le.s32.totalorder 1, %s8
    %p114 = scmp.lt.s32.totalorder %s8, 3
    %p115 = pnand %p113, %p114
    %p116 = pneg %p115
    // Predicated region
    $region25: #{cnn_xy_forward.8} parent=5 // pred_check
      _
    $region26: #{cnn_xy_forward.8} parent=5 // pred_check_branch
      %118 = sbr.rel (%p115) target = $region28
    $region27: #{cnn_xy_forward.8} parent=5 // pred_region
      %s119 = ssub.s32 %s8, 1
      %s120 = smul.u32 18, %s13
      %p121 = scmp.lt.s32.totalorder %s120, 35
      %s122 = scalar_select %p121, %s120, 35
      %s123 = smul.addr %s122, 5
      %s124 = smul.addr %s123, 4
      %s125 = scalar_lea.vmem %s0, %s124
      %p126 = pneg %p34
      %p127 = pneg %p31
      %p128 = pneg %p55
      %p129 = pneg %p52
      %p130 = pneg %p81
      %p131 = pneg %p78
      %s132 = smul.u32 18, %s13
      %p133 = scmp.lt.s32.totalorder %s132, 35
      %s134 = scalar_select %p133, %s132, 35
      %s135 = smul.addr %s134, 8
      %s136 = scalar_lea.vmem %s2, %s135
      %s137 = smul.u32 18, %s13
      %p138 = scmp.lt.s32.totalorder %s137, 35
      %s139 = scalar_select %p138, %s137, 35
      %s140 = smul.addr %s139, 5
      %s141 = smul.addr %s140, 4
      %s142 = scalar_lea.vmem %s0, %s141
      %s143 = smul.u32 18, %s13
      %s144 = smul.u32 18, %s13
      %p145 = scmp.lt.s32.totalorder %s144, 35
      %s146 = scalar_select %p145, %s144, 35
      %s147 = smul.addr %s146, 8
      %s148 = scalar_lea.vmem %s2, %s147
      %s149 = smul.u32 18, %s13
      %v151 = vld [vmem:[%s142] sm:$0xff]
      %v152 = vld [vmem:[%s142 + $0x8] sm:$0xff]
      %v153 = vld [vmem:[%s142 + $0x10] sm:$0xf]
      %v154 = vld [vmem:[%s142 + $0x14] sm:$0xff]
      %v155 = vld [vmem:[%s142 + $0x1c] sm:$0xff]
      %v156 = vld [vmem:[%s142 + $0x24] sm:$0xf]
      %v157 = vld [vmem:[%s142 + $0x28] sm:$0xff]
      %v158 = vld [vmem:[%s142 + $0x30] sm:$0xff]
      %v159 = vld [vmem:[%s142 + $0x38] sm:$0xf]
      %v160 = vld [vmem:[%s142 + $0x3c] sm:$0xff]
      %v161 = vld [vmem:[%s142 + $0x44] sm:$0xff]
      %v162 = vld [vmem:[%s142 + $0x4c] sm:$0xf]
      %v163 = vld [vmem:[%s142 + $0x50] sm:$0xff]
      %v164 = vld [vmem:[%s142 + $0x58] sm:$0xff]
      %v165 = vld [vmem:[%s142 + $0x60] sm:$0xf]
      %v166 = vld [vmem:[%s142 + $0x64] sm:$0xff]
      %v167 = vld [vmem:[%s142 + $0x6c] sm:$0xff]
      %v168 = vld [vmem:[%s142 + $0x74] sm:$0xf]
      %v169 = vld [vmem:[%s142 + $0x78] sm:$0xff]
      %v170 = vld [vmem:[%s142 + $0x80] sm:$0xff]
      %v171 = vld [vmem:[%s142 + $0x88] sm:$0xf]
      %v172 = vld [vmem:[%s142 + $0x8c] sm:$0xff]
      %v173 = vld [vmem:[%s142 + $0x94] sm:$0xff]
      %v174 = vld [vmem:[%s142 + $0x9c] sm:$0xf]
      %v175 = vld [vmem:[%s142 + $0xa0] sm:$0xff]
      %v176 = vld [vmem:[%s142 + $0xa8] sm:$0xff]
      %v177 = vld [vmem:[%s142 + $0xb0] sm:$0xf]
      %v178 = vld [vmem:[%s142 + $0xb4] sm:$0xff]
      %v179 = vld [vmem:[%s142 + $0xbc] sm:$0xff]
      %v180 = vld [vmem:[%s142 + $0xc4] sm:$0xf]
      %v181 = vld [vmem:[%s142 + $0xc8] sm:$0xff]
      %v182 = vld [vmem:[%s142 + $0xd0] sm:$0xff]
      %v183 = vld [vmem:[%s142 + $0xd8] sm:$0xf]
      %v184 = vld [vmem:[%s142 + $0xdc] sm:$0xff]
      %v185 = vld [vmem:[%s142 + $0xe4] sm:$0xff]
      %v186 = vld [vmem:[%s142 + $0xec] sm:$0xf]
      %v187 = vld [vmem:[%s142 + $0xf0] sm:$0xff]
      %v188 = vld [vmem:[%s142 + $0xf8] sm:$0xff]
      %v189 = vld [vmem:[%s142 + $0x100] sm:$0xf]
      %v190 = vld [vmem:[%s142 + $0x104] sm:$0xff]
      %v191 = vld [vmem:[%s142 + $0x10c] sm:$0xff]
      %v192 = vld [vmem:[%s142 + $0x114] sm:$0xf]
      %v193 = vld [vmem:[%s142 + $0x118] sm:$0xff]
      %v194 = vld [vmem:[%s142 + $0x120] sm:$0xff]
      %v195 = vld [vmem:[%s142 + $0x128] sm:$0xf]
      %v196 = vld [vmem:[%s142 + $0x12c] sm:$0xff]
      %v197 = vld [vmem:[%s142 + $0x134] sm:$0xff]
      %v198 = vld [vmem:[%s142 + $0x13c] sm:$0xf]
      %v199 = vld [vmem:[%s142 + $0x140] sm:$0xff]
      %v200 = vld [vmem:[%s142 + $0x148] sm:$0xff]
      %v201 = vld [vmem:[%s142 + $0x150] sm:$0xf]
      %v202 = vld [vmem:[%s142 + $0x154] sm:$0xff]
      %v203 = vld [vmem:[%s142 + $0x15c] sm:$0xff]
      %v204 = vld [vmem:[%s142 + $0x164] sm:$0xf]
      %v205 = vld [vmem:[%s1] sm:$0xf]
      %v206 = vld [vmem:[%s1 + $0x4] sm:$0xf]
      %v207 = vld [vmem:[%s1 + $0x8] sm:$0xf]
      %v208 = vld [vmem:[%s1 + $0xc] sm:$0xf]
      %v209 = vld [vmem:[%s1 + $0x10] sm:$0xf]
      %v210 = vld [vmem:[%s1 + $0x14] sm:$0xf]
      %v211 = vld [vmem:[%s1 + $0x18] sm:$0xf]
      %v212 = vld [vmem:[%s1 + $0x1c] sm:$0xf]
      %v213 = vld [vmem:[%s1 + $0x20] sm:$0xf]
      %v214 = vld [vmem:[%s1 + $0x24] sm:$0xf]
      %v215 = vld [vmem:[%s1 + $0x28] sm:$0xf]
      %v216 = vld [vmem:[%s1 + $0x2c] sm:$0xf]
      %v217 = vld [vmem:[%s1 + $0x30] sm:$0xf]
      %v218 = vld [vmem:[%s1 + $0x34] sm:$0xf]
      %v219 = vld [vmem:[%s1 + $0x38] sm:$0xf]
      %v220 = vld [vmem:[%s1 + $0x3c] sm:$0xf]
      %v221 = vld [vmem:[%s1 + $0x40] sm:$0xf]
      %v222 = vld [vmem:[%s1 + $0x44] sm:$0xf]
      %v223 = vld [vmem:[%s1 + $0x48] sm:$0xf]
      %v224 = vld [vmem:[%s1 + $0x4c] sm:$0xf]
      %v225 = vld [vmem:[%s1 + $0x50] sm:$0xf]
      %v226 = vld [vmem:[%s1 + $0x54] sm:$0xf]
      %v227 = vld [vmem:[%s1 + $0x58] sm:$0xf]
      %v228 = vld [vmem:[%s1 + $0x5c] sm:$0xf]
      %v229 = vld [vmem:[%s1 + $0x60] sm:$0xf]
      %v230 = vld [vmem:[%s1 + $0x64] sm:$0xf]
      %v231 = vld [vmem:[%s1 + $0x68] sm:$0xf]
      %v232 = vld [vmem:[%s1 + $0x6c] sm:$0xf]
      %v233 = vld [vmem:[%s1 + $0x70] sm:$0xf]
      %v234 = vld [vmem:[%s1 + $0x74] sm:$0xf]
      %v235 = vld [vmem:[%s1 + $0x78] sm:$0xf]
      %v236 = vld [vmem:[%s1 + $0x7c] sm:$0xf]
      %v237 = vld [vmem:[%s1 + $0x80] sm:$0xf]
      %v238 = vld [vmem:[%s1 + $0x84] sm:$0xf]
      %v239 = vld [vmem:[%s1 + $0x88] sm:$0xf]
      %v240 = vld [vmem:[%s1 + $0x8c] sm:$0xf]
      %v241 = vld [vmem:[%s1 + $0x90] sm:$0xf]
      %v242 = vld [vmem:[%s1 + $0x94] sm:$0xf]
      %v243 = vld [vmem:[%s1 + $0x98] sm:$0xf]
      %v244 = vld [vmem:[%s1 + $0x9c] sm:$0xf]
      %v245 = vld [vmem:[%s1 + $0xa0] sm:$0xf]
      %v246 = vld [vmem:[%s1 + $0xa4] sm:$0xf]
      %v247 = vld [vmem:[%s1 + $0xa8] sm:$0xf]
      %v248 = vld [vmem:[%s1 + $0xac] sm:$0xf]
      %v249 = vld [vmem:[%s1 + $0xb0] sm:$0xf]
      %v250 = vld [vmem:[%s1 + $0xb4] sm:$0xf]
      %v251 = vld [vmem:[%s1 + $0xb8] sm:$0xf]
      %v252 = vld [vmem:[%s1 + $0xbc] sm:$0xf]
      %v253 = vld [vmem:[%s1 + $0xc0] sm:$0xf]
      %v254 = vld [vmem:[%s1 + $0xc4] sm:$0xf]
      %v255 = vld [vmem:[%s1 + $0xc8] sm:$0xf]
      %v256 = vld [vmem:[%s1 + $0xcc] sm:$0xf]
      %v257 = vld [vmem:[%s1 + $0xd0] sm:$0xf]
      %v258 = vld [vmem:[%s1 + $0xd4] sm:$0xf]
      %v259 = vld [vmem:[%s1 + $0xd8] sm:$0xf]
      %v260 = vld [vmem:[%s1 + $0xdc] sm:$0xf]
      %v261 = vld [vmem:[%s1 + $0xe0] sm:$0xf]
      %v262 = vld [vmem:[%s1 + $0xe4] sm:$0xf]
      %v263 = vld [vmem:[%s1 + $0xe8] sm:$0xf]
      %v264 = vld [vmem:[%s1 + $0xec] sm:$0xf]
      %v265 = vld [vmem:[%s1 + $0xf0] sm:$0xf]
      %v266 = vld [vmem:[%s1 + $0xf4] sm:$0xf]
      %v267 = vld [vmem:[%s1 + $0xf8] sm:$0xf]
      %v268 = vld [vmem:[%s1 + $0xfc] sm:$0xf]
      %v269 = vld [vmem:[%s1 + $0x100] sm:$0xf]
      %v270 = vld [vmem:[%s1 + $0x104] sm:$0xf]
      %v271 = vld [vmem:[%s1 + $0x108] sm:$0xf]
      %v272 = vld [vmem:[%s1 + $0x10c] sm:$0xf]
      %v273 = vld [vmem:[%s1 + $0x110] sm:$0xf]
      %v274 = vld [vmem:[%s1 + $0x114] sm:$0xf]
      %v275 = vld [vmem:[%s1 + $0x118] sm:$0xf]
      %v276 = vld [vmem:[%s1 + $0x11c] sm:$0xf]
      %v277 = vld [vmem:[%s1 + $0x120] sm:$0xf]
      %v278 = vld [vmem:[%s1 + $0x124] sm:$0xf]
      %v279 = vld [vmem:[%s1 + $0x128] sm:$0xf]
      %v280 = vld [vmem:[%s1 + $0x12c] sm:$0xf]
      %v281 = vld [vmem:[%s1 + $0x130] sm:$0xf]
      %v282 = vld [vmem:[%s1 + $0x134] sm:$0xf]
      %v283 = vld [vmem:[%s1 + $0x138] sm:$0xf]
      %v284 = vld [vmem:[%s1 + $0x13c] sm:$0xf]
      %v339 = vunpack.c.l.b16 %v151
      %v340 = vunpack.c.h.b16 %v151
      %v341 = vunpack.c.l.b16 %v152
      %v342 = vunpack.c.h.b16 %v152
      %v343 = vunpack.c.l.b16 %v153
      %v344 = vunpack.c.l.b16 %v154
      %v345 = vunpack.c.h.b16 %v154
      %v346 = vunpack.c.l.b16 %v155
      %v347 = vunpack.c.h.b16 %v155
      %v348 = vunpack.c.l.b16 %v156
      %v349 = vunpack.c.l.b16 %v157
      %v350 = vunpack.c.h.b16 %v157
      %v351 = vunpack.c.l.b16 %v158
      %v352 = vunpack.c.h.b16 %v158
      %v353 = vunpack.c.l.b16 %v159
      %v354 = vunpack.c.l.b16 %v160
      %v355 = vunpack.c.h.b16 %v160
      %v356 = vunpack.c.l.b16 %v161
      %v357 = vunpack.c.h.b16 %v161
      %v358 = vunpack.c.l.b16 %v162
      %v359 = vunpack.c.l.b16 %v163
      %v360 = vunpack.c.h.b16 %v163
      %v361 = vunpack.c.l.b16 %v164
      %v362 = vunpack.c.h.b16 %v164
      %v363 = vunpack.c.l.b16 %v165
      %v364 = vunpack.c.l.b16 %v166
      %v365 = vunpack.c.h.b16 %v166
      %v366 = vunpack.c.l.b16 %v167
      %v367 = vunpack.c.h.b16 %v167
      %v368 = vunpack.c.l.b16 %v168
      %v369 = vunpack.c.l.b16 %v169
      %v370 = vunpack.c.h.b16 %v169
      %v371 = vunpack.c.l.b16 %v170
      %v372 = vunpack.c.h.b16 %v170
      %v373 = vunpack.c.l.b16 %v171
      %v374 = vunpack.c.l.b16 %v172
      %v375 = vunpack.c.h.b16 %v172
      %v376 = vunpack.c.l.b16 %v173
      %v377 = vunpack.c.h.b16 %v173
      %v378 = vunpack.c.l.b16 %v174
      %v379 = vunpack.c.l.b16 %v175
      %v380 = vunpack.c.h.b16 %v175
      %v381 = vunpack.c.l.b16 %v176
      %v382 = vunpack.c.h.b16 %v176
      %v383 = vunpack.c.l.b16 %v177
      %v384 = vunpack.c.l.b16 %v178
      %v385 = vunpack.c.h.b16 %v178
      %v386 = vunpack.c.l.b16 %v179
      %v387 = vunpack.c.h.b16 %v179
      %v388 = vunpack.c.l.b16 %v180
      %v389 = vunpack.c.l.b16 %v181
      %v390 = vunpack.c.h.b16 %v181
      %v391 = vunpack.c.l.b16 %v182
      %v392 = vunpack.c.h.b16 %v182
      %v393 = vunpack.c.l.b16 %v183
      %v394 = vunpack.c.l.b16 %v184
      %v395 = vunpack.c.h.b16 %v184
      %v396 = vunpack.c.l.b16 %v185
      %v397 = vunpack.c.h.b16 %v185
      %v398 = vunpack.c.l.b16 %v186
      %v399 = vunpack.c.l.b16 %v187
      %v400 = vunpack.c.h.b16 %v187
      %v401 = vunpack.c.l.b16 %v188
      %v402 = vunpack.c.h.b16 %v188
      %v403 = vunpack.c.l.b16 %v189
      %v404 = vunpack.c.l.b16 %v190
      %v405 = vunpack.c.h.b16 %v190
      %v406 = vunpack.c.l.b16 %v191
      %v407 = vunpack.c.h.b16 %v191
      %v408 = vunpack.c.l.b16 %v192
      %v409 = vunpack.c.l.b16 %v193
      %v410 = vunpack.c.h.b16 %v193
      %v411 = vunpack.c.l.b16 %v194
      %v412 = vunpack.c.h.b16 %v194
      %v413 = vunpack.c.l.b16 %v195
      %v414 = vunpack.c.l.b16 %v196
      %v415 = vunpack.c.h.b16 %v196
      %v416 = vunpack.c.l.b16 %v197
      %v417 = vunpack.c.h.b16 %v197
      %v418 = vunpack.c.l.b16 %v198
      %v419 = vunpack.c.l.b16 %v199
      %v420 = vunpack.c.h.b16 %v199
      %v421 = vunpack.c.l.b16 %v200
      %v422 = vunpack.c.h.b16 %v200
      %v423 = vunpack.c.l.b16 %v201
      %v424 = vunpack.c.l.b16 %v202
      %v425 = vunpack.c.h.b16 %v202
      %v426 = vunpack.c.l.b16 %v203
      %v427 = vunpack.c.h.b16 %v203
      %v428 = vunpack.c.l.b16 %v204
      %v429 = vpack.c.b16 %v344, %v339
      %v430 = vpack.c.b16 %v345, %v340
      %v431 = vpack.c.b16 %v346, %v341
      %v432 = vpack.c.b16 %v347, %v342
      %v433 = vpack.c.b16 %v348, %v343
      %v434 = vpack.c.b16 %v354, %v349
      %v435 = vpack.c.b16 %v355, %v350
      %v436 = vpack.c.b16 %v356, %v351
      %v437 = vpack.c.b16 %v357, %v352
      %v438 = vpack.c.b16 %v358, %v353
      %v439 = vpack.c.b16 %v364, %v359
      %v440 = vpack.c.b16 %v365, %v360
      %v441 = vpack.c.b16 %v366, %v361
      %v442 = vpack.c.b16 %v367, %v362
      %v443 = vpack.c.b16 %v368, %v363
      %v444 = vpack.c.b16 %v374, %v369
      %v445 = vpack.c.b16 %v375, %v370
      %v446 = vpack.c.b16 %v376, %v371
      %v447 = vpack.c.b16 %v377, %v372
      %v448 = vpack.c.b16 %v378, %v373
      %v449 = vpack.c.b16 %v384, %v379
      %v450 = vpack.c.b16 %v385, %v380
      %v451 = vpack.c.b16 %v386, %v381
      %v452 = vpack.c.b16 %v387, %v382
      %v453 = vpack.c.b16 %v388, %v383
      %v454 = vpack.c.b16 %v394, %v389
      %v455 = vpack.c.b16 %v395, %v390
      %v456 = vpack.c.b16 %v396, %v391
      %v457 = vpack.c.b16 %v397, %v392
      %v458 = vpack.c.b16 %v398, %v393
      %v459 = vpack.c.b16 %v404, %v399
      %v460 = vpack.c.b16 %v405, %v400
      %v461 = vpack.c.b16 %v406, %v401
      %v462 = vpack.c.b16 %v407, %v402
      %v463 = vpack.c.b16 %v408, %v403
      %v464 = vpack.c.b16 %v414, %v409
      %v465 = vpack.c.b16 %v415, %v410
      %v466 = vpack.c.b16 %v416, %v411
      %v467 = vpack.c.b16 %v417, %v412
      %v468 = vpack.c.b16 %v418, %v413
      %v469 = vpack.c.b16 %v424, %v419
      %v470 = vpack.c.b16 %v425, %v420
      %v471 = vpack.c.b16 %v426, %v421
      %v472 = vpack.c.b16 %v427, %v422
      %v473 = vpack.c.b16 %v428, %v423
      %v599 = vunpack.c.l.b16 %v205
      %v600 = vunpack.c.l.b16 %v206
      %v601 = vunpack.c.l.b16 %v207
      %v602 = vunpack.c.l.b16 %v208
      %v603 = vunpack.c.l.b16 %v209
      %v604 = vunpack.c.l.b16 %v210
      %v605 = vunpack.c.l.b16 %v211
      %v606 = vunpack.c.l.b16 %v212
      %v607 = vunpack.c.l.b16 %v213
      %v608 = vunpack.c.l.b16 %v214
      %v609 = vunpack.c.l.b16 %v215
      %v610 = vunpack.c.l.b16 %v216
      %v611 = vunpack.c.l.b16 %v217
      %v612 = vunpack.c.l.b16 %v218
      %v613 = vunpack.c.l.b16 %v219
      %v614 = vunpack.c.l.b16 %v220
      %v615 = vunpack.c.l.b16 %v221
      %v616 = vunpack.c.l.b16 %v222
      %v617 = vunpack.c.l.b16 %v223
      %v618 = vunpack.c.l.b16 %v224
      %v619 = vunpack.c.l.b16 %v225
      %v620 = vunpack.c.l.b16 %v226
      %v621 = vunpack.c.l.b16 %v227
      %v622 = vunpack.c.l.b16 %v228
      %v623 = vunpack.c.l.b16 %v229
      %v624 = vunpack.c.l.b16 %v230
      %v625 = vunpack.c.l.b16 %v231
      %v626 = vunpack.c.l.b16 %v232
      %v627 = vunpack.c.l.b16 %v233
      %v628 = vunpack.c.l.b16 %v234
      %v629 = vunpack.c.l.b16 %v235
      %v630 = vunpack.c.l.b16 %v236
      %v631 = vunpack.c.l.b16 %v237
      %v632 = vunpack.c.l.b16 %v238
      %v633 = vunpack.c.l.b16 %v239
      %v634 = vunpack.c.l.b16 %v240
      %v635 = vunpack.c.l.b16 %v241
      %v636 = vunpack.c.l.b16 %v242
      %v637 = vunpack.c.l.b16 %v243
      %v638 = vunpack.c.l.b16 %v244
      %v639 = vunpack.c.l.b16 %v245
      %v640 = vunpack.c.l.b16 %v246
      %v641 = vunpack.c.l.b16 %v247
      %v642 = vunpack.c.l.b16 %v248
      %v643 = vunpack.c.l.b16 %v249
      %v644 = vunpack.c.l.b16 %v250
      %v645 = vunpack.c.l.b16 %v251
      %v646 = vunpack.c.l.b16 %v252
      %v647 = vunpack.c.l.b16 %v253
      %v648 = vunpack.c.l.b16 %v254
      %v649 = vunpack.c.l.b16 %v255
      %v650 = vunpack.c.l.b16 %v256
      %v651 = vunpack.c.l.b16 %v257
      %v652 = vunpack.c.l.b16 %v258
      %v653 = vunpack.c.l.b16 %v259
      %v654 = vunpack.c.l.b16 %v260
      %v655 = vunpack.c.l.b16 %v261
      %v656 = vunpack.c.l.b16 %v262
      %v657 = vunpack.c.l.b16 %v263
      %v658 = vunpack.c.l.b16 %v264
      %v659 = vunpack.c.l.b16 %v265
      %v660 = vunpack.c.l.b16 %v266
      %v661 = vunpack.c.l.b16 %v267
      %v662 = vunpack.c.l.b16 %v268
      %v663 = vunpack.c.l.b16 %v269
      %v664 = vunpack.c.l.b16 %v270
      %v665 = vunpack.c.l.b16 %v271
      %v666 = vunpack.c.l.b16 %v272
      %v667 = vunpack.c.l.b16 %v273
      %v668 = vunpack.c.l.b16 %v274
      %v669 = vunpack.c.l.b16 %v275
      %v670 = vunpack.c.l.b16 %v276
      %v671 = vunpack.c.l.b16 %v277
      %v672 = vunpack.c.l.b16 %v278
      %v673 = vunpack.c.l.b16 %v279
      %v674 = vunpack.c.l.b16 %v280
      %v675 = vunpack.c.l.b16 %v281
      %v676 = vunpack.c.l.b16 %v282
      %v677 = vunpack.c.l.b16 %v283
      %v678 = vunpack.c.l.b16 %v284
      %v679 = vpack.c.b16 %v600, %v599
      %v680 = vpack.c.b16 %v602, %v601
      %v681 = vpack.c.b16 %v604, %v603
      %v682 = vpack.c.b16 %v606, %v605
      %v683 = vpack.c.b16 %v608, %v607
      %v684 = vpack.c.b16 %v610, %v609
      %v685 = vpack.c.b16 %v612, %v611
      %v686 = vpack.c.b16 %v614, %v613
      %v687 = vpack.c.b16 %v616, %v615
      %v688 = vpack.c.b16 %v618, %v617
      %v689 = vpack.c.b16 %v620, %v619
      %v690 = vpack.c.b16 %v622, %v621
      %v691 = vpack.c.b16 %v624, %v623
      %v692 = vpack.c.b16 %v626, %v625
      %v693 = vpack.c.b16 %v628, %v627
      %v694 = vpack.c.b16 %v630, %v629
      %v695 = vpack.c.b16 %v632, %v631
      %v696 = vpack.c.b16 %v634, %v633
      %v697 = vpack.c.b16 %v636, %v635
      %v698 = vpack.c.b16 %v638, %v637
      %v699 = vpack.c.b16 %v640, %v639
      %v700 = vpack.c.b16 %v642, %v641
      %v701 = vpack.c.b16 %v644, %v643
      %v702 = vpack.c.b16 %v646, %v645
      %v703 = vpack.c.b16 %v648, %v647
      %v704 = vpack.c.b16 %v650, %v649
      %v705 = vpack.c.b16 %v652, %v651
      %v706 = vpack.c.b16 %v654, %v653
      %v707 = vpack.c.b16 %v656, %v655
      %v708 = vpack.c.b16 %v658, %v657
      %v709 = vpack.c.b16 %v660, %v659
      %v710 = vpack.c.b16 %v662, %v661
      %v711 = vpack.c.b16 %v664, %v663
      %v712 = vpack.c.b16 %v666, %v665
      %v713 = vpack.c.b16 %v668, %v667
      %v714 = vpack.c.b16 %v670, %v669
      %v715 = vpack.c.b16 %v672, %v671
      %v716 = vpack.c.b16 %v674, %v673
      %v717 = vpack.c.b16 %v676, %v675
      %v718 = vpack.c.b16 %v678, %v677
      %759 = vmatprep.subr.bf16.mxu0 0
      %760 = vmatpush1.bf16.msra.mxu0 %v679
      %761 = vmatprep.subr.bf16.mxu0 0
      %762 = vmatpush1.bf16.msra.mxu0 %v680
      %763 = vmatprep.subr.bf16.mxu0 0
      %764 = vmatpush1.bf16.msra.mxu0 %v681
      %765 = vmatprep.subr.bf16.mxu0 0
      %766 = vmatpush1.bf16.msra.mxu0 %v682
      %767 = vmatprep.subr.bf16.mxu0 0
      %768 = vmatpush1.bf16.msra.mxu0 %v683
      %769 = vmatprep.subr.bf16.mxu0 0
      %770 = vmatpush1.bf16.msra.mxu0 %v684
      %771 = vmatprep.subr.bf16.mxu0 0
      %772 = vmatpush1.bf16.msra.mxu0 %v685
      %773 = vmatprep.subr.bf16.mxu0 0
      %774 = vmatpush1.bf16.msra.mxu0 %v686
      %775 = vmatprep.subr.bf16.mxu0 0
      %776 = vmatpush1.bf16.msra.mxu0 %v687
      %777 = vmatprep.subr.bf16.mxu0 0
      %778 = vmatpush1.bf16.msra.mxu0 %v688
      %779 = vmatprep.subr.bf16.mxu0 0
      %780 = vmatpush1.bf16.msra.mxu0 %v689
      %781 = vmatprep.subr.bf16.mxu0 0
      %782 = vmatpush1.bf16.msra.mxu0 %v690
      %783 = vmatprep.subr.bf16.mxu0 0
      %784 = vmatpush1.bf16.msra.mxu0 %v691
      %785 = vmatprep.subr.bf16.mxu0 0
      %786 = vmatpush1.bf16.msra.mxu0 %v692
      %787 = vmatprep.subr.bf16.mxu0 0
      %788 = vmatpush1.bf16.msra.mxu0 %v693
      %789 = vmatprep.subr.bf16.mxu0 0
      %790 = vmatpush1.bf16.msra.mxu0 %v694
      %791 = vmatprep.mubr.bf16.mxu0 %v430
      %792 = vmatmul.mubr.bf16.gmra.mrb[0].mxu0 %v429
      %v793 = vpop.f32.mrb[0].mxu0
      %v794 = vadd.f32 0.0, %v793
      %v795 = vpop.f32.mrb[0].mxu0
      %v796 = vpop.f32.mrb[0].mxu0
      %v797 = vadd.f32 0.0, %v796
      %v798 = vpop.f32.mrb[0].mxu0
      %799 = vmatprep.mubr.bf16.mxu0 %v435
      %800 = vmatmul.mubr.bf16.gmra.mrb[0].mxu0 %v434
      %v801 = vpop.f32.mrb[0].mxu0
      %v802 = vadd.f32 0.0, %v801
      %v803 = vpop.f32.mrb[0].mxu0
      %v804 = vpop.f32.mrb[0].mxu0
      %v805 = vadd.f32 0.0, %v804
      %v806 = vpop.f32.mrb[0].mxu0
      %807 = vmatprep.mubr.bf16.mxu0 %v440
      %808 = vmatmul.mubr.bf16.gmra.mrb[0].mxu0 %v439
      %v809 = vpop.f32.mrb[0].mxu0
      %v810 = vadd.f32 0.0, %v809
      %v811 = vpop.f32.mrb[0].mxu0
      %v812 = vpop.f32.mrb[0].mxu0
      %v813 = vadd.f32 0.0, %v812
      %v814 = vpop.f32.mrb[0].mxu0
      %815 = vmatprep.mubr.bf16.mxu0 %v445
      %816 = vmatmul.mubr.bf16.gmra.mrb[0].mxu0 %v444
      %v817 = vpop.f32.mrb[0].mxu0
      %v818 = vadd.f32 0.0, %v817
      %v819 = vpop.f32.mrb[0].mxu0
      %v820 = vpop.f32.mrb[0].mxu0
      %v821 = vadd.f32 0.0, %v820
      %v822 = vpop.f32.mrb[0].mxu0
      %823 = vmatprep.mubr.bf16.mxu0 %v450
      %824 = vmatmul.mubr.bf16.gmra.mrb[0].mxu0 %v449
      %v825 = vpop.f32.mrb[0].mxu0
      %v826 = vadd.f32 0.0, %v825
      %v827 = vpop.f32.mrb[0].mxu0
      %v828 = vpop.f32.mrb[0].mxu0
      %v829 = vadd.f32 0.0, %v828
      %v830 = vpop.f32.mrb[0].mxu0
      %831 = vmatprep.mubr.bf16.mxu0 %v455
      %832 = vmatmul.mubr.bf16.gmra.mrb[0].mxu0 %v454
      %v833 = vpop.f32.mrb[0].mxu0
      %v834 = vadd.f32 0.0, %v833
      %v835 = vpop.f32.mrb[0].mxu0
      %v836 = vpop.f32.mrb[0].mxu0
      %v837 = vadd.f32 0.0, %v836
      %v838 = vpop.f32.mrb[0].mxu0
      %839 = vmatprep.mubr.bf16.mxu0 %v460
      %840 = vmatmul.mubr.bf16.gmra.mrb[0].mxu0 %v459
      %v841 = vpop.f32.mrb[0].mxu0
      %v842 = vadd.f32 0.0, %v841
      %v843 = vpop.f32.mrb[0].mxu0
      %v844 = vpop.f32.mrb[0].mxu0
      %v845 = vadd.f32 0.0, %v844
      %v846 = vpop.f32.mrb[0].mxu0
      %847 = vmatprep.mubr.bf16.mxu0 %v465
      %848 = vmatmul.mubr.bf16.gmra.mrb[0].mxu0 %v464
      %v849 = vpop.f32.mrb[0].mxu0
      %v850 = vadd.f32 0.0, %v849
      %v851 = vpop.f32.mrb[0].mxu0
      %v852 = vpop.f32.mrb[0].mxu0
      %v853 = vadd.f32 0.0, %v852
      %v854 = vpop.f32.mrb[0].mxu0
      %855 = vmatprep.mubr.bf16.mxu0 %v470
      %856 = vmatmul.mubr.bf16.gmra.mrb[0].mxu0 %v469
      %v857 = vpop.f32.mrb[0].mxu0
      %v858 = vadd.f32 0.0, %v857
      %v859 = vpop.f32.mrb[0].mxu0
      %v860 = vpop.f32.mrb[0].mxu0
      %v861 = vadd.f32 0.0, %v860
      %v862 = vpop.f32.mrb[0].mxu0
      %863 = vdwg.mxu0
      %864 = vmatprep.subr.bf16.mxu0 0
      %865 = vmatpush1.bf16.msra.mxu0 %v695
      %866 = vmatprep.subr.bf16.mxu0 0
      %867 = vmatpush1.bf16.msra.mxu0 %v696
      %868 = vmatprep.subr.bf16.mxu0 0
      %869 = vmatpush1.bf16.msra.mxu0 %v697
      %870 = vmatprep.subr.bf16.mxu0 0
      %871 = vmatpush1.bf16.msra.mxu0 %v698
      %872 = vmatprep.subr.bf16.mxu0 0
      %873 = vmatpush1.bf16.msra.mxu0 %v699
      %874 = vmatprep.subr.bf16.mxu0 0
      %875 = vmatpush1.bf16.msra.mxu0 %v700
      %876 = vmatprep.subr.bf16.mxu0 0
      %877 = vmatpush1.bf16.msra.mxu0 %v701
      %878 = vmatprep.subr.bf16.mxu0 0
      %879 = vmatpush1.bf16.msra.mxu0 %v702
      %880 = vmatprep.subr.bf16.mxu0 0
      %881 = vmatpush1.bf16.msra.mxu0 %v703
      %882 = vmatprep.subr.bf16.mxu0 0
      %883 = vmatpush1.bf16.msra.mxu0 %v704
      %884 = vmatprep.subr.bf16.mxu0 0
      %885 = vmatpush1.bf16.msra.mxu0 %v705
      %886 = vmatprep.subr.bf16.mxu0 0
      %887 = vmatpush1.bf16.msra.mxu0 %v706
      %888 = vmatprep.subr.bf16.mxu0 0
      %889 = vmatpush1.bf16.msra.mxu0 %v707
      %890 = vmatprep.subr.bf16.mxu0 0
      %891 = vmatpush1.bf16.msra.mxu0 %v708
      %892 = vmatprep.subr.bf16.mxu0 0
      %893 = vmatpush1.bf16.msra.mxu0 %v709
      %894 = vmatprep.subr.bf16.mxu0 0
      %895 = vmatpush1.bf16.msra.mxu0 %v710
      %896 = vmatprep.mubr.bf16.mxu0 %v432
      %897 = vmatmul.mubr.bf16.gmra.mrb[0].mxu0 %v431
      %v898 = vpop.f32.mrb[0].mxu0
      %v899 = vadd.f32 %v794, %v898
      %v900 = vpop.f32.mrb[0].mxu0
      %v901 = vpop.f32.mrb[0].mxu0
      %v902 = vadd.f32 %v797, %v901
      %v903 = vpop.f32.mrb[0].mxu0
      %904 = vmatprep.mubr.bf16.mxu0 %v437
      %905 = vmatmul.mubr.bf16.gmra.mrb[0].mxu0 %v436
      %v906 = vpop.f32.mrb[0].mxu0
      %v907 = vadd.f32 %v802, %v906
      %v908 = vpop.f32.mrb[0].mxu0
      %v909 = vpop.f32.mrb[0].mxu0
      %v910 = vadd.f32 %v805, %v909
      %v911 = vpop.f32.mrb[0].mxu0
      %912 = vmatprep.mubr.bf16.mxu0 %v442
      %913 = vmatmul.mubr.bf16.gmra.mrb[0].mxu0 %v441
      %v914 = vpop.f32.mrb[0].mxu0
      %v915 = vadd.f32 %v810, %v914
      %v916 = vpop.f32.mrb[0].mxu0
      %v917 = vpop.f32.mrb[0].mxu0
      %v918 = vadd.f32 %v813, %v917
      %v919 = vpop.f32.mrb[0].mxu0
      %920 = vmatprep.mubr.bf16.mxu0 %v447
      %921 = vmatmul.mubr.bf16.gmra.mrb[0].mxu0 %v446
      %v922 = vpop.f32.mrb[0].mxu0
      %v923 = vadd.f32 %v818, %v922
      %v924 = vpop.f32.mrb[0].mxu0
      %v925 = vpop.f32.mrb[0].mxu0
      %v926 = vadd.f32 %v821, %v925
      %v927 = vpop.f32.mrb[0].mxu0
      %928 = vmatprep.mubr.bf16.mxu0 %v452
      %929 = vmatmul.mubr.bf16.gmra.mrb[0].mxu0 %v451
      %v930 = vpop.f32.mrb[0].mxu0
      %v931 = vadd.f32 %v826, %v930
      %v932 = vpop.f32.mrb[0].mxu0
      %v933 = vpop.f32.mrb[0].mxu0
      %v934 = vadd.f32 %v829, %v933
      %v935 = vpop.f32.mrb[0].mxu0
      %936 = vmatprep.mubr.bf16.mxu0 %v457
      %937 = vmatmul.mubr.bf16.gmra.mrb[0].mxu0 %v456
      %v938 = vpop.f32.mrb[0].mxu0
      %v939 = vadd.f32 %v834, %v938
      %v940 = vpop.f32.mrb[0].mxu0
      %v941 = vpop.f32.mrb[0].mxu0
      %v942 = vadd.f32 %v837, %v941
      %v943 = vpop.f32.mrb[0].mxu0
      %944 = vmatprep.mubr.bf16.mxu0 %v462
      %945 = vmatmul.mubr.bf16.gmra.mrb[0].mxu0 %v461
      %v946 = vpop.f32.mrb[0].mxu0
      %v947 = vadd.f32 %v842, %v946
      %v948 = vpop.f32.mrb[0].mxu0
      %v949 = vpop.f32.mrb[0].mxu0
      %v950 = vadd.f32 %v845, %v949
      %v951 = vpop.f32.mrb[0].mxu0
      %952 = vmatprep.mubr.bf16.mxu0 %v467
      %953 = vmatmul.mubr.bf16.gmra.mrb[0].mxu0 %v466
      %v954 = vpop.f32.mrb[0].mxu0
      %v955 = vadd.f32 %v850, %v954
      %v956 = vpop.f32.mrb[0].mxu0
      %v957 = vpop.f32.mrb[0].mxu0
      %v958 = vadd.f32 %v853, %v957
      %v959 = vpop.f32.mrb[0].mxu0
      %960 = vmatprep.mubr.bf16.mxu0 %v472
      %961 = vmatmul.mubr.bf16.gmra.mrb[0].mxu0 %v471
      %v962 = vpop.f32.mrb[0].mxu0
      %v963 = vadd.f32 %v858, %v962
      %v964 = vpop.f32.mrb[0].mxu0
      %v965 = vpop.f32.mrb[0].mxu0
      %v966 = vadd.f32 %v861, %v965
      %v967 = vpop.f32.mrb[0].mxu0
      %968 = vdwg.mxu0
      %969 = vmatprep.subr.bf16.mxu0 0
      %970 = vmatpush1.bf16.msra.mxu0 %v711
      %971 = vmatprep.subr.bf16.mxu0 0
      %972 = vmatpush1.bf16.msra.mxu0 %v712
      %973 = vmatprep.subr.bf16.mxu0 0
      %974 = vmatpush1.bf16.msra.mxu0 %v713
      %975 = vmatprep.subr.bf16.mxu0 0
      %976 = vmatpush1.bf16.msra.mxu0 %v714
      %977 = vmatprep.subr.bf16.mxu0 0
      %978 = vmatpush1.bf16.msra.mxu0 %v715
      %979 = vmatprep.subr.bf16.mxu0 0
      %980 = vmatpush1.bf16.msra.mxu0 %v716
      %981 = vmatprep.subr.bf16.mxu0 0
      %982 = vmatpush1.bf16.msra.mxu0 %v717
      %983 = vmatprep.subr.bf16.mxu0 0
      %984 = vmatpush1.bf16.msra.mxu0 %v718
      %985 = vmatprep.subr.bf16.mxu0 0
      %986 = vmatpush1.bf16.msra.mxu0 0
      %987 = vmatprep.subr.bf16.mxu0 0
      %988 = vmatpush1.bf16.msra.mxu0 0
      %989 = vmatprep.subr.bf16.mxu0 0
      %990 = vmatpush1.bf16.msra.mxu0 0
      %991 = vmatprep.subr.bf16.mxu0 0
      %992 = vmatpush1.bf16.msra.mxu0 0
      %993 = vmatprep.subr.bf16.mxu0 0
      %994 = vmatpush1.bf16.msra.mxu0 0
      %995 = vmatprep.subr.bf16.mxu0 0
      %996 = vmatpush1.bf16.msra.mxu0 0
      %997 = vmatprep.subr.bf16.mxu0 0
      %998 = vmatpush1.bf16.msra.mxu0 0
      %999 = vmatprep.subr.bf16.mxu0 0
      %1000 = vmatpush1.bf16.msra.mxu0 0
      %1001 = vmatprep.mubr.bf16.mxu0 0
      %1002 = vmatmul.mubr.bf16.gmra.mrb[0].mxu0 %v433
      %v1003 = vpop.f32.mrb[0].mxu0
      %v1004 = vadd.f32 %v899, %v1003
      %v1005 = vpop.f32.mrb[0].mxu0
      %v1006 = vpop.f32.mrb[0].mxu0
      %v1007 = vadd.f32 %v902, %v1006
      %v1008 = vpop.f32.mrb[0].mxu0
      %1009 = vmatprep.mubr.bf16.mxu0 0
      %1010 = vmatmul.mubr.bf16.gmra.mrb[0].mxu0 %v438
      %v1011 = vpop.f32.mrb[0].mxu0
      %v1012 = vadd.f32 %v907, %v1011
      %v1013 = vpop.f32.mrb[0].mxu0
      %v1014 = vpop.f32.mrb[0].mxu0
      %v1015 = vadd.f32 %v910, %v1014
      %v1016 = vpop.f32.mrb[0].mxu0
      %1017 = vmatprep.mubr.bf16.mxu0 0
      %1018 = vmatmul.mubr.bf16.gmra.mrb[0].mxu0 %v443
      %v1019 = vpop.f32.mrb[0].mxu0
      %v1020 = vadd.f32 %v915, %v1019
      %v1021 = vpop.f32.mrb[0].mxu0
      %v1022 = vpop.f32.mrb[0].mxu0
      %v1023 = vadd.f32 %v918, %v1022
      %v1024 = vpop.f32.mrb[0].mxu0
      %1025 = vmatprep.mubr.bf16.mxu0 0
      %1026 = vmatmul.mubr.bf16.gmra.mrb[0].mxu0 %v448
      %v1027 = vpop.f32.mrb[0].mxu0
      %v1028 = vadd.f32 %v923, %v1027
      %v1029 = vpop.f32.mrb[0].mxu0
      %v1030 = vpop.f32.mrb[0].mxu0
      %v1031 = vadd.f32 %v926, %v1030
      %v1032 = vpop.f32.mrb[0].mxu0
      %1033 = vmatprep.mubr.bf16.mxu0 0
      %1034 = vmatmul.mubr.bf16.gmra.mrb[0].mxu0 %v453
      %v1035 = vpop.f32.mrb[0].mxu0
      %v1036 = vadd.f32 %v931, %v1035
      %v1037 = vpop.f32.mrb[0].mxu0
      %v1038 = vpop.f32.mrb[0].mxu0
      %v1039 = vadd.f32 %v934, %v1038
      %v1040 = vpop.f32.mrb[0].mxu0
      %1041 = vmatprep.mubr.bf16.mxu0 0
      %1042 = vmatmul.mubr.bf16.gmra.mrb[0].mxu0 %v458
      %v1043 = vpop.f32.mrb[0].mxu0
      %v1044 = vadd.f32 %v939, %v1043
      %v1045 = vpop.f32.mrb[0].mxu0
      %v1046 = vpop.f32.mrb[0].mxu0
      %v1047 = vadd.f32 %v942, %v1046
      %v1048 = vpop.f32.mrb[0].mxu0
      %1049 = vmatprep.mubr.bf16.mxu0 0
      %1050 = vmatmul.mubr.bf16.gmra.mrb[0].mxu0 %v463
      %v1051 = vpop.f32.mrb[0].mxu0
      %v1052 = vadd.f32 %v947, %v1051
      %v1053 = vpop.f32.mrb[0].mxu0
      %v1054 = vpop.f32.mrb[0].mxu0
      %v1055 = vadd.f32 %v950, %v1054
      %v1056 = vpop.f32.mrb[0].mxu0
      %1057 = vmatprep.mubr.bf16.mxu0 0
      %1058 = vmatmul.mubr.bf16.gmra.mrb[0].mxu0 %v468
      %v1059 = vpop.f32.mrb[0].mxu0
      %v1060 = vadd.f32 %v955, %v1059
      %v1061 = vpop.f32.mrb[0].mxu0
      %v1062 = vpop.f32.mrb[0].mxu0
      %v1063 = vadd.f32 %v958, %v1062
      %v1064 = vpop.f32.mrb[0].mxu0
      %1065 = vmatprep.mubr.bf16.mxu0 0
      %1066 = vmatmul.mubr.bf16.gmra.mrb[0].mxu0 %v473
      %v1067 = vpop.f32.mrb[0].mxu0
      %v1068 = vadd.f32 %v963, %v1067
      %v1069 = vpop.f32.mrb[0].mxu0
      %v1070 = vpop.f32.mrb[0].mxu0
      %v1071 = vadd.f32 %v966, %v1070
      %v1072 = vpop.f32.mrb[0].mxu0
      %1073 = vdwg.mxu0
      %v1074 = vmax.f32 %v1004, 0.0
      %v1075 = vmax.f32 %v1007, 0.0
      %v1076 = vmax.f32 %v1012, 0.0
      %v1077 = vmax.f32 %v1015, 0.0
      %v1078 = vmax.f32 %v1020, 0.0
      %v1079 = vmax.f32 %v1023, 0.0
      %v1080 = vmax.f32 %v1028, 0.0
      %v1081 = vmax.f32 %v1031, 0.0
      %v1082 = vmax.f32 %v1036, 0.0
      %v1083 = vmax.f32 %v1039, 0.0
      %v1084 = vmax.f32 %v1044, 0.0
      %v1085 = vmax.f32 %v1047, 0.0
      %v1086 = vmax.f32 %v1052, 0.0
      %v1087 = vmax.f32 %v1055, 0.0
      %v1088 = vmax.f32 %v1060, 0.0
      %v1089 = vmax.f32 %v1063, 0.0
      %v1090 = vmax.f32 %v1068, 0.0
      %v1091 = vmax.f32 %v1071, 0.0
      %1092 = vst [vmem:[%s148] sm:$0xff] %v1074
      %1093 = vst [vmem:[%s148 + $0x8] sm:$0xff] %v1075
      %1094 = vst [vmem:[%s148 + $0x10] sm:$0xff] %v1076
      %1095 = vst [vmem:[%s148 + $0x18] sm:$0xff] %v1077
      %1096 = vst [vmem:[%s148 + $0x20] sm:$0xff] %v1078
      %1097 = vst [vmem:[%s148 + $0x28] sm:$0xff] %v1079
      %1098 = vst [vmem:[%s148 + $0x30] sm:$0xff] %v1080
      %1099 = vst [vmem:[%s148 + $0x38] sm:$0xff] %v1081
      %1100 = vst [vmem:[%s148 + $0x40] sm:$0xff] %v1082
      %1101 = vst [vmem:[%s148 + $0x48] sm:$0xff] %v1083
      %1102 = vst [vmem:[%s148 + $0x50] sm:$0xff] %v1084
      %1103 = vst [vmem:[%s148 + $0x58] sm:$0xff] %v1085
      %1104 = vst [vmem:[%s148 + $0x60] sm:$0xff] %v1086
      %1105 = vst [vmem:[%s148 + $0x68] sm:$0xff] %v1087
      %1106 = vst [vmem:[%s148 + $0x70] sm:$0xff] %v1088
      %1107 = vst [vmem:[%s148 + $0x78] sm:$0xff] %v1089
      %1108 = vst [vmem:[%s148 + $0x80] sm:$0xff] %v1090
      %1109 = vst [vmem:[%s148 + $0x88] sm:$0xff] %v1091
      %s1110 = smul.u32 18, %s13
      %p1111 = scmp.lt.s32.totalorder %s1110, 35
      %s1112 = scalar_select %p1111, %s1110, 35
      %s1113 = smul.addr %s1112, 8
      %s1114 = scalar_lea.vmem %s2, %s1113
      // Predicated region
      $region29: #{cnn_xy_forward.8} parent=27 // pred_check
        %p1115 = pneg %p78
      $region30: #{cnn_xy_forward.8} parent=27 // pred_check_branch
        %1117 = sbr.rel (%p1115) target = $region32
      $region31: #{cnn_xy_forward.8} parent=27 // pred_region
        %s1118 = smul.u32 18, %s13
      $region32: #{cnn_xy_forward.8} parent=27 // pred_fallthru
        _
    $region28: #{cnn_xy_forward.8} parent=5 // pred_fallthru
      _
    %p1119 = scmp.le.s32.totalorder 2, %s8
    // Predicated region
    $region33: #{cnn_xy_forward.8} parent=5 // pred_check
      %p1120 = pneg %p1119
    $region34: #{cnn_xy_forward.8} parent=5 // pred_check_branch
      %1122 = sbr.rel (%p1120) target = $region36
    $region35: #{cnn_xy_forward.8} parent=5 // pred_region
      %s1123 = ssub.s32 %s8, 2
      // Predicated region
      $region37: #{cnn_xy_forward.8} parent=35 // pred_check
        %p1124 = pneg %p84
      $region38: #{cnn_xy_forward.8} parent=35 // pred_check_branch
        %1126 = sbr.rel (%p1124) target = $region40
      $region39: #{cnn_xy_forward.8} parent=35 // pred_region
        %s1127 = smul.u32 18, %s14
        %p1128 = scmp.lt.s32.totalorder %s1127, 35
        %s1129 = scalar_select %p1128, %s1127, 35
        %s1130 = smul.addr %s1129, 8
        %s1131 = scalar_lea.vmem %s2, %s1130
      $region40: #{cnn_xy_forward.8} parent=35 // pred_fallthru
        _
    $region36: #{cnn_xy_forward.8} parent=5 // pred_fallthru
      _
  $region6: #{cnn_xy_forward.8} parent=0 // loop_footer
    %s12 = sadd.s32 1, %s8
  $region7: #{cnn_xy_forward.8} parent=0 // loop_footer_branch
    %7 = sbr.rel target = $region3
  $region8: #{cnn_xy_forward.8} parent=0 // loop_exit
    _

// kernel: cnn_xy_forward.9
$region0: #{cnn_xy_forward.9}
  #allocation0 [shape = 'u32[]', space=smem, size = 0x4, offset = 0x4, fixed_abs, tag = 'smem constant byte address 0x4 - core index']
  #allocation1 [shape = 'u32[144,128]{1,0:T(1,128)}', space=vmem, size = 0x12000, scoped, tag = 'internal scratch']
  %s0 = inlined_call_operand.vmem [shape: bf16[176,1152], index: 0, kind: input, shape index: {}]
  %s1 = inlined_call_operand.vmem [shape: bf16[1152,256], index: 1, kind: input, shape index: {}]
  %s2 = inlined_call_operand.vmem [shape: f32[176,256], index: 2, kind: output, shape index: {}]
  %s3 = sld [smem:[#allocation0]]
  $region18: #{cnn_xy_forward.9} parent=0
    _
  %s5 = ssub.s32 1, %s3
  %s6 = scalar_select 0, %s5, %s3
  // Predicated region
  $region2: #{cnn_xy_forward.9} parent=0 // pred_check
    _
  $region3: #{cnn_xy_forward.9} parent=0 // pred_check_branch
    %8 = sbr.rel (0) target = $region5
  $region4: #{cnn_xy_forward.9} parent=0 // pred_region
    _
  $region5: #{cnn_xy_forward.9} parent=0 // pred_fallthru
    _
  // Predicated region
  $region6: #{cnn_xy_forward.9} parent=0 // pred_check
    _
  $region7: #{cnn_xy_forward.9} parent=0 // pred_check_branch
    %10 = sbr.rel (0) target = $region9
  $region8: #{cnn_xy_forward.9} parent=0 // pred_region
    _
  $region9: #{cnn_xy_forward.9} parent=0 // pred_fallthru
    _
  %v12 = vld [vmem:[%s0] sm:$0xff]
  %v13 = vld [vmem:[%s0 + $0x8] sm:$0xff]
  %v14 = vld [vmem:[%s0 + $0x10] sm:$0xff]
  %v15 = vld [vmem:[%s0 + $0x18] sm:$0xff]
  %v16 = vld [vmem:[%s0 + $0x20] sm:$0xf]
  %v17 = vld [vmem:[%s0 + $0x24] sm:$0xff]
  %v18 = vld [vmem:[%s0 + $0x2c] sm:$0xff]
  %v19 = vld [vmem:[%s0 + $0x34] sm:$0xff]
  %v20 = vld [vmem:[%s0 + $0x3c] sm:$0xff]
  %v21 = vld [vmem:[%s0 + $0x44] sm:$0xf]
  %v22 = vld [vmem:[%s0 + $0x48] sm:$0xff]
  %v23 = vld [vmem:[%s0 + $0x50] sm:$0xff]
  %v24 = vld [vmem:[%s0 + $0x58] sm:$0xff]
  %v25 = vld [vmem:[%s0 + $0x60] sm:$0xff]
  %v26 = vld [vmem:[%s0 + $0x68] sm:$0xf]
  %v27 = vld [vmem:[%s0 + $0x6c] sm:$0xff]
  %v28 = vld [vmem:[%s0 + $0x74] sm:$0xff]
  %v29 = vld [vmem:[%s0 + $0x7c] sm:$0xff]
  %v30 = vld [vmem:[%s0 + $0x84] sm:$0xff]
  %v31 = vld [vmem:[%s0 + $0x8c] sm:$0xf]
  %v32 = vld [vmem:[%s0 + $0x90] sm:$0xff]
  %v33 = vld [vmem:[%s0 + $0x98] sm:$0xff]
  %v34 = vld [vmem:[%s0 + $0xa0] sm:$0xff]
  %v35 = vld [vmem:[%s0 + $0xa8] sm:$0xff]
  %v36 = vld [vmem:[%s0 + $0xb0] sm:$0xf]
  %v37 = vld [vmem:[%s0 + $0xb4] sm:$0xff]
  %v38 = vld [vmem:[%s0 + $0xbc] sm:$0xff]
  %v39 = vld [vmem:[%s0 + $0xc4] sm:$0xff]
  %v40 = vld [vmem:[%s0 + $0xcc] sm:$0xff]
  %v41 = vld [vmem:[%s0 + $0xd4] sm:$0xf]
  %v42 = vld [vmem:[%s0 + $0xd8] sm:$0xff]
  %v43 = vld [vmem:[%s0 + $0xe0] sm:$0xff]
  %v44 = vld [vmem:[%s0 + $0xe8] sm:$0xff]
  %v45 = vld [vmem:[%s0 + $0xf0] sm:$0xff]
  %v46 = vld [vmem:[%s0 + $0xf8] sm:$0xf]
  %v47 = vld [vmem:[%s0 + $0xfc] sm:$0xff]
  %v48 = vld [vmem:[%s0 + $0x104] sm:$0xff]
  %v49 = vld [vmem:[%s0 + $0x10c] sm:$0xff]
  %v50 = vld [vmem:[%s0 + $0x114] sm:$0xff]
  %v51 = vld [vmem:[%s0 + $0x11c] sm:$0xf]
  %v52 = vld [vmem:[%s0 + $0x120] sm:$0xff]
  %v53 = vld [vmem:[%s0 + $0x128] sm:$0xff]
  %v54 = vld [vmem:[%s0 + $0x130] sm:$0xff]
  %v55 = vld [vmem:[%s0 + $0x138] sm:$0xff]
  %v56 = vld [vmem:[%s0 + $0x140] sm:$0xf]
  %v57 = vld [vmem:[%s0 + $0x144] sm:$0xff]
  %v58 = vld [vmem:[%s0 + $0x14c] sm:$0xff]
  %v59 = vld [vmem:[%s0 + $0x154] sm:$0xff]
  %v60 = vld [vmem:[%s0 + $0x15c] sm:$0xff]
  %v61 = vld [vmem:[%s0 + $0x164] sm:$0xf]
  %v62 = vld [vmem:[%s0 + $0x168] sm:$0xff]
  %v63 = vld [vmem:[%s0 + $0x170] sm:$0xff]
  %v64 = vld [vmem:[%s0 + $0x178] sm:$0xff]
  %v65 = vld [vmem:[%s0 + $0x180] sm:$0xff]
  %v66 = vld [vmem:[%s0 + $0x188] sm:$0xf]
  %v67 = vld [vmem:[%s0 + $0x18c] sm:$0xff]
  %v68 = vld [vmem:[%s0 + $0x194] sm:$0xff]
  %v69 = vld [vmem:[%s0 + $0x19c] sm:$0xff]
  %v70 = vld [vmem:[%s0 + $0x1a4] sm:$0xff]
  %v71 = vld [vmem:[%s0 + $0x1ac] sm:$0xf]
  %v72 = vld [vmem:[%s0 + $0x1b0] sm:$0xff]
  %v73 = vld [vmem:[%s0 + $0x1b8] sm:$0xff]
  %v74 = vld [vmem:[%s0 + $0x1c0] sm:$0xff]
  %v75 = vld [vmem:[%s0 + $0x1c8] sm:$0xff]
  %v76 = vld [vmem:[%s0 + $0x1d0] sm:$0xf]
  %v77 = vld [vmem:[%s0 + $0x1d4] sm:$0xff]
  %v78 = vld [vmem:[%s0 + $0x1dc] sm:$0xff]
  %v79 = vld [vmem:[%s0 + $0x1e4] sm:$0xff]
  %v80 = vld [vmem:[%s0 + $0x1ec] sm:$0xff]
  %v81 = vld [vmem:[%s0 + $0x1f4] sm:$0xf]
  %v82 = vld [vmem:[%s0 + $0x1f8] sm:$0xff]
  %v83 = vld [vmem:[%s0 + $0x200] sm:$0xff]
  %v84 = vld [vmem:[%s0 + $0x208] sm:$0xff]
  %v85 = vld [vmem:[%s0 + $0x210] sm:$0xff]
  %v86 = vld [vmem:[%s0 + $0x218] sm:$0xf]
  %v87 = vld [vmem:[%s0 + $0x21c] sm:$0xff]
  %v88 = vld [vmem:[%s0 + $0x224] sm:$0xff]
  %v89 = vld [vmem:[%s0 + $0x22c] sm:$0xff]
  %v90 = vld [vmem:[%s0 + $0x234] sm:$0xff]
  %v91 = vld [vmem:[%s0 + $0x23c] sm:$0xf]
  %v92 = vld [vmem:[%s0 + $0x240] sm:$0xff]
  %v93 = vld [vmem:[%s0 + $0x248] sm:$0xff]
  %v94 = vld [vmem:[%s0 + $0x250] sm:$0xff]
  %v95 = vld [vmem:[%s0 + $0x258] sm:$0xff]
  %v96 = vld [vmem:[%s0 + $0x260] sm:$0xf]
  %v97 = vld [vmem:[%s0 + $0x264] sm:$0xff]
  %v98 = vld [vmem:[%s0 + $0x26c] sm:$0xff]
  %v99 = vld [vmem:[%s0 + $0x274] sm:$0xff]
  %v100 = vld [vmem:[%s0 + $0x27c] sm:$0xff]
  %v101 = vld [vmem:[%s0 + $0x284] sm:$0xf]
  %v102 = vld [vmem:[%s0 + $0x288] sm:$0xff]
  %v103 = vld [vmem:[%s0 + $0x290] sm:$0xff]
  %v104 = vld [vmem:[%s0 + $0x298] sm:$0xff]
  %v105 = vld [vmem:[%s0 + $0x2a0] sm:$0xff]
  %v106 = vld [vmem:[%s0 + $0x2a8] sm:$0xf]
  %v107 = vld [vmem:[%s0 + $0x2ac] sm:$0xff]
  %v108 = vld [vmem:[%s0 + $0x2b4] sm:$0xff]
  %v109 = vld [vmem:[%s0 + $0x2bc] sm:$0xff]
  %v110 = vld [vmem:[%s0 + $0x2c4] sm:$0xff]
  %v111 = vld [vmem:[%s0 + $0x2cc] sm:$0xf]
  %v112 = vld [vmem:[%s0 + $0x2d0] sm:$0xff]
  %v113 = vld [vmem:[%s0 + $0x2d8] sm:$0xff]
  %v114 = vld [vmem:[%s0 + $0x2e0] sm:$0xff]
  %v115 = vld [vmem:[%s0 + $0x2e8] sm:$0xff]
  %v116 = vld [vmem:[%s0 + $0x2f0] sm:$0xf]
  %v117 = vld [vmem:[%s0 + $0x2f4] sm:$0xff]
  %v118 = vld [vmem:[%s0 + $0x2fc] sm:$0xff]
  %v119 = vld [vmem:[%s0 + $0x304] sm:$0xff]
  %v120 = vld [vmem:[%s0 + $0x30c] sm:$0xff]
  %v121 = vld [vmem:[%s0 + $0x314] sm:$0xf]
  %v122 = vld [vmem:[%s1] sm:$0xff]
  %v123 = vld [vmem:[%s1 + $0x8] sm:$0xff]
  %v124 = vld [vmem:[%s1 + $0x10] sm:$0xff]
  %v125 = vld [vmem:[%s1 + $0x18] sm:$0xff]
  %v126 = vld [vmem:[%s1 + $0x20] sm:$0xff]
  %v127 = vld [vmem:[%s1 + $0x28] sm:$0xff]
  %v128 = vld [vmem:[%s1 + $0x30] sm:$0xff]
  %v129 = vld [vmem:[%s1 + $0x38] sm:$0xff]
  %v130 = vld [vmem:[%s1 + $0x40] sm:$0xff]
  %v131 = vld [vmem:[%s1 + $0x48] sm:$0xff]
  %v132 = vld [vmem:[%s1 + $0x50] sm:$0xff]
  %v133 = vld [vmem:[%s1 + $0x58] sm:$0xff]
  %v134 = vld [vmem:[%s1 + $0x60] sm:$0xff]
  %v135 = vld [vmem:[%s1 + $0x68] sm:$0xff]
  %v136 = vld [vmem:[%s1 + $0x70] sm:$0xff]
  %v137 = vld [vmem:[%s1 + $0x78] sm:$0xff]
  %v138 = vld [vmem:[%s1 + $0x80] sm:$0xff]
  %v139 = vld [vmem:[%s1 + $0x88] sm:$0xff]
  %v140 = vld [vmem:[%s1 + $0x90] sm:$0xff]
  %v141 = vld [vmem:[%s1 + $0x98] sm:$0xff]
  %v142 = vld [vmem:[%s1 + $0xa0] sm:$0xff]
  %v143 = vld [vmem:[%s1 + $0xa8] sm:$0xff]
  %v144 = vld [vmem:[%s1 + $0xb0] sm:$0xff]
  %v145 = vld [vmem:[%s1 + $0xb8] sm:$0xff]
  %v146 = vld [vmem:[%s1 + $0xc0] sm:$0xff]
  %v147 = vld [vmem:[%s1 + $0xc8] sm:$0xff]
  %v148 = vld [vmem:[%s1 + $0xd0] sm:$0xff]
  %v149 = vld [vmem:[%s1 + $0xd8] sm:$0xff]
  %v150 = vld [vmem:[%s1 + $0xe0] sm:$0xff]
  %v151 = vld [vmem:[%s1 + $0xe8] sm:$0xff]
  %v152 = vld [vmem:[%s1 + $0xf0] sm:$0xff]
  %v153 = vld [vmem:[%s1 + $0xf8] sm:$0xff]
  %v154 = vld [vmem:[%s1 + $0x100] sm:$0xff]
  %v155 = vld [vmem:[%s1 + $0x108] sm:$0xff]
  %v156 = vld [vmem:[%s1 + $0x110] sm:$0xff]
  %v157 = vld [vmem:[%s1 + $0x118] sm:$0xff]
  %v158 = vld [vmem:[%s1 + $0x120] sm:$0xff]
  %v159 = vld [vmem:[%s1 + $0x128] sm:$0xff]
  %v160 = vld [vmem:[%s1 + $0x130] sm:$0xff]
  %v161 = vld [vmem:[%s1 + $0x138] sm:$0xff]
  %v162 = vld [vmem:[%s1 + $0x140] sm:$0xff]
  %v163 = vld [vmem:[%s1 + $0x148] sm:$0xff]
  %v164 = vld [vmem:[%s1 + $0x150] sm:$0xff]
  %v165 = vld [vmem:[%s1 + $0x158] sm:$0xff]
  %v166 = vld [vmem:[%s1 + $0x160] sm:$0xff]
  %v167 = vld [vmem:[%s1 + $0x168] sm:$0xff]
  %v168 = vld [vmem:[%s1 + $0x170] sm:$0xff]
  %v169 = vld [vmem:[%s1 + $0x178] sm:$0xff]
  %v170 = vld [vmem:[%s1 + $0x180] sm:$0xff]
  %v171 = vld [vmem:[%s1 + $0x188] sm:$0xff]
  %v172 = vld [vmem:[%s1 + $0x190] sm:$0xff]
  %v173 = vld [vmem:[%s1 + $0x198] sm:$0xff]
  %v174 = vld [vmem:[%s1 + $0x1a0] sm:$0xff]
  %v175 = vld [vmem:[%s1 + $0x1a8] sm:$0xff]
  %v176 = vld [vmem:[%s1 + $0x1b0] sm:$0xff]
  %v177 = vld [vmem:[%s1 + $0x1b8] sm:$0xff]
  %v178 = vld [vmem:[%s1 + $0x1c0] sm:$0xff]
  %v179 = vld [vmem:[%s1 + $0x1c8] sm:$0xff]
  %v180 = vld [vmem:[%s1 + $0x1d0] sm:$0xff]
  %v181 = vld [vmem:[%s1 + $0x1d8] sm:$0xff]
  %v182 = vld [vmem:[%s1 + $0x1e0] sm:$0xff]
  %v183 = vld [vmem:[%s1 + $0x1e8] sm:$0xff]
  %v184 = vld [vmem:[%s1 + $0x1f0] sm:$0xff]
  %v185 = vld [vmem:[%s1 + $0x1f8] sm:$0xff]
  %v186 = vld [vmem:[%s1 + $0x200] sm:$0xff]
  %v187 = vld [vmem:[%s1 + $0x208] sm:$0xff]
  %v188 = vld [vmem:[%s1 + $0x210] sm:$0xff]
  %v189 = vld [vmem:[%s1 + $0x218] sm:$0xff]
  %v190 = vld [vmem:[%s1 + $0x220] sm:$0xff]
  %v191 = vld [vmem:[%s1 + $0x228] sm:$0xff]
  %v192 = vld [vmem:[%s1 + $0x230] sm:$0xff]
  %v193 = vld [vmem:[%s1 + $0x238] sm:$0xff]
  %v194 = vld [vmem:[%s1 + $0x240] sm:$0xff]
  %v195 = vld [vmem:[%s1 + $0x248] sm:$0xff]
  %v196 = vld [vmem:[%s1 + $0x250] sm:$0xff]
  %v197 = vld [vmem:[%s1 + $0x258] sm:$0xff]
  %v198 = vld [vmem:[%s1 + $0x260] sm:$0xff]
  %v199 = vld [vmem:[%s1 + $0x268] sm:$0xff]
  %v200 = vld [vmem:[%s1 + $0x270] sm:$0xff]
  %v201 = vld [vmem:[%s1 + $0x278] sm:$0xff]
  %v202 = vld [vmem:[%s1 + $0x280] sm:$0xff]
  %v203 = vld [vmem:[%s1 + $0x288] sm:$0xff]
  %v204 = vld [vmem:[%s1 + $0x290] sm:$0xff]
  %v205 = vld [vmem:[%s1 + $0x298] sm:$0xff]
  %v206 = vld [vmem:[%s1 + $0x2a0] sm:$0xff]
  %v207 = vld [vmem:[%s1 + $0x2a8] sm:$0xff]
  %v208 = vld [vmem:[%s1 + $0x2b0] sm:$0xff]
  %v209 = vld [vmem:[%s1 + $0x2b8] sm:$0xff]
  %v210 = vld [vmem:[%s1 + $0x2c0] sm:$0xff]
  %v211 = vld [vmem:[%s1 + $0x2c8] sm:$0xff]
  %v212 = vld [vmem:[%s1 + $0x2d0] sm:$0xff]
  %v213 = vld [vmem:[%s1 + $0x2d8] sm:$0xff]
  %v214 = vld [vmem:[%s1 + $0x2e0] sm:$0xff]
  %v215 = vld [vmem:[%s1 + $0x2e8] sm:$0xff]
  %v216 = vld [vmem:[%s1 + $0x2f0] sm:$0xff]
  %v217 = vld [vmem:[%s1 + $0x2f8] sm:$0xff]
  %v218 = vld [vmem:[%s1 + $0x300] sm:$0xff]
  %v219 = vld [vmem:[%s1 + $0x308] sm:$0xff]
  %v220 = vld [vmem:[%s1 + $0x310] sm:$0xff]
  %v221 = vld [vmem:[%s1 + $0x318] sm:$0xff]
  %v222 = vld [vmem:[%s1 + $0x320] sm:$0xff]
  %v223 = vld [vmem:[%s1 + $0x328] sm:$0xff]
  %v224 = vld [vmem:[%s1 + $0x330] sm:$0xff]
  %v225 = vld [vmem:[%s1 + $0x338] sm:$0xff]
  %v226 = vld [vmem:[%s1 + $0x340] sm:$0xff]
  %v227 = vld [vmem:[%s1 + $0x348] sm:$0xff]
  %v228 = vld [vmem:[%s1 + $0x350] sm:$0xff]
  %v229 = vld [vmem:[%s1 + $0x358] sm:$0xff]
  %v230 = vld [vmem:[%s1 + $0x360] sm:$0xff]
  %v231 = vld [vmem:[%s1 + $0x368] sm:$0xff]
  %v232 = vld [vmem:[%s1 + $0x370] sm:$0xff]
  %v233 = vld [vmem:[%s1 + $0x378] sm:$0xff]
  %v234 = vld [vmem:[%s1 + $0x380] sm:$0xff]
  %v235 = vld [vmem:[%s1 + $0x388] sm:$0xff]
  %v236 = vld [vmem:[%s1 + $0x390] sm:$0xff]
  %v237 = vld [vmem:[%s1 + $0x398] sm:$0xff]
  %v238 = vld [vmem:[%s1 + $0x3a0] sm:$0xff]
  %v239 = vld [vmem:[%s1 + $0x3a8] sm:$0xff]
  %v240 = vld [vmem:[%s1 + $0x3b0] sm:$0xff]
  %v241 = vld [vmem:[%s1 + $0x3b8] sm:$0xff]
  %v242 = vld [vmem:[%s1 + $0x3c0] sm:$0xff]
  %v243 = vld [vmem:[%s1 + $0x3c8] sm:$0xff]
  %v244 = vld [vmem:[%s1 + $0x3d0] sm:$0xff]
  %v245 = vld [vmem:[%s1 + $0x3d8] sm:$0xff]
  %v246 = vld [vmem:[%s1 + $0x3e0] sm:$0xff]
  %v247 = vld [vmem:[%s1 + $0x3e8] sm:$0xff]
  %v248 = vld [vmem:[%s1 + $0x3f0] sm:$0xff]
  %v249 = vld [vmem:[%s1 + $0x3f8] sm:$0xff]
  %v250 = vld [vmem:[%s1 + $0x400] sm:$0xff]
  %v251 = vld [vmem:[%s1 + $0x408] sm:$0xff]
  %v252 = vld [vmem:[%s1 + $0x410] sm:$0xff]
  %v253 = vld [vmem:[%s1 + $0x418] sm:$0xff]
  %v254 = vld [vmem:[%s1 + $0x420] sm:$0xff]
  %v255 = vld [vmem:[%s1 + $0x428] sm:$0xff]
  %v256 = vld [vmem:[%s1 + $0x430] sm:$0xff]
  %v257 = vld [vmem:[%s1 + $0x438] sm:$0xff]
  %v258 = vld [vmem:[%s1 + $0x440] sm:$0xff]
  %v259 = vld [vmem:[%s1 + $0x448] sm:$0xff]
  %v260 = vld [vmem:[%s1 + $0x450] sm:$0xff]
  %v261 = vld [vmem:[%s1 + $0x458] sm:$0xff]
  %v262 = vld [vmem:[%s1 + $0x460] sm:$0xff]
  %v263 = vld [vmem:[%s1 + $0x468] sm:$0xff]
  %v264 = vld [vmem:[%s1 + $0x470] sm:$0xff]
  %v265 = vld [vmem:[%s1 + $0x478] sm:$0xff]
  %v376 = vunpack.c.l.b16 %v12
  %v377 = vunpack.c.h.b16 %v12
  %v378 = vunpack.c.l.b16 %v13
  %v379 = vunpack.c.h.b16 %v13
  %v380 = vunpack.c.l.b16 %v14
  %v381 = vunpack.c.h.b16 %v14
  %v382 = vunpack.c.l.b16 %v15
  %v383 = vunpack.c.h.b16 %v15
  %v384 = vunpack.c.l.b16 %v16
  %v385 = vunpack.c.l.b16 %v17
  %v386 = vunpack.c.h.b16 %v17
  %v387 = vunpack.c.l.b16 %v18
  %v388 = vunpack.c.h.b16 %v18
  %v389 = vunpack.c.l.b16 %v19
  %v390 = vunpack.c.h.b16 %v19
  %v391 = vunpack.c.l.b16 %v20
  %v392 = vunpack.c.h.b16 %v20
  %v393 = vunpack.c.l.b16 %v21
  %v394 = vunpack.c.l.b16 %v22
  %v395 = vunpack.c.h.b16 %v22
  %v396 = vunpack.c.l.b16 %v23
  %v397 = vunpack.c.h.b16 %v23
  %v398 = vunpack.c.l.b16 %v24
  %v399 = vunpack.c.h.b16 %v24
  %v400 = vunpack.c.l.b16 %v25
  %v401 = vunpack.c.h.b16 %v25
  %v402 = vunpack.c.l.b16 %v26
  %v403 = vunpack.c.l.b16 %v27
  %v404 = vunpack.c.h.b16 %v27
  %v405 = vunpack.c.l.b16 %v28
  %v406 = vunpack.c.h.b16 %v28
  %v407 = vunpack.c.l.b16 %v29
  %v408 = vunpack.c.h.b16 %v29
  %v409 = vunpack.c.l.b16 %v30
  %v410 = vunpack.c.h.b16 %v30
  %v411 = vunpack.c.l.b16 %v31
  %v412 = vunpack.c.l.b16 %v32
  %v413 = vunpack.c.h.b16 %v32
  %v414 = vunpack.c.l.b16 %v33
  %v415 = vunpack.c.h.b16 %v33
  %v416 = vunpack.c.l.b16 %v34
  %v417 = vunpack.c.h.b16 %v34
  %v418 = vunpack.c.l.b16 %v35
  %v419 = vunpack.c.h.b16 %v35
  %v420 = vunpack.c.l.b16 %v36
  %v421 = vunpack.c.l.b16 %v37
  %v422 = vunpack.c.h.b16 %v37
  %v423 = vunpack.c.l.b16 %v38
  %v424 = vunpack.c.h.b16 %v38
  %v425 = vunpack.c.l.b16 %v39
  %v426 = vunpack.c.h.b16 %v39
  %v427 = vunpack.c.l.b16 %v40
  %v428 = vunpack.c.h.b16 %v40
  %v429 = vunpack.c.l.b16 %v41
  %v430 = vunpack.c.l.b16 %v42
  %v431 = vunpack.c.h.b16 %v42
  %v432 = vunpack.c.l.b16 %v43
  %v433 = vunpack.c.h.b16 %v43
  %v434 = vunpack.c.l.b16 %v44
  %v435 = vunpack.c.h.b16 %v44
  %v436 = vunpack.c.l.b16 %v45
  %v437 = vunpack.c.h.b16 %v45
  %v438 = vunpack.c.l.b16 %v46
  %v439 = vunpack.c.l.b16 %v47
  %v440 = vunpack.c.h.b16 %v47
  %v441 = vunpack.c.l.b16 %v48
  %v442 = vunpack.c.h.b16 %v48
  %v443 = vunpack.c.l.b16 %v49
  %v444 = vunpack.c.h.b16 %v49
  %v445 = vunpack.c.l.b16 %v50
  %v446 = vunpack.c.h.b16 %v50
  %v447 = vunpack.c.l.b16 %v51
  %v448 = vunpack.c.l.b16 %v52
  %v449 = vunpack.c.h.b16 %v52
  %v450 = vunpack.c.l.b16 %v53
  %v451 = vunpack.c.h.b16 %v53
  %v452 = vunpack.c.l.b16 %v54
  %v453 = vunpack.c.h.b16 %v54
  %v454 = vunpack.c.l.b16 %v55
  %v455 = vunpack.c.h.b16 %v55
  %v456 = vunpack.c.l.b16 %v56
  %v457 = vunpack.c.l.b16 %v57
  %v458 = vunpack.c.h.b16 %v57
  %v459 = vunpack.c.l.b16 %v58
  %v460 = vunpack.c.h.b16 %v58
  %v461 = vunpack.c.l.b16 %v59
  %v462 = vunpack.c.h.b16 %v59
  %v463 = vunpack.c.l.b16 %v60
  %v464 = vunpack.c.h.b16 %v60
  %v465 = vunpack.c.l.b16 %v61
  %v466 = vunpack.c.l.b16 %v62
  %v467 = vunpack.c.h.b16 %v62
  %v468 = vunpack.c.l.b16 %v63
  %v469 = vunpack.c.h.b16 %v63
  %v470 = vunpack.c.l.b16 %v64
  %v471 = vunpack.c.h.b16 %v64
  %v472 = vunpack.c.l.b16 %v65
  %v473 = vunpack.c.h.b16 %v65
  %v474 = vunpack.c.l.b16 %v66
  %v475 = vunpack.c.l.b16 %v67
  %v476 = vunpack.c.h.b16 %v67
  %v477 = vunpack.c.l.b16 %v68
  %v478 = vunpack.c.h.b16 %v68
  %v479 = vunpack.c.l.b16 %v69
  %v480 = vunpack.c.h.b16 %v69
  %v481 = vunpack.c.l.b16 %v70
  %v482 = vunpack.c.h.b16 %v70
  %v483 = vunpack.c.l.b16 %v71
  %v484 = vunpack.c.l.b16 %v72
  %v485 = vunpack.c.h.b16 %v72
  %v486 = vunpack.c.l.b16 %v73
  %v487 = vunpack.c.h.b16 %v73
  %v488 = vunpack.c.l.b16 %v74
  %v489 = vunpack.c.h.b16 %v74
  %v490 = vunpack.c.l.b16 %v75
  %v491 = vunpack.c.h.b16 %v75
  %v492 = vunpack.c.l.b16 %v76
  %v493 = vunpack.c.l.b16 %v77
  %v494 = vunpack.c.h.b16 %v77
  %v495 = vunpack.c.l.b16 %v78
  %v496 = vunpack.c.h.b16 %v78
  %v497 = vunpack.c.l.b16 %v79
  %v498 = vunpack.c.h.b16 %v79
  %v499 = vunpack.c.l.b16 %v80
  %v500 = vunpack.c.h.b16 %v80
  %v501 = vunpack.c.l.b16 %v81
  %v502 = vunpack.c.l.b16 %v82
  %v503 = vunpack.c.h.b16 %v82
  %v504 = vunpack.c.l.b16 %v83
  %v505 = vunpack.c.h.b16 %v83
  %v506 = vunpack.c.l.b16 %v84
  %v507 = vunpack.c.h.b16 %v84
  %v508 = vunpack.c.l.b16 %v85
  %v509 = vunpack.c.h.b16 %v85
  %v510 = vunpack.c.l.b16 %v86
  %v511 = vunpack.c.l.b16 %v87
  %v512 = vunpack.c.h.b16 %v87
  %v513 = vunpack.c.l.b16 %v88
  %v514 = vunpack.c.h.b16 %v88
  %v515 = vunpack.c.l.b16 %v89
  %v516 = vunpack.c.h.b16 %v89
  %v517 = vunpack.c.l.b16 %v90
  %v518 = vunpack.c.h.b16 %v90
  %v519 = vunpack.c.l.b16 %v91
  %v520 = vunpack.c.l.b16 %v92
  %v521 = vunpack.c.h.b16 %v92
  %v522 = vunpack.c.l.b16 %v93
  %v523 = vunpack.c.h.b16 %v93
  %v524 = vunpack.c.l.b16 %v94
  %v525 = vunpack.c.h.b16 %v94
  %v526 = vunpack.c.l.b16 %v95
  %v527 = vunpack.c.h.b16 %v95
  %v528 = vunpack.c.l.b16 %v96
  %v529 = vunpack.c.l.b16 %v97
  %v530 = vunpack.c.h.b16 %v97
  %v531 = vunpack.c.l.b16 %v98
  %v532 = vunpack.c.h.b16 %v98
  %v533 = vunpack.c.l.b16 %v99
  %v534 = vunpack.c.h.b16 %v99
  %v535 = vunpack.c.l.b16 %v100
  %v536 = vunpack.c.h.b16 %v100
  %v537 = vunpack.c.l.b16 %v101
  %v538 = vunpack.c.l.b16 %v102
  %v539 = vunpack.c.h.b16 %v102
  %v540 = vunpack.c.l.b16 %v103
  %v541 = vunpack.c.h.b16 %v103
  %v542 = vunpack.c.l.b16 %v104
  %v543 = vunpack.c.h.b16 %v104
  %v544 = vunpack.c.l.b16 %v105
  %v545 = vunpack.c.h.b16 %v105
  %v546 = vunpack.c.l.b16 %v106
  %v547 = vunpack.c.l.b16 %v107
  %v548 = vunpack.c.h.b16 %v107
  %v549 = vunpack.c.l.b16 %v108
  %v550 = vunpack.c.h.b16 %v108
  %v551 = vunpack.c.l.b16 %v109
  %v552 = vunpack.c.h.b16 %v109
  %v553 = vunpack.c.l.b16 %v110
  %v554 = vunpack.c.h.b16 %v110
  %v555 = vunpack.c.l.b16 %v111
  %v556 = vunpack.c.l.b16 %v112
  %v557 = vunpack.c.h.b16 %v112
  %v558 = vunpack.c.l.b16 %v113
  %v559 = vunpack.c.h.b16 %v113
  %v560 = vunpack.c.l.b16 %v114
  %v561 = vunpack.c.h.b16 %v114
  %v562 = vunpack.c.l.b16 %v115
  %v563 = vunpack.c.h.b16 %v115
  %v564 = vunpack.c.l.b16 %v116
  %v565 = vunpack.c.l.b16 %v117
  %v566 = vunpack.c.h.b16 %v117
  %v567 = vunpack.c.l.b16 %v118
  %v568 = vunpack.c.h.b16 %v118
  %v569 = vunpack.c.l.b16 %v119
  %v570 = vunpack.c.h.b16 %v119
  %v571 = vunpack.c.l.b16 %v120
  %v572 = vunpack.c.h.b16 %v120
  %v573 = vunpack.c.l.b16 %v121
  %v574 = vpack.c.b16 %v385, %v376
  %v575 = vpack.c.b16 %v386, %v377
  %v576 = vpack.c.b16 %v387, %v378
  %v577 = vpack.c.b16 %v388, %v379
  %v578 = vpack.c.b16 %v389, %v380
  %v579 = vpack.c.b16 %v390, %v381
  %v580 = vpack.c.b16 %v391, %v382
  %v581 = vpack.c.b16 %v392, %v383
  %v582 = vpack.c.b16 %v393, %v384
  %v583 = vpack.c.b16 %v403, %v394
  %v584 = vpack.c.b16 %v404, %v395
  %v585 = vpack.c.b16 %v405, %v396
  %v586 = vpack.c.b16 %v406, %v397
  %v587 = vpack.c.b16 %v407, %v398
  %v588 = vpack.c.b16 %v408, %v399
  %v589 = vpack.c.b16 %v409, %v400
  %v590 = vpack.c.b16 %v410, %v401
  %v591 = vpack.c.b16 %v411, %v402
  %v592 = vpack.c.b16 %v421, %v412
  %v593 = vpack.c.b16 %v422, %v413
  %v594 = vpack.c.b16 %v423, %v414
  %v595 = vpack.c.b16 %v424, %v415
  %v596 = vpack.c.b16 %v425, %v416
  %v597 = vpack.c.b16 %v426, %v417
  %v598 = vpack.c.b16 %v427, %v418
  %v599 = vpack.c.b16 %v428, %v419
  %v600 = vpack.c.b16 %v429, %v420
  %v601 = vpack.c.b16 %v439, %v430
  %v602 = vpack.c.b16 %v440, %v431
  %v603 = vpack.c.b16 %v441, %v432
  %v604 = vpack.c.b16 %v442, %v433
  %v605 = vpack.c.b16 %v443, %v434
  %v606 = vpack.c.b16 %v444, %v435
  %v607 = vpack.c.b16 %v445, %v436
  %v608 = vpack.c.b16 %v446, %v437
  %v609 = vpack.c.b16 %v447, %v438
  %v610 = vpack.c.b16 %v457, %v448
  %v611 = vpack.c.b16 %v458, %v449
  %v612 = vpack.c.b16 %v459, %v450
  %v613 = vpack.c.b16 %v460, %v451
  %v614 = vpack.c.b16 %v461, %v452
  %v615 = vpack.c.b16 %v462, %v453
  %v616 = vpack.c.b16 %v463, %v454
  %v617 = vpack.c.b16 %v464, %v455
  %v618 = vpack.c.b16 %v465, %v456
  %v619 = vpack.c.b16 %v475, %v466
  %v620 = vpack.c.b16 %v476, %v467
  %v621 = vpack.c.b16 %v477, %v468
  %v622 = vpack.c.b16 %v478, %v469
  %v623 = vpack.c.b16 %v479, %v470
  %v624 = vpack.c.b16 %v480, %v471
  %v625 = vpack.c.b16 %v481, %v472
  %v626 = vpack.c.b16 %v482, %v473
  %v627 = vpack.c.b16 %v483, %v474
  %v628 = vpack.c.b16 %v493, %v484
  %v629 = vpack.c.b16 %v494, %v485
  %v630 = vpack.c.b16 %v495, %v486
  %v631 = vpack.c.b16 %v496, %v487
  %v632 = vpack.c.b16 %v497, %v488
  %v633 = vpack.c.b16 %v498, %v489
  %v634 = vpack.c.b16 %v499, %v490
  %v635 = vpack.c.b16 %v500, %v491
  %v636 = vpack.c.b16 %v501, %v492
  %v637 = vpack.c.b16 %v511, %v502
  %v638 = vpack.c.b16 %v512, %v503
  %v639 = vpack.c.b16 %v513, %v504
  %v640 = vpack.c.b16 %v514, %v505
  %v641 = vpack.c.b16 %v515, %v506
  %v642 = vpack.c.b16 %v516, %v507
  %v643 = vpack.c.b16 %v517, %v508
  %v644 = vpack.c.b16 %v518, %v509
  %v645 = vpack.c.b16 %v519, %v510
  %v646 = vpack.c.b16 %v529, %v520
  %v647 = vpack.c.b16 %v530, %v521
  %v648 = vpack.c.b16 %v531, %v522
  %v649 = vpack.c.b16 %v532, %v523
  %v650 = vpack.c.b16 %v533, %v524
  %v651 = vpack.c.b16 %v534, %v525
  %v652 = vpack.c.b16 %v535, %v526
  %v653 = vpack.c.b16 %v536, %v527
  %v654 = vpack.c.b16 %v537, %v528
  %v655 = vpack.c.b16 %v547, %v538
  %v656 = vpack.c.b16 %v548, %v539
  %v657 = vpack.c.b16 %v549, %v540
  %v658 = vpack.c.b16 %v550, %v541
  %v659 = vpack.c.b16 %v551, %v542
  %v660 = vpack.c.b16 %v552, %v543
  %v661 = vpack.c.b16 %v553, %v544
  %v662 = vpack.c.b16 %v554, %v545
  %v663 = vpack.c.b16 %v555, %v546
  %v664 = vpack.c.b16 %v565, %v556
  %v665 = vpack.c.b16 %v566, %v557
  %v666 = vpack.c.b16 %v567, %v558
  %v667 = vpack.c.b16 %v568, %v559
  %v668 = vpack.c.b16 %v569, %v560
  %v669 = vpack.c.b16 %v570, %v561
  %v670 = vpack.c.b16 %v571, %v562
  %v671 = vpack.c.b16 %v572, %v563
  %v672 = vpack.c.b16 %v573, %v564
  %v916 = vunpack.c.l.b16 %v122
  %v917 = vunpack.c.h.b16 %v122
  %v918 = vunpack.c.l.b16 %v123
  %v919 = vunpack.c.h.b16 %v123
  %v920 = vunpack.c.l.b16 %v124
  %v921 = vunpack.c.h.b16 %v124
  %v922 = vunpack.c.l.b16 %v125
  %v923 = vunpack.c.h.b16 %v125
  %v924 = vunpack.c.l.b16 %v126
  %v925 = vunpack.c.h.b16 %v126
  %v926 = vunpack.c.l.b16 %v127
  %v927 = vunpack.c.h.b16 %v127
  %v928 = vunpack.c.l.b16 %v128
  %v929 = vunpack.c.h.b16 %v128
  %v930 = vunpack.c.l.b16 %v129
  %v931 = vunpack.c.h.b16 %v129
  %v932 = vunpack.c.l.b16 %v130
  %v933 = vunpack.c.h.b16 %v130
  %v934 = vunpack.c.l.b16 %v131
  %v935 = vunpack.c.h.b16 %v131
  %v936 = vunpack.c.l.b16 %v132
  %v937 = vunpack.c.h.b16 %v132
  %v938 = vunpack.c.l.b16 %v133
  %v939 = vunpack.c.h.b16 %v133
  %v940 = vunpack.c.l.b16 %v134
  %v941 = vunpack.c.h.b16 %v134
  %v942 = vunpack.c.l.b16 %v135
  %v943 = vunpack.c.h.b16 %v135
  %v944 = vunpack.c.l.b16 %v136
  %v945 = vunpack.c.h.b16 %v136
  %v946 = vunpack.c.l.b16 %v137
  %v947 = vunpack.c.h.b16 %v137
  %v948 = vunpack.c.l.b16 %v138
  %v949 = vunpack.c.h.b16 %v138
  %v950 = vunpack.c.l.b16 %v139
  %v951 = vunpack.c.h.b16 %v139
  %v952 = vunpack.c.l.b16 %v140
  %v953 = vunpack.c.h.b16 %v140
  %v954 = vunpack.c.l.b16 %v141
  %v955 = vunpack.c.h.b16 %v141
  %v956 = vunpack.c.l.b16 %v142
  %v957 = vunpack.c.h.b16 %v142
  %v958 = vunpack.c.l.b16 %v143
  %v959 = vunpack.c.h.b16 %v143
  %v960 = vunpack.c.l.b16 %v144
  %v961 = vunpack.c.h.b16 %v144
  %v962 = vunpack.c.l.b16 %v145
  %v963 = vunpack.c.h.b16 %v145
  %v964 = vunpack.c.l.b16 %v146
  %v965 = vunpack.c.h.b16 %v146
  %v966 = vunpack.c.l.b16 %v147
  %v967 = vunpack.c.h.b16 %v147
  %v968 = vunpack.c.l.b16 %v148
  %v969 = vunpack.c.h.b16 %v148
  %v970 = vunpack.c.l.b16 %v149
  %v971 = vunpack.c.h.b16 %v149
  %v972 = vunpack.c.l.b16 %v150
  %v973 = vunpack.c.h.b16 %v150
  %v974 = vunpack.c.l.b16 %v151
  %v975 = vunpack.c.h.b16 %v151
  %v976 = vunpack.c.l.b16 %v152
  %v977 = vunpack.c.h.b16 %v152
  %v978 = vunpack.c.l.b16 %v153
  %v979 = vunpack.c.h.b16 %v153
  %v980 = vunpack.c.l.b16 %v154
  %v981 = vunpack.c.h.b16 %v154
  %v982 = vunpack.c.l.b16 %v155
  %v983 = vunpack.c.h.b16 %v155
  %v984 = vunpack.c.l.b16 %v156
  %v985 = vunpack.c.h.b16 %v156
  %v986 = vunpack.c.l.b16 %v157
  %v987 = vunpack.c.h.b16 %v157
  %v988 = vunpack.c.l.b16 %v158
  %v989 = vunpack.c.h.b16 %v158
  %v990 = vunpack.c.l.b16 %v159
  %v991 = vunpack.c.h.b16 %v159
  %v992 = vunpack.c.l.b16 %v160
  %v993 = vunpack.c.h.b16 %v160
  %v994 = vunpack.c.l.b16 %v161
  %v995 = vunpack.c.h.b16 %v161
  %v996 = vunpack.c.l.b16 %v162
  %v997 = vunpack.c.h.b16 %v162
  %v998 = vunpack.c.l.b16 %v163
  %v999 = vunpack.c.h.b16 %v163
  %v1000 = vunpack.c.l.b16 %v164
  %v1001 = vunpack.c.h.b16 %v164
  %v1002 = vunpack.c.l.b16 %v165
  %v1003 = vunpack.c.h.b16 %v165
  %v1004 = vunpack.c.l.b16 %v166
  %v1005 = vunpack.c.h.b16 %v166
  %v1006 = vunpack.c.l.b16 %v167
  %v1007 = vunpack.c.h.b16 %v167
  %v1008 = vunpack.c.l.b16 %v168
  %v1009 = vunpack.c.h.b16 %v168
  %v1010 = vunpack.c.l.b16 %v169
  %v1011 = vunpack.c.h.b16 %v169
  %v1012 = vunpack.c.l.b16 %v170
  %v1013 = vunpack.c.h.b16 %v170
  %v1014 = vunpack.c.l.b16 %v171
  %v1015 = vunpack.c.h.b16 %v171
  %v1016 = vunpack.c.l.b16 %v172
  %v1017 = vunpack.c.h.b16 %v172
  %v1018 = vunpack.c.l.b16 %v173
  %v1019 = vunpack.c.h.b16 %v173
  %v1020 = vunpack.c.l.b16 %v174
  %v1021 = vunpack.c.h.b16 %v174
  %v1022 = vunpack.c.l.b16 %v175
  %v1023 = vunpack.c.h.b16 %v175
  %v1024 = vunpack.c.l.b16 %v176
  %v1025 = vunpack.c.h.b16 %v176
  %v1026 = vunpack.c.l.b16 %v177
  %v1027 = vunpack.c.h.b16 %v177
  %v1028 = vunpack.c.l.b16 %v178
  %v1029 = vunpack.c.h.b16 %v178
  %v1030 = vunpack.c.l.b16 %v179
  %v1031 = vunpack.c.h.b16 %v179
  %v1032 = vunpack.c.l.b16 %v180
  %v1033 = vunpack.c.h.b16 %v180
  %v1034 = vunpack.c.l.b16 %v181
  %v1035 = vunpack.c.h.b16 %v181
  %v1036 = vunpack.c.l.b16 %v182
  %v1037 = vunpack.c.h.b16 %v182
  %v1038 = vunpack.c.l.b16 %v183
  %v1039 = vunpack.c.h.b16 %v183
  %v1040 = vunpack.c.l.b16 %v184
  %v1041 = vunpack.c.h.b16 %v184
  %v1042 = vunpack.c.l.b16 %v185
  %v1043 = vunpack.c.h.b16 %v185
  %v1044 = vunpack.c.l.b16 %v186
  %v1045 = vunpack.c.h.b16 %v186
  %v1046 = vunpack.c.l.b16 %v187
  %v1047 = vunpack.c.h.b16 %v187
  %v1048 = vunpack.c.l.b16 %v188
  %v1049 = vunpack.c.h.b16 %v188
  %v1050 = vunpack.c.l.b16 %v189
  %v1051 = vunpack.c.h.b16 %v189
  %v1052 = vunpack.c.l.b16 %v190
  %v1053 = vunpack.c.h.b16 %v190
  %v1054 = vunpack.c.l.b16 %v191
  %v1055 = vunpack.c.h.b16 %v191
  %v1056 = vunpack.c.l.b16 %v192
  %v1057 = vunpack.c.h.b16 %v192
  %v1058 = vunpack.c.l.b16 %v193
  %v1059 = vunpack.c.h.b16 %v193
  %v1060 = vunpack.c.l.b16 %v194
  %v1061 = vunpack.c.h.b16 %v194
  %v1062 = vunpack.c.l.b16 %v195
  %v1063 = vunpack.c.h.b16 %v195
  %v1064 = vunpack.c.l.b16 %v196
  %v1065 = vunpack.c.h.b16 %v196
  %v1066 = vunpack.c.l.b16 %v197
  %v1067 = vunpack.c.h.b16 %v197
  %v1068 = vunpack.c.l.b16 %v198
  %v1069 = vunpack.c.h.b16 %v198
  %v1070 = vunpack.c.l.b16 %v199
  %v1071 = vunpack.c.h.b16 %v199
  %v1072 = vunpack.c.l.b16 %v200
  %v1073 = vunpack.c.h.b16 %v200
  %v1074 = vunpack.c.l.b16 %v201
  %v1075 = vunpack.c.h.b16 %v201
  %v1076 = vunpack.c.l.b16 %v202
  %v1077 = vunpack.c.h.b16 %v202
  %v1078 = vunpack.c.l.b16 %v203
  %v1079 = vunpack.c.h.b16 %v203
  %v1080 = vunpack.c.l.b16 %v204
  %v1081 = vunpack.c.h.b16 %v204
  %v1082 = vunpack.c.l.b16 %v205
  %v1083 = vunpack.c.h.b16 %v205
  %v1084 = vunpack.c.l.b16 %v206
  %v1085 = vunpack.c.h.b16 %v206
  %v1086 = vunpack.c.l.b16 %v207
  %v1087 = vunpack.c.h.b16 %v207
  %v1088 = vunpack.c.l.b16 %v208
  %v1089 = vunpack.c.h.b16 %v208
  %v1090 = vunpack.c.l.b16 %v209
  %v1091 = vunpack.c.h.b16 %v209
  %v1092 = vunpack.c.l.b16 %v210
  %v1093 = vunpack.c.h.b16 %v210
  %v1094 = vunpack.c.l.b16 %v211
  %v1095 = vunpack.c.h.b16 %v211
  %v1096 = vunpack.c.l.b16 %v212
  %v1097 = vunpack.c.h.b16 %v212
  %v1098 = vunpack.c.l.b16 %v213
  %v1099 = vunpack.c.h.b16 %v213
  %v1100 = vunpack.c.l.b16 %v214
  %v1101 = vunpack.c.h.b16 %v214
  %v1102 = vunpack.c.l.b16 %v215
  %v1103 = vunpack.c.h.b16 %v215
  %v1104 = vunpack.c.l.b16 %v216
  %v1105 = vunpack.c.h.b16 %v216
  %v1106 = vunpack.c.l.b16 %v217
  %v1107 = vunpack.c.h.b16 %v217
  %v1108 = vunpack.c.l.b16 %v218
  %v1109 = vunpack.c.h.b16 %v218
  %v1110 = vunpack.c.l.b16 %v219
  %v1111 = vunpack.c.h.b16 %v219
  %v1112 = vunpack.c.l.b16 %v220
  %v1113 = vunpack.c.h.b16 %v220
  %v1114 = vunpack.c.l.b16 %v221
  %v1115 = vunpack.c.h.b16 %v221
  %v1116 = vunpack.c.l.b16 %v222
  %v1117 = vunpack.c.h.b16 %v222
  %v1118 = vunpack.c.l.b16 %v223
  %v1119 = vunpack.c.h.b16 %v223
  %v1120 = vunpack.c.l.b16 %v224
  %v1121 = vunpack.c.h.b16 %v224
  %v1122 = vunpack.c.l.b16 %v225
  %v1123 = vunpack.c.h.b16 %v225
  %v1124 = vunpack.c.l.b16 %v226
  %v1125 = vunpack.c.h.b16 %v226
  %v1126 = vunpack.c.l.b16 %v227
  %v1127 = vunpack.c.h.b16 %v227
  %v1128 = vunpack.c.l.b16 %v228
  %v1129 = vunpack.c.h.b16 %v228
  %v1130 = vunpack.c.l.b16 %v229
  %v1131 = vunpack.c.h.b16 %v229
  %v1132 = vunpack.c.l.b16 %v230
  %v1133 = vunpack.c.h.b16 %v230
  %v1134 = vunpack.c.l.b16 %v231
  %v1135 = vunpack.c.h.b16 %v231
  %v1136 = vunpack.c.l.b16 %v232
  %v1137 = vunpack.c.h.b16 %v232
  %v1138 = vunpack.c.l.b16 %v233
  %v1139 = vunpack.c.h.b16 %v233
  %v1140 = vunpack.c.l.b16 %v234
  %v1141 = vunpack.c.h.b16 %v234
  %v1142 = vunpack.c.l.b16 %v235
  %v1143 = vunpack.c.h.b16 %v235
  %v1144 = vunpack.c.l.b16 %v236
  %v1145 = vunpack.c.h.b16 %v236
  %v1146 = vunpack.c.l.b16 %v237
  %v1147 = vunpack.c.h.b16 %v237
  %v1148 = vunpack.c.l.b16 %v238
  %v1149 = vunpack.c.h.b16 %v238
  %v1150 = vunpack.c.l.b16 %v239
  %v1151 = vunpack.c.h.b16 %v239
  %v1152 = vunpack.c.l.b16 %v240
  %v1153 = vunpack.c.h.b16 %v240
  %v1154 = vunpack.c.l.b16 %v241
  %v1155 = vunpack.c.h.b16 %v241
  %v1156 = vunpack.c.l.b16 %v242
  %v1157 = vunpack.c.h.b16 %v242
  %v1158 = vunpack.c.l.b16 %v243
  %v1159 = vunpack.c.h.b16 %v243
  %v1160 = vunpack.c.l.b16 %v244
  %v1161 = vunpack.c.h.b16 %v244
  %v1162 = vunpack.c.l.b16 %v245
  %v1163 = vunpack.c.h.b16 %v245
  %v1164 = vunpack.c.l.b16 %v246
  %v1165 = vunpack.c.h.b16 %v246
  %v1166 = vunpack.c.l.b16 %v247
  %v1167 = vunpack.c.h.b16 %v247
  %v1168 = vunpack.c.l.b16 %v248
  %v1169 = vunpack.c.h.b16 %v248
  %v1170 = vunpack.c.l.b16 %v249
  %v1171 = vunpack.c.h.b16 %v249
  %v1172 = vunpack.c.l.b16 %v250
  %v1173 = vunpack.c.h.b16 %v250
  %v1174 = vunpack.c.l.b16 %v251
  %v1175 = vunpack.c.h.b16 %v251
  %v1176 = vunpack.c.l.b16 %v252
  %v1177 = vunpack.c.h.b16 %v252
  %v1178 = vunpack.c.l.b16 %v253
  %v1179 = vunpack.c.h.b16 %v253
  %v1180 = vunpack.c.l.b16 %v254
  %v1181 = vunpack.c.h.b16 %v254
  %v1182 = vunpack.c.l.b16 %v255
  %v1183 = vunpack.c.h.b16 %v255
  %v1184 = vunpack.c.l.b16 %v256
  %v1185 = vunpack.c.h.b16 %v256
  %v1186 = vunpack.c.l.b16 %v257
  %v1187 = vunpack.c.h.b16 %v257
  %v1188 = vunpack.c.l.b16 %v258
  %v1189 = vunpack.c.h.b16 %v258
  %v1190 = vunpack.c.l.b16 %v259
  %v1191 = vunpack.c.h.b16 %v259
  %v1192 = vunpack.c.l.b16 %v260
  %v1193 = vunpack.c.h.b16 %v260
  %v1194 = vunpack.c.l.b16 %v261
  %v1195 = vunpack.c.h.b16 %v261
  %v1196 = vunpack.c.l.b16 %v262
  %v1197 = vunpack.c.h.b16 %v262
  %v1198 = vunpack.c.l.b16 %v263
  %v1199 = vunpack.c.h.b16 %v263
  %v1200 = vunpack.c.l.b16 %v264
  %v1201 = vunpack.c.h.b16 %v264
  %v1202 = vunpack.c.l.b16 %v265
  %v1203 = vunpack.c.h.b16 %v265
  %v1204 = vpack.c.b16 %v918, %v916
  %v1205 = vpack.c.b16 %v919, %v917
  %v1206 = vpack.c.b16 %v922, %v920
  %v1207 = vpack.c.b16 %v923, %v921
  %v1208 = vpack.c.b16 %v926, %v924
  %v1209 = vpack.c.b16 %v927, %v925
  %v1210 = vpack.c.b16 %v930, %v928
  %v1211 = vpack.c.b16 %v931, %v929
  %v1212 = vpack.c.b16 %v934, %v932
  %v1213 = vpack.c.b16 %v935, %v933
  %v1214 = vpack.c.b16 %v938, %v936
  %v1215 = vpack.c.b16 %v939, %v937
  %v1216 = vpack.c.b16 %v942, %v940
  %v1217 = vpack.c.b16 %v943, %v941
  %v1218 = vpack.c.b16 %v946, %v944
  %v1219 = vpack.c.b16 %v947, %v945
  %v1220 = vpack.c.b16 %v950, %v948
  %v1221 = vpack.c.b16 %v951, %v949
  %v1222 = vpack.c.b16 %v954, %v952
  %v1223 = vpack.c.b16 %v955, %v953
  %v1224 = vpack.c.b16 %v958, %v956
  %v1225 = vpack.c.b16 %v959, %v957
  %v1226 = vpack.c.b16 %v962, %v960
  %v1227 = vpack.c.b16 %v963, %v961
  %v1228 = vpack.c.b16 %v966, %v964
  %v1229 = vpack.c.b16 %v967, %v965
  %v1230 = vpack.c.b16 %v970, %v968
  %v1231 = vpack.c.b16 %v971, %v969
  %v1232 = vpack.c.b16 %v974, %v972
  %v1233 = vpack.c.b16 %v975, %v973
  %v1234 = vpack.c.b16 %v978, %v976
  %v1235 = vpack.c.b16 %v979, %v977
  %v1236 = vpack.c.b16 %v982, %v980
  %v1237 = vpack.c.b16 %v983, %v981
  %v1238 = vpack.c.b16 %v986, %v984
  %v1239 = vpack.c.b16 %v987, %v985
  %v1240 = vpack.c.b16 %v990, %v988
  %v1241 = vpack.c.b16 %v991, %v989
  %v1242 = vpack.c.b16 %v994, %v992
  %v1243 = vpack.c.b16 %v995, %v993
  %v1244 = vpack.c.b16 %v998, %v996
  %v1245 = vpack.c.b16 %v999, %v997
  %v1246 = vpack.c.b16 %v1002, %v1000
  %v1247 = vpack.c.b16 %v1003, %v1001
  %v1248 = vpack.c.b16 %v1006, %v1004
  %v1249 = vpack.c.b16 %v1007, %v1005
  %v1250 = vpack.c.b16 %v1010, %v1008
  %v1251 = vpack.c.b16 %v1011, %v1009
  %v1252 = vpack.c.b16 %v1014, %v1012
  %v1253 = vpack.c.b16 %v1015, %v1013
  %v1254 = vpack.c.b16 %v1018, %v1016
  %v1255 = vpack.c.b16 %v1019, %v1017
  %v1256 = vpack.c.b16 %v1022, %v1020
  %v1257 = vpack.c.b16 %v1023, %v1021
  %v1258 = vpack.c.b16 %v1026, %v1024
  %v1259 = vpack.c.b16 %v1027, %v1025
  %v1260 = vpack.c.b16 %v1030, %v1028
  %v1261 = vpack.c.b16 %v1031, %v1029
  %v1262 = vpack.c.b16 %v1034, %v1032
  %v1263 = vpack.c.b16 %v1035, %v1033
  %v1264 = vpack.c.b16 %v1038, %v1036
  %v1265 = vpack.c.b16 %v1039, %v1037
  %v1266 = vpack.c.b16 %v1042, %v1040
  %v1267 = vpack.c.b16 %v1043, %v1041
  %v1268 = vpack.c.b16 %v1046, %v1044
  %v1269 = vpack.c.b16 %v1047, %v1045
  %v1270 = vpack.c.b16 %v1050, %v1048
  %v1271 = vpack.c.b16 %v1051, %v1049
  %v1272 = vpack.c.b16 %v1054, %v1052
  %v1273 = vpack.c.b16 %v1055, %v1053
  %v1274 = vpack.c.b16 %v1058, %v1056
  %v1275 = vpack.c.b16 %v1059, %v1057
  %v1276 = vpack.c.b16 %v1062, %v1060
  %v1277 = vpack.c.b16 %v1063, %v1061
  %v1278 = vpack.c.b16 %v1066, %v1064
  %v1279 = vpack.c.b16 %v1067, %v1065
  %v1280 = vpack.c.b16 %v1070, %v1068
  %v1281 = vpack.c.b16 %v1071, %v1069
  %v1282 = vpack.c.b16 %v1074, %v1072
  %v1283 = vpack.c.b16 %v1075, %v1073
  %v1284 = vpack.c.b16 %v1078, %v1076
  %v1285 = vpack.c.b16 %v1079, %v1077
  %v1286 = vpack.c.b16 %v1082, %v1080
  %v1287 = vpack.c.b16 %v1083, %v1081
  %v1288 = vpack.c.b16 %v1086, %v1084
  %v1289 = vpack.c.b16 %v1087, %v1085
  %v1290 = vpack.c.b16 %v1090, %v1088
  %v1291 = vpack.c.b16 %v1091, %v1089
  %v1292 = vpack.c.b16 %v1094, %v1092
  %v1293 = vpack.c.b16 %v1095, %v1093
  %v1294 = vpack.c.b16 %v1098, %v1096
  %v1295 = vpack.c.b16 %v1099, %v1097
  %v1296 = vpack.c.b16 %v1102, %v1100
  %v1297 = vpack.c.b16 %v1103, %v1101
  %v1298 = vpack.c.b16 %v1106, %v1104
  %v1299 = vpack.c.b16 %v1107, %v1105
  %v1300 = vpack.c.b16 %v1110, %v1108
  %v1301 = vpack.c.b16 %v1111, %v1109
  %v1302 = vpack.c.b16 %v1114, %v1112
  %v1303 = vpack.c.b16 %v1115, %v1113
  %v1304 = vpack.c.b16 %v1118, %v1116
  %v1305 = vpack.c.b16 %v1119, %v1117
  %v1306 = vpack.c.b16 %v1122, %v1120
  %v1307 = vpack.c.b16 %v1123, %v1121
  %v1308 = vpack.c.b16 %v1126, %v1124
  %v1309 = vpack.c.b16 %v1127, %v1125
  %v1310 = vpack.c.b16 %v1130, %v1128
  %v1311 = vpack.c.b16 %v1131, %v1129
  %v1312 = vpack.c.b16 %v1134, %v1132
  %v1313 = vpack.c.b16 %v1135, %v1133
  %v1314 = vpack.c.b16 %v1138, %v1136
  %v1315 = vpack.c.b16 %v1139, %v1137
  %v1316 = vpack.c.b16 %v1142, %v1140
  %v1317 = vpack.c.b16 %v1143, %v1141
  %v1318 = vpack.c.b16 %v1146, %v1144
  %v1319 = vpack.c.b16 %v1147, %v1145
  %v1320 = vpack.c.b16 %v1150, %v1148
  %v1321 = vpack.c.b16 %v1151, %v1149
  %v1322 = vpack.c.b16 %v1154, %v1152
  %v1323 = vpack.c.b16 %v1155, %v1153
  %v1324 = vpack.c.b16 %v1158, %v1156
  %v1325 = vpack.c.b16 %v1159, %v1157
  %v1326 = vpack.c.b16 %v1162, %v1160
  %v1327 = vpack.c.b16 %v1163, %v1161
  %v1328 = vpack.c.b16 %v1166, %v1164
  %v1329 = vpack.c.b16 %v1167, %v1165
  %v1330 = vpack.c.b16 %v1170, %v1168
  %v1331 = vpack.c.b16 %v1171, %v1169
  %v1332 = vpack.c.b16 %v1174, %v1172
  %v1333 = vpack.c.b16 %v1175, %v1173
  %v1334 = vpack.c.b16 %v1178, %v1176
  %v1335 = vpack.c.b16 %v1179, %v1177
  %v1336 = vpack.c.b16 %v1182, %v1180
  %v1337 = vpack.c.b16 %v1183, %v1181
  %v1338 = vpack.c.b16 %v1186, %v1184
  %v1339 = vpack.c.b16 %v1187, %v1185
  %v1340 = vpack.c.b16 %v1190, %v1188
  %v1341 = vpack.c.b16 %v1191, %v1189
  %v1342 = vpack.c.b16 %v1194, %v1192
  %v1343 = vpack.c.b16 %v1195, %v1193
  %v1344 = vpack.c.b16 %v1198, %v1196
  %v1345 = vpack.c.b16 %v1199, %v1197
  %v1346 = vpack.c.b16 %v1202, %v1200
  %v1347 = vpack.c.b16 %v1203, %v1201
  %1492 = vmatprep.subr.bf16.mxu0 %v1205
  %1493 = vmatpush1.bf16.msra.mxu0 %v1204
  %1494 = vmatprep.subr.bf16.mxu0 %v1207
  %1495 = vmatpush1.bf16.msra.mxu0 %v1206
  %1496 = vmatprep.subr.bf16.mxu0 %v1209
  %1497 = vmatpush1.bf16.msra.mxu0 %v1208
  %1498 = vmatprep.subr.bf16.mxu0 %v1211
  %1499 = vmatpush1.bf16.msra.mxu0 %v1210
  %1500 = vmatprep.subr.bf16.mxu0 %v1213
  %1501 = vmatpush1.bf16.msra.mxu0 %v1212
  %1502 = vmatprep.subr.bf16.mxu0 %v1215
  %1503 = vmatpush1.bf16.msra.mxu0 %v1214
  %1504 = vmatprep.subr.bf16.mxu0 %v1217
  %1505 = vmatpush1.bf16.msra.mxu0 %v1216
  %1506 = vmatprep.subr.bf16.mxu0 %v1219
  %1507 = vmatpush1.bf16.msra.mxu0 %v1218
  %1508 = vmatprep.subr.bf16.mxu0 %v1221
  %1509 = vmatpush1.bf16.msra.mxu0 %v1220
  %1510 = vmatprep.subr.bf16.mxu0 %v1223
  %1511 = vmatpush1.bf16.msra.mxu0 %v1222
  %1512 = vmatprep.subr.bf16.mxu0 %v1225
  %1513 = vmatpush1.bf16.msra.mxu0 %v1224
  %1514 = vmatprep.subr.bf16.mxu0 %v1227
  %1515 = vmatpush1.bf16.msra.mxu0 %v1226
  %1516 = vmatprep.subr.bf16.mxu0 %v1229
  %1517 = vmatpush1.bf16.msra.mxu0 %v1228
  %1518 = vmatprep.subr.bf16.mxu0 %v1231
  %1519 = vmatpush1.bf16.msra.mxu0 %v1230
  %1520 = vmatprep.subr.bf16.mxu0 %v1233
  %1521 = vmatpush1.bf16.msra.mxu0 %v1232
  %1522 = vmatprep.subr.bf16.mxu0 %v1235
  %1523 = vmatpush1.bf16.msra.mxu0 %v1234
  %1524 = vmatprep.mubr.bf16.mxu0 %v575
  %1525 = vmatmul.mubr.bf16.gmra.mrb[0].mxu0 %v574
  %v1526 = vpop.f32.mrb[0].mxu0
  %v1527 = vadd.f32 0.0, %v1526
  %v1528 = vpop.f32.mrb[0].mxu0
  %v1529 = vadd.f32 0.0, %v1528
  %v1530 = vpop.f32.mrb[0].mxu0
  %v1531 = vadd.f32 0.0, %v1530
  %v1532 = vpop.f32.mrb[0].mxu0
  %v1533 = vadd.f32 0.0, %v1532
  %1534 = vmatprep.mubr.bf16.mxu0 %v584
  %1535 = vmatmul.mubr.bf16.gmra.mrb[0].mxu0 %v583
  %v1536 = vpop.f32.mrb[0].mxu0
  %v1537 = vadd.f32 0.0, %v1536
  %v1538 = vpop.f32.mrb[0].mxu0
  %v1539 = vadd.f32 0.0, %v1538
  %v1540 = vpop.f32.mrb[0].mxu0
  %v1541 = vadd.f32 0.0, %v1540
  %v1542 = vpop.f32.mrb[0].mxu0
  %v1543 = vadd.f32 0.0, %v1542
  %1544 = vmatprep.mubr.bf16.mxu0 %v593
  %1545 = vmatmul.mubr.bf16.gmra.mrb[0].mxu0 %v592
  %v1546 = vpop.f32.mrb[0].mxu0
  %v1547 = vadd.f32 0.0, %v1546
  %v1548 = vpop.f32.mrb[0].mxu0
  %v1549 = vadd.f32 0.0, %v1548
  %v1550 = vpop.f32.mrb[0].mxu0
  %v1551 = vadd.f32 0.0, %v1550
  %v1552 = vpop.f32.mrb[0].mxu0
  %v1553 = vadd.f32 0.0, %v1552
  %1554 = vmatprep.mubr.bf16.mxu0 %v602
  %1555 = vmatmul.mubr.bf16.gmra.mrb[0].mxu0 %v601
  %v1556 = vpop.f32.mrb[0].mxu0
  %v1557 = vadd.f32 0.0, %v1556
  %v1558 = vpop.f32.mrb[0].mxu0
  %v1559 = vadd.f32 0.0, %v1558
  %v1560 = vpop.f32.mrb[0].mxu0
  %v1561 = vadd.f32 0.0, %v1560
  %v1562 = vpop.f32.mrb[0].mxu0
  %v1563 = vadd.f32 0.0, %v1562
  %1564 = vmatprep.mubr.bf16.mxu0 %v611
  %1565 = vmatmul.mubr.bf16.gmra.mrb[0].mxu0 %v610
  %v1566 = vpop.f32.mrb[0].mxu0
  %v1567 = vadd.f32 0.0, %v1566
  %v1568 = vpop.f32.mrb[0].mxu0
  %v1569 = vadd.f32 0.0, %v1568
  %v1570 = vpop.f32.mrb[0].mxu0
  %v1571 = vadd.f32 0.0, %v1570
  %v1572 = vpop.f32.mrb[0].mxu0
  %v1573 = vadd.f32 0.0, %v1572
  %1574 = vmatprep.mubr.bf16.mxu0 %v620
  %1575 = vmatmul.mubr.bf16.gmra.mrb[0].mxu0 %v619
  %v1576 = vpop.f32.mrb[0].mxu0
  %v1577 = vadd.f32 0.0, %v1576
  %v1578 = vpop.f32.mrb[0].mxu0
  %v1579 = vadd.f32 0.0, %v1578
  %v1580 = vpop.f32.mrb[0].mxu0
  %v1581 = vadd.f32 0.0, %v1580
  %v1582 = vpop.f32.mrb[0].mxu0
  %v1583 = vadd.f32 0.0, %v1582
  %1584 = vmatprep.mubr.bf16.mxu0 %v629
  %1585 = vmatmul.mubr.bf16.gmra.mrb[0].mxu0 %v628
  %v1586 = vpop.f32.mrb[0].mxu0
  %v1587 = vadd.f32 0.0, %v1586
  %v1588 = vpop.f32.mrb[0].mxu0
  %v1589 = vadd.f32 0.0, %v1588
  %v1590 = vpop.f32.mrb[0].mxu0
  %v1591 = vadd.f32 0.0, %v1590
  %v1592 = vpop.f32.mrb[0].mxu0
  %v1593 = vadd.f32 0.0, %v1592
  %1594 = vmatprep.mubr.bf16.mxu0 %v638
  %1595 = vmatmul.mubr.bf16.gmra.mrb[0].mxu0 %v637
  %v1596 = vpop.f32.mrb[0].mxu0
  %v1597 = vadd.f32 0.0, %v1596
  %v1598 = vpop.f32.mrb[0].mxu0
  %v1599 = vadd.f32 0.0, %v1598
  %v1600 = vpop.f32.mrb[0].mxu0
  %v1601 = vadd.f32 0.0, %v1600
  %v1602 = vpop.f32.mrb[0].mxu0
  %v1603 = vadd.f32 0.0, %v1602
  %1604 = vmatprep.mubr.bf16.mxu0 %v647
  %1605 = vmatmul.mubr.bf16.gmra.mrb[0].mxu0 %v646
  %v1606 = vpop.f32.mrb[0].mxu0
  %v1607 = vadd.f32 0.0, %v1606
  %v1608 = vpop.f32.mrb[0].mxu0
  %v1609 = vadd.f32 0.0, %v1608
  %v1610 = vpop.f32.mrb[0].mxu0
  %v1611 = vadd.f32 0.0, %v1610
  %v1612 = vpop.f32.mrb[0].mxu0
  %v1613 = vadd.f32 0.0, %v1612
  %1614 = vmatprep.mubr.bf16.mxu0 %v656
  %1615 = vmatmul.mubr.bf16.gmra.mrb[0].mxu0 %v655
  %v1616 = vpop.f32.mrb[0].mxu0
  %v1617 = vadd.f32 0.0, %v1616
  %v1618 = vpop.f32.mrb[0].mxu0
  %v1619 = vadd.f32 0.0, %v1618
  %v1620 = vpop.f32.mrb[0].mxu0
  %v1621 = vadd.f32 0.0, %v1620
  %v1622 = vpop.f32.mrb[0].mxu0
  %v1623 = vadd.f32 0.0, %v1622
  %1624 = vmatprep.mubr.bf16.mxu0 %v665
  %1625 = vmatmul.mubr.bf16.gmra.mrb[0].mxu0 %v664
  %v1626 = vpop.f32.mrb[0].mxu0
  %v1627 = vadd.f32 0.0, %v1626
  %v1628 = vpop.f32.mrb[0].mxu0
  %v1629 = vadd.f32 0.0, %v1628
  %v1630 = vpop.f32.mrb[0].mxu0
  %v1631 = vadd.f32 0.0, %v1630
  %v1632 = vpop.f32.mrb[0].mxu0
  %v1633 = vadd.f32 0.0, %v1632
  %1634 = vdwg.mxu0
  %1635 = vmatprep.subr.bf16.mxu0 %v1237
  %1636 = vmatpush1.bf16.msra.mxu0 %v1236
  %1637 = vmatprep.subr.bf16.mxu0 %v1239
  %1638 = vmatpush1.bf16.msra.mxu0 %v1238
  %1639 = vmatprep.subr.bf16.mxu0 %v1241
  %1640 = vmatpush1.bf16.msra.mxu0 %v1240
  %1641 = vmatprep.subr.bf16.mxu0 %v1243
  %1642 = vmatpush1.bf16.msra.mxu0 %v1242
  %1643 = vmatprep.subr.bf16.mxu0 %v1245
  %1644 = vmatpush1.bf16.msra.mxu0 %v1244
  %1645 = vmatprep.subr.bf16.mxu0 %v1247
  %1646 = vmatpush1.bf16.msra.mxu0 %v1246
  %1647 = vmatprep.subr.bf16.mxu0 %v1249
  %1648 = vmatpush1.bf16.msra.mxu0 %v1248
  %1649 = vmatprep.subr.bf16.mxu0 %v1251
  %1650 = vmatpush1.bf16.msra.mxu0 %v1250
  %1651 = vmatprep.subr.bf16.mxu0 %v1253
  %1652 = vmatpush1.bf16.msra.mxu0 %v1252
  %1653 = vmatprep.subr.bf16.mxu0 %v1255
  %1654 = vmatpush1.bf16.msra.mxu0 %v1254
  %1655 = vmatprep.subr.bf16.mxu0 %v1257
  %1656 = vmatpush1.bf16.msra.mxu0 %v1256
  %1657 = vmatprep.subr.bf16.mxu0 %v1259
  %1658 = vmatpush1.bf16.msra.mxu0 %v1258
  %1659 = vmatprep.subr.bf16.mxu0 %v1261
  %1660 = vmatpush1.bf16.msra.mxu0 %v1260
  %1661 = vmatprep.subr.bf16.mxu0 %v1263
  %1662 = vmatpush1.bf16.msra.mxu0 %v1262
  %1663 = vmatprep.subr.bf16.mxu0 %v1265
  %1664 = vmatpush1.bf16.msra.mxu0 %v1264
  %1665 = vmatprep.subr.bf16.mxu0 %v1267
  %1666 = vmatpush1.bf16.msra.mxu0 %v1266
  %1667 = vmatprep.mubr.bf16.mxu0 %v577
  %1668 = vmatmul.mubr.bf16.gmra.mrb[0].mxu0 %v576
  %v1669 = vpop.f32.mrb[0].mxu0
  %v1670 = vadd.f32 %v1527, %v1669
  %v1671 = vpop.f32.mrb[0].mxu0
  %v1672 = vadd.f32 %v1529, %v1671
  %v1673 = vpop.f32.mrb[0].mxu0
  %v1674 = vadd.f32 %v1531, %v1673
  %v1675 = vpop.f32.mrb[0].mxu0
  %v1676 = vadd.f32 %v1533, %v1675
  %1677 = vmatprep.mubr.bf16.mxu0 %v586
  %1678 = vmatmul.mubr.bf16.gmra.mrb[0].mxu0 %v585
  %v1679 = vpop.f32.mrb[0].mxu0
  %v1680 = vadd.f32 %v1537, %v1679
  %v1681 = vpop.f32.mrb[0].mxu0
  %v1682 = vadd.f32 %v1539, %v1681
  %v1683 = vpop.f32.mrb[0].mxu0
  %v1684 = vadd.f32 %v1541, %v1683
  %v1685 = vpop.f32.mrb[0].mxu0
  %v1686 = vadd.f32 %v1543, %v1685
  %1687 = vmatprep.mubr.bf16.mxu0 %v595
  %1688 = vmatmul.mubr.bf16.gmra.mrb[0].mxu0 %v594
  %v1689 = vpop.f32.mrb[0].mxu0
  %v1690 = vadd.f32 %v1547, %v1689
  %v1691 = vpop.f32.mrb[0].mxu0
  %v1692 = vadd.f32 %v1549, %v1691
  %v1693 = vpop.f32.mrb[0].mxu0
  %v1694 = vadd.f32 %v1551, %v1693
  %v1695 = vpop.f32.mrb[0].mxu0
  %v1696 = vadd.f32 %v1553, %v1695
  %1697 = vmatprep.mubr.bf16.mxu0 %v604
  %1698 = vmatmul.mubr.bf16.gmra.mrb[0].mxu0 %v603
  %v1699 = vpop.f32.mrb[0].mxu0
  %v1700 = vadd.f32 %v1557, %v1699
  %v1701 = vpop.f32.mrb[0].mxu0
  %v1702 = vadd.f32 %v1559, %v1701
  %v1703 = vpop.f32.mrb[0].mxu0
  %v1704 = vadd.f32 %v1561, %v1703
  %v1705 = vpop.f32.mrb[0].mxu0
  %v1706 = vadd.f32 %v1563, %v1705
  %1707 = vmatprep.mubr.bf16.mxu0 %v613
  %1708 = vmatmul.mubr.bf16.gmra.mrb[0].mxu0 %v612
  %v1709 = vpop.f32.mrb[0].mxu0
  %v1710 = vadd.f32 %v1567, %v1709
  %v1711 = vpop.f32.mrb[0].mxu0
  %v1712 = vadd.f32 %v1569, %v1711
  %v1713 = vpop.f32.mrb[0].mxu0
  %v1714 = vadd.f32 %v1571, %v1713
  %v1715 = vpop.f32.mrb[0].mxu0
  %v1716 = vadd.f32 %v1573, %v1715
  %1717 = vmatprep.mubr.bf16.mxu0 %v622
  %1718 = vmatmul.mubr.bf16.gmra.mrb[0].mxu0 %v621
  %v1719 = vpop.f32.mrb[0].mxu0
  %v1720 = vadd.f32 %v1577, %v1719
  %v1721 = vpop.f32.mrb[0].mxu0
  %v1722 = vadd.f32 %v1579, %v1721
  %v1723 = vpop.f32.mrb[0].mxu0
  %v1724 = vadd.f32 %v1581, %v1723
  %v1725 = vpop.f32.mrb[0].mxu0
  %v1726 = vadd.f32 %v1583, %v1725
  %1727 = vmatprep.mubr.bf16.mxu0 %v631
  %1728 = vmatmul.mubr.bf16.gmra.mrb[0].mxu0 %v630
  %v1729 = vpop.f32.mrb[0].mxu0
  %v1730 = vadd.f32 %v1587, %v1729
  %v1731 = vpop.f32.mrb[0].mxu0
  %v1732 = vadd.f32 %v1589, %v1731
  %v1733 = vpop.f32.mrb[0].mxu0
  %v1734 = vadd.f32 %v1591, %v1733
  %v1735 = vpop.f32.mrb[0].mxu0
  %v1736 = vadd.f32 %v1593, %v1735
  %1737 = vmatprep.mubr.bf16.mxu0 %v640
  %1738 = vmatmul.mubr.bf16.gmra.mrb[0].mxu0 %v639
  %v1739 = vpop.f32.mrb[0].mxu0
  %v1740 = vadd.f32 %v1597, %v1739
  %v1741 = vpop.f32.mrb[0].mxu0
  %v1742 = vadd.f32 %v1599, %v1741
  %v1743 = vpop.f32.mrb[0].mxu0
  %v1744 = vadd.f32 %v1601, %v1743
  %v1745 = vpop.f32.mrb[0].mxu0
  %v1746 = vadd.f32 %v1603, %v1745
  %1747 = vmatprep.mubr.bf16.mxu0 %v649
  %1748 = vmatmul.mubr.bf16.gmra.mrb[0].mxu0 %v648
  %v1749 = vpop.f32.mrb[0].mxu0
  %v1750 = vadd.f32 %v1607, %v1749
  %v1751 = vpop.f32.mrb[0].mxu0
  %v1752 = vadd.f32 %v1609, %v1751
  %v1753 = vpop.f32.mrb[0].mxu0
  %v1754 = vadd.f32 %v1611, %v1753
  %v1755 = vpop.f32.mrb[0].mxu0
  %v1756 = vadd.f32 %v1613, %v1755
  %1757 = vmatprep.mubr.bf16.mxu0 %v658
  %1758 = vmatmul.mubr.bf16.gmra.mrb[0].mxu0 %v657
  %v1759 = vpop.f32.mrb[0].mxu0
  %v1760 = vadd.f32 %v1617, %v1759
  %v1761 = vpop.f32.mrb[0].mxu0
  %v1762 = vadd.f32 %v1619, %v1761
  %v1763 = vpop.f32.mrb[0].mxu0
  %v1764 = vadd.f32 %v1621, %v1763
  %v1765 = vpop.f32.mrb[0].mxu0
  %v1766 = vadd.f32 %v1623, %v1765
  %1767 = vmatprep.mubr.bf16.mxu0 %v667
  %1768 = vmatmul.mubr.bf16.gmra.mrb[0].mxu0 %v666
  %v1769 = vpop.f32.mrb[0].mxu0
  %v1770 = vadd.f32 %v1627, %v1769
  %v1771 = vpop.f32.mrb[0].mxu0
  %v1772 = vadd.f32 %v1629, %v1771
  %v1773 = vpop.f32.mrb[0].mxu0
  %v1774 = vadd.f32 %v1631, %v1773
  %v1775 = vpop.f32.mrb[0].mxu0
  %v1776 = vadd.f32 %v1633, %v1775
  %1777 = vdwg.mxu0
  %1778 = vmatprep.subr.bf16.mxu0 %v1269
  %1779 = vmatpush1.bf16.msra.mxu0 %v1268
  %1780 = vmatprep.subr.bf16.mxu0 %v1271
  %1781 = vmatpush1.bf16.msra.mxu0 %v1270
  %1782 = vmatprep.subr.bf16.mxu0 %v1273
  %1783 = vmatpush1.bf16.msra.mxu0 %v1272
  %1784 = vmatprep.subr.bf16.mxu0 %v1275
  %1785 = vmatpush1.bf16.msra.mxu0 %v1274
  %1786 = vmatprep.subr.bf16.mxu0 %v1277
  %1787 = vmatpush1.bf16.msra.mxu0 %v1276
  %1788 = vmatprep.subr.bf16.mxu0 %v1279
  %1789 = vmatpush1.bf16.msra.mxu0 %v1278
  %1790 = vmatprep.subr.bf16.mxu0 %v1281
  %1791 = vmatpush1.bf16.msra.mxu0 %v1280
  %1792 = vmatprep.subr.bf16.mxu0 %v1283
  %1793 = vmatpush1.bf16.msra.mxu0 %v1282
  %1794 = vmatprep.subr.bf16.mxu0 %v1285
  %1795 = vmatpush1.bf16.msra.mxu0 %v1284
  %1796 = vmatprep.subr.bf16.mxu0 %v1287
  %1797 = vmatpush1.bf16.msra.mxu0 %v1286
  %1798 = vmatprep.subr.bf16.mxu0 %v1289
  %1799 = vmatpush1.bf16.msra.mxu0 %v1288
  %1800 = vmatprep.subr.bf16.mxu0 %v1291
  %1801 = vmatpush1.bf16.msra.mxu0 %v1290
  %1802 = vmatprep.subr.bf16.mxu0 %v1293
  %1803 = vmatpush1.bf16.msra.mxu0 %v1292
  %1804 = vmatprep.subr.bf16.mxu0 %v1295
  %1805 = vmatpush1.bf16.msra.mxu0 %v1294
  %1806 = vmatprep.subr.bf16.mxu0 %v1297
  %1807 = vmatpush1.bf16.msra.mxu0 %v1296
  %1808 = vmatprep.subr.bf16.mxu0 %v1299
  %1809 = vmatpush1.bf16.msra.mxu0 %v1298
  %1810 = vmatprep.mubr.bf16.mxu0 %v579
  %1811 = vmatmul.mubr.bf16.gmra.mrb[0].mxu0 %v578
  %v1812 = vpop.f32.mrb[0].mxu0
  %v1813 = vadd.f32 %v1670, %v1812
  %v1814 = vpop.f32.mrb[0].mxu0
  %v1815 = vadd.f32 %v1672, %v1814
  %v1816 = vpop.f32.mrb[0].mxu0
  %v1817 = vadd.f32 %v1674, %v1816
  %v1818 = vpop.f32.mrb[0].mxu0
  %v1819 = vadd.f32 %v1676, %v1818
  %1820 = vmatprep.mubr.bf16.mxu0 %v588
  %1821 = vmatmul.mubr.bf16.gmra.mrb[0].mxu0 %v587
  %v1822 = vpop.f32.mrb[0].mxu0
  %v1823 = vadd.f32 %v1680, %v1822
  %v1824 = vpop.f32.mrb[0].mxu0
  %v1825 = vadd.f32 %v1682, %v1824
  %v1826 = vpop.f32.mrb[0].mxu0
  %v1827 = vadd.f32 %v1684, %v1826
  %v1828 = vpop.f32.mrb[0].mxu0
  %v1829 = vadd.f32 %v1686, %v1828
  %1830 = vmatprep.mubr.bf16.mxu0 %v597
  %1831 = vmatmul.mubr.bf16.gmra.mrb[0].mxu0 %v596
  %v1832 = vpop.f32.mrb[0].mxu0
  %v1833 = vadd.f32 %v1690, %v1832
  %v1834 = vpop.f32.mrb[0].mxu0
  %v1835 = vadd.f32 %v1692, %v1834
  %v1836 = vpop.f32.mrb[0].mxu0
  %v1837 = vadd.f32 %v1694, %v1836
  %v1838 = vpop.f32.mrb[0].mxu0
  %v1839 = vadd.f32 %v1696, %v1838
  %1840 = vmatprep.mubr.bf16.mxu0 %v606
  %1841 = vmatmul.mubr.bf16.gmra.mrb[0].mxu0 %v605
  %v1842 = vpop.f32.mrb[0].mxu0
  %v1843 = vadd.f32 %v1700, %v1842
  %v1844 = vpop.f32.mrb[0].mxu0
  %v1845 = vadd.f32 %v1702, %v1844
  %v1846 = vpop.f32.mrb[0].mxu0
  %v1847 = vadd.f32 %v1704, %v1846
  %v1848 = vpop.f32.mrb[0].mxu0
  %v1849 = vadd.f32 %v1706, %v1848
  %1850 = vmatprep.mubr.bf16.mxu0 %v615
  %1851 = vmatmul.mubr.bf16.gmra.mrb[0].mxu0 %v614
  %v1852 = vpop.f32.mrb[0].mxu0
  %v1853 = vadd.f32 %v1710, %v1852
  %v1854 = vpop.f32.mrb[0].mxu0
  %v1855 = vadd.f32 %v1712, %v1854
  %v1856 = vpop.f32.mrb[0].mxu0
  %v1857 = vadd.f32 %v1714, %v1856
  %v1858 = vpop.f32.mrb[0].mxu0
  %v1859 = vadd.f32 %v1716, %v1858
  %1860 = vmatprep.mubr.bf16.mxu0 %v624
  %1861 = vmatmul.mubr.bf16.gmra.mrb[0].mxu0 %v623
  %v1862 = vpop.f32.mrb[0].mxu0
  %v1863 = vadd.f32 %v1720, %v1862
  %v1864 = vpop.f32.mrb[0].mxu0
  %v1865 = vadd.f32 %v1722, %v1864
  %v1866 = vpop.f32.mrb[0].mxu0
  %v1867 = vadd.f32 %v1724, %v1866
  %v1868 = vpop.f32.mrb[0].mxu0
  %v1869 = vadd.f32 %v1726, %v1868
  %1870 = vmatprep.mubr.bf16.mxu0 %v633
  %1871 = vmatmul.mubr.bf16.gmra.mrb[0].mxu0 %v632
  %v1872 = vpop.f32.mrb[0].mxu0
  %v1873 = vadd.f32 %v1730, %v1872
  %v1874 = vpop.f32.mrb[0].mxu0
  %v1875 = vadd.f32 %v1732, %v1874
  %v1876 = vpop.f32.mrb[0].mxu0
  %v1877 = vadd.f32 %v1734, %v1876
  %v1878 = vpop.f32.mrb[0].mxu0
  %v1879 = vadd.f32 %v1736, %v1878
  %1880 = vmatprep.mubr.bf16.mxu0 %v642
  %1881 = vmatmul.mubr.bf16.gmra.mrb[0].mxu0 %v641
  %v1882 = vpop.f32.mrb[0].mxu0
  %v1883 = vadd.f32 %v1740, %v1882
  %v1884 = vpop.f32.mrb[0].mxu0
  %v1885 = vadd.f32 %v1742, %v1884
  %v1886 = vpop.f32.mrb[0].mxu0
  %v1887 = vadd.f32 %v1744, %v1886
  %v1888 = vpop.f32.mrb[0].mxu0
  %v1889 = vadd.f32 %v1746, %v1888
  %1890 = vmatprep.mubr.bf16.mxu0 %v651
  %1891 = vmatmul.mubr.bf16.gmra.mrb[0].mxu0 %v650
  %v1892 = vpop.f32.mrb[0].mxu0
  %v1893 = vadd.f32 %v1750, %v1892
  %v1894 = vpop.f32.mrb[0].mxu0
  %v1895 = vadd.f32 %v1752, %v1894
  %v1896 = vpop.f32.mrb[0].mxu0
  %v1897 = vadd.f32 %v1754, %v1896
  %v1898 = vpop.f32.mrb[0].mxu0
  %v1899 = vadd.f32 %v1756, %v1898
  %1900 = vmatprep.mubr.bf16.mxu0 %v660
  %1901 = vmatmul.mubr.bf16.gmra.mrb[0].mxu0 %v659
  %v1902 = vpop.f32.mrb[0].mxu0
  %v1903 = vadd.f32 %v1760, %v1902
  %v1904 = vpop.f32.mrb[0].mxu0
  %v1905 = vadd.f32 %v1762, %v1904
  %v1906 = vpop.f32.mrb[0].mxu0
  %v1907 = vadd.f32 %v1764, %v1906
  %v1908 = vpop.f32.mrb[0].mxu0
  %v1909 = vadd.f32 %v1766, %v1908
  %1910 = vmatprep.mubr.bf16.mxu0 %v669
  %1911 = vmatmul.mubr.bf16.gmra.mrb[0].mxu0 %v668
  %v1912 = vpop.f32.mrb[0].mxu0
  %v1913 = vadd.f32 %v1770, %v1912
  %v1914 = vpop.f32.mrb[0].mxu0
  %v1915 = vadd.f32 %v1772, %v1914
  %v1916 = vpop.f32.mrb[0].mxu0
  %v1917 = vadd.f32 %v1774, %v1916
  %v1918 = vpop.f32.mrb[0].mxu0
  %v1919 = vadd.f32 %v1776, %v1918
  %1920 = vdwg.mxu0
  %1921 = vmatprep.subr.bf16.mxu0 %v1301
  %1922 = vmatpush1.bf16.msra.mxu0 %v1300
  %1923 = vmatprep.subr.bf16.mxu0 %v1303
  %1924 = vmatpush1.bf16.msra.mxu0 %v1302
  %1925 = vmatprep.subr.bf16.mxu0 %v1305
  %1926 = vmatpush1.bf16.msra.mxu0 %v1304
  %1927 = vmatprep.subr.bf16.mxu0 %v1307
  %1928 = vmatpush1.bf16.msra.mxu0 %v1306
  %1929 = vmatprep.subr.bf16.mxu0 %v1309
  %1930 = vmatpush1.bf16.msra.mxu0 %v1308
  %1931 = vmatprep.subr.bf16.mxu0 %v1311
  %1932 = vmatpush1.bf16.msra.mxu0 %v1310
  %1933 = vmatprep.subr.bf16.mxu0 %v1313
  %1934 = vmatpush1.bf16.msra.mxu0 %v1312
  %1935 = vmatprep.subr.bf16.mxu0 %v1315
  %1936 = vmatpush1.bf16.msra.mxu0 %v1314
  %1937 = vmatprep.subr.bf16.mxu0 %v1317
  %1938 = vmatpush1.bf16.msra.mxu0 %v1316
  %1939 = vmatprep.subr.bf16.mxu0 %v1319
  %1940 = vmatpush1.bf16.msra.mxu0 %v1318
  %1941 = vmatprep.subr.bf16.mxu0 %v1321
  %1942 = vmatpush1.bf16.msra.mxu0 %v1320
  %1943 = vmatprep.subr.bf16.mxu0 %v1323
  %1944 = vmatpush1.bf16.msra.mxu0 %v1322
  %1945 = vmatprep.subr.bf16.mxu0 %v1325
  %1946 = vmatpush1.bf16.msra.mxu0 %v1324
  %1947 = vmatprep.subr.bf16.mxu0 %v1327
  %1948 = vmatpush1.bf16.msra.mxu0 %v1326
  %1949 = vmatprep.subr.bf16.mxu0 %v1329
  %1950 = vmatpush1.bf16.msra.mxu0 %v1328
  %1951 = vmatprep.subr.bf16.mxu0 %v1331
  %1952 = vmatpush1.bf16.msra.mxu0 %v1330
  %1953 = vmatprep.mubr.bf16.mxu0 %v581
  %1954 = vmatmul.mubr.bf16.gmra.mrb[0].mxu0 %v580
  %v1955 = vpop.f32.mrb[0].mxu0
  %v1956 = vadd.f32 %v1813, %v1955
  %v1957 = vpop.f32.mrb[0].mxu0
  %v1958 = vadd.f32 %v1815, %v1957
  %v1959 = vpop.f32.mrb[0].mxu0
  %v1960 = vadd.f32 %v1817, %v1959
  %v1961 = vpop.f32.mrb[0].mxu0
  %v1962 = vadd.f32 %v1819, %v1961
  %1963 = vmatprep.mubr.bf16.mxu0 %v590
  %1964 = vmatmul.mubr.bf16.gmra.mrb[0].mxu0 %v589
  %v1965 = vpop.f32.mrb[0].mxu0
  %v1966 = vadd.f32 %v1823, %v1965
  %v1967 = vpop.f32.mrb[0].mxu0
  %v1968 = vadd.f32 %v1825, %v1967
  %v1969 = vpop.f32.mrb[0].mxu0
  %v1970 = vadd.f32 %v1827, %v1969
  %v1971 = vpop.f32.mrb[0].mxu0
  %v1972 = vadd.f32 %v1829, %v1971
  %1973 = vmatprep.mubr.bf16.mxu0 %v599
  %1974 = vmatmul.mubr.bf16.gmra.mrb[0].mxu0 %v598
  %v1975 = vpop.f32.mrb[0].mxu0
  %v1976 = vadd.f32 %v1833, %v1975
  %v1977 = vpop.f32.mrb[0].mxu0
  %v1978 = vadd.f32 %v1835, %v1977
  %v1979 = vpop.f32.mrb[0].mxu0
  %v1980 = vadd.f32 %v1837, %v1979
  %v1981 = vpop.f32.mrb[0].mxu0
  %v1982 = vadd.f32 %v1839, %v1981
  %1983 = vmatprep.mubr.bf16.mxu0 %v608
  %1984 = vmatmul.mubr.bf16.gmra.mrb[0].mxu0 %v607
  %v1985 = vpop.f32.mrb[0].mxu0
  %v1986 = vadd.f32 %v1843, %v1985
  %v1987 = vpop.f32.mrb[0].mxu0
  %v1988 = vadd.f32 %v1845, %v1987
  %v1989 = vpop.f32.mrb[0].mxu0
  %v1990 = vadd.f32 %v1847, %v1989
  %v1991 = vpop.f32.mrb[0].mxu0
  %v1992 = vadd.f32 %v1849, %v1991
  %1993 = vmatprep.mubr.bf16.mxu0 %v617
  %1994 = vmatmul.mubr.bf16.gmra.mrb[0].mxu0 %v616
  %v1995 = vpop.f32.mrb[0].mxu0
  %v1996 = vadd.f32 %v1853, %v1995
  %v1997 = vpop.f32.mrb[0].mxu0
  %v1998 = vadd.f32 %v1855, %v1997
  %v1999 = vpop.f32.mrb[0].mxu0
  %v2000 = vadd.f32 %v1857, %v1999
  %v2001 = vpop.f32.mrb[0].mxu0
  %v2002 = vadd.f32 %v1859, %v2001
  %2003 = vmatprep.mubr.bf16.mxu0 %v626
  %2004 = vmatmul.mubr.bf16.gmra.mrb[0].mxu0 %v625
  %v2005 = vpop.f32.mrb[0].mxu0
  %v2006 = vadd.f32 %v1863, %v2005
  %v2007 = vpop.f32.mrb[0].mxu0
  %v2008 = vadd.f32 %v1865, %v2007
  %v2009 = vpop.f32.mrb[0].mxu0
  %v2010 = vadd.f32 %v1867, %v2009
  %v2011 = vpop.f32.mrb[0].mxu0
  %v2012 = vadd.f32 %v1869, %v2011
  %2013 = vmatprep.mubr.bf16.mxu0 %v635
  %2014 = vmatmul.mubr.bf16.gmra.mrb[0].mxu0 %v634
  %v2015 = vpop.f32.mrb[0].mxu0
  %v2016 = vadd.f32 %v1873, %v2015
  %v2017 = vpop.f32.mrb[0].mxu0
  %v2018 = vadd.f32 %v1875, %v2017
  %v2019 = vpop.f32.mrb[0].mxu0
  %v2020 = vadd.f32 %v1877, %v2019
  %v2021 = vpop.f32.mrb[0].mxu0
  %v2022 = vadd.f32 %v1879, %v2021
  %2023 = vmatprep.mubr.bf16.mxu0 %v644
  %2024 = vmatmul.mubr.bf16.gmra.mrb[0].mxu0 %v643
  %v2025 = vpop.f32.mrb[0].mxu0
  %v2026 = vadd.f32 %v1883, %v2025
  %v2027 = vpop.f32.mrb[0].mxu0
  %v2028 = vadd.f32 %v1885, %v2027
  %v2029 = vpop.f32.mrb[0].mxu0
  %v2030 = vadd.f32 %v1887, %v2029
  %v2031 = vpop.f32.mrb[0].mxu0
  %v2032 = vadd.f32 %v1889, %v2031
  %2033 = vmatprep.mubr.bf16.mxu0 %v653
  %2034 = vmatmul.mubr.bf16.gmra.mrb[0].mxu0 %v652
  %v2035 = vpop.f32.mrb[0].mxu0
  %v2036 = vadd.f32 %v1893, %v2035
  %v2037 = vpop.f32.mrb[0].mxu0
  %v2038 = vadd.f32 %v1895, %v2037
  %v2039 = vpop.f32.mrb[0].mxu0
  %v2040 = vadd.f32 %v1897, %v2039
  %v2041 = vpop.f32.mrb[0].mxu0
  %v2042 = vadd.f32 %v1899, %v2041
  %2043 = vmatprep.mubr.bf16.mxu0 %v662
  %2044 = vmatmul.mubr.bf16.gmra.mrb[0].mxu0 %v661
  %v2045 = vpop.f32.mrb[0].mxu0
  %v2046 = vadd.f32 %v1903, %v2045
  %v2047 = vpop.f32.mrb[0].mxu0
  %v2048 = vadd.f32 %v1905, %v2047
  %v2049 = vpop.f32.mrb[0].mxu0
  %v2050 = vadd.f32 %v1907, %v2049
  %v2051 = vpop.f32.mrb[0].mxu0
  %v2052 = vadd.f32 %v1909, %v2051
  %2053 = vmatprep.mubr.bf16.mxu0 %v671
  %2054 = vmatmul.mubr.bf16.gmra.mrb[0].mxu0 %v670
  %v2055 = vpop.f32.mrb[0].mxu0
  %v2056 = vadd.f32 %v1913, %v2055
  %v2057 = vpop.f32.mrb[0].mxu0
  %v2058 = vadd.f32 %v1915, %v2057
  %v2059 = vpop.f32.mrb[0].mxu0
  %v2060 = vadd.f32 %v1917, %v2059
  %v2061 = vpop.f32.mrb[0].mxu0
  %v2062 = vadd.f32 %v1919, %v2061
  %2063 = vdwg.mxu0
  %2064 = vmatprep.subr.bf16.mxu0 %v1333
  %2065 = vmatpush1.bf16.msra.mxu0 %v1332
  %2066 = vmatprep.subr.bf16.mxu0 %v1335
  %2067 = vmatpush1.bf16.msra.mxu0 %v1334
  %2068 = vmatprep.subr.bf16.mxu0 %v1337
  %2069 = vmatpush1.bf16.msra.mxu0 %v1336
  %2070 = vmatprep.subr.bf16.mxu0 %v1339
  %2071 = vmatpush1.bf16.msra.mxu0 %v1338
  %2072 = vmatprep.subr.bf16.mxu0 %v1341
  %2073 = vmatpush1.bf16.msra.mxu0 %v1340
  %2074 = vmatprep.subr.bf16.mxu0 %v1343
  %2075 = vmatpush1.bf16.msra.mxu0 %v1342
  %2076 = vmatprep.subr.bf16.mxu0 %v1345
  %2077 = vmatpush1.bf16.msra.mxu0 %v1344
  %2078 = vmatprep.subr.bf16.mxu0 %v1347
  %2079 = vmatpush1.bf16.msra.mxu0 %v1346
  %2080 = vmatprep.subr.bf16.mxu0 0
  %2081 = vmatpush1.bf16.msra.mxu0 0
  %2082 = vmatprep.subr.bf16.mxu0 0
  %2083 = vmatpush1.bf16.msra.mxu0 0
  %2084 = vmatprep.subr.bf16.mxu0 0
  %2085 = vmatpush1.bf16.msra.mxu0 0
  %2086 = vmatprep.subr.bf16.mxu0 0
  %2087 = vmatpush1.bf16.msra.mxu0 0
  %2088 = vmatprep.subr.bf16.mxu0 0
  %2089 = vmatpush1.bf16.msra.mxu0 0
  %2090 = vmatprep.subr.bf16.mxu0 0
  %2091 = vmatpush1.bf16.msra.mxu0 0
  %2092 = vmatprep.subr.bf16.mxu0 0
  %2093 = vmatpush1.bf16.msra.mxu0 0
  %2094 = vmatprep.subr.bf16.mxu0 0
  %2095 = vmatpush1.bf16.msra.mxu0 0
  %2096 = vmatprep.mubr.bf16.mxu0 0
  %2097 = vmatmul.mubr.bf16.gmra.mrb[0].mxu0 %v582
  %v2098 = vpop.f32.mrb[0].mxu0
  %v2099 = vadd.f32 %v1956, %v2098
  %v2100 = vpop.f32.mrb[0].mxu0
  %v2101 = vadd.f32 %v1958, %v2100
  %v2102 = vpop.f32.mrb[0].mxu0
  %v2103 = vadd.f32 %v1960, %v2102
  %v2104 = vpop.f32.mrb[0].mxu0
  %v2105 = vadd.f32 %v1962, %v2104
  %2106 = vmatprep.mubr.bf16.mxu0 0
  %2107 = vmatmul.mubr.bf16.gmra.mrb[0].mxu0 %v591
  %v2108 = vpop.f32.mrb[0].mxu0
  %v2109 = vadd.f32 %v1966, %v2108
  %v2110 = vpop.f32.mrb[0].mxu0
  %v2111 = vadd.f32 %v1968, %v2110
  %v2112 = vpop.f32.mrb[0].mxu0
  %v2113 = vadd.f32 %v1970, %v2112
  %v2114 = vpop.f32.mrb[0].mxu0
  %v2115 = vadd.f32 %v1972, %v2114
  %2116 = vmatprep.mubr.bf16.mxu0 0
  %2117 = vmatmul.mubr.bf16.gmra.mrb[0].mxu0 %v600
  %v2118 = vpop.f32.mrb[0].mxu0
  %v2119 = vadd.f32 %v1976, %v2118
  %v2120 = vpop.f32.mrb[0].mxu0
  %v2121 = vadd.f32 %v1978, %v2120
  %v2122 = vpop.f32.mrb[0].mxu0
  %v2123 = vadd.f32 %v1980, %v2122
  %v2124 = vpop.f32.mrb[0].mxu0
  %v2125 = vadd.f32 %v1982, %v2124
  %2126 = vmatprep.mubr.bf16.mxu0 0
  %2127 = vmatmul.mubr.bf16.gmra.mrb[0].mxu0 %v609
  %v2128 = vpop.f32.mrb[0].mxu0
  %v2129 = vadd.f32 %v1986, %v2128
  %v2130 = vpop.f32.mrb[0].mxu0
  %v2131 = vadd.f32 %v1988, %v2130
  %v2132 = vpop.f32.mrb[0].mxu0
  %v2133 = vadd.f32 %v1990, %v2132
  %v2134 = vpop.f32.mrb[0].mxu0
  %v2135 = vadd.f32 %v1992, %v2134
  %2136 = vmatprep.mubr.bf16.mxu0 0
  %2137 = vmatmul.mubr.bf16.gmra.mrb[0].mxu0 %v618
  %v2138 = vpop.f32.mrb[0].mxu0
  %v2139 = vadd.f32 %v1996, %v2138
  %v2140 = vpop.f32.mrb[0].mxu0
  %v2141 = vadd.f32 %v1998, %v2140
  %v2142 = vpop.f32.mrb[0].mxu0
  %v2143 = vadd.f32 %v2000, %v2142
  %v2144 = vpop.f32.mrb[0].mxu0
  %v2145 = vadd.f32 %v2002, %v2144
  %2146 = vmatprep.mubr.bf16.mxu0 0
  %2147 = vmatmul.mubr.bf16.gmra.mrb[0].mxu0 %v627
  %v2148 = vpop.f32.mrb[0].mxu0
  %v2149 = vadd.f32 %v2006, %v2148
  %v2150 = vpop.f32.mrb[0].mxu0
  %v2151 = vadd.f32 %v2008, %v2150
  %v2152 = vpop.f32.mrb[0].mxu0
  %v2153 = vadd.f32 %v2010, %v2152
  %v2154 = vpop.f32.mrb[0].mxu0
  %v2155 = vadd.f32 %v2012, %v2154
  %2156 = vmatprep.mubr.bf16.mxu0 0
  %2157 = vmatmul.mubr.bf16.gmra.mrb[0].mxu0 %v636
  %v2158 = vpop.f32.mrb[0].mxu0
  %v2159 = vadd.f32 %v2016, %v2158
  %v2160 = vpop.f32.mrb[0].mxu0
  %v2161 = vadd.f32 %v2018, %v2160
  %v2162 = vpop.f32.mrb[0].mxu0
  %v2163 = vadd.f32 %v2020, %v2162
  %v2164 = vpop.f32.mrb[0].mxu0
  %v2165 = vadd.f32 %v2022, %v2164
  %2166 = vmatprep.mubr.bf16.mxu0 0
  %2167 = vmatmul.mubr.bf16.gmra.mrb[0].mxu0 %v645
  %v2168 = vpop.f32.mrb[0].mxu0
  %v2169 = vadd.f32 %v2026, %v2168
  %v2170 = vpop.f32.mrb[0].mxu0
  %v2171 = vadd.f32 %v2028, %v2170
  %v2172 = vpop.f32.mrb[0].mxu0
  %v2173 = vadd.f32 %v2030, %v2172
  %v2174 = vpop.f32.mrb[0].mxu0
  %v2175 = vadd.f32 %v2032, %v2174
  %2176 = vmatprep.mubr.bf16.mxu0 0
  %2177 = vmatmul.mubr.bf16.gmra.mrb[0].mxu0 %v654
  %v2178 = vpop.f32.mrb[0].mxu0
  %v2179 = vadd.f32 %v2036, %v2178
  %v2180 = vpop.f32.mrb[0].mxu0
  %v2181 = vadd.f32 %v2038, %v2180
  %v2182 = vpop.f32.mrb[0].mxu0
  %v2183 = vadd.f32 %v2040, %v2182
  %v2184 = vpop.f32.mrb[0].mxu0
  %v2185 = vadd.f32 %v2042, %v2184
  %2186 = vmatprep.mubr.bf16.mxu0 0
  %2187 = vmatmul.mubr.bf16.gmra.mrb[0].mxu0 %v663
  %v2188 = vpop.f32.mrb[0].mxu0
  %v2189 = vadd.f32 %v2046, %v2188
  %v2190 = vpop.f32.mrb[0].mxu0
  %v2191 = vadd.f32 %v2048, %v2190
  %v2192 = vpop.f32.mrb[0].mxu0
  %v2193 = vadd.f32 %v2050, %v2192
  %v2194 = vpop.f32.mrb[0].mxu0
  %v2195 = vadd.f32 %v2052, %v2194
  %2196 = vmatprep.mubr.bf16.mxu0 0
  %2197 = vmatmul.mubr.bf16.gmra.mrb[0].mxu0 %v672
  %v2198 = vpop.f32.mrb[0].mxu0
  %v2199 = vadd.f32 %v2056, %v2198
  %v2200 = vpop.f32.mrb[0].mxu0
  %v2201 = vadd.f32 %v2058, %v2200
  %v2202 = vpop.f32.mrb[0].mxu0
  %v2203 = vadd.f32 %v2060, %v2202
  %v2204 = vpop.f32.mrb[0].mxu0
  %v2205 = vadd.f32 %v2062, %v2204
  %2206 = vdwg.mxu0
  %v2207 = vmax.f32 %v2099, 0.0
  %v2208 = vmax.f32 %v2101, 0.0
  %v2209 = vmax.f32 %v2103, 0.0
  %v2210 = vmax.f32 %v2105, 0.0
  %v2211 = vmax.f32 %v2109, 0.0
  %v2212 = vmax.f32 %v2111, 0.0
  %v2213 = vmax.f32 %v2113, 0.0
  %v2214 = vmax.f32 %v2115, 0.0
  %v2215 = vmax.f32 %v2119, 0.0
  %v2216 = vmax.f32 %v2121, 0.0
  %v2217 = vmax.f32 %v2123, 0.0
  %v2218 = vmax.f32 %v2125, 0.0
  %v2219 = vmax.f32 %v2129, 0.0
  %v2220 = vmax.f32 %v2131, 0.0
  %v2221 = vmax.f32 %v2133, 0.0
  %v2222 = vmax.f32 %v2135, 0.0
  %v2223 = vmax.f32 %v2139, 0.0
  %v2224 = vmax.f32 %v2141, 0.0
  %v2225 = vmax.f32 %v2143, 0.0
  %v2226 = vmax.f32 %v2145, 0.0
  %v2227 = vmax.f32 %v2149, 0.0
  %v2228 = vmax.f32 %v2151, 0.0
  %v2229 = vmax.f32 %v2153, 0.0
  %v2230 = vmax.f32 %v2155, 0.0
  %v2231 = vmax.f32 %v2159, 0.0
  %v2232 = vmax.f32 %v2161, 0.0
  %v2233 = vmax.f32 %v2163, 0.0
  %v2234 = vmax.f32 %v2165, 0.0
  %v2235 = vmax.f32 %v2169, 0.0
  %v2236 = vmax.f32 %v2171, 0.0
  %v2237 = vmax.f32 %v2173, 0.0
  %v2238 = vmax.f32 %v2175, 0.0
  %v2239 = vmax.f32 %v2179, 0.0
  %v2240 = vmax.f32 %v2181, 0.0
  %v2241 = vmax.f32 %v2183, 0.0
  %v2242 = vmax.f32 %v2185, 0.0
  %v2243 = vmax.f32 %v2189, 0.0
  %v2244 = vmax.f32 %v2191, 0.0
  %v2245 = vmax.f32 %v2193, 0.0
  %v2246 = vmax.f32 %v2195, 0.0
  %v2247 = vmax.f32 %v2199, 0.0
  %v2248 = vmax.f32 %v2201, 0.0
  %v2249 = vmax.f32 %v2203, 0.0
  %v2250 = vmax.f32 %v2205, 0.0
  %2251 = vst [vmem:[%s2] sm:$0xff] %v2207
  %2252 = vst [vmem:[%s2 + $0x8] sm:$0xff] %v2208
  %2253 = vst [vmem:[%s2 + $0x10] sm:$0xff] %v2209
  %2254 = vst [vmem:[%s2 + $0x18] sm:$0xff] %v2210
  %2255 = vst [vmem:[%s2 + $0x20] sm:$0xff] %v2211
  %2256 = vst [vmem:[%s2 + $0x28] sm:$0xff] %v2212
  %2257 = vst [vmem:[%s2 + $0x30] sm:$0xff] %v2213
  %2258 = vst [vmem:[%s2 + $0x38] sm:$0xff] %v2214
  %2259 = vst [vmem:[%s2 + $0x40] sm:$0xff] %v2215
  %2260 = vst [vmem:[%s2 + $0x48] sm:$0xff] %v2216
  %2261 = vst [vmem:[%s2 + $0x50] sm:$0xff] %v2217
  %2262 = vst [vmem:[%s2 + $0x58] sm:$0xff] %v2218
  %2263 = vst [vmem:[%s2 + $0x60] sm:$0xff] %v2219
  %2264 = vst [vmem:[%s2 + $0x68] sm:$0xff] %v2220
  %2265 = vst [vmem:[%s2 + $0x70] sm:$0xff] %v2221
  %2266 = vst [vmem:[%s2 + $0x78] sm:$0xff] %v2222
  %2267 = vst [vmem:[%s2 + $0x80] sm:$0xff] %v2223
  %2268 = vst [vmem:[%s2 + $0x88] sm:$0xff] %v2224
  %2269 = vst [vmem:[%s2 + $0x90] sm:$0xff] %v2225
  %2270 = vst [vmem:[%s2 + $0x98] sm:$0xff] %v2226
  %2271 = vst [vmem:[%s2 + $0xa0] sm:$0xff] %v2227
  %2272 = vst [vmem:[%s2 + $0xa8] sm:$0xff] %v2228
  %2273 = vst [vmem:[%s2 + $0xb0] sm:$0xff] %v2229
  %2274 = vst [vmem:[%s2 + $0xb8] sm:$0xff] %v2230
  %2275 = vst [vmem:[%s2 + $0xc0] sm:$0xff] %v2231
  %2276 = vst [vmem:[%s2 + $0xc8] sm:$0xff] %v2232
  %2277 = vst [vmem:[%s2 + $0xd0] sm:$0xff] %v2233
  %2278 = vst [vmem:[%s2 + $0xd8] sm:$0xff] %v2234
  %2279 = vst [vmem:[%s2 + $0xe0] sm:$0xff] %v2235
  %2280 = vst [vmem:[%s2 + $0xe8] sm:$0xff] %v2236
  %2281 = vst [vmem:[%s2 + $0xf0] sm:$0xff] %v2237
  %2282 = vst [vmem:[%s2 + $0xf8] sm:$0xff] %v2238
  %2283 = vst [vmem:[%s2 + $0x100] sm:$0xff] %v2239
  %2284 = vst [vmem:[%s2 + $0x108] sm:$0xff] %v2240
  %2285 = vst [vmem:[%s2 + $0x110] sm:$0xff] %v2241
  %2286 = vst [vmem:[%s2 + $0x118] sm:$0xff] %v2242
  %2287 = vst [vmem:[%s2 + $0x120] sm:$0xff] %v2243
  %2288 = vst [vmem:[%s2 + $0x128] sm:$0xff] %v2244
  %2289 = vst [vmem:[%s2 + $0x130] sm:$0xff] %v2245
  %2290 = vst [vmem:[%s2 + $0x138] sm:$0xff] %v2246
  %2291 = vst [vmem:[%s2 + $0x140] sm:$0xff] %v2247
  %2292 = vst [vmem:[%s2 + $0x148] sm:$0xff] %v2248
  %2293 = vst [vmem:[%s2 + $0x150] sm:$0xff] %v2249
  %2294 = vst [vmem:[%s2 + $0x158] sm:$0xff] %v2250
  // Predicated region
  $region10: #{cnn_xy_forward.9} parent=0 // pred_check
    _
  $region11: #{cnn_xy_forward.9} parent=0 // pred_check_branch
    %2296 = sbr.rel (0) target = $region13
  $region12: #{cnn_xy_forward.9} parent=0 // pred_region
    _
  $region13: #{cnn_xy_forward.9} parent=0 // pred_fallthru
    _
  // Predicated region
  $region14: #{cnn_xy_forward.9} parent=0 // pred_check
    _
  $region15: #{cnn_xy_forward.9} parent=0 // pred_check_branch
    %2298 = sbr.rel (0) target = $region17
  $region16: #{cnn_xy_forward.9} parent=0 // pred_region
    _
  $region17: #{cnn_xy_forward.9} parent=0 // pred_fallthru
    _

// kernel: cnn_xy_forward.10
$region0: #{cnn_xy_forward.10}
  #allocation0 [shape = 'u32[]', space=smem, size = 0x4, offset = 0x4, fixed_abs, tag = 'smem constant byte address 0x4 - core index']
  #allocation1 [shape = 'u32[144,128]{1,0:T(1,128)}', space=vmem, size = 0x12000, scoped, tag = 'internal scratch']
  %s0 = inlined_call_operand.vmem [shape: bf16[80,1792], index: 0, kind: input, shape index: {}]
  %s1 = inlined_call_operand.vmem [shape: bf16[1792,256], index: 1, kind: input, shape index: {}]
  %s2 = inlined_call_operand.vmem [shape: f32[80,256], index: 2, kind: output, shape index: {}]
  %s3 = sld [smem:[#allocation0]]
  $region18: #{cnn_xy_forward.10} parent=0
    _
  %s5 = ssub.s32 1, %s3
  %s6 = scalar_select 0, %s5, %s3
  // Predicated region
  $region2: #{cnn_xy_forward.10} parent=0 // pred_check
    _
  $region3: #{cnn_xy_forward.10} parent=0 // pred_check_branch
    %8 = sbr.rel (0) target = $region5
  $region4: #{cnn_xy_forward.10} parent=0 // pred_region
    _
  $region5: #{cnn_xy_forward.10} parent=0 // pred_fallthru
    _
  // Predicated region
  $region6: #{cnn_xy_forward.10} parent=0 // pred_check
    _
  $region7: #{cnn_xy_forward.10} parent=0 // pred_check_branch
    %10 = sbr.rel (0) target = $region9
  $region8: #{cnn_xy_forward.10} parent=0 // pred_region
    _
  $region9: #{cnn_xy_forward.10} parent=0 // pred_fallthru
    _
  %v11 = vld [vmem:[%s0] sm:$0xff]
  %v12 = vld [vmem:[%s0 + $0x8] sm:$0xff]
  %v13 = vld [vmem:[%s0 + $0x10] sm:$0xff]
  %v14 = vld [vmem:[%s0 + $0x18] sm:$0xff]
  %v15 = vld [vmem:[%s0 + $0x20] sm:$0xff]
  %v16 = vld [vmem:[%s0 + $0x28] sm:$0xff]
  %v17 = vld [vmem:[%s0 + $0x30] sm:$0xff]
  %v18 = vld [vmem:[%s0 + $0x38] sm:$0xff]
  %v19 = vld [vmem:[%s0 + $0x40] sm:$0xff]
  %v20 = vld [vmem:[%s0 + $0x48] sm:$0xff]
  %v21 = vld [vmem:[%s0 + $0x50] sm:$0xff]
  %v22 = vld [vmem:[%s0 + $0x58] sm:$0xff]
  %v23 = vld [vmem:[%s0 + $0x60] sm:$0xff]
  %v24 = vld [vmem:[%s0 + $0x68] sm:$0xff]
  %v25 = vld [vmem:[%s0 + $0x70] sm:$0xff]
  %v26 = vld [vmem:[%s0 + $0x78] sm:$0xff]
  %v27 = vld [vmem:[%s0 + $0x80] sm:$0xff]
  %v28 = vld [vmem:[%s0 + $0x88] sm:$0xff]
  %v29 = vld [vmem:[%s0 + $0x90] sm:$0xff]
  %v30 = vld [vmem:[%s0 + $0x98] sm:$0xff]
  %v31 = vld [vmem:[%s0 + $0xa0] sm:$0xff]
  %v32 = vld [vmem:[%s0 + $0xa8] sm:$0xff]
  %v33 = vld [vmem:[%s0 + $0xb0] sm:$0xff]
  %v34 = vld [vmem:[%s0 + $0xb8] sm:$0xff]
  %v35 = vld [vmem:[%s0 + $0xc0] sm:$0xff]
  %v36 = vld [vmem:[%s0 + $0xc8] sm:$0xff]
  %v37 = vld [vmem:[%s0 + $0xd0] sm:$0xff]
  %v38 = vld [vmem:[%s0 + $0xd8] sm:$0xff]
  %v39 = vld [vmem:[%s0 + $0xe0] sm:$0xff]
  %v40 = vld [vmem:[%s0 + $0xe8] sm:$0xff]
  %v41 = vld [vmem:[%s0 + $0xf0] sm:$0xff]
  %v42 = vld [vmem:[%s0 + $0xf8] sm:$0xff]
  %v43 = vld [vmem:[%s0 + $0x100] sm:$0xff]
  %v44 = vld [vmem:[%s0 + $0x108] sm:$0xff]
  %v45 = vld [vmem:[%s0 + $0x110] sm:$0xff]
  %v46 = vld [vmem:[%s0 + $0x118] sm:$0xff]
  %v47 = vld [vmem:[%s0 + $0x120] sm:$0xff]
  %v48 = vld [vmem:[%s0 + $0x128] sm:$0xff]
  %v49 = vld [vmem:[%s0 + $0x130] sm:$0xff]
  %v50 = vld [vmem:[%s0 + $0x138] sm:$0xff]
  %v51 = vld [vmem:[%s0 + $0x140] sm:$0xff]
  %v52 = vld [vmem:[%s0 + $0x148] sm:$0xff]
  %v53 = vld [vmem:[%s0 + $0x150] sm:$0xff]
  %v54 = vld [vmem:[%s0 + $0x158] sm:$0xff]
  %v55 = vld [vmem:[%s0 + $0x160] sm:$0xff]
  %v56 = vld [vmem:[%s0 + $0x168] sm:$0xff]
  %v57 = vld [vmem:[%s0 + $0x170] sm:$0xff]
  %v58 = vld [vmem:[%s0 + $0x178] sm:$0xff]
  %v59 = vld [vmem:[%s0 + $0x180] sm:$0xff]
  %v60 = vld [vmem:[%s0 + $0x188] sm:$0xff]
  %v61 = vld [vmem:[%s0 + $0x190] sm:$0xff]
  %v62 = vld [vmem:[%s0 + $0x198] sm:$0xff]
  %v63 = vld [vmem:[%s0 + $0x1a0] sm:$0xff]
  %v64 = vld [vmem:[%s0 + $0x1a8] sm:$0xff]
  %v65 = vld [vmem:[%s0 + $0x1b0] sm:$0xff]
  %v66 = vld [vmem:[%s0 + $0x1b8] sm:$0xff]
  %v67 = vld [vmem:[%s0 + $0x1c0] sm:$0xff]
  %v68 = vld [vmem:[%s0 + $0x1c8] sm:$0xff]
  %v69 = vld [vmem:[%s0 + $0x1d0] sm:$0xff]
  %v70 = vld [vmem:[%s0 + $0x1d8] sm:$0xff]
  %v71 = vld [vmem:[%s0 + $0x1e0] sm:$0xff]
  %v72 = vld [vmem:[%s0 + $0x1e8] sm:$0xff]
  %v73 = vld [vmem:[%s0 + $0x1f0] sm:$0xff]
  %v74 = vld [vmem:[%s0 + $0x1f8] sm:$0xff]
  %v75 = vld [vmem:[%s0 + $0x200] sm:$0xff]
  %v76 = vld [vmem:[%s0 + $0x208] sm:$0xff]
  %v77 = vld [vmem:[%s0 + $0x210] sm:$0xff]
  %v78 = vld [vmem:[%s0 + $0x218] sm:$0xff]
  %v79 = vld [vmem:[%s0 + $0x220] sm:$0xff]
  %v80 = vld [vmem:[%s0 + $0x228] sm:$0xff]
  %v81 = vld [vmem:[%s1] sm:$0xff]
  %v82 = vld [vmem:[%s1 + $0x8] sm:$0xff]
  %v83 = vld [vmem:[%s1 + $0x10] sm:$0xff]
  %v84 = vld [vmem:[%s1 + $0x18] sm:$0xff]
  %v85 = vld [vmem:[%s1 + $0x20] sm:$0xff]
  %v86 = vld [vmem:[%s1 + $0x28] sm:$0xff]
  %v87 = vld [vmem:[%s1 + $0x30] sm:$0xff]
  %v88 = vld [vmem:[%s1 + $0x38] sm:$0xff]
  %v89 = vld [vmem:[%s1 + $0x40] sm:$0xff]
  %v90 = vld [vmem:[%s1 + $0x48] sm:$0xff]
  %v91 = vld [vmem:[%s1 + $0x50] sm:$0xff]
  %v92 = vld [vmem:[%s1 + $0x58] sm:$0xff]
  %v93 = vld [vmem:[%s1 + $0x60] sm:$0xff]
  %v94 = vld [vmem:[%s1 + $0x68] sm:$0xff]
  %v95 = vld [vmem:[%s1 + $0x70] sm:$0xff]
  %v96 = vld [vmem:[%s1 + $0x78] sm:$0xff]
  %v97 = vld [vmem:[%s1 + $0x80] sm:$0xff]
  %v98 = vld [vmem:[%s1 + $0x88] sm:$0xff]
  %v99 = vld [vmem:[%s1 + $0x90] sm:$0xff]
  %v100 = vld [vmem:[%s1 + $0x98] sm:$0xff]
  %v101 = vld [vmem:[%s1 + $0xa0] sm:$0xff]
  %v102 = vld [vmem:[%s1 + $0xa8] sm:$0xff]
  %v103 = vld [vmem:[%s1 + $0xb0] sm:$0xff]
  %v104 = vld [vmem:[%s1 + $0xb8] sm:$0xff]
  %v105 = vld [vmem:[%s1 + $0xc0] sm:$0xff]
  %v106 = vld [vmem:[%s1 + $0xc8] sm:$0xff]
  %v107 = vld [vmem:[%s1 + $0xd0] sm:$0xff]
  %v108 = vld [vmem:[%s1 + $0xd8] sm:$0xff]
  %v109 = vld [vmem:[%s1 + $0xe0] sm:$0xff]
  %v110 = vld [vmem:[%s1 + $0xe8] sm:$0xff]
  %v111 = vld [vmem:[%s1 + $0xf0] sm:$0xff]
  %v112 = vld [vmem:[%s1 + $0xf8] sm:$0xff]
  %v113 = vld [vmem:[%s1 + $0x100] sm:$0xff]
  %v114 = vld [vmem:[%s1 + $0x108] sm:$0xff]
  %v115 = vld [vmem:[%s1 + $0x110] sm:$0xff]
  %v116 = vld [vmem:[%s1 + $0x118] sm:$0xff]
  %v117 = vld [vmem:[%s1 + $0x120] sm:$0xff]
  %v118 = vld [vmem:[%s1 + $0x128] sm:$0xff]
  %v119 = vld [vmem:[%s1 + $0x130] sm:$0xff]
  %v120 = vld [vmem:[%s1 + $0x138] sm:$0xff]
  %v121 = vld [vmem:[%s1 + $0x140] sm:$0xff]
  %v122 = vld [vmem:[%s1 + $0x148] sm:$0xff]
  %v123 = vld [vmem:[%s1 + $0x150] sm:$0xff]
  %v124 = vld [vmem:[%s1 + $0x158] sm:$0xff]
  %v125 = vld [vmem:[%s1 + $0x160] sm:$0xff]
  %v126 = vld [vmem:[%s1 + $0x168] sm:$0xff]
  %v127 = vld [vmem:[%s1 + $0x170] sm:$0xff]
  %v128 = vld [vmem:[%s1 + $0x178] sm:$0xff]
  %v129 = vld [vmem:[%s1 + $0x180] sm:$0xff]
  %v130 = vld [vmem:[%s1 + $0x188] sm:$0xff]
  %v131 = vld [vmem:[%s1 + $0x190] sm:$0xff]
  %v132 = vld [vmem:[%s1 + $0x198] sm:$0xff]
  %v133 = vld [vmem:[%s1 + $0x1a0] sm:$0xff]
  %v134 = vld [vmem:[%s1 + $0x1a8] sm:$0xff]
  %v135 = vld [vmem:[%s1 + $0x1b0] sm:$0xff]
  %v136 = vld [vmem:[%s1 + $0x1b8] sm:$0xff]
  %v137 = vld [vmem:[%s1 + $0x1c0] sm:$0xff]
  %v138 = vld [vmem:[%s1 + $0x1c8] sm:$0xff]
  %v139 = vld [vmem:[%s1 + $0x1d0] sm:$0xff]
  %v140 = vld [vmem:[%s1 + $0x1d8] sm:$0xff]
  %v141 = vld [vmem:[%s1 + $0x1e0] sm:$0xff]
  %v142 = vld [vmem:[%s1 + $0x1e8] sm:$0xff]
  %v143 = vld [vmem:[%s1 + $0x1f0] sm:$0xff]
  %v144 = vld [vmem:[%s1 + $0x1f8] sm:$0xff]
  %v145 = vld [vmem:[%s1 + $0x200] sm:$0xff]
  %v146 = vld [vmem:[%s1 + $0x208] sm:$0xff]
  %v147 = vld [vmem:[%s1 + $0x210] sm:$0xff]
  %v148 = vld [vmem:[%s1 + $0x218] sm:$0xff]
  %v149 = vld [vmem:[%s1 + $0x220] sm:$0xff]
  %v150 = vld [vmem:[%s1 + $0x228] sm:$0xff]
  %v151 = vld [vmem:[%s1 + $0x230] sm:$0xff]
  %v152 = vld [vmem:[%s1 + $0x238] sm:$0xff]
  %v153 = vld [vmem:[%s1 + $0x240] sm:$0xff]
  %v154 = vld [vmem:[%s1 + $0x248] sm:$0xff]
  %v155 = vld [vmem:[%s1 + $0x250] sm:$0xff]
  %v156 = vld [vmem:[%s1 + $0x258] sm:$0xff]
  %v157 = vld [vmem:[%s1 + $0x260] sm:$0xff]
  %v158 = vld [vmem:[%s1 + $0x268] sm:$0xff]
  %v159 = vld [vmem:[%s1 + $0x270] sm:$0xff]
  %v160 = vld [vmem:[%s1 + $0x278] sm:$0xff]
  %v161 = vld [vmem:[%s1 + $0x280] sm:$0xff]
  %v162 = vld [vmem:[%s1 + $0x288] sm:$0xff]
  %v163 = vld [vmem:[%s1 + $0x290] sm:$0xff]
  %v164 = vld [vmem:[%s1 + $0x298] sm:$0xff]
  %v165 = vld [vmem:[%s1 + $0x2a0] sm:$0xff]
  %v166 = vld [vmem:[%s1 + $0x2a8] sm:$0xff]
  %v167 = vld [vmem:[%s1 + $0x2b0] sm:$0xff]
  %v168 = vld [vmem:[%s1 + $0x2b8] sm:$0xff]
  %v169 = vld [vmem:[%s1 + $0x2c0] sm:$0xff]
  %v170 = vld [vmem:[%s1 + $0x2c8] sm:$0xff]
  %v171 = vld [vmem:[%s1 + $0x2d0] sm:$0xff]
  %v172 = vld [vmem:[%s1 + $0x2d8] sm:$0xff]
  %v173 = vld [vmem:[%s1 + $0x2e0] sm:$0xff]
  %v174 = vld [vmem:[%s1 + $0x2e8] sm:$0xff]
  %v175 = vld [vmem:[%s1 + $0x2f0] sm:$0xff]
  %v176 = vld [vmem:[%s1 + $0x2f8] sm:$0xff]
  %v177 = vld [vmem:[%s1 + $0x300] sm:$0xff]
  %v178 = vld [vmem:[%s1 + $0x308] sm:$0xff]
  %v179 = vld [vmem:[%s1 + $0x310] sm:$0xff]
  %v180 = vld [vmem:[%s1 + $0x318] sm:$0xff]
  %v181 = vld [vmem:[%s1 + $0x320] sm:$0xff]
  %v182 = vld [vmem:[%s1 + $0x328] sm:$0xff]
  %v183 = vld [vmem:[%s1 + $0x330] sm:$0xff]
  %v184 = vld [vmem:[%s1 + $0x338] sm:$0xff]
  %v185 = vld [vmem:[%s1 + $0x340] sm:$0xff]
  %v186 = vld [vmem:[%s1 + $0x348] sm:$0xff]
  %v187 = vld [vmem:[%s1 + $0x350] sm:$0xff]
  %v188 = vld [vmem:[%s1 + $0x358] sm:$0xff]
  %v189 = vld [vmem:[%s1 + $0x360] sm:$0xff]
  %v190 = vld [vmem:[%s1 + $0x368] sm:$0xff]
  %v191 = vld [vmem:[%s1 + $0x370] sm:$0xff]
  %v192 = vld [vmem:[%s1 + $0x378] sm:$0xff]
  %v193 = vld [vmem:[%s1 + $0x380] sm:$0xff]
  %v194 = vld [vmem:[%s1 + $0x388] sm:$0xff]
  %v195 = vld [vmem:[%s1 + $0x390] sm:$0xff]
  %v196 = vld [vmem:[%s1 + $0x398] sm:$0xff]
  %v197 = vld [vmem:[%s1 + $0x3a0] sm:$0xff]
  %v198 = vld [vmem:[%s1 + $0x3a8] sm:$0xff]
  %v199 = vld [vmem:[%s1 + $0x3b0] sm:$0xff]
  %v200 = vld [vmem:[%s1 + $0x3b8] sm:$0xff]
  %v201 = vld [vmem:[%s1 + $0x3c0] sm:$0xff]
  %v202 = vld [vmem:[%s1 + $0x3c8] sm:$0xff]
  %v203 = vld [vmem:[%s1 + $0x3d0] sm:$0xff]
  %v204 = vld [vmem:[%s1 + $0x3d8] sm:$0xff]
  %v205 = vld [vmem:[%s1 + $0x3e0] sm:$0xff]
  %v206 = vld [vmem:[%s1 + $0x3e8] sm:$0xff]
  %v207 = vld [vmem:[%s1 + $0x3f0] sm:$0xff]
  %v208 = vld [vmem:[%s1 + $0x3f8] sm:$0xff]
  %v209 = vld [vmem:[%s1 + $0x400] sm:$0xff]
  %v210 = vld [vmem:[%s1 + $0x408] sm:$0xff]
  %v211 = vld [vmem:[%s1 + $0x410] sm:$0xff]
  %v212 = vld [vmem:[%s1 + $0x418] sm:$0xff]
  %v213 = vld [vmem:[%s1 + $0x420] sm:$0xff]
  %v214 = vld [vmem:[%s1 + $0x428] sm:$0xff]
  %v215 = vld [vmem:[%s1 + $0x430] sm:$0xff]
  %v216 = vld [vmem:[%s1 + $0x438] sm:$0xff]
  %v217 = vld [vmem:[%s1 + $0x440] sm:$0xff]
  %v218 = vld [vmem:[%s1 + $0x448] sm:$0xff]
  %v219 = vld [vmem:[%s1 + $0x450] sm:$0xff]
  %v220 = vld [vmem:[%s1 + $0x458] sm:$0xff]
  %v221 = vld [vmem:[%s1 + $0x460] sm:$0xff]
  %v222 = vld [vmem:[%s1 + $0x468] sm:$0xff]
  %v223 = vld [vmem:[%s1 + $0x470] sm:$0xff]
  %v224 = vld [vmem:[%s1 + $0x478] sm:$0xff]
  %v225 = vld [vmem:[%s1 + $0x480] sm:$0xff]
  %v226 = vld [vmem:[%s1 + $0x488] sm:$0xff]
  %v227 = vld [vmem:[%s1 + $0x490] sm:$0xff]
  %v228 = vld [vmem:[%s1 + $0x498] sm:$0xff]
  %v229 = vld [vmem:[%s1 + $0x4a0] sm:$0xff]
  %v230 = vld [vmem:[%s1 + $0x4a8] sm:$0xff]
  %v231 = vld [vmem:[%s1 + $0x4b0] sm:$0xff]
  %v232 = vld [vmem:[%s1 + $0x4b8] sm:$0xff]
  %v233 = vld [vmem:[%s1 + $0x4c0] sm:$0xff]
  %v234 = vld [vmem:[%s1 + $0x4c8] sm:$0xff]
  %v235 = vld [vmem:[%s1 + $0x4d0] sm:$0xff]
  %v236 = vld [vmem:[%s1 + $0x4d8] sm:$0xff]
  %v237 = vld [vmem:[%s1 + $0x4e0] sm:$0xff]
  %v238 = vld [vmem:[%s1 + $0x4e8] sm:$0xff]
  %v239 = vld [vmem:[%s1 + $0x4f0] sm:$0xff]
  %v240 = vld [vmem:[%s1 + $0x4f8] sm:$0xff]
  %v241 = vld [vmem:[%s1 + $0x500] sm:$0xff]
  %v242 = vld [vmem:[%s1 + $0x508] sm:$0xff]
  %v243 = vld [vmem:[%s1 + $0x510] sm:$0xff]
  %v244 = vld [vmem:[%s1 + $0x518] sm:$0xff]
  %v245 = vld [vmem:[%s1 + $0x520] sm:$0xff]
  %v246 = vld [vmem:[%s1 + $0x528] sm:$0xff]
  %v247 = vld [vmem:[%s1 + $0x530] sm:$0xff]
  %v248 = vld [vmem:[%s1 + $0x538] sm:$0xff]
  %v249 = vld [vmem:[%s1 + $0x540] sm:$0xff]
  %v250 = vld [vmem:[%s1 + $0x548] sm:$0xff]
  %v251 = vld [vmem:[%s1 + $0x550] sm:$0xff]
  %v252 = vld [vmem:[%s1 + $0x558] sm:$0xff]
  %v253 = vld [vmem:[%s1 + $0x560] sm:$0xff]
  %v254 = vld [vmem:[%s1 + $0x568] sm:$0xff]
  %v255 = vld [vmem:[%s1 + $0x570] sm:$0xff]
  %v256 = vld [vmem:[%s1 + $0x578] sm:$0xff]
  %v257 = vld [vmem:[%s1 + $0x580] sm:$0xff]
  %v258 = vld [vmem:[%s1 + $0x588] sm:$0xff]
  %v259 = vld [vmem:[%s1 + $0x590] sm:$0xff]
  %v260 = vld [vmem:[%s1 + $0x598] sm:$0xff]
  %v261 = vld [vmem:[%s1 + $0x5a0] sm:$0xff]
  %v262 = vld [vmem:[%s1 + $0x5a8] sm:$0xff]
  %v263 = vld [vmem:[%s1 + $0x5b0] sm:$0xff]
  %v264 = vld [vmem:[%s1 + $0x5b8] sm:$0xff]
  %v265 = vld [vmem:[%s1 + $0x5c0] sm:$0xff]
  %v266 = vld [vmem:[%s1 + $0x5c8] sm:$0xff]
  %v267 = vld [vmem:[%s1 + $0x5d0] sm:$0xff]
  %v268 = vld [vmem:[%s1 + $0x5d8] sm:$0xff]
  %v269 = vld [vmem:[%s1 + $0x5e0] sm:$0xff]
  %v270 = vld [vmem:[%s1 + $0x5e8] sm:$0xff]
  %v271 = vld [vmem:[%s1 + $0x5f0] sm:$0xff]
  %v272 = vld [vmem:[%s1 + $0x5f8] sm:$0xff]
  %v273 = vld [vmem:[%s1 + $0x600] sm:$0xff]
  %v274 = vld [vmem:[%s1 + $0x608] sm:$0xff]
  %v275 = vld [vmem:[%s1 + $0x610] sm:$0xff]
  %v276 = vld [vmem:[%s1 + $0x618] sm:$0xff]
  %v277 = vld [vmem:[%s1 + $0x620] sm:$0xff]
  %v278 = vld [vmem:[%s1 + $0x628] sm:$0xff]
  %v279 = vld [vmem:[%s1 + $0x630] sm:$0xff]
  %v280 = vld [vmem:[%s1 + $0x638] sm:$0xff]
  %v281 = vld [vmem:[%s1 + $0x640] sm:$0xff]
  %v282 = vld [vmem:[%s1 + $0x648] sm:$0xff]
  %v283 = vld [vmem:[%s1 + $0x650] sm:$0xff]
  %v284 = vld [vmem:[%s1 + $0x658] sm:$0xff]
  %v285 = vld [vmem:[%s1 + $0x660] sm:$0xff]
  %v286 = vld [vmem:[%s1 + $0x668] sm:$0xff]
  %v287 = vld [vmem:[%s1 + $0x670] sm:$0xff]
  %v288 = vld [vmem:[%s1 + $0x678] sm:$0xff]
  %v289 = vld [vmem:[%s1 + $0x680] sm:$0xff]
  %v290 = vld [vmem:[%s1 + $0x688] sm:$0xff]
  %v291 = vld [vmem:[%s1 + $0x690] sm:$0xff]
  %v292 = vld [vmem:[%s1 + $0x698] sm:$0xff]
  %v293 = vld [vmem:[%s1 + $0x6a0] sm:$0xff]
  %v294 = vld [vmem:[%s1 + $0x6a8] sm:$0xff]
  %v295 = vld [vmem:[%s1 + $0x6b0] sm:$0xff]
  %v296 = vld [vmem:[%s1 + $0x6b8] sm:$0xff]
  %v297 = vld [vmem:[%s1 + $0x6c0] sm:$0xff]
  %v298 = vld [vmem:[%s1 + $0x6c8] sm:$0xff]
  %v299 = vld [vmem:[%s1 + $0x6d0] sm:$0xff]
  %v300 = vld [vmem:[%s1 + $0x6d8] sm:$0xff]
  %v301 = vld [vmem:[%s1 + $0x6e0] sm:$0xff]
  %v302 = vld [vmem:[%s1 + $0x6e8] sm:$0xff]
  %v303 = vld [vmem:[%s1 + $0x6f0] sm:$0xff]
  %v304 = vld [vmem:[%s1 + $0x6f8] sm:$0xff]
  %v375 = vunpack.c.l.b16 %v11
  %v376 = vunpack.c.h.b16 %v11
  %v377 = vunpack.c.l.b16 %v12
  %v378 = vunpack.c.h.b16 %v12
  %v379 = vunpack.c.l.b16 %v13
  %v380 = vunpack.c.h.b16 %v13
  %v381 = vunpack.c.l.b16 %v14
  %v382 = vunpack.c.h.b16 %v14
  %v383 = vunpack.c.l.b16 %v15
  %v384 = vunpack.c.h.b16 %v15
  %v385 = vunpack.c.l.b16 %v16
  %v386 = vunpack.c.h.b16 %v16
  %v387 = vunpack.c.l.b16 %v17
  %v388 = vunpack.c.h.b16 %v17
  %v389 = vunpack.c.l.b16 %v18
  %v390 = vunpack.c.h.b16 %v18
  %v391 = vunpack.c.l.b16 %v19
  %v392 = vunpack.c.h.b16 %v19
  %v393 = vunpack.c.l.b16 %v20
  %v394 = vunpack.c.h.b16 %v20
  %v395 = vunpack.c.l.b16 %v21
  %v396 = vunpack.c.h.b16 %v21
  %v397 = vunpack.c.l.b16 %v22
  %v398 = vunpack.c.h.b16 %v22
  %v399 = vunpack.c.l.b16 %v23
  %v400 = vunpack.c.h.b16 %v23
  %v401 = vunpack.c.l.b16 %v24
  %v402 = vunpack.c.h.b16 %v24
  %v403 = vunpack.c.l.b16 %v25
  %v404 = vunpack.c.h.b16 %v25
  %v405 = vunpack.c.l.b16 %v26
  %v406 = vunpack.c.h.b16 %v26
  %v407 = vunpack.c.l.b16 %v27
  %v408 = vunpack.c.h.b16 %v27
  %v409 = vunpack.c.l.b16 %v28
  %v410 = vunpack.c.h.b16 %v28
  %v411 = vunpack.c.l.b16 %v29
  %v412 = vunpack.c.h.b16 %v29
  %v413 = vunpack.c.l.b16 %v30
  %v414 = vunpack.c.h.b16 %v30
  %v415 = vunpack.c.l.b16 %v31
  %v416 = vunpack.c.h.b16 %v31
  %v417 = vunpack.c.l.b16 %v32
  %v418 = vunpack.c.h.b16 %v32
  %v419 = vunpack.c.l.b16 %v33
  %v420 = vunpack.c.h.b16 %v33
  %v421 = vunpack.c.l.b16 %v34
  %v422 = vunpack.c.h.b16 %v34
  %v423 = vunpack.c.l.b16 %v35
  %v424 = vunpack.c.h.b16 %v35
  %v425 = vunpack.c.l.b16 %v36
  %v426 = vunpack.c.h.b16 %v36
  %v427 = vunpack.c.l.b16 %v37
  %v428 = vunpack.c.h.b16 %v37
  %v429 = vunpack.c.l.b16 %v38
  %v430 = vunpack.c.h.b16 %v38
  %v431 = vunpack.c.l.b16 %v39
  %v432 = vunpack.c.h.b16 %v39
  %v433 = vunpack.c.l.b16 %v40
  %v434 = vunpack.c.h.b16 %v40
  %v435 = vunpack.c.l.b16 %v41
  %v436 = vunpack.c.h.b16 %v41
  %v437 = vunpack.c.l.b16 %v42
  %v438 = vunpack.c.h.b16 %v42
  %v439 = vunpack.c.l.b16 %v43
  %v440 = vunpack.c.h.b16 %v43
  %v441 = vunpack.c.l.b16 %v44
  %v442 = vunpack.c.h.b16 %v44
  %v443 = vunpack.c.l.b16 %v45
  %v444 = vunpack.c.h.b16 %v45
  %v445 = vunpack.c.l.b16 %v46
  %v446 = vunpack.c.h.b16 %v46
  %v447 = vunpack.c.l.b16 %v47
  %v448 = vunpack.c.h.b16 %v47
  %v449 = vunpack.c.l.b16 %v48
  %v450 = vunpack.c.h.b16 %v48
  %v451 = vunpack.c.l.b16 %v49
  %v452 = vunpack.c.h.b16 %v49
  %v453 = vunpack.c.l.b16 %v50
  %v454 = vunpack.c.h.b16 %v50
  %v455 = vunpack.c.l.b16 %v51
  %v456 = vunpack.c.h.b16 %v51
  %v457 = vunpack.c.l.b16 %v52
  %v458 = vunpack.c.h.b16 %v52
  %v459 = vunpack.c.l.b16 %v53
  %v460 = vunpack.c.h.b16 %v53
  %v461 = vunpack.c.l.b16 %v54
  %v462 = vunpack.c.h.b16 %v54
  %v463 = vunpack.c.l.b16 %v55
  %v464 = vunpack.c.h.b16 %v55
  %v465 = vunpack.c.l.b16 %v56
  %v466 = vunpack.c.h.b16 %v56
  %v467 = vunpack.c.l.b16 %v57
  %v468 = vunpack.c.h.b16 %v57
  %v469 = vunpack.c.l.b16 %v58
  %v470 = vunpack.c.h.b16 %v58
  %v471 = vunpack.c.l.b16 %v59
  %v472 = vunpack.c.h.b16 %v59
  %v473 = vunpack.c.l.b16 %v60
  %v474 = vunpack.c.h.b16 %v60
  %v475 = vunpack.c.l.b16 %v61
  %v476 = vunpack.c.h.b16 %v61
  %v477 = vunpack.c.l.b16 %v62
  %v478 = vunpack.c.h.b16 %v62
  %v479 = vunpack.c.l.b16 %v63
  %v480 = vunpack.c.h.b16 %v63
  %v481 = vunpack.c.l.b16 %v64
  %v482 = vunpack.c.h.b16 %v64
  %v483 = vunpack.c.l.b16 %v65
  %v484 = vunpack.c.h.b16 %v65
  %v485 = vunpack.c.l.b16 %v66
  %v486 = vunpack.c.h.b16 %v66
  %v487 = vunpack.c.l.b16 %v67
  %v488 = vunpack.c.h.b16 %v67
  %v489 = vunpack.c.l.b16 %v68
  %v490 = vunpack.c.h.b16 %v68
  %v491 = vunpack.c.l.b16 %v69
  %v492 = vunpack.c.h.b16 %v69
  %v493 = vunpack.c.l.b16 %v70
  %v494 = vunpack.c.h.b16 %v70
  %v495 = vunpack.c.l.b16 %v71
  %v496 = vunpack.c.h.b16 %v71
  %v497 = vunpack.c.l.b16 %v72
  %v498 = vunpack.c.h.b16 %v72
  %v499 = vunpack.c.l.b16 %v73
  %v500 = vunpack.c.h.b16 %v73
  %v501 = vunpack.c.l.b16 %v74
  %v502 = vunpack.c.h.b16 %v74
  %v503 = vunpack.c.l.b16 %v75
  %v504 = vunpack.c.h.b16 %v75
  %v505 = vunpack.c.l.b16 %v76
  %v506 = vunpack.c.h.b16 %v76
  %v507 = vunpack.c.l.b16 %v77
  %v508 = vunpack.c.h.b16 %v77
  %v509 = vunpack.c.l.b16 %v78
  %v510 = vunpack.c.h.b16 %v78
  %v511 = vunpack.c.l.b16 %v79
  %v512 = vunpack.c.h.b16 %v79
  %v513 = vunpack.c.l.b16 %v80
  %v514 = vunpack.c.h.b16 %v80
  %v515 = vpack.c.b16 %v389, %v375
  %v516 = vpack.c.b16 %v390, %v376
  %v517 = vpack.c.b16 %v391, %v377
  %v518 = vpack.c.b16 %v392, %v378
  %v519 = vpack.c.b16 %v393, %v379
  %v520 = vpack.c.b16 %v394, %v380
  %v521 = vpack.c.b16 %v395, %v381
  %v522 = vpack.c.b16 %v396, %v382
  %v523 = vpack.c.b16 %v397, %v383
  %v524 = vpack.c.b16 %v398, %v384
  %v525 = vpack.c.b16 %v399, %v385
  %v526 = vpack.c.b16 %v400, %v386
  %v527 = vpack.c.b16 %v401, %v387
  %v528 = vpack.c.b16 %v402, %v388
  %v529 = vpack.c.b16 %v417, %v403
  %v530 = vpack.c.b16 %v418, %v404
  %v531 = vpack.c.b16 %v419, %v405
  %v532 = vpack.c.b16 %v420, %v406
  %v533 = vpack.c.b16 %v421, %v407
  %v534 = vpack.c.b16 %v422, %v408
  %v535 = vpack.c.b16 %v423, %v409
  %v536 = vpack.c.b16 %v424, %v410
  %v537 = vpack.c.b16 %v425, %v411
  %v538 = vpack.c.b16 %v426, %v412
  %v539 = vpack.c.b16 %v427, %v413
  %v540 = vpack.c.b16 %v428, %v414
  %v541 = vpack.c.b16 %v429, %v415
  %v542 = vpack.c.b16 %v430, %v416
  %v543 = vpack.c.b16 %v445, %v431
  %v544 = vpack.c.b16 %v446, %v432
  %v545 = vpack.c.b16 %v447, %v433
  %v546 = vpack.c.b16 %v448, %v434
  %v547 = vpack.c.b16 %v449, %v435
  %v548 = vpack.c.b16 %v450, %v436
  %v549 = vpack.c.b16 %v451, %v437
  %v550 = vpack.c.b16 %v452, %v438
  %v551 = vpack.c.b16 %v453, %v439
  %v552 = vpack.c.b16 %v454, %v440
  %v553 = vpack.c.b16 %v455, %v441
  %v554 = vpack.c.b16 %v456, %v442
  %v555 = vpack.c.b16 %v457, %v443
  %v556 = vpack.c.b16 %v458, %v444
  %v557 = vpack.c.b16 %v473, %v459
  %v558 = vpack.c.b16 %v474, %v460
  %v559 = vpack.c.b16 %v475, %v461
  %v560 = vpack.c.b16 %v476, %v462
  %v561 = vpack.c.b16 %v477, %v463
  %v562 = vpack.c.b16 %v478, %v464
  %v563 = vpack.c.b16 %v479, %v465
  %v564 = vpack.c.b16 %v480, %v466
  %v565 = vpack.c.b16 %v481, %v467
  %v566 = vpack.c.b16 %v482, %v468
  %v567 = vpack.c.b16 %v483, %v469
  %v568 = vpack.c.b16 %v484, %v470
  %v569 = vpack.c.b16 %v485, %v471
  %v570 = vpack.c.b16 %v486, %v472
  %v571 = vpack.c.b16 %v501, %v487
  %v572 = vpack.c.b16 %v502, %v488
  %v573 = vpack.c.b16 %v503, %v489
  %v574 = vpack.c.b16 %v504, %v490
  %v575 = vpack.c.b16 %v505, %v491
  %v576 = vpack.c.b16 %v506, %v492
  %v577 = vpack.c.b16 %v507, %v493
  %v578 = vpack.c.b16 %v508, %v494
  %v579 = vpack.c.b16 %v509, %v495
  %v580 = vpack.c.b16 %v510, %v496
  %v581 = vpack.c.b16 %v511, %v497
  %v582 = vpack.c.b16 %v512, %v498
  %v583 = vpack.c.b16 %v513, %v499
  %v584 = vpack.c.b16 %v514, %v500
  %v879 = vunpack.c.l.b16 %v81
  %v880 = vunpack.c.h.b16 %v81
  %v881 = vunpack.c.l.b16 %v82
  %v882 = vunpack.c.h.b16 %v82
  %v883 = vunpack.c.l.b16 %v83
  %v884 = vunpack.c.h.b16 %v83
  %v885 = vunpack.c.l.b16 %v84
  %v886 = vunpack.c.h.b16 %v84
  %v887 = vunpack.c.l.b16 %v85
  %v888 = vunpack.c.h.b16 %v85
  %v889 = vunpack.c.l.b16 %v86
  %v890 = vunpack.c.h.b16 %v86
  %v891 = vunpack.c.l.b16 %v87
  %v892 = vunpack.c.h.b16 %v87
  %v893 = vunpack.c.l.b16 %v88
  %v894 = vunpack.c.h.b16 %v88
  %v895 = vunpack.c.l.b16 %v89
  %v896 = vunpack.c.h.b16 %v89
  %v897 = vunpack.c.l.b16 %v90
  %v898 = vunpack.c.h.b16 %v90
  %v899 = vunpack.c.l.b16 %v91
  %v900 = vunpack.c.h.b16 %v91
  %v901 = vunpack.c.l.b16 %v92
  %v902 = vunpack.c.h.b16 %v92
  %v903 = vunpack.c.l.b16 %v93
  %v904 = vunpack.c.h.b16 %v93
  %v905 = vunpack.c.l.b16 %v94
  %v906 = vunpack.c.h.b16 %v94
  %v907 = vunpack.c.l.b16 %v95
  %v908 = vunpack.c.h.b16 %v95
  %v909 = vunpack.c.l.b16 %v96
  %v910 = vunpack.c.h.b16 %v96
  %v911 = vunpack.c.l.b16 %v97
  %v912 = vunpack.c.h.b16 %v97
  %v913 = vunpack.c.l.b16 %v98
  %v914 = vunpack.c.h.b16 %v98
  %v915 = vunpack.c.l.b16 %v99
  %v916 = vunpack.c.h.b16 %v99
  %v917 = vunpack.c.l.b16 %v100
  %v918 = vunpack.c.h.b16 %v100
  %v919 = vunpack.c.l.b16 %v101
  %v920 = vunpack.c.h.b16 %v101
  %v921 = vunpack.c.l.b16 %v102
  %v922 = vunpack.c.h.b16 %v102
  %v923 = vunpack.c.l.b16 %v103
  %v924 = vunpack.c.h.b16 %v103
  %v925 = vunpack.c.l.b16 %v104
  %v926 = vunpack.c.h.b16 %v104
  %v927 = vunpack.c.l.b16 %v105
  %v928 = vunpack.c.h.b16 %v105
  %v929 = vunpack.c.l.b16 %v106
  %v930 = vunpack.c.h.b16 %v106
  %v931 = vunpack.c.l.b16 %v107
  %v932 = vunpack.c.h.b16 %v107
  %v933 = vunpack.c.l.b16 %v108
  %v934 = vunpack.c.h.b16 %v108
  %v935 = vunpack.c.l.b16 %v109
  %v936 = vunpack.c.h.b16 %v109
  %v937 = vunpack.c.l.b16 %v110
  %v938 = vunpack.c.h.b16 %v110
  %v939 = vunpack.c.l.b16 %v111
  %v940 = vunpack.c.h.b16 %v111
  %v941 = vunpack.c.l.b16 %v112
  %v942 = vunpack.c.h.b16 %v112
  %v943 = vunpack.c.l.b16 %v113
  %v944 = vunpack.c.h.b16 %v113
  %v945 = vunpack.c.l.b16 %v114
  %v946 = vunpack.c.h.b16 %v114
  %v947 = vunpack.c.l.b16 %v115
  %v948 = vunpack.c.h.b16 %v115
  %v949 = vunpack.c.l.b16 %v116
  %v950 = vunpack.c.h.b16 %v116
  %v951 = vunpack.c.l.b16 %v117
  %v952 = vunpack.c.h.b16 %v117
  %v953 = vunpack.c.l.b16 %v118
  %v954 = vunpack.c.h.b16 %v118
  %v955 = vunpack.c.l.b16 %v119
  %v956 = vunpack.c.h.b16 %v119
  %v957 = vunpack.c.l.b16 %v120
  %v958 = vunpack.c.h.b16 %v120
  %v959 = vunpack.c.l.b16 %v121
  %v960 = vunpack.c.h.b16 %v121
  %v961 = vunpack.c.l.b16 %v122
  %v962 = vunpack.c.h.b16 %v122
  %v963 = vunpack.c.l.b16 %v123
  %v964 = vunpack.c.h.b16 %v123
  %v965 = vunpack.c.l.b16 %v124
  %v966 = vunpack.c.h.b16 %v124
  %v967 = vunpack.c.l.b16 %v125
  %v968 = vunpack.c.h.b16 %v125
  %v969 = vunpack.c.l.b16 %v126
  %v970 = vunpack.c.h.b16 %v126
  %v971 = vunpack.c.l.b16 %v127
  %v972 = vunpack.c.h.b16 %v127
  %v973 = vunpack.c.l.b16 %v128
  %v974 = vunpack.c.h.b16 %v128
  %v975 = vunpack.c.l.b16 %v129
  %v976 = vunpack.c.h.b16 %v129
  %v977 = vunpack.c.l.b16 %v130
  %v978 = vunpack.c.h.b16 %v130
  %v979 = vunpack.c.l.b16 %v131
  %v980 = vunpack.c.h.b16 %v131
  %v981 = vunpack.c.l.b16 %v132
  %v982 = vunpack.c.h.b16 %v132
  %v983 = vunpack.c.l.b16 %v133
  %v984 = vunpack.c.h.b16 %v133
  %v985 = vunpack.c.l.b16 %v134
  %v986 = vunpack.c.h.b16 %v134
  %v987 = vunpack.c.l.b16 %v135
  %v988 = vunpack.c.h.b16 %v135
  %v989 = vunpack.c.l.b16 %v136
  %v990 = vunpack.c.h.b16 %v136
  %v991 = vunpack.c.l.b16 %v137
  %v992 = vunpack.c.h.b16 %v137
  %v993 = vunpack.c.l.b16 %v138
  %v994 = vunpack.c.h.b16 %v138
  %v995 = vunpack.c.l.b16 %v139
  %v996 = vunpack.c.h.b16 %v139
  %v997 = vunpack.c.l.b16 %v140
  %v998 = vunpack.c.h.b16 %v140
  %v999 = vunpack.c.l.b16 %v141
  %v1000 = vunpack.c.h.b16 %v141
  %v1001 = vunpack.c.l.b16 %v142
  %v1002 = vunpack.c.h.b16 %v142
  %v1003 = vunpack.c.l.b16 %v143
  %v1004 = vunpack.c.h.b16 %v143
  %v1005 = vunpack.c.l.b16 %v144
  %v1006 = vunpack.c.h.b16 %v144
  %v1007 = vunpack.c.l.b16 %v145
  %v1008 = vunpack.c.h.b16 %v145
  %v1009 = vunpack.c.l.b16 %v146
  %v1010 = vunpack.c.h.b16 %v146
  %v1011 = vunpack.c.l.b16 %v147
  %v1012 = vunpack.c.h.b16 %v147
  %v1013 = vunpack.c.l.b16 %v148
  %v1014 = vunpack.c.h.b16 %v148
  %v1015 = vunpack.c.l.b16 %v149
  %v1016 = vunpack.c.h.b16 %v149
  %v1017 = vunpack.c.l.b16 %v150
  %v1018 = vunpack.c.h.b16 %v150
  %v1019 = vunpack.c.l.b16 %v151
  %v1020 = vunpack.c.h.b16 %v151
  %v1021 = vunpack.c.l.b16 %v152
  %v1022 = vunpack.c.h.b16 %v152
  %v1023 = vunpack.c.l.b16 %v153
  %v1024 = vunpack.c.h.b16 %v153
  %v1025 = vunpack.c.l.b16 %v154
  %v1026 = vunpack.c.h.b16 %v154
  %v1027 = vunpack.c.l.b16 %v155
  %v1028 = vunpack.c.h.b16 %v155
  %v1029 = vunpack.c.l.b16 %v156
  %v1030 = vunpack.c.h.b16 %v156
  %v1031 = vunpack.c.l.b16 %v157
  %v1032 = vunpack.c.h.b16 %v157
  %v1033 = vunpack.c.l.b16 %v158
  %v1034 = vunpack.c.h.b16 %v158
  %v1035 = vunpack.c.l.b16 %v159
  %v1036 = vunpack.c.h.b16 %v159
  %v1037 = vunpack.c.l.b16 %v160
  %v1038 = vunpack.c.h.b16 %v160
  %v1039 = vunpack.c.l.b16 %v161
  %v1040 = vunpack.c.h.b16 %v161
  %v1041 = vunpack.c.l.b16 %v162
  %v1042 = vunpack.c.h.b16 %v162
  %v1043 = vunpack.c.l.b16 %v163
  %v1044 = vunpack.c.h.b16 %v163
  %v1045 = vunpack.c.l.b16 %v164
  %v1046 = vunpack.c.h.b16 %v164
  %v1047 = vunpack.c.l.b16 %v165
  %v1048 = vunpack.c.h.b16 %v165
  %v1049 = vunpack.c.l.b16 %v166
  %v1050 = vunpack.c.h.b16 %v166
  %v1051 = vunpack.c.l.b16 %v167
  %v1052 = vunpack.c.h.b16 %v167
  %v1053 = vunpack.c.l.b16 %v168
  %v1054 = vunpack.c.h.b16 %v168
  %v1055 = vunpack.c.l.b16 %v169
  %v1056 = vunpack.c.h.b16 %v169
  %v1057 = vunpack.c.l.b16 %v170
  %v1058 = vunpack.c.h.b16 %v170
  %v1059 = vunpack.c.l.b16 %v171
  %v1060 = vunpack.c.h.b16 %v171
  %v1061 = vunpack.c.l.b16 %v172
  %v1062 = vunpack.c.h.b16 %v172
  %v1063 = vunpack.c.l.b16 %v173
  %v1064 = vunpack.c.h.b16 %v173
  %v1065 = vunpack.c.l.b16 %v174
  %v1066 = vunpack.c.h.b16 %v174
  %v1067 = vunpack.c.l.b16 %v175
  %v1068 = vunpack.c.h.b16 %v175
  %v1069 = vunpack.c.l.b16 %v176
  %v1070 = vunpack.c.h.b16 %v176
  %v1071 = vunpack.c.l.b16 %v177
  %v1072 = vunpack.c.h.b16 %v177
  %v1073 = vunpack.c.l.b16 %v178
  %v1074 = vunpack.c.h.b16 %v178
  %v1075 = vunpack.c.l.b16 %v179
  %v1076 = vunpack.c.h.b16 %v179
  %v1077 = vunpack.c.l.b16 %v180
  %v1078 = vunpack.c.h.b16 %v180
  %v1079 = vunpack.c.l.b16 %v181
  %v1080 = vunpack.c.h.b16 %v181
  %v1081 = vunpack.c.l.b16 %v182
  %v1082 = vunpack.c.h.b16 %v182
  %v1083 = vunpack.c.l.b16 %v183
  %v1084 = vunpack.c.h.b16 %v183
  %v1085 = vunpack.c.l.b16 %v184
  %v1086 = vunpack.c.h.b16 %v184
  %v1087 = vunpack.c.l.b16 %v185
  %v1088 = vunpack.c.h.b16 %v185
  %v1089 = vunpack.c.l.b16 %v186
  %v1090 = vunpack.c.h.b16 %v186
  %v1091 = vunpack.c.l.b16 %v187
  %v1092 = vunpack.c.h.b16 %v187
  %v1093 = vunpack.c.l.b16 %v188
  %v1094 = vunpack.c.h.b16 %v188
  %v1095 = vunpack.c.l.b16 %v189
  %v1096 = vunpack.c.h.b16 %v189
  %v1097 = vunpack.c.l.b16 %v190
  %v1098 = vunpack.c.h.b16 %v190
  %v1099 = vunpack.c.l.b16 %v191
  %v1100 = vunpack.c.h.b16 %v191
  %v1101 = vunpack.c.l.b16 %v192
  %v1102 = vunpack.c.h.b16 %v192
  %v1103 = vunpack.c.l.b16 %v193
  %v1104 = vunpack.c.h.b16 %v193
  %v1105 = vunpack.c.l.b16 %v194
  %v1106 = vunpack.c.h.b16 %v194
  %v1107 = vunpack.c.l.b16 %v195
  %v1108 = vunpack.c.h.b16 %v195
  %v1109 = vunpack.c.l.b16 %v196
  %v1110 = vunpack.c.h.b16 %v196
  %v1111 = vunpack.c.l.b16 %v197
  %v1112 = vunpack.c.h.b16 %v197
  %v1113 = vunpack.c.l.b16 %v198
  %v1114 = vunpack.c.h.b16 %v198
  %v1115 = vunpack.c.l.b16 %v199
  %v1116 = vunpack.c.h.b16 %v199
  %v1117 = vunpack.c.l.b16 %v200
  %v1118 = vunpack.c.h.b16 %v200
  %v1119 = vunpack.c.l.b16 %v201
  %v1120 = vunpack.c.h.b16 %v201
  %v1121 = vunpack.c.l.b16 %v202
  %v1122 = vunpack.c.h.b16 %v202
  %v1123 = vunpack.c.l.b16 %v203
  %v1124 = vunpack.c.h.b16 %v203
  %v1125 = vunpack.c.l.b16 %v204
  %v1126 = vunpack.c.h.b16 %v204
  %v1127 = vunpack.c.l.b16 %v205
  %v1128 = vunpack.c.h.b16 %v205
  %v1129 = vunpack.c.l.b16 %v206
  %v1130 = vunpack.c.h.b16 %v206
  %v1131 = vunpack.c.l.b16 %v207
  %v1132 = vunpack.c.h.b16 %v207
  %v1133 = vunpack.c.l.b16 %v208
  %v1134 = vunpack.c.h.b16 %v208
  %v1135 = vunpack.c.l.b16 %v209
  %v1136 = vunpack.c.h.b16 %v209
  %v1137 = vunpack.c.l.b16 %v210
  %v1138 = vunpack.c.h.b16 %v210
  %v1139 = vunpack.c.l.b16 %v211
  %v1140 = vunpack.c.h.b16 %v211
  %v1141 = vunpack.c.l.b16 %v212
  %v1142 = vunpack.c.h.b16 %v212
  %v1143 = vunpack.c.l.b16 %v213
  %v1144 = vunpack.c.h.b16 %v213
  %v1145 = vunpack.c.l.b16 %v214
  %v1146 = vunpack.c.h.b16 %v214
  %v1147 = vunpack.c.l.b16 %v215
  %v1148 = vunpack.c.h.b16 %v215
  %v1149 = vunpack.c.l.b16 %v216
  %v1150 = vunpack.c.h.b16 %v216
  %v1151 = vunpack.c.l.b16 %v217
  %v1152 = vunpack.c.h.b16 %v217
  %v1153 = vunpack.c.l.b16 %v218
  %v1154 = vunpack.c.h.b16 %v218
  %v1155 = vunpack.c.l.b16 %v219
  %v1156 = vunpack.c.h.b16 %v219
  %v1157 = vunpack.c.l.b16 %v220
  %v1158 = vunpack.c.h.b16 %v220
  %v1159 = vunpack.c.l.b16 %v221
  %v1160 = vunpack.c.h.b16 %v221
  %v1161 = vunpack.c.l.b16 %v222
  %v1162 = vunpack.c.h.b16 %v222
  %v1163 = vunpack.c.l.b16 %v223
  %v1164 = vunpack.c.h.b16 %v223
  %v1165 = vunpack.c.l.b16 %v224
  %v1166 = vunpack.c.h.b16 %v224
  %v1167 = vunpack.c.l.b16 %v225
  %v1168 = vunpack.c.h.b16 %v225
  %v1169 = vunpack.c.l.b16 %v226
  %v1170 = vunpack.c.h.b16 %v226
  %v1171 = vunpack.c.l.b16 %v227
  %v1172 = vunpack.c.h.b16 %v227
  %v1173 = vunpack.c.l.b16 %v228
  %v1174 = vunpack.c.h.b16 %v228
  %v1175 = vunpack.c.l.b16 %v229
  %v1176 = vunpack.c.h.b16 %v229
  %v1177 = vunpack.c.l.b16 %v230
  %v1178 = vunpack.c.h.b16 %v230
  %v1179 = vunpack.c.l.b16 %v231
  %v1180 = vunpack.c.h.b16 %v231
  %v1181 = vunpack.c.l.b16 %v232
  %v1182 = vunpack.c.h.b16 %v232
  %v1183 = vunpack.c.l.b16 %v233
  %v1184 = vunpack.c.h.b16 %v233
  %v1185 = vunpack.c.l.b16 %v234
  %v1186 = vunpack.c.h.b16 %v234
  %v1187 = vunpack.c.l.b16 %v235
  %v1188 = vunpack.c.h.b16 %v235
  %v1189 = vunpack.c.l.b16 %v236
  %v1190 = vunpack.c.h.b16 %v236
  %v1191 = vunpack.c.l.b16 %v237
  %v1192 = vunpack.c.h.b16 %v237
  %v1193 = vunpack.c.l.b16 %v238
  %v1194 = vunpack.c.h.b16 %v238
  %v1195 = vunpack.c.l.b16 %v239
  %v1196 = vunpack.c.h.b16 %v239
  %v1197 = vunpack.c.l.b16 %v240
  %v1198 = vunpack.c.h.b16 %v240
  %v1199 = vunpack.c.l.b16 %v241
  %v1200 = vunpack.c.h.b16 %v241
  %v1201 = vunpack.c.l.b16 %v242
  %v1202 = vunpack.c.h.b16 %v242
  %v1203 = vunpack.c.l.b16 %v243
  %v1204 = vunpack.c.h.b16 %v243
  %v1205 = vunpack.c.l.b16 %v244
  %v1206 = vunpack.c.h.b16 %v244
  %v1207 = vunpack.c.l.b16 %v245
  %v1208 = vunpack.c.h.b16 %v245
  %v1209 = vunpack.c.l.b16 %v246
  %v1210 = vunpack.c.h.b16 %v246
  %v1211 = vunpack.c.l.b16 %v247
  %v1212 = vunpack.c.h.b16 %v247
  %v1213 = vunpack.c.l.b16 %v248
  %v1214 = vunpack.c.h.b16 %v248
  %v1215 = vunpack.c.l.b16 %v249
  %v1216 = vunpack.c.h.b16 %v249
  %v1217 = vunpack.c.l.b16 %v250
  %v1218 = vunpack.c.h.b16 %v250
  %v1219 = vunpack.c.l.b16 %v251
  %v1220 = vunpack.c.h.b16 %v251
  %v1221 = vunpack.c.l.b16 %v252
  %v1222 = vunpack.c.h.b16 %v252
  %v1223 = vunpack.c.l.b16 %v253
  %v1224 = vunpack.c.h.b16 %v253
  %v1225 = vunpack.c.l.b16 %v254
  %v1226 = vunpack.c.h.b16 %v254
  %v1227 = vunpack.c.l.b16 %v255
  %v1228 = vunpack.c.h.b16 %v255
  %v1229 = vunpack.c.l.b16 %v256
  %v1230 = vunpack.c.h.b16 %v256
  %v1231 = vunpack.c.l.b16 %v257
  %v1232 = vunpack.c.h.b16 %v257
  %v1233 = vunpack.c.l.b16 %v258
  %v1234 = vunpack.c.h.b16 %v258
  %v1235 = vunpack.c.l.b16 %v259
  %v1236 = vunpack.c.h.b16 %v259
  %v1237 = vunpack.c.l.b16 %v260
  %v1238 = vunpack.c.h.b16 %v260
  %v1239 = vunpack.c.l.b16 %v261
  %v1240 = vunpack.c.h.b16 %v261
  %v1241 = vunpack.c.l.b16 %v262
  %v1242 = vunpack.c.h.b16 %v262
  %v1243 = vunpack.c.l.b16 %v263
  %v1244 = vunpack.c.h.b16 %v263
  %v1245 = vunpack.c.l.b16 %v264
  %v1246 = vunpack.c.h.b16 %v264
  %v1247 = vunpack.c.l.b16 %v265
  %v1248 = vunpack.c.h.b16 %v265
  %v1249 = vunpack.c.l.b16 %v266
  %v1250 = vunpack.c.h.b16 %v266
  %v1251 = vunpack.c.l.b16 %v267
  %v1252 = vunpack.c.h.b16 %v267
  %v1253 = vunpack.c.l.b16 %v268
  %v1254 = vunpack.c.h.b16 %v268
  %v1255 = vunpack.c.l.b16 %v269
  %v1256 = vunpack.c.h.b16 %v269
  %v1257 = vunpack.c.l.b16 %v270
  %v1258 = vunpack.c.h.b16 %v270
  %v1259 = vunpack.c.l.b16 %v271
  %v1260 = vunpack.c.h.b16 %v271
  %v1261 = vunpack.c.l.b16 %v272
  %v1262 = vunpack.c.h.b16 %v272
  %v1263 = vunpack.c.l.b16 %v273
  %v1264 = vunpack.c.h.b16 %v273
  %v1265 = vunpack.c.l.b16 %v274
  %v1266 = vunpack.c.h.b16 %v274
  %v1267 = vunpack.c.l.b16 %v275
  %v1268 = vunpack.c.h.b16 %v275
  %v1269 = vunpack.c.l.b16 %v276
  %v1270 = vunpack.c.h.b16 %v276
  %v1271 = vunpack.c.l.b16 %v277
  %v1272 = vunpack.c.h.b16 %v277
  %v1273 = vunpack.c.l.b16 %v278
  %v1274 = vunpack.c.h.b16 %v278
  %v1275 = vunpack.c.l.b16 %v279
  %v1276 = vunpack.c.h.b16 %v279
  %v1277 = vunpack.c.l.b16 %v280
  %v1278 = vunpack.c.h.b16 %v280
  %v1279 = vunpack.c.l.b16 %v281
  %v1280 = vunpack.c.h.b16 %v281
  %v1281 = vunpack.c.l.b16 %v282
  %v1282 = vunpack.c.h.b16 %v282
  %v1283 = vunpack.c.l.b16 %v283
  %v1284 = vunpack.c.h.b16 %v283
  %v1285 = vunpack.c.l.b16 %v284
  %v1286 = vunpack.c.h.b16 %v284
  %v1287 = vunpack.c.l.b16 %v285
  %v1288 = vunpack.c.h.b16 %v285
  %v1289 = vunpack.c.l.b16 %v286
  %v1290 = vunpack.c.h.b16 %v286
  %v1291 = vunpack.c.l.b16 %v287
  %v1292 = vunpack.c.h.b16 %v287
  %v1293 = vunpack.c.l.b16 %v288
  %v1294 = vunpack.c.h.b16 %v288
  %v1295 = vunpack.c.l.b16 %v289
  %v1296 = vunpack.c.h.b16 %v289
  %v1297 = vunpack.c.l.b16 %v290
  %v1298 = vunpack.c.h.b16 %v290
  %v1299 = vunpack.c.l.b16 %v291
  %v1300 = vunpack.c.h.b16 %v291
  %v1301 = vunpack.c.l.b16 %v292
  %v1302 = vunpack.c.h.b16 %v292
  %v1303 = vunpack.c.l.b16 %v293
  %v1304 = vunpack.c.h.b16 %v293
  %v1305 = vunpack.c.l.b16 %v294
  %v1306 = vunpack.c.h.b16 %v294
  %v1307 = vunpack.c.l.b16 %v295
  %v1308 = vunpack.c.h.b16 %v295
  %v1309 = vunpack.c.l.b16 %v296
  %v1310 = vunpack.c.h.b16 %v296
  %v1311 = vunpack.c.l.b16 %v297
  %v1312 = vunpack.c.h.b16 %v297
  %v1313 = vunpack.c.l.b16 %v298
  %v1314 = vunpack.c.h.b16 %v298
  %v1315 = vunpack.c.l.b16 %v299
  %v1316 = vunpack.c.h.b16 %v299
  %v1317 = vunpack.c.l.b16 %v300
  %v1318 = vunpack.c.h.b16 %v300
  %v1319 = vunpack.c.l.b16 %v301
  %v1320 = vunpack.c.h.b16 %v301
  %v1321 = vunpack.c.l.b16 %v302
  %v1322 = vunpack.c.h.b16 %v302
  %v1323 = vunpack.c.l.b16 %v303
  %v1324 = vunpack.c.h.b16 %v303
  %v1325 = vunpack.c.l.b16 %v304
  %v1326 = vunpack.c.h.b16 %v304
  %v1327 = vpack.c.b16 %v881, %v879
  %v1328 = vpack.c.b16 %v882, %v880
  %v1329 = vpack.c.b16 %v885, %v883
  %v1330 = vpack.c.b16 %v886, %v884
  %v1331 = vpack.c.b16 %v889, %v887
  %v1332 = vpack.c.b16 %v890, %v888
  %v1333 = vpack.c.b16 %v893, %v891
  %v1334 = vpack.c.b16 %v894, %v892
  %v1335 = vpack.c.b16 %v897, %v895
  %v1336 = vpack.c.b16 %v898, %v896
  %v1337 = vpack.c.b16 %v901, %v899
  %v1338 = vpack.c.b16 %v902, %v900
  %v1339 = vpack.c.b16 %v905, %v903
  %v1340 = vpack.c.b16 %v906, %v904
  %v1341 = vpack.c.b16 %v909, %v907
  %v1342 = vpack.c.b16 %v910, %v908
  %v1343 = vpack.c.b16 %v913, %v911
  %v1344 = vpack.c.b16 %v914, %v912
  %v1345 = vpack.c.b16 %v917, %v915
  %v1346 = vpack.c.b16 %v918, %v916
  %v1347 = vpack.c.b16 %v921, %v919
  %v1348 = vpack.c.b16 %v922, %v920
  %v1349 = vpack.c.b16 %v925, %v923
  %v1350 = vpack.c.b16 %v926, %v924
  %v1351 = vpack.c.b16 %v929, %v927
  %v1352 = vpack.c.b16 %v930, %v928
  %v1353 = vpack.c.b16 %v933, %v931
  %v1354 = vpack.c.b16 %v934, %v932
  %v1355 = vpack.c.b16 %v937, %v935
  %v1356 = vpack.c.b16 %v938, %v936
  %v1357 = vpack.c.b16 %v941, %v939
  %v1358 = vpack.c.b16 %v942, %v940
  %v1359 = vpack.c.b16 %v945, %v943
  %v1360 = vpack.c.b16 %v946, %v944
  %v1361 = vpack.c.b16 %v949, %v947
  %v1362 = vpack.c.b16 %v950, %v948
  %v1363 = vpack.c.b16 %v953, %v951
  %v1364 = vpack.c.b16 %v954, %v952
  %v1365 = vpack.c.b16 %v957, %v955
  %v1366 = vpack.c.b16 %v958, %v956
  %v1367 = vpack.c.b16 %v961, %v959
  %v1368 = vpack.c.b16 %v962, %v960
  %v1369 = vpack.c.b16 %v965, %v963
  %v1370 = vpack.c.b16 %v966, %v964
  %v1371 = vpack.c.b16 %v969, %v967
  %v1372 = vpack.c.b16 %v970, %v968
  %v1373 = vpack.c.b16 %v973, %v971
  %v1374 = vpack.c.b16 %v974, %v972
  %v1375 = vpack.c.b16 %v977, %v975
  %v1376 = vpack.c.b16 %v978, %v976
  %v1377 = vpack.c.b16 %v981, %v979
  %v1378 = vpack.c.b16 %v982, %v980
  %v1379 = vpack.c.b16 %v985, %v983
  %v1380 = vpack.c.b16 %v986, %v984
  %v1381 = vpack.c.b16 %v989, %v987
  %v1382 = vpack.c.b16 %v990, %v988
  %v1383 = vpack.c.b16 %v993, %v991
  %v1384 = vpack.c.b16 %v994, %v992
  %v1385 = vpack.c.b16 %v997, %v995
  %v1386 = vpack.c.b16 %v998, %v996
  %v1387 = vpack.c.b16 %v1001, %v999
  %v1388 = vpack.c.b16 %v1002, %v1000
  %v1389 = vpack.c.b16 %v1005, %v1003
  %v1390 = vpack.c.b16 %v1006, %v1004
  %v1391 = vpack.c.b16 %v1009, %v1007
  %v1392 = vpack.c.b16 %v1010, %v1008
  %v1393 = vpack.c.b16 %v1013, %v1011
  %v1394 = vpack.c.b16 %v1014, %v1012
  %v1395 = vpack.c.b16 %v1017, %v1015
  %v1396 = vpack.c.b16 %v1018, %v1016
  %v1397 = vpack.c.b16 %v1021, %v1019
  %v1398 = vpack.c.b16 %v1022, %v1020
  %v1399 = vpack.c.b16 %v1025, %v1023
  %v1400 = vpack.c.b16 %v1026, %v1024
  %v1401 = vpack.c.b16 %v1029, %v1027
  %v1402 = vpack.c.b16 %v1030, %v1028
  %v1403 = vpack.c.b16 %v1033, %v1031
  %v1404 = vpack.c.b16 %v1034, %v1032
  %v1405 = vpack.c.b16 %v1037, %v1035
  %v1406 = vpack.c.b16 %v1038, %v1036
  %v1407 = vpack.c.b16 %v1041, %v1039
  %v1408 = vpack.c.b16 %v1042, %v1040
  %v1409 = vpack.c.b16 %v1045, %v1043
  %v1410 = vpack.c.b16 %v1046, %v1044
  %v1411 = vpack.c.b16 %v1049, %v1047
  %v1412 = vpack.c.b16 %v1050, %v1048
  %v1413 = vpack.c.b16 %v1053, %v1051
  %v1414 = vpack.c.b16 %v1054, %v1052
  %v1415 = vpack.c.b16 %v1057, %v1055
  %v1416 = vpack.c.b16 %v1058, %v1056
  %v1417 = vpack.c.b16 %v1061, %v1059
  %v1418 = vpack.c.b16 %v1062, %v1060
  %v1419 = vpack.c.b16 %v1065, %v1063
  %v1420 = vpack.c.b16 %v1066, %v1064
  %v1421 = vpack.c.b16 %v1069, %v1067
  %v1422 = vpack.c.b16 %v1070, %v1068
  %v1423 = vpack.c.b16 %v1073, %v1071
  %v1424 = vpack.c.b16 %v1074, %v1072
  %v1425 = vpack.c.b16 %v1077, %v1075
  %v1426 = vpack.c.b16 %v1078, %v1076
  %v1427 = vpack.c.b16 %v1081, %v1079
  %v1428 = vpack.c.b16 %v1082, %v1080
  %v1429 = vpack.c.b16 %v1085, %v1083
  %v1430 = vpack.c.b16 %v1086, %v1084
  %v1431 = vpack.c.b16 %v1089, %v1087
  %v1432 = vpack.c.b16 %v1090, %v1088
  %v1433 = vpack.c.b16 %v1093, %v1091
  %v1434 = vpack.c.b16 %v1094, %v1092
  %v1435 = vpack.c.b16 %v1097, %v1095
  %v1436 = vpack.c.b16 %v1098, %v1096
  %v1437 = vpack.c.b16 %v1101, %v1099
  %v1438 = vpack.c.b16 %v1102, %v1100
  %v1439 = vpack.c.b16 %v1105, %v1103
  %v1440 = vpack.c.b16 %v1106, %v1104
  %v1441 = vpack.c.b16 %v1109, %v1107
  %v1442 = vpack.c.b16 %v1110, %v1108
  %v1443 = vpack.c.b16 %v1113, %v1111
  %v1444 = vpack.c.b16 %v1114, %v1112
  %v1445 = vpack.c.b16 %v1117, %v1115
  %v1446 = vpack.c.b16 %v1118, %v1116
  %v1447 = vpack.c.b16 %v1121, %v1119
  %v1448 = vpack.c.b16 %v1122, %v1120
  %v1449 = vpack.c.b16 %v1125, %v1123
  %v1450 = vpack.c.b16 %v1126, %v1124
  %v1451 = vpack.c.b16 %v1129, %v1127
  %v1452 = vpack.c.b16 %v1130, %v1128
  %v1453 = vpack.c.b16 %v1133, %v1131
  %v1454 = vpack.c.b16 %v1134, %v1132
  %v1455 = vpack.c.b16 %v1137, %v1135
  %v1456 = vpack.c.b16 %v1138, %v1136
  %v1457 = vpack.c.b16 %v1141, %v1139
  %v1458 = vpack.c.b16 %v1142, %v1140
  %v1459 = vpack.c.b16 %v1145, %v1143
  %v1460 = vpack.c.b16 %v1146, %v1144
  %v1461 = vpack.c.b16 %v1149, %v1147
  %v1462 = vpack.c.b16 %v1150, %v1148
  %v1463 = vpack.c.b16 %v1153, %v1151
  %v1464 = vpack.c.b16 %v1154, %v1152
  %v1465 = vpack.c.b16 %v1157, %v1155
  %v1466 = vpack.c.b16 %v1158, %v1156
  %v1467 = vpack.c.b16 %v1161, %v1159
  %v1468 = vpack.c.b16 %v1162, %v1160
  %v1469 = vpack.c.b16 %v1165, %v1163
  %v1470 = vpack.c.b16 %v1166, %v1164
  %v1471 = vpack.c.b16 %v1169, %v1167
  %v1472 = vpack.c.b16 %v1170, %v1168
  %v1473 = vpack.c.b16 %v1173, %v1171
  %v1474 = vpack.c.b16 %v1174, %v1172
  %v1475 = vpack.c.b16 %v1177, %v1175
  %v1476 = vpack.c.b16 %v1178, %v1176
  %v1477 = vpack.c.b16 %v1181, %v1179
  %v1478 = vpack.c.b16 %v1182, %v1180
  %v1479 = vpack.c.b16 %v1185, %v1183
  %v1480 = vpack.c.b16 %v1186, %v1184
  %v1481 = vpack.c.b16 %v1189, %v1187
  %v1482 = vpack.c.b16 %v1190, %v1188
  %v1483 = vpack.c.b16 %v1193, %v1191
  %v1484 = vpack.c.b16 %v1194, %v1192
  %v1485 = vpack.c.b16 %v1197, %v1195
  %v1486 = vpack.c.b16 %v1198, %v1196
  %v1487 = vpack.c.b16 %v1201, %v1199
  %v1488 = vpack.c.b16 %v1202, %v1200
  %v1489 = vpack.c.b16 %v1205, %v1203
  %v1490 = vpack.c.b16 %v1206, %v1204
  %v1491 = vpack.c.b16 %v1209, %v1207
  %v1492 = vpack.c.b16 %v1210, %v1208
  %v1493 = vpack.c.b16 %v1213, %v1211
  %v1494 = vpack.c.b16 %v1214, %v1212
  %v1495 = vpack.c.b16 %v1217, %v1215
  %v1496 = vpack.c.b16 %v1218, %v1216
  %v1497 = vpack.c.b16 %v1221, %v1219
  %v1498 = vpack.c.b16 %v1222, %v1220
  %v1499 = vpack.c.b16 %v1225, %v1223
  %v1500 = vpack.c.b16 %v1226, %v1224
  %v1501 = vpack.c.b16 %v1229, %v1227
  %v1502 = vpack.c.b16 %v1230, %v1228
  %v1503 = vpack.c.b16 %v1233, %v1231
  %v1504 = vpack.c.b16 %v1234, %v1232
  %v1505 = vpack.c.b16 %v1237, %v1235
  %v1506 = vpack.c.b16 %v1238, %v1236
  %v1507 = vpack.c.b16 %v1241, %v1239
  %v1508 = vpack.c.b16 %v1242, %v1240
  %v1509 = vpack.c.b16 %v1245, %v1243
  %v1510 = vpack.c.b16 %v1246, %v1244
  %v1511 = vpack.c.b16 %v1249, %v1247
  %v1512 = vpack.c.b16 %v1250, %v1248
  %v1513 = vpack.c.b16 %v1253, %v1251
  %v1514 = vpack.c.b16 %v1254, %v1252
  %v1515 = vpack.c.b16 %v1257, %v1255
  %v1516 = vpack.c.b16 %v1258, %v1256
  %v1517 = vpack.c.b16 %v1261, %v1259
  %v1518 = vpack.c.b16 %v1262, %v1260
  %v1519 = vpack.c.b16 %v1265, %v1263
  %v1520 = vpack.c.b16 %v1266, %v1264
  %v1521 = vpack.c.b16 %v1269, %v1267
  %v1522 = vpack.c.b16 %v1270, %v1268
  %v1523 = vpack.c.b16 %v1273, %v1271
  %v1524 = vpack.c.b16 %v1274, %v1272
  %v1525 = vpack.c.b16 %v1277, %v1275
  %v1526 = vpack.c.b16 %v1278, %v1276
  %v1527 = vpack.c.b16 %v1281, %v1279
  %v1528 = vpack.c.b16 %v1282, %v1280
  %v1529 = vpack.c.b16 %v1285, %v1283
  %v1530 = vpack.c.b16 %v1286, %v1284
  %v1531 = vpack.c.b16 %v1289, %v1287
  %v1532 = vpack.c.b16 %v1290, %v1288
  %v1533 = vpack.c.b16 %v1293, %v1291
  %v1534 = vpack.c.b16 %v1294, %v1292
  %v1535 = vpack.c.b16 %v1297, %v1295
  %v1536 = vpack.c.b16 %v1298, %v1296
  %v1537 = vpack.c.b16 %v1301, %v1299
  %v1538 = vpack.c.b16 %v1302, %v1300
  %v1539 = vpack.c.b16 %v1305, %v1303
  %v1540 = vpack.c.b16 %v1306, %v1304
  %v1541 = vpack.c.b16 %v1309, %v1307
  %v1542 = vpack.c.b16 %v1310, %v1308
  %v1543 = vpack.c.b16 %v1313, %v1311
  %v1544 = vpack.c.b16 %v1314, %v1312
  %v1545 = vpack.c.b16 %v1317, %v1315
  %v1546 = vpack.c.b16 %v1318, %v1316
  %v1547 = vpack.c.b16 %v1321, %v1319
  %v1548 = vpack.c.b16 %v1322, %v1320
  %v1549 = vpack.c.b16 %v1325, %v1323
  %v1550 = vpack.c.b16 %v1326, %v1324
  %1775 = vmatprep.subr.bf16.mxu0 %v1328
  %1776 = vmatpush1.bf16.msra.mxu0 %v1327
  %1777 = vmatprep.subr.bf16.mxu0 %v1330
  %1778 = vmatpush1.bf16.msra.mxu0 %v1329
  %1779 = vmatprep.subr.bf16.mxu0 %v1332
  %1780 = vmatpush1.bf16.msra.mxu0 %v1331
  %1781 = vmatprep.subr.bf16.mxu0 %v1334
  %1782 = vmatpush1.bf16.msra.mxu0 %v1333
  %1783 = vmatprep.subr.bf16.mxu0 %v1336
  %1784 = vmatpush1.bf16.msra.mxu0 %v1335
  %1785 = vmatprep.subr.bf16.mxu0 %v1338
  %1786 = vmatpush1.bf16.msra.mxu0 %v1337
  %1787 = vmatprep.subr.bf16.mxu0 %v1340
  %1788 = vmatpush1.bf16.msra.mxu0 %v1339
  %1789 = vmatprep.subr.bf16.mxu0 %v1342
  %1790 = vmatpush1.bf16.msra.mxu0 %v1341
  %1791 = vmatprep.subr.bf16.mxu0 %v1344
  %1792 = vmatpush1.bf16.msra.mxu0 %v1343
  %1793 = vmatprep.subr.bf16.mxu0 %v1346
  %1794 = vmatpush1.bf16.msra.mxu0 %v1345
  %1795 = vmatprep.subr.bf16.mxu0 %v1348
  %1796 = vmatpush1.bf16.msra.mxu0 %v1347
  %1797 = vmatprep.subr.bf16.mxu0 %v1350
  %1798 = vmatpush1.bf16.msra.mxu0 %v1349
  %1799 = vmatprep.subr.bf16.mxu0 %v1352
  %1800 = vmatpush1.bf16.msra.mxu0 %v1351
  %1801 = vmatprep.subr.bf16.mxu0 %v1354
  %1802 = vmatpush1.bf16.msra.mxu0 %v1353
  %1803 = vmatprep.subr.bf16.mxu0 %v1356
  %1804 = vmatpush1.bf16.msra.mxu0 %v1355
  %1805 = vmatprep.subr.bf16.mxu0 %v1358
  %1806 = vmatpush1.bf16.msra.mxu0 %v1357
  %1807 = vmatprep.mubr.bf16.mxu0 %v516
  %1808 = vmatmul.mubr.bf16.gmra.mrb[0].mxu0 %v515
  %v1809 = vpop.f32.mrb[0].mxu0
  %v1810 = vadd.f32 0.0, %v1809
  %v1811 = vpop.f32.mrb[0].mxu0
  %v1812 = vadd.f32 0.0, %v1811
  %v1813 = vpop.f32.mrb[0].mxu0
  %v1814 = vadd.f32 0.0, %v1813
  %v1815 = vpop.f32.mrb[0].mxu0
  %v1816 = vadd.f32 0.0, %v1815
  %1817 = vmatprep.mubr.bf16.mxu0 %v530
  %1818 = vmatmul.mubr.bf16.gmra.mrb[0].mxu0 %v529
  %v1819 = vpop.f32.mrb[0].mxu0
  %v1820 = vadd.f32 0.0, %v1819
  %v1821 = vpop.f32.mrb[0].mxu0
  %v1822 = vadd.f32 0.0, %v1821
  %v1823 = vpop.f32.mrb[0].mxu0
  %v1824 = vadd.f32 0.0, %v1823
  %v1825 = vpop.f32.mrb[0].mxu0
  %v1826 = vadd.f32 0.0, %v1825
  %1827 = vmatprep.mubr.bf16.mxu0 %v544
  %1828 = vmatmul.mubr.bf16.gmra.mrb[0].mxu0 %v543
  %v1829 = vpop.f32.mrb[0].mxu0
  %v1830 = vadd.f32 0.0, %v1829
  %v1831 = vpop.f32.mrb[0].mxu0
  %v1832 = vadd.f32 0.0, %v1831
  %v1833 = vpop.f32.mrb[0].mxu0
  %v1834 = vadd.f32 0.0, %v1833
  %v1835 = vpop.f32.mrb[0].mxu0
  %v1836 = vadd.f32 0.0, %v1835
  %1837 = vmatprep.mubr.bf16.mxu0 %v558
  %1838 = vmatmul.mubr.bf16.gmra.mrb[0].mxu0 %v557
  %v1839 = vpop.f32.mrb[0].mxu0
  %v1840 = vadd.f32 0.0, %v1839
  %v1841 = vpop.f32.mrb[0].mxu0
  %v1842 = vadd.f32 0.0, %v1841
  %v1843 = vpop.f32.mrb[0].mxu0
  %v1844 = vadd.f32 0.0, %v1843
  %v1845 = vpop.f32.mrb[0].mxu0
  %v1846 = vadd.f32 0.0, %v1845
  %1847 = vmatprep.mubr.bf16.mxu0 %v572
  %1848 = vmatmul.mubr.bf16.gmra.mrb[0].mxu0 %v571
  %v1849 = vpop.f32.mrb[0].mxu0
  %v1850 = vadd.f32 0.0, %v1849
  %v1851 = vpop.f32.mrb[0].mxu0
  %v1852 = vadd.f32 0.0, %v1851
  %v1853 = vpop.f32.mrb[0].mxu0
  %v1854 = vadd.f32 0.0, %v1853
  %v1855 = vpop.f32.mrb[0].mxu0
  %v1856 = vadd.f32 0.0, %v1855
  %1857 = vdwg.mxu0
  %1858 = vmatprep.subr.bf16.mxu0 %v1360
  %1859 = vmatpush1.bf16.msra.mxu0 %v1359
  %1860 = vmatprep.subr.bf16.mxu0 %v1362
  %1861 = vmatpush1.bf16.msra.mxu0 %v1361
  %1862 = vmatprep.subr.bf16.mxu0 %v1364
  %1863 = vmatpush1.bf16.msra.mxu0 %v1363
  %1864 = vmatprep.subr.bf16.mxu0 %v1366
  %1865 = vmatpush1.bf16.msra.mxu0 %v1365
  %1866 = vmatprep.subr.bf16.mxu0 %v1368
  %1867 = vmatpush1.bf16.msra.mxu0 %v1367
  %1868 = vmatprep.subr.bf16.mxu0 %v1370
  %1869 = vmatpush1.bf16.msra.mxu0 %v1369
  %1870 = vmatprep.subr.bf16.mxu0 %v1372
  %1871 = vmatpush1.bf16.msra.mxu0 %v1371
  %1872 = vmatprep.subr.bf16.mxu0 %v1374
  %1873 = vmatpush1.bf16.msra.mxu0 %v1373
  %1874 = vmatprep.subr.bf16.mxu0 %v1376
  %1875 = vmatpush1.bf16.msra.mxu0 %v1375
  %1876 = vmatprep.subr.bf16.mxu0 %v1378
  %1877 = vmatpush1.bf16.msra.mxu0 %v1377
  %1878 = vmatprep.subr.bf16.mxu0 %v1380
  %1879 = vmatpush1.bf16.msra.mxu0 %v1379
  %1880 = vmatprep.subr.bf16.mxu0 %v1382
  %1881 = vmatpush1.bf16.msra.mxu0 %v1381
  %1882 = vmatprep.subr.bf16.mxu0 %v1384
  %1883 = vmatpush1.bf16.msra.mxu0 %v1383
  %1884 = vmatprep.subr.bf16.mxu0 %v1386
  %1885 = vmatpush1.bf16.msra.mxu0 %v1385
  %1886 = vmatprep.subr.bf16.mxu0 %v1388
  %1887 = vmatpush1.bf16.msra.mxu0 %v1387
  %1888 = vmatprep.subr.bf16.mxu0 %v1390
  %1889 = vmatpush1.bf16.msra.mxu0 %v1389
  %1890 = vmatprep.mubr.bf16.mxu0 %v518
  %1891 = vmatmul.mubr.bf16.gmra.mrb[0].mxu0 %v517
  %v1892 = vpop.f32.mrb[0].mxu0
  %v1893 = vadd.f32 %v1810, %v1892
  %v1894 = vpop.f32.mrb[0].mxu0
  %v1895 = vadd.f32 %v1812, %v1894
  %v1896 = vpop.f32.mrb[0].mxu0
  %v1897 = vadd.f32 %v1814, %v1896
  %v1898 = vpop.f32.mrb[0].mxu0
  %v1899 = vadd.f32 %v1816, %v1898
  %1900 = vmatprep.mubr.bf16.mxu0 %v532
  %1901 = vmatmul.mubr.bf16.gmra.mrb[0].mxu0 %v531
  %v1902 = vpop.f32.mrb[0].mxu0
  %v1903 = vadd.f32 %v1820, %v1902
  %v1904 = vpop.f32.mrb[0].mxu0
  %v1905 = vadd.f32 %v1822, %v1904
  %v1906 = vpop.f32.mrb[0].mxu0
  %v1907 = vadd.f32 %v1824, %v1906
  %v1908 = vpop.f32.mrb[0].mxu0
  %v1909 = vadd.f32 %v1826, %v1908
  %1910 = vmatprep.mubr.bf16.mxu0 %v546
  %1911 = vmatmul.mubr.bf16.gmra.mrb[0].mxu0 %v545
  %v1912 = vpop.f32.mrb[0].mxu0
  %v1913 = vadd.f32 %v1830, %v1912
  %v1914 = vpop.f32.mrb[0].mxu0
  %v1915 = vadd.f32 %v1832, %v1914
  %v1916 = vpop.f32.mrb[0].mxu0
  %v1917 = vadd.f32 %v1834, %v1916
  %v1918 = vpop.f32.mrb[0].mxu0
  %v1919 = vadd.f32 %v1836, %v1918
  %1920 = vmatprep.mubr.bf16.mxu0 %v560
  %1921 = vmatmul.mubr.bf16.gmra.mrb[0].mxu0 %v559
  %v1922 = vpop.f32.mrb[0].mxu0
  %v1923 = vadd.f32 %v1840, %v1922
  %v1924 = vpop.f32.mrb[0].mxu0
  %v1925 = vadd.f32 %v1842, %v1924
  %v1926 = vpop.f32.mrb[0].mxu0
  %v1927 = vadd.f32 %v1844, %v1926
  %v1928 = vpop.f32.mrb[0].mxu0
  %v1929 = vadd.f32 %v1846, %v1928
  %1930 = vmatprep.mubr.bf16.mxu0 %v574
  %1931 = vmatmul.mubr.bf16.gmra.mrb[0].mxu0 %v573
  %v1932 = vpop.f32.mrb[0].mxu0
  %v1933 = vadd.f32 %v1850, %v1932
  %v1934 = vpop.f32.mrb[0].mxu0
  %v1935 = vadd.f32 %v1852, %v1934
  %v1936 = vpop.f32.mrb[0].mxu0
  %v1937 = vadd.f32 %v1854, %v1936
  %v1938 = vpop.f32.mrb[0].mxu0
  %v1939 = vadd.f32 %v1856, %v1938
  %1940 = vdwg.mxu0
  %1941 = vmatprep.subr.bf16.mxu0 %v1392
  %1942 = vmatpush1.bf16.msra.mxu0 %v1391
  %1943 = vmatprep.subr.bf16.mxu0 %v1394
  %1944 = vmatpush1.bf16.msra.mxu0 %v1393
  %1945 = vmatprep.subr.bf16.mxu0 %v1396
  %1946 = vmatpush1.bf16.msra.mxu0 %v1395
  %1947 = vmatprep.subr.bf16.mxu0 %v1398
  %1948 = vmatpush1.bf16.msra.mxu0 %v1397
  %1949 = vmatprep.subr.bf16.mxu0 %v1400
  %1950 = vmatpush1.bf16.msra.mxu0 %v1399
  %1951 = vmatprep.subr.bf16.mxu0 %v1402
  %1952 = vmatpush1.bf16.msra.mxu0 %v1401
  %1953 = vmatprep.subr.bf16.mxu0 %v1404
  %1954 = vmatpush1.bf16.msra.mxu0 %v1403
  %1955 = vmatprep.subr.bf16.mxu0 %v1406
  %1956 = vmatpush1.bf16.msra.mxu0 %v1405
  %1957 = vmatprep.subr.bf16.mxu0 %v1408
  %1958 = vmatpush1.bf16.msra.mxu0 %v1407
  %1959 = vmatprep.subr.bf16.mxu0 %v1410
  %1960 = vmatpush1.bf16.msra.mxu0 %v1409
  %1961 = vmatprep.subr.bf16.mxu0 %v1412
  %1962 = vmatpush1.bf16.msra.mxu0 %v1411
  %1963 = vmatprep.subr.bf16.mxu0 %v1414
  %1964 = vmatpush1.bf16.msra.mxu0 %v1413
  %1965 = vmatprep.subr.bf16.mxu0 %v1416
  %1966 = vmatpush1.bf16.msra.mxu0 %v1415
  %1967 = vmatprep.subr.bf16.mxu0 %v1418
  %1968 = vmatpush1.bf16.msra.mxu0 %v1417
  %1969 = vmatprep.subr.bf16.mxu0 %v1420
  %1970 = vmatpush1.bf16.msra.mxu0 %v1419
  %1971 = vmatprep.subr.bf16.mxu0 %v1422
  %1972 = vmatpush1.bf16.msra.mxu0 %v1421
  %1973 = vmatprep.mubr.bf16.mxu0 %v520
  %1974 = vmatmul.mubr.bf16.gmra.mrb[0].mxu0 %v519
  %v1975 = vpop.f32.mrb[0].mxu0
  %v1976 = vadd.f32 %v1893, %v1975
  %v1977 = vpop.f32.mrb[0].mxu0
  %v1978 = vadd.f32 %v1895, %v1977
  %v1979 = vpop.f32.mrb[0].mxu0
  %v1980 = vadd.f32 %v1897, %v1979
  %v1981 = vpop.f32.mrb[0].mxu0
  %v1982 = vadd.f32 %v1899, %v1981
  %1983 = vmatprep.mubr.bf16.mxu0 %v534
  %1984 = vmatmul.mubr.bf16.gmra.mrb[0].mxu0 %v533
  %v1985 = vpop.f32.mrb[0].mxu0
  %v1986 = vadd.f32 %v1903, %v1985
  %v1987 = vpop.f32.mrb[0].mxu0
  %v1988 = vadd.f32 %v1905, %v1987
  %v1989 = vpop.f32.mrb[0].mxu0
  %v1990 = vadd.f32 %v1907, %v1989
  %v1991 = vpop.f32.mrb[0].mxu0
  %v1992 = vadd.f32 %v1909, %v1991
  %1993 = vmatprep.mubr.bf16.mxu0 %v548
  %1994 = vmatmul.mubr.bf16.gmra.mrb[0].mxu0 %v547
  %v1995 = vpop.f32.mrb[0].mxu0
  %v1996 = vadd.f32 %v1913, %v1995
  %v1997 = vpop.f32.mrb[0].mxu0
  %v1998 = vadd.f32 %v1915, %v1997
  %v1999 = vpop.f32.mrb[0].mxu0
  %v2000 = vadd.f32 %v1917, %v1999
  %v2001 = vpop.f32.mrb[0].mxu0
  %v2002 = vadd.f32 %v1919, %v2001
  %2003 = vmatprep.mubr.bf16.mxu0 %v562
  %2004 = vmatmul.mubr.bf16.gmra.mrb[0].mxu0 %v561
  %v2005 = vpop.f32.mrb[0].mxu0
  %v2006 = vadd.f32 %v1923, %v2005
  %v2007 = vpop.f32.mrb[0].mxu0
  %v2008 = vadd.f32 %v1925, %v2007
  %v2009 = vpop.f32.mrb[0].mxu0
  %v2010 = vadd.f32 %v1927, %v2009
  %v2011 = vpop.f32.mrb[0].mxu0
  %v2012 = vadd.f32 %v1929, %v2011
  %2013 = vmatprep.mubr.bf16.mxu0 %v576
  %2014 = vmatmul.mubr.bf16.gmra.mrb[0].mxu0 %v575
  %v2015 = vpop.f32.mrb[0].mxu0
  %v2016 = vadd.f32 %v1933, %v2015
  %v2017 = vpop.f32.mrb[0].mxu0
  %v2018 = vadd.f32 %v1935, %v2017
  %v2019 = vpop.f32.mrb[0].mxu0
  %v2020 = vadd.f32 %v1937, %v2019
  %v2021 = vpop.f32.mrb[0].mxu0
  %v2022 = vadd.f32 %v1939, %v2021
  %2023 = vdwg.mxu0
  %2024 = vmatprep.subr.bf16.mxu0 %v1424
  %2025 = vmatpush1.bf16.msra.mxu0 %v1423
  %2026 = vmatprep.subr.bf16.mxu0 %v1426
  %2027 = vmatpush1.bf16.msra.mxu0 %v1425
  %2028 = vmatprep.subr.bf16.mxu0 %v1428
  %2029 = vmatpush1.bf16.msra.mxu0 %v1427
  %2030 = vmatprep.subr.bf16.mxu0 %v1430
  %2031 = vmatpush1.bf16.msra.mxu0 %v1429
  %2032 = vmatprep.subr.bf16.mxu0 %v1432
  %2033 = vmatpush1.bf16.msra.mxu0 %v1431
  %2034 = vmatprep.subr.bf16.mxu0 %v1434
  %2035 = vmatpush1.bf16.msra.mxu0 %v1433
  %2036 = vmatprep.subr.bf16.mxu0 %v1436
  %2037 = vmatpush1.bf16.msra.mxu0 %v1435
  %2038 = vmatprep.subr.bf16.mxu0 %v1438
  %2039 = vmatpush1.bf16.msra.mxu0 %v1437
  %2040 = vmatprep.subr.bf16.mxu0 %v1440
  %2041 = vmatpush1.bf16.msra.mxu0 %v1439
  %2042 = vmatprep.subr.bf16.mxu0 %v1442
  %2043 = vmatpush1.bf16.msra.mxu0 %v1441
  %2044 = vmatprep.subr.bf16.mxu0 %v1444
  %2045 = vmatpush1.bf16.msra.mxu0 %v1443
  %2046 = vmatprep.subr.bf16.mxu0 %v1446
  %2047 = vmatpush1.bf16.msra.mxu0 %v1445
  %2048 = vmatprep.subr.bf16.mxu0 %v1448
  %2049 = vmatpush1.bf16.msra.mxu0 %v1447
  %2050 = vmatprep.subr.bf16.mxu0 %v1450
  %2051 = vmatpush1.bf16.msra.mxu0 %v1449
  %2052 = vmatprep.subr.bf16.mxu0 %v1452
  %2053 = vmatpush1.bf16.msra.mxu0 %v1451
  %2054 = vmatprep.subr.bf16.mxu0 %v1454
  %2055 = vmatpush1.bf16.msra.mxu0 %v1453
  %2056 = vmatprep.mubr.bf16.mxu0 %v522
  %2057 = vmatmul.mubr.bf16.gmra.mrb[0].mxu0 %v521
  %v2058 = vpop.f32.mrb[0].mxu0
  %v2059 = vadd.f32 %v1976, %v2058
  %v2060 = vpop.f32.mrb[0].mxu0
  %v2061 = vadd.f32 %v1978, %v2060
  %v2062 = vpop.f32.mrb[0].mxu0
  %v2063 = vadd.f32 %v1980, %v2062
  %v2064 = vpop.f32.mrb[0].mxu0
  %v2065 = vadd.f32 %v1982, %v2064
  %2066 = vmatprep.mubr.bf16.mxu0 %v536
  %2067 = vmatmul.mubr.bf16.gmra.mrb[0].mxu0 %v535
  %v2068 = vpop.f32.mrb[0].mxu0
  %v2069 = vadd.f32 %v1986, %v2068
  %v2070 = vpop.f32.mrb[0].mxu0
  %v2071 = vadd.f32 %v1988, %v2070
  %v2072 = vpop.f32.mrb[0].mxu0
  %v2073 = vadd.f32 %v1990, %v2072
  %v2074 = vpop.f32.mrb[0].mxu0
  %v2075 = vadd.f32 %v1992, %v2074
  %2076 = vmatprep.mubr.bf16.mxu0 %v550
  %2077 = vmatmul.mubr.bf16.gmra.mrb[0].mxu0 %v549
  %v2078 = vpop.f32.mrb[0].mxu0
  %v2079 = vadd.f32 %v1996, %v2078
  %v2080 = vpop.f32.mrb[0].mxu0
  %v2081 = vadd.f32 %v1998, %v2080
  %v2082 = vpop.f32.mrb[0].mxu0
  %v2083 = vadd.f32 %v2000, %v2082
  %v2084 = vpop.f32.mrb[0].mxu0
  %v2085 = vadd.f32 %v2002, %v2084
  %2086 = vmatprep.mubr.bf16.mxu0 %v564
  %2087 = vmatmul.mubr.bf16.gmra.mrb[0].mxu0 %v563
  %v2088 = vpop.f32.mrb[0].mxu0
  %v2089 = vadd.f32 %v2006, %v2088
  %v2090 = vpop.f32.mrb[0].mxu0
  %v2091 = vadd.f32 %v2008, %v2090
  %v2092 = vpop.f32.mrb[0].mxu0
  %v2093 = vadd.f32 %v2010, %v2092
  %v2094 = vpop.f32.mrb[0].mxu0
  %v2095 = vadd.f32 %v2012, %v2094
  %2096 = vmatprep.mubr.bf16.mxu0 %v578
  %2097 = vmatmul.mubr.bf16.gmra.mrb[0].mxu0 %v577
  %v2098 = vpop.f32.mrb[0].mxu0
  %v2099 = vadd.f32 %v2016, %v2098
  %v2100 = vpop.f32.mrb[0].mxu0
  %v2101 = vadd.f32 %v2018, %v2100
  %v2102 = vpop.f32.mrb[0].mxu0
  %v2103 = vadd.f32 %v2020, %v2102
  %v2104 = vpop.f32.mrb[0].mxu0
  %v2105 = vadd.f32 %v2022, %v2104
  %2106 = vdwg.mxu0
  %2107 = vmatprep.subr.bf16.mxu0 %v1456
  %2108 = vmatpush1.bf16.msra.mxu0 %v1455
  %2109 = vmatprep.subr.bf16.mxu0 %v1458
  %2110 = vmatpush1.bf16.msra.mxu0 %v1457
  %2111 = vmatprep.subr.bf16.mxu0 %v1460
  %2112 = vmatpush1.bf16.msra.mxu0 %v1459
  %2113 = vmatprep.subr.bf16.mxu0 %v1462
  %2114 = vmatpush1.bf16.msra.mxu0 %v1461
  %2115 = vmatprep.subr.bf16.mxu0 %v1464
  %2116 = vmatpush1.bf16.msra.mxu0 %v1463
  %2117 = vmatprep.subr.bf16.mxu0 %v1466
  %2118 = vmatpush1.bf16.msra.mxu0 %v1465
  %2119 = vmatprep.subr.bf16.mxu0 %v1468
  %2120 = vmatpush1.bf16.msra.mxu0 %v1467
  %2121 = vmatprep.subr.bf16.mxu0 %v1470
  %2122 = vmatpush1.bf16.msra.mxu0 %v1469
  %2123 = vmatprep.subr.bf16.mxu0 %v1472
  %2124 = vmatpush1.bf16.msra.mxu0 %v1471
  %2125 = vmatprep.subr.bf16.mxu0 %v1474
  %2126 = vmatpush1.bf16.msra.mxu0 %v1473
  %2127 = vmatprep.subr.bf16.mxu0 %v1476
  %2128 = vmatpush1.bf16.msra.mxu0 %v1475
  %2129 = vmatprep.subr.bf16.mxu0 %v1478
  %2130 = vmatpush1.bf16.msra.mxu0 %v1477
  %2131 = vmatprep.subr.bf16.mxu0 %v1480
  %2132 = vmatpush1.bf16.msra.mxu0 %v1479
  %2133 = vmatprep.subr.bf16.mxu0 %v1482
  %2134 = vmatpush1.bf16.msra.mxu0 %v1481
  %2135 = vmatprep.subr.bf16.mxu0 %v1484
  %2136 = vmatpush1.bf16.msra.mxu0 %v1483
  %2137 = vmatprep.subr.bf16.mxu0 %v1486
  %2138 = vmatpush1.bf16.msra.mxu0 %v1485
  %2139 = vmatprep.mubr.bf16.mxu0 %v524
  %2140 = vmatmul.mubr.bf16.gmra.mrb[0].mxu0 %v523
  %v2141 = vpop.f32.mrb[0].mxu0
  %v2142 = vadd.f32 %v2059, %v2141
  %v2143 = vpop.f32.mrb[0].mxu0
  %v2144 = vadd.f32 %v2061, %v2143
  %v2145 = vpop.f32.mrb[0].mxu0
  %v2146 = vadd.f32 %v2063, %v2145
  %v2147 = vpop.f32.mrb[0].mxu0
  %v2148 = vadd.f32 %v2065, %v2147
  %2149 = vmatprep.mubr.bf16.mxu0 %v538
  %2150 = vmatmul.mubr.bf16.gmra.mrb[0].mxu0 %v537
  %v2151 = vpop.f32.mrb[0].mxu0
  %v2152 = vadd.f32 %v2069, %v2151
  %v2153 = vpop.f32.mrb[0].mxu0
  %v2154 = vadd.f32 %v2071, %v2153
  %v2155 = vpop.f32.mrb[0].mxu0
  %v2156 = vadd.f32 %v2073, %v2155
  %v2157 = vpop.f32.mrb[0].mxu0
  %v2158 = vadd.f32 %v2075, %v2157
  %2159 = vmatprep.mubr.bf16.mxu0 %v552
  %2160 = vmatmul.mubr.bf16.gmra.mrb[0].mxu0 %v551
  %v2161 = vpop.f32.mrb[0].mxu0
  %v2162 = vadd.f32 %v2079, %v2161
  %v2163 = vpop.f32.mrb[0].mxu0
  %v2164 = vadd.f32 %v2081, %v2163
  %v2165 = vpop.f32.mrb[0].mxu0
  %v2166 = vadd.f32 %v2083, %v2165
  %v2167 = vpop.f32.mrb[0].mxu0
  %v2168 = vadd.f32 %v2085, %v2167
  %2169 = vmatprep.mubr.bf16.mxu0 %v566
  %2170 = vmatmul.mubr.bf16.gmra.mrb[0].mxu0 %v565
  %v2171 = vpop.f32.mrb[0].mxu0
  %v2172 = vadd.f32 %v2089, %v2171
  %v2173 = vpop.f32.mrb[0].mxu0
  %v2174 = vadd.f32 %v2091, %v2173
  %v2175 = vpop.f32.mrb[0].mxu0
  %v2176 = vadd.f32 %v2093, %v2175
  %v2177 = vpop.f32.mrb[0].mxu0
  %v2178 = vadd.f32 %v2095, %v2177
  %2179 = vmatprep.mubr.bf16.mxu0 %v580
  %2180 = vmatmul.mubr.bf16.gmra.mrb[0].mxu0 %v579
  %v2181 = vpop.f32.mrb[0].mxu0
  %v2182 = vadd.f32 %v2099, %v2181
  %v2183 = vpop.f32.mrb[0].mxu0
  %v2184 = vadd.f32 %v2101, %v2183
  %v2185 = vpop.f32.mrb[0].mxu0
  %v2186 = vadd.f32 %v2103, %v2185
  %v2187 = vpop.f32.mrb[0].mxu0
  %v2188 = vadd.f32 %v2105, %v2187
  %2189 = vdwg.mxu0
  %2190 = vmatprep.subr.bf16.mxu0 %v1488
  %2191 = vmatpush1.bf16.msra.mxu0 %v1487
  %2192 = vmatprep.subr.bf16.mxu0 %v1490
  %2193 = vmatpush1.bf16.msra.mxu0 %v1489
  %2194 = vmatprep.subr.bf16.mxu0 %v1492
  %2195 = vmatpush1.bf16.msra.mxu0 %v1491
  %2196 = vmatprep.subr.bf16.mxu0 %v1494
  %2197 = vmatpush1.bf16.msra.mxu0 %v1493
  %2198 = vmatprep.subr.bf16.mxu0 %v1496
  %2199 = vmatpush1.bf16.msra.mxu0 %v1495
  %2200 = vmatprep.subr.bf16.mxu0 %v1498
  %2201 = vmatpush1.bf16.msra.mxu0 %v1497
  %2202 = vmatprep.subr.bf16.mxu0 %v1500
  %2203 = vmatpush1.bf16.msra.mxu0 %v1499
  %2204 = vmatprep.subr.bf16.mxu0 %v1502
  %2205 = vmatpush1.bf16.msra.mxu0 %v1501
  %2206 = vmatprep.subr.bf16.mxu0 %v1504
  %2207 = vmatpush1.bf16.msra.mxu0 %v1503
  %2208 = vmatprep.subr.bf16.mxu0 %v1506
  %2209 = vmatpush1.bf16.msra.mxu0 %v1505
  %2210 = vmatprep.subr.bf16.mxu0 %v1508
  %2211 = vmatpush1.bf16.msra.mxu0 %v1507
  %2212 = vmatprep.subr.bf16.mxu0 %v1510
  %2213 = vmatpush1.bf16.msra.mxu0 %v1509
  %2214 = vmatprep.subr.bf16.mxu0 %v1512
  %2215 = vmatpush1.bf16.msra.mxu0 %v1511
  %2216 = vmatprep.subr.bf16.mxu0 %v1514
  %2217 = vmatpush1.bf16.msra.mxu0 %v1513
  %2218 = vmatprep.subr.bf16.mxu0 %v1516
  %2219 = vmatpush1.bf16.msra.mxu0 %v1515
  %2220 = vmatprep.subr.bf16.mxu0 %v1518
  %2221 = vmatpush1.bf16.msra.mxu0 %v1517
  %2222 = vmatprep.mubr.bf16.mxu0 %v526
  %2223 = vmatmul.mubr.bf16.gmra.mrb[0].mxu0 %v525
  %v2224 = vpop.f32.mrb[0].mxu0
  %v2225 = vadd.f32 %v2142, %v2224
  %v2226 = vpop.f32.mrb[0].mxu0
  %v2227 = vadd.f32 %v2144, %v2226
  %v2228 = vpop.f32.mrb[0].mxu0
  %v2229 = vadd.f32 %v2146, %v2228
  %v2230 = vpop.f32.mrb[0].mxu0
  %v2231 = vadd.f32 %v2148, %v2230
  %2232 = vmatprep.mubr.bf16.mxu0 %v540
  %2233 = vmatmul.mubr.bf16.gmra.mrb[0].mxu0 %v539
  %v2234 = vpop.f32.mrb[0].mxu0
  %v2235 = vadd.f32 %v2152, %v2234
  %v2236 = vpop.f32.mrb[0].mxu0
  %v2237 = vadd.f32 %v2154, %v2236
  %v2238 = vpop.f32.mrb[0].mxu0
  %v2239 = vadd.f32 %v2156, %v2238
  %v2240 = vpop.f32.mrb[0].mxu0
  %v2241 = vadd.f32 %v2158, %v2240
  %2242 = vmatprep.mubr.bf16.mxu0 %v554
  %2243 = vmatmul.mubr.bf16.gmra.mrb[0].mxu0 %v553
  %v2244 = vpop.f32.mrb[0].mxu0
  %v2245 = vadd.f32 %v2162, %v2244
  %v2246 = vpop.f32.mrb[0].mxu0
  %v2247 = vadd.f32 %v2164, %v2246
  %v2248 = vpop.f32.mrb[0].mxu0
  %v2249 = vadd.f32 %v2166, %v2248
  %v2250 = vpop.f32.mrb[0].mxu0
  %v2251 = vadd.f32 %v2168, %v2250
  %2252 = vmatprep.mubr.bf16.mxu0 %v568
  %2253 = vmatmul.mubr.bf16.gmra.mrb[0].mxu0 %v567
  %v2254 = vpop.f32.mrb[0].mxu0
  %v2255 = vadd.f32 %v2172, %v2254
  %v2256 = vpop.f32.mrb[0].mxu0
  %v2257 = vadd.f32 %v2174, %v2256
  %v2258 = vpop.f32.mrb[0].mxu0
  %v2259 = vadd.f32 %v2176, %v2258
  %v2260 = vpop.f32.mrb[0].mxu0
  %v2261 = vadd.f32 %v2178, %v2260
  %2262 = vmatprep.mubr.bf16.mxu0 %v582
  %2263 = vmatmul.mubr.bf16.gmra.mrb[0].mxu0 %v581
  %v2264 = vpop.f32.mrb[0].mxu0
  %v2265 = vadd.f32 %v2182, %v2264
  %v2266 = vpop.f32.mrb[0].mxu0
  %v2267 = vadd.f32 %v2184, %v2266
  %v2268 = vpop.f32.mrb[0].mxu0
  %v2269 = vadd.f32 %v2186, %v2268
  %v2270 = vpop.f32.mrb[0].mxu0
  %v2271 = vadd.f32 %v2188, %v2270
  %2272 = vdwg.mxu0
  %2273 = vmatprep.subr.bf16.mxu0 %v1520
  %2274 = vmatpush1.bf16.msra.mxu0 %v1519
  %2275 = vmatprep.subr.bf16.mxu0 %v1522
  %2276 = vmatpush1.bf16.msra.mxu0 %v1521
  %2277 = vmatprep.subr.bf16.mxu0 %v1524
  %2278 = vmatpush1.bf16.msra.mxu0 %v1523
  %2279 = vmatprep.subr.bf16.mxu0 %v1526
  %2280 = vmatpush1.bf16.msra.mxu0 %v1525
  %2281 = vmatprep.subr.bf16.mxu0 %v1528
  %2282 = vmatpush1.bf16.msra.mxu0 %v1527
  %2283 = vmatprep.subr.bf16.mxu0 %v1530
  %2284 = vmatpush1.bf16.msra.mxu0 %v1529
  %2285 = vmatprep.subr.bf16.mxu0 %v1532
  %2286 = vmatpush1.bf16.msra.mxu0 %v1531
  %2287 = vmatprep.subr.bf16.mxu0 %v1534
  %2288 = vmatpush1.bf16.msra.mxu0 %v1533
  %2289 = vmatprep.subr.bf16.mxu0 %v1536
  %2290 = vmatpush1.bf16.msra.mxu0 %v1535
  %2291 = vmatprep.subr.bf16.mxu0 %v1538
  %2292 = vmatpush1.bf16.msra.mxu0 %v1537
  %2293 = vmatprep.subr.bf16.mxu0 %v1540
  %2294 = vmatpush1.bf16.msra.mxu0 %v1539
  %2295 = vmatprep.subr.bf16.mxu0 %v1542
  %2296 = vmatpush1.bf16.msra.mxu0 %v1541
  %2297 = vmatprep.subr.bf16.mxu0 %v1544
  %2298 = vmatpush1.bf16.msra.mxu0 %v1543
  %2299 = vmatprep.subr.bf16.mxu0 %v1546
  %2300 = vmatpush1.bf16.msra.mxu0 %v1545
  %2301 = vmatprep.subr.bf16.mxu0 %v1548
  %2302 = vmatpush1.bf16.msra.mxu0 %v1547
  %2303 = vmatprep.subr.bf16.mxu0 %v1550
  %2304 = vmatpush1.bf16.msra.mxu0 %v1549
  %2305 = vmatprep.mubr.bf16.mxu0 %v528
  %2306 = vmatmul.mubr.bf16.gmra.mrb[0].mxu0 %v527
  %v2307 = vpop.f32.mrb[0].mxu0
  %v2308 = vadd.f32 %v2225, %v2307
  %v2309 = vpop.f32.mrb[0].mxu0
  %v2310 = vadd.f32 %v2227, %v2309
  %v2311 = vpop.f32.mrb[0].mxu0
  %v2312 = vadd.f32 %v2229, %v2311
  %v2313 = vpop.f32.mrb[0].mxu0
  %v2314 = vadd.f32 %v2231, %v2313
  %2315 = vmatprep.mubr.bf16.mxu0 %v542
  %2316 = vmatmul.mubr.bf16.gmra.mrb[0].mxu0 %v541
  %v2317 = vpop.f32.mrb[0].mxu0
  %v2318 = vadd.f32 %v2235, %v2317
  %v2319 = vpop.f32.mrb[0].mxu0
  %v2320 = vadd.f32 %v2237, %v2319
  %v2321 = vpop.f32.mrb[0].mxu0
  %v2322 = vadd.f32 %v2239, %v2321
  %v2323 = vpop.f32.mrb[0].mxu0
  %v2324 = vadd.f32 %v2241, %v2323
  %2325 = vmatprep.mubr.bf16.mxu0 %v556
  %2326 = vmatmul.mubr.bf16.gmra.mrb[0].mxu0 %v555
  %v2327 = vpop.f32.mrb[0].mxu0
  %v2328 = vadd.f32 %v2245, %v2327
  %v2329 = vpop.f32.mrb[0].mxu0
  %v2330 = vadd.f32 %v2247, %v2329
  %v2331 = vpop.f32.mrb[0].mxu0
  %v2332 = vadd.f32 %v2249, %v2331
  %v2333 = vpop.f32.mrb[0].mxu0
  %v2334 = vadd.f32 %v2251, %v2333
  %2335 = vmatprep.mubr.bf16.mxu0 %v570
  %2336 = vmatmul.mubr.bf16.gmra.mrb[0].mxu0 %v569
  %v2337 = vpop.f32.mrb[0].mxu0
  %v2338 = vadd.f32 %v2255, %v2337
  %v2339 = vpop.f32.mrb[0].mxu0
  %v2340 = vadd.f32 %v2257, %v2339
  %v2341 = vpop.f32.mrb[0].mxu0
  %v2342 = vadd.f32 %v2259, %v2341
  %v2343 = vpop.f32.mrb[0].mxu0
  %v2344 = vadd.f32 %v2261, %v2343
  %2345 = vmatprep.mubr.bf16.mxu0 %v584
  %2346 = vmatmul.mubr.bf16.gmra.mrb[0].mxu0 %v583
  %v2347 = vpop.f32.mrb[0].mxu0
  %v2348 = vadd.f32 %v2265, %v2347
  %v2349 = vpop.f32.mrb[0].mxu0
  %v2350 = vadd.f32 %v2267, %v2349
  %v2351 = vpop.f32.mrb[0].mxu0
  %v2352 = vadd.f32 %v2269, %v2351
  %v2353 = vpop.f32.mrb[0].mxu0
  %v2354 = vadd.f32 %v2271, %v2353
  %2355 = vdwg.mxu0
  %v2356 = vmax.f32 %v2308, 0.0
  %v2357 = vmax.f32 %v2310, 0.0
  %v2358 = vmax.f32 %v2312, 0.0
  %v2359 = vmax.f32 %v2314, 0.0
  %v2360 = vmax.f32 %v2318, 0.0
  %v2361 = vmax.f32 %v2320, 0.0
  %v2362 = vmax.f32 %v2322, 0.0
  %v2363 = vmax.f32 %v2324, 0.0
  %v2364 = vmax.f32 %v2328, 0.0
  %v2365 = vmax.f32 %v2330, 0.0
  %v2366 = vmax.f32 %v2332, 0.0
  %v2367 = vmax.f32 %v2334, 0.0
  %v2368 = vmax.f32 %v2338, 0.0
  %v2369 = vmax.f32 %v2340, 0.0
  %v2370 = vmax.f32 %v2342, 0.0
  %v2371 = vmax.f32 %v2344, 0.0
  %v2372 = vmax.f32 %v2348, 0.0
  %v2373 = vmax.f32 %v2350, 0.0
  %v2374 = vmax.f32 %v2352, 0.0
  %v2375 = vmax.f32 %v2354, 0.0
  %2376 = vst [vmem:[%s2] sm:$0xff] %v2356
  %2377 = vst [vmem:[%s2 + $0x8] sm:$0xff] %v2357
  %2378 = vst [vmem:[%s2 + $0x10] sm:$0xff] %v2358
  %2379 = vst [vmem:[%s2 + $0x18] sm:$0xff] %v2359
  %2380 = vst [vmem:[%s2 + $0x20] sm:$0xff] %v2360
  %2381 = vst [vmem:[%s2 + $0x28] sm:$0xff] %v2361
  %2382 = vst [vmem:[%s2 + $0x30] sm:$0xff] %v2362
  %2383 = vst [vmem:[%s2 + $0x38] sm:$0xff] %v2363
  %2384 = vst [vmem:[%s2 + $0x40] sm:$0xff] %v2364
  %2385 = vst [vmem:[%s2 + $0x48] sm:$0xff] %v2365
  %2386 = vst [vmem:[%s2 + $0x50] sm:$0xff] %v2366
  %2387 = vst [vmem:[%s2 + $0x58] sm:$0xff] %v2367
  %2388 = vst [vmem:[%s2 + $0x60] sm:$0xff] %v2368
  %2389 = vst [vmem:[%s2 + $0x68] sm:$0xff] %v2369
  %2390 = vst [vmem:[%s2 + $0x70] sm:$0xff] %v2370
  %2391 = vst [vmem:[%s2 + $0x78] sm:$0xff] %v2371
  %2392 = vst [vmem:[%s2 + $0x80] sm:$0xff] %v2372
  %2393 = vst [vmem:[%s2 + $0x88] sm:$0xff] %v2373
  %2394 = vst [vmem:[%s2 + $0x90] sm:$0xff] %v2374
  %2395 = vst [vmem:[%s2 + $0x98] sm:$0xff] %v2375
  // Predicated region
  $region10: #{cnn_xy_forward.10} parent=0 // pred_check
    _
  $region11: #{cnn_xy_forward.10} parent=0 // pred_check_branch
    %2397 = sbr.rel (0) target = $region13
  $region12: #{cnn_xy_forward.10} parent=0 // pred_region
    _
  $region13: #{cnn_xy_forward.10} parent=0 // pred_fallthru
    _
  // Predicated region
  $region14: #{cnn_xy_forward.10} parent=0 // pred_check
    _
  $region15: #{cnn_xy_forward.10} parent=0 // pred_check_branch
    %2399 = sbr.rel (0) target = $region17
  $region16: #{cnn_xy_forward.10} parent=0 // pred_region
    _
  $region17: #{cnn_xy_forward.10} parent=0 // pred_fallthru
    _

// kernel: cnn_xy_forward.11
$region0: #{cnn_xy_forward.11}
  #allocation0 [shape = 'u32[]', space=smem, size = 0x4, offset = 0x4, fixed_abs, tag = 'smem constant byte address 0x4 - core index']
  #allocation1 [shape = 'u32[144,128]{1,0:T(1,128)}', space=vmem, size = 0x12000, scoped, tag = 'internal scratch']
  #allocation2 [shape = 'f32[16,256]{1,0:T(8,128)}', space=vmem, size = 0x4000, scoped, tag = 'scratch operand']
  %s0 = inlined_call_operand.vmem [shape: bf16[16,10240], index: 0, kind: input, shape index: {}]
  %s1 = inlined_call_operand.vmem [shape: bf16[10240,256], index: 1, kind: input, shape index: {}]
  %s2 = inlined_call_operand.vmem [shape: f32[1,256], index: 2, kind: input, shape index: {}]
  %s3 = inlined_call_operand.vmem [shape: bf16[256,128], index: 3, kind: input, shape index: {}]
  %s4 = inlined_call_operand.vmem [shape: f32[1,128], index: 4, kind: input, shape index: {}]
  %s5 = inlined_call_operand.vmem [shape: f32[16,128], index: 5, kind: output, shape index: {}]
  %s6 = sld [smem:[#allocation0]]
  $region84: #{cnn_xy_forward.11} parent=0
    _
  %s8 = ssub.s32 1, %s6
  %s9 = scalar_select 0, %s8, %s6
  $region1: #{cnn_xy_forward.11} parent=0
    #allocation3 [shape = 'u8[131072]{0}', space=vmem, size = 0x20000, scoped, tag = 'input window, operand 0']
    loop: start=0, step=1, limit=7
    $region2: #{cnn_xy_forward.11} parent=1 // loop_pre_header
      _
    $region3: #{cnn_xy_forward.11} parent=1 // loop_header
      %s11 = sphi 0, %s15
      %p12 = scmp.ge.s32.totalorder %s11, 7
      %s18 = sphi 0, %s30
      %s19 = sphi 0, %s26
      %s20 = sphi 0, %s18
      %s21 = sphi 0, %s19
      %s22 = sphi 0, %s20
      %s23 = sphi 0, %s21
      %s35 = sphi 0, %s37
      %s38 = sphi 0, %s35
      %s39 = sphi 0, %s38
      %s55 = sphi 0, %s39
      %s61 = sphi 0, %s63
      %s64 = sphi 0, %s61
      %s65 = sphi 0, %s64
      %s81 = sphi 0, %s65
      %s85 = sphi 0, %s85
      %s87 = sphi 0, %s85
      %s88 = sphi 0, %s87
      %s102 = sphi 0, %s88
      %s106 = sphi 0, %s106
      %s108 = sphi 0, %s106
      %s109 = sphi 0, %s108
      %s123 = sphi 0, %s109
      %s127 = sphi 0, %s127
      %s129 = sphi 0, %s127
      %s130 = sphi 0, %s129
      %s144 = sphi 0, %s130
      %s150 = sphi 0, %s152
      %s153 = sphi 0, %s150
      %s154 = sphi 0, %s153
      %s170 = sphi 0, %s154
    $region4: #{cnn_xy_forward.11} parent=1 // loop_header_branch
      %14 = sbr.rel (%p12) target = $region8
    $region5: #{cnn_xy_forward.11} parent=1 // loop_body
      %s16 = ssub.s32 %s11, 1
      %s17 = ssub.s32 %s11, 2
      %s24 = sadd.s32 1, %s19
      %p25 = scmp.ge.s32.totalorder %s24, 5
      %s26 = scalar_select %p25, 0, %s24
      %s27 = sadd.s32 1, %s18
      %s28 = scalar_select %p25, %s27, %s18
      %p29 = scmp.ge.s32.totalorder %s28, 1
      %s30 = scalar_select %p29, 0, %s28
      %s31 = ssub.s32 %s18, %s30
      %s32 = ssub.s32 %s19, %s26
      %s33 = sor.u32 %s31, %s32
      %p34 = scmp.eq.s32.totalorder %s33, 0
      %s36 = sadd.s32 %s35, 1
      %s37 = scalar_select %p34, %s35, %s36
      %p40 = pneg %p34
      %p41 = scmp.eq.s32.totalorder %s11, 4
      %p42 = por %p40, %p41
      %p43 = scmp.ne.s32.totalorder %s35, %s38
      %p44 = scmp.eq.s32.totalorder %s11, 0
      %p45 = por %p43, %p44
      %p46 = scmp.ne.s32.totalorder %s35, %s38
      %p47 = scmp.eq.s32.totalorder %s16, 4
      %p48 = por %p46, %p47
      %p49 = scmp.ne.s32.totalorder %s38, %s39
      %p50 = scmp.eq.s32.totalorder %s16, 0
      %p51 = por %p49, %p50
      %p52 = scmp.ne.s32.totalorder %s38, %s39
      %p53 = scmp.eq.s32.totalorder %s17, 4
      %p54 = por %p52, %p53
      %p56 = scmp.ne.s32.totalorder %s39, %s55
      %p57 = scmp.eq.s32.totalorder %s17, 0
      %p58 = por %p56, %p57
      %s59 = ssub.s32 %s19, %s26
      %p60 = scmp.eq.s32.totalorder %s59, 0
      %s62 = sadd.s32 %s61, 1
      %s63 = scalar_select %p60, %s61, %s62
      %p66 = pneg %p60
      %p67 = scmp.eq.s32.totalorder %s11, 4
      %p68 = por %p66, %p67
      %p69 = scmp.ne.s32.totalorder %s61, %s64
      %p70 = scmp.eq.s32.totalorder %s11, 0
      %p71 = por %p69, %p70
      %p72 = scmp.ne.s32.totalorder %s61, %s64
      %p73 = scmp.eq.s32.totalorder %s16, 4
      %p74 = por %p72, %p73
      %p75 = scmp.ne.s32.totalorder %s64, %s65
      %p76 = scmp.eq.s32.totalorder %s16, 0
      %p77 = por %p75, %p76
      %p78 = scmp.ne.s32.totalorder %s64, %s65
      %p79 = scmp.eq.s32.totalorder %s17, 4
      %p80 = por %p78, %p79
      %p82 = scmp.ne.s32.totalorder %s65, %s81
      %p83 = scmp.eq.s32.totalorder %s17, 0
      %p84 = por %p82, %p83
      %s86 = sadd.s32 %s85, 1
      %p89 = scmp.eq.s32.totalorder %s11, 4
      %p90 = scmp.ne.s32.totalorder %s85, %s87
      %p91 = scmp.eq.s32.totalorder %s11, 0
      %p92 = por %p90, %p91
      %p93 = scmp.ne.s32.totalorder %s85, %s87
      %p94 = scmp.eq.s32.totalorder %s16, 4
      %p95 = por %p93, %p94
      %p96 = scmp.ne.s32.totalorder %s87, %s88
      %p97 = scmp.eq.s32.totalorder %s16, 0
      %p98 = por %p96, %p97
      %p99 = scmp.ne.s32.totalorder %s87, %s88
      %p100 = scmp.eq.s32.totalorder %s17, 4
      %p101 = por %p99, %p100
      %p103 = scmp.ne.s32.totalorder %s88, %s102
      %p104 = scmp.eq.s32.totalorder %s17, 0
      %p105 = por %p103, %p104
      %s107 = sadd.s32 %s106, 1
      %p110 = scmp.eq.s32.totalorder %s11, 4
      %p111 = scmp.ne.s32.totalorder %s106, %s108
      %p112 = scmp.eq.s32.totalorder %s11, 0
      %p113 = por %p111, %p112
      %p114 = scmp.ne.s32.totalorder %s106, %s108
      %p115 = scmp.eq.s32.totalorder %s16, 4
      %p116 = por %p114, %p115
      %p117 = scmp.ne.s32.totalorder %s108, %s109
      %p118 = scmp.eq.s32.totalorder %s16, 0
      %p119 = por %p117, %p118
      %p120 = scmp.ne.s32.totalorder %s108, %s109
      %p121 = scmp.eq.s32.totalorder %s17, 4
      %p122 = por %p120, %p121
      %p124 = scmp.ne.s32.totalorder %s109, %s123
      %p125 = scmp.eq.s32.totalorder %s17, 0
      %p126 = por %p124, %p125
      %s128 = sadd.s32 %s127, 1
      %p131 = scmp.eq.s32.totalorder %s11, 4
      %p132 = scmp.ne.s32.totalorder %s127, %s129
      %p133 = scmp.eq.s32.totalorder %s11, 0
      %p134 = por %p132, %p133
      %p135 = scmp.ne.s32.totalorder %s127, %s129
      %p136 = scmp.eq.s32.totalorder %s16, 4
      %p137 = por %p135, %p136
      %p138 = scmp.ne.s32.totalorder %s129, %s130
      %p139 = scmp.eq.s32.totalorder %s16, 0
      %p140 = por %p138, %p139
      %p141 = scmp.ne.s32.totalorder %s129, %s130
      %p142 = scmp.eq.s32.totalorder %s17, 4
      %p143 = por %p141, %p142
      %p145 = scmp.ne.s32.totalorder %s130, %s144
      %p146 = scmp.eq.s32.totalorder %s17, 0
      %p147 = por %p145, %p146
      %s148 = ssub.s32 %s18, %s30
      %p149 = scmp.eq.s32.totalorder %s148, 0
      %s151 = sadd.s32 %s150, 1
      %s152 = scalar_select %p149, %s150, %s151
      %p155 = pneg %p149
      %p156 = scmp.eq.s32.totalorder %s11, 4
      %p157 = por %p155, %p156
      %p158 = scmp.ne.s32.totalorder %s150, %s153
      %p159 = scmp.eq.s32.totalorder %s11, 0
      %p160 = por %p158, %p159
      %p161 = scmp.ne.s32.totalorder %s150, %s153
      %p162 = scmp.eq.s32.totalorder %s16, 4
      %p163 = por %p161, %p162
      %p164 = scmp.ne.s32.totalorder %s153, %s154
      %p165 = scmp.eq.s32.totalorder %s16, 0
      %p166 = por %p164, %p165
      %p167 = scmp.ne.s32.totalorder %s153, %s154
      %p168 = scmp.eq.s32.totalorder %s17, 4
      %p169 = por %p167, %p168
      %p171 = scmp.ne.s32.totalorder %s154, %s170
      %p172 = scmp.eq.s32.totalorder %s17, 0
      %p173 = por %p171, %p172
      %p174 = scmp.le.s32.totalorder 1, %s11
      %p175 = scmp.lt.s32.totalorder %s11, 6
      %p176 = pnand %p174, %p175
      %p177 = pneg %p176
      // Predicated region
      $region9: #{cnn_xy_forward.11} parent=5 // pred_check
        _
      $region10: #{cnn_xy_forward.11} parent=5 // pred_check_branch
        %179 = sbr.rel (%p176) target = $region12
      $region11: #{cnn_xy_forward.11} parent=5 // pred_region
        %s180 = ssub.s32 %s11, 1
        // Predicated region
        $region13: #{cnn_xy_forward.11} parent=11 // pred_check
          %p181 = pneg %p98
        $region14: #{cnn_xy_forward.11} parent=11 // pred_check_branch
          %183 = sbr.rel (%p181) target = $region16
        $region15: #{cnn_xy_forward.11} parent=11 // pred_region
          _
        $region16: #{cnn_xy_forward.11} parent=11 // pred_fallthru
          _
        // Predicated region
        $region17: #{cnn_xy_forward.11} parent=11 // pred_check
          %p184 = pneg %p119
        $region18: #{cnn_xy_forward.11} parent=11 // pred_check_branch
          %186 = sbr.rel (%p184) target = $region20
        $region19: #{cnn_xy_forward.11} parent=11 // pred_region
          _
        $region20: #{cnn_xy_forward.11} parent=11 // pred_fallthru
          _
        // Predicated region
        $region21: #{cnn_xy_forward.11} parent=11 // pred_check
          %p187 = pneg %p140
        $region22: #{cnn_xy_forward.11} parent=11 // pred_check_branch
          %189 = sbr.rel (%p187) target = $region24
        $region23: #{cnn_xy_forward.11} parent=11 // pred_region
          _
        $region24: #{cnn_xy_forward.11} parent=11 // pred_fallthru
          _
      $region12: #{cnn_xy_forward.11} parent=5 // pred_fallthru
        _
      %p190 = scmp.lt.s32.totalorder %s11, 5
      // Predicated region
      $region25: #{cnn_xy_forward.11} parent=5 // pred_check
        %p191 = pneg %p190
      $region26: #{cnn_xy_forward.11} parent=5 // pred_check_branch
        %193 = sbr.rel (%p191) target = $region28
      $region27: #{cnn_xy_forward.11} parent=5 // pred_region
        // Predicated region
        $region29: #{cnn_xy_forward.11} parent=27 // pred_check
          %p194 = pneg %p45
        $region30: #{cnn_xy_forward.11} parent=27 // pred_check_branch
          %196 = sbr.rel (%p194) target = $region32
        $region31: #{cnn_xy_forward.11} parent=27 // pred_region
          %s197 = sand.u32 %s35, 1
          %s198 = sand.u32 %s35, 1
          %s199 = smul.addr %s198, 128
          %s200 = scalar_lea.vmem [#allocation3], %s199
          %s201 = smul.u32 2, %s18
          %s202 = smul.u32 16, %s19
          %s203 = smul.addr %s201, 80
          %s204 = sadd.s32 %s202, %s203
          %s205 = smul.addr %s204, 4
          %s206 = scalar_lea.vmem %s0, %s205
          // Predicated region
          $region33: #{cnn_xy_forward.11} parent=31 // pred_check
            _
          $region34: #{cnn_xy_forward.11} parent=31 // pred_check_branch
            %208 = sbr.rel (0) target = $region36
          $region35: #{cnn_xy_forward.11} parent=31 // pred_region
            // Predicated region
            $region37: #{cnn_xy_forward.11} parent=35 // pred_check
              _
            $region38: #{cnn_xy_forward.11} parent=35 // pred_check_branch
              %210 = sbr.rel (0) target = $region40
            $region39: #{cnn_xy_forward.11} parent=35 // pred_region
              loop: start=0, step=1, limit=1
              $region41: #{cnn_xy_forward.11} parent=39 // loop_pre_header
                _
              $region42: #{cnn_xy_forward.11} parent=39 // loop_header
                %s212 = sphi 0, %s216
                %p213 = scmp.ge.s32.totalorder %s212, 1
                %s217 = sphi %s206, %s206
                %s218 = sphi %s200, %s200
              $region43: #{cnn_xy_forward.11} parent=39 // loop_header_branch
                %215 = sbr.rel (%p213) target = $region47
              $region44: #{cnn_xy_forward.11} parent=39 // loop_body
                %v219 = vld [vmem:[%s217] sm:$0xff]
                %220 = vst [vmem:[%s218] sm:$0xff] %v219
                %v221 = vld [vmem:[%s217 + $0x8] sm:$0xff]
                %222 = vst [vmem:[%s218 + $0x8] sm:$0xff] %v221
                %v223 = vld [vmem:[%s217 + $0x10] sm:$0xff]
                %224 = vst [vmem:[%s218 + $0x10] sm:$0xff] %v223
                %v225 = vld [vmem:[%s217 + $0x18] sm:$0xff]
                %226 = vst [vmem:[%s218 + $0x18] sm:$0xff] %v225
                %v227 = vld [vmem:[%s217 + $0x20] sm:$0xff]
                %228 = vst [vmem:[%s218 + $0x20] sm:$0xff] %v227
                %v229 = vld [vmem:[%s217 + $0x28] sm:$0xff]
                %230 = vst [vmem:[%s218 + $0x28] sm:$0xff] %v229
                %v231 = vld [vmem:[%s217 + $0x30] sm:$0xff]
                %232 = vst [vmem:[%s218 + $0x30] sm:$0xff] %v231
                %v233 = vld [vmem:[%s217 + $0x38] sm:$0xff]
                %234 = vst [vmem:[%s218 + $0x38] sm:$0xff] %v233
                %v235 = vld [vmem:[%s217 + $0x140] sm:$0xff]
                %236 = vst [vmem:[%s218 + $0x40] sm:$0xff] %v235
                %v237 = vld [vmem:[%s217 + $0x148] sm:$0xff]
                %238 = vst [vmem:[%s218 + $0x48] sm:$0xff] %v237
                %v239 = vld [vmem:[%s217 + $0x150] sm:$0xff]
                %240 = vst [vmem:[%s218 + $0x50] sm:$0xff] %v239
                %v241 = vld [vmem:[%s217 + $0x158] sm:$0xff]
                %242 = vst [vmem:[%s218 + $0x58] sm:$0xff] %v241
                %v243 = vld [vmem:[%s217 + $0x160] sm:$0xff]
                %244 = vst [vmem:[%s218 + $0x60] sm:$0xff] %v243
                %v245 = vld [vmem:[%s217 + $0x168] sm:$0xff]
                %246 = vst [vmem:[%s218 + $0x68] sm:$0xff] %v245
                %v247 = vld [vmem:[%s217 + $0x170] sm:$0xff]
                %248 = vst [vmem:[%s218 + $0x70] sm:$0xff] %v247
                %v249 = vld [vmem:[%s217 + $0x178] sm:$0xff]
                %250 = vst [vmem:[%s218 + $0x78] sm:$0xff] %v249
              $region45: #{cnn_xy_forward.11} parent=39 // loop_footer
                %s216 = sadd.s32 1, %s212
              $region46: #{cnn_xy_forward.11} parent=39 // loop_footer_branch
                %211 = sbr.rel target = $region42
              $region47: #{cnn_xy_forward.11} parent=39 // loop_exit
                _
            $region40: #{cnn_xy_forward.11} parent=35 // pred_fallthru
              _
            // Predicated region
            $region48: #{cnn_xy_forward.11} parent=35 // pred_check
              _
            $region49: #{cnn_xy_forward.11} parent=35 // pred_check_branch
              %252 = sbr.rel target = $region51
            $region50: #{cnn_xy_forward.11} parent=35 // pred_region
              _
            $region51: #{cnn_xy_forward.11} parent=35 // pred_fallthru
              _
          $region36: #{cnn_xy_forward.11} parent=31 // pred_fallthru
            _
          %253 = vnop
        $region32: #{cnn_xy_forward.11} parent=27 // pred_fallthru
          _
        // Predicated region
        $region52: #{cnn_xy_forward.11} parent=27 // pred_check
          %p254 = pneg %p71
        $region53: #{cnn_xy_forward.11} parent=27 // pred_check_branch
          %256 = sbr.rel (%p254) target = $region55
        $region54: #{cnn_xy_forward.11} parent=27 // pred_region
          %s257 = smul.u32 256, %s19
          %p258 = scmp.lt.s32.totalorder %s257, 1279
          %s259 = scalar_select %p258, %s257, 1279
          %s260 = smul.addr %s259, 2
          %s261 = smul.addr %s260, 4
          %s262 = scalar_lea.vmem %s1, %s261
          %s263 = smul.u32 256, %s19
        $region55: #{cnn_xy_forward.11} parent=27 // pred_fallthru
          _
      $region28: #{cnn_xy_forward.11} parent=5 // pred_fallthru
        _
      %p264 = scmp.le.s32.totalorder 1, %s11
      %p265 = scmp.lt.s32.totalorder %s11, 6
      %p266 = pnand %p264, %p265
      %p267 = pneg %p266
      // Predicated region
      $region56: #{cnn_xy_forward.11} parent=5 // pred_check
        _
      $region57: #{cnn_xy_forward.11} parent=5 // pred_check_branch
        %269 = sbr.rel (%p266) target = $region59
      $region58: #{cnn_xy_forward.11} parent=5 // pred_region
        %s270 = ssub.s32 %s11, 1
        %s271 = sand.u32 %s38, 1
        %s272 = sand.u32 %s38, 1
        %s273 = smul.addr %s272, 128
        %s274 = scalar_lea.vmem [#allocation3], %s273
        // Predicated region
        $region60: #{cnn_xy_forward.11} parent=58 // pred_check
          %p275 = pneg %p51
        $region61: #{cnn_xy_forward.11} parent=58 // pred_check_branch
          %277 = sbr.rel (%p275) target = $region63
        $region62: #{cnn_xy_forward.11} parent=58 // pred_region
          _
        $region63: #{cnn_xy_forward.11} parent=58 // pred_fallthru
          _
        %s278 = sand.u32 %s38, 1
        %s279 = sand.u32 %s38, 1
        %s280 = smul.addr %s279, 128
        %s281 = scalar_lea.vmem [#allocation3], %s280
        %p282 = pneg %p51
        %p283 = pneg %p48
        %s284 = smul.u32 256, %s21
        %p285 = scmp.lt.s32.totalorder %s284, 1279
        %s286 = scalar_select %p285, %s284, 1279
        %s287 = smul.addr %s286, 2
        %s288 = smul.addr %s287, 4
        %s289 = scalar_lea.vmem %s1, %s288
        %p290 = pneg %p77
        %p291 = pneg %p74
        %p292 = pneg %p98
        %p293 = pneg %p95
        %p294 = pneg %p119
        %p295 = pneg %p116
        %p296 = pneg %p140
        %p297 = pneg %p137
        %p298 = pneg %p166
        %p299 = pneg %p163
        %s300 = smul.u32 2, %s20
        %p301 = scmp.lt.s32.totalorder %s300, 1
        %s302 = scalar_select %p301, %s300, 1
        %s303 = smul.addr %s302, 8
        %s304 = scalar_lea.vmem %s5, %s303
        %s305 = smul.u32 2, %s20
        %s306 = smul.u32 16, %s21
        %s307 = smul.u32 256, %s21
        %p308 = scmp.lt.s32.totalorder %s307, 1279
        %s309 = scalar_select %p308, %s307, 1279
        %s310 = smul.addr %s309, 2
        %s311 = smul.addr %s310, 4
        %s312 = scalar_lea.vmem %s1, %s311
        %s313 = smul.u32 256, %s21
        %s314 = smul.u32 2, %s20
        %p315 = scmp.lt.s32.totalorder %s314, 1
        %s316 = scalar_select %p315, %s314, 1
        %s317 = smul.addr %s316, 8
        %s318 = scalar_lea.vmem %s5, %s317
        %s319 = smul.u32 2, %s20
        %p321 = scmp.eq.s32.totalorder %s21, 0
        // Predicated region
        $region64: #{cnn_xy_forward.11} parent=58 // pred_check
          %p322 = pneg %p321
        $region65: #{cnn_xy_forward.11} parent=58 // pred_check_branch
          %324 = sbr.rel (%p322) target = $region67
        $region66: #{cnn_xy_forward.11} parent=58 // pred_region
          %325 = vst [vmem:[#allocation2] sm:$0xff] 0.0
          %326 = vst [vmem:[#allocation2 + $0x8] sm:$0xff] 0.0
          %327 = vst [vmem:[#allocation2 + $0x10] sm:$0xff] 0.0
          %328 = vst [vmem:[#allocation2 + $0x18] sm:$0xff] 0.0
        $region67: #{cnn_xy_forward.11} parent=58 // pred_fallthru
          _
        %v329 = vld [vmem:[#allocation2] sm:$0xff]
        %v330 = vld [vmem:[#allocation2 + $0x8] sm:$0xff]
        %v331 = vld [vmem:[#allocation2 + $0x10] sm:$0xff]
        %v332 = vld [vmem:[#allocation2 + $0x18] sm:$0xff]
        %v333 = vld [vmem:[%s274] sm:$0xff]
        %v334 = vld [vmem:[%s274 + $0x8] sm:$0xff]
        %v335 = vld [vmem:[%s274 + $0x10] sm:$0xff]
        %v336 = vld [vmem:[%s274 + $0x18] sm:$0xff]
        %v337 = vld [vmem:[%s274 + $0x20] sm:$0xff]
        %v338 = vld [vmem:[%s274 + $0x28] sm:$0xff]
        %v339 = vld [vmem:[%s274 + $0x30] sm:$0xff]
        %v340 = vld [vmem:[%s274 + $0x38] sm:$0xff]
        %v341 = vld [vmem:[%s274 + $0x40] sm:$0xff]
        %v342 = vld [vmem:[%s274 + $0x48] sm:$0xff]
        %v343 = vld [vmem:[%s274 + $0x50] sm:$0xff]
        %v344 = vld [vmem:[%s274 + $0x58] sm:$0xff]
        %v345 = vld [vmem:[%s274 + $0x60] sm:$0xff]
        %v346 = vld [vmem:[%s274 + $0x68] sm:$0xff]
        %v347 = vld [vmem:[%s274 + $0x70] sm:$0xff]
        %v348 = vld [vmem:[%s274 + $0x78] sm:$0xff]
        %v349 = vld [vmem:[%s312] sm:$0xff]
        %v350 = vld [vmem:[%s312 + $0x8] sm:$0xff]
        %v351 = vld [vmem:[%s312 + $0x10] sm:$0xff]
        %v352 = vld [vmem:[%s312 + $0x18] sm:$0xff]
        %v353 = vld [vmem:[%s312 + $0x20] sm:$0xff]
        %v354 = vld [vmem:[%s312 + $0x28] sm:$0xff]
        %v355 = vld [vmem:[%s312 + $0x30] sm:$0xff]
        %v356 = vld [vmem:[%s312 + $0x38] sm:$0xff]
        %v357 = vld [vmem:[%s312 + $0x40] sm:$0xff]
        %v358 = vld [vmem:[%s312 + $0x48] sm:$0xff]
        %v359 = vld [vmem:[%s312 + $0x50] sm:$0xff]
        %v360 = vld [vmem:[%s312 + $0x58] sm:$0xff]
        %v361 = vld [vmem:[%s312 + $0x60] sm:$0xff]
        %v362 = vld [vmem:[%s312 + $0x68] sm:$0xff]
        %v363 = vld [vmem:[%s312 + $0x70] sm:$0xff]
        %v364 = vld [vmem:[%s312 + $0x78] sm:$0xff]
        %v365 = vld [vmem:[%s312 + $0x80] sm:$0xff]
        %v366 = vld [vmem:[%s312 + $0x88] sm:$0xff]
        %v367 = vld [vmem:[%s312 + $0x90] sm:$0xff]
        %v368 = vld [vmem:[%s312 + $0x98] sm:$0xff]
        %v369 = vld [vmem:[%s312 + $0xa0] sm:$0xff]
        %v370 = vld [vmem:[%s312 + $0xa8] sm:$0xff]
        %v371 = vld [vmem:[%s312 + $0xb0] sm:$0xff]
        %v372 = vld [vmem:[%s312 + $0xb8] sm:$0xff]
        %v373 = vld [vmem:[%s312 + $0xc0] sm:$0xff]
        %v374 = vld [vmem:[%s312 + $0xc8] sm:$0xff]
        %v375 = vld [vmem:[%s312 + $0xd0] sm:$0xff]
        %v376 = vld [vmem:[%s312 + $0xd8] sm:$0xff]
        %v377 = vld [vmem:[%s312 + $0xe0] sm:$0xff]
        %v378 = vld [vmem:[%s312 + $0xe8] sm:$0xff]
        %v379 = vld [vmem:[%s312 + $0xf0] sm:$0xff]
        %v380 = vld [vmem:[%s312 + $0xf8] sm:$0xff]
        %v381 = vld [vmem:[%s312 + $0x100] sm:$0xff]
        %v382 = vld [vmem:[%s312 + $0x108] sm:$0xff]
        %v383 = vld [vmem:[%s312 + $0x110] sm:$0xff]
        %v384 = vld [vmem:[%s312 + $0x118] sm:$0xff]
        %v385 = vld [vmem:[%s312 + $0x120] sm:$0xff]
        %v386 = vld [vmem:[%s312 + $0x128] sm:$0xff]
        %v387 = vld [vmem:[%s312 + $0x130] sm:$0xff]
        %v388 = vld [vmem:[%s312 + $0x138] sm:$0xff]
        %v389 = vld [vmem:[%s312 + $0x140] sm:$0xff]
        %v390 = vld [vmem:[%s312 + $0x148] sm:$0xff]
        %v391 = vld [vmem:[%s312 + $0x150] sm:$0xff]
        %v392 = vld [vmem:[%s312 + $0x158] sm:$0xff]
        %v393 = vld [vmem:[%s312 + $0x160] sm:$0xff]
        %v394 = vld [vmem:[%s312 + $0x168] sm:$0xff]
        %v395 = vld [vmem:[%s312 + $0x170] sm:$0xff]
        %v396 = vld [vmem:[%s312 + $0x178] sm:$0xff]
        %v397 = vld [vmem:[%s312 + $0x180] sm:$0xff]
        %v398 = vld [vmem:[%s312 + $0x188] sm:$0xff]
        %v399 = vld [vmem:[%s312 + $0x190] sm:$0xff]
        %v400 = vld [vmem:[%s312 + $0x198] sm:$0xff]
        %v401 = vld [vmem:[%s312 + $0x1a0] sm:$0xff]
        %v402 = vld [vmem:[%s312 + $0x1a8] sm:$0xff]
        %v403 = vld [vmem:[%s312 + $0x1b0] sm:$0xff]
        %v404 = vld [vmem:[%s312 + $0x1b8] sm:$0xff]
        %v405 = vld [vmem:[%s312 + $0x1c0] sm:$0xff]
        %v406 = vld [vmem:[%s312 + $0x1c8] sm:$0xff]
        %v407 = vld [vmem:[%s312 + $0x1d0] sm:$0xff]
        %v408 = vld [vmem:[%s312 + $0x1d8] sm:$0xff]
        %v409 = vld [vmem:[%s312 + $0x1e0] sm:$0xff]
        %v410 = vld [vmem:[%s312 + $0x1e8] sm:$0xff]
        %v411 = vld [vmem:[%s312 + $0x1f0] sm:$0xff]
        %v412 = vld [vmem:[%s312 + $0x1f8] sm:$0xff]
        %v413 = vld [vmem:[%s312 + $0x200] sm:$0xff]
        %v414 = vld [vmem:[%s312 + $0x208] sm:$0xff]
        %v415 = vld [vmem:[%s312 + $0x210] sm:$0xff]
        %v416 = vld [vmem:[%s312 + $0x218] sm:$0xff]
        %v417 = vld [vmem:[%s312 + $0x220] sm:$0xff]
        %v418 = vld [vmem:[%s312 + $0x228] sm:$0xff]
        %v419 = vld [vmem:[%s312 + $0x230] sm:$0xff]
        %v420 = vld [vmem:[%s312 + $0x238] sm:$0xff]
        %v421 = vld [vmem:[%s312 + $0x240] sm:$0xff]
        %v422 = vld [vmem:[%s312 + $0x248] sm:$0xff]
        %v423 = vld [vmem:[%s312 + $0x250] sm:$0xff]
        %v424 = vld [vmem:[%s312 + $0x258] sm:$0xff]
        %v425 = vld [vmem:[%s312 + $0x260] sm:$0xff]
        %v426 = vld [vmem:[%s312 + $0x268] sm:$0xff]
        %v427 = vld [vmem:[%s312 + $0x270] sm:$0xff]
        %v428 = vld [vmem:[%s312 + $0x278] sm:$0xff]
        %v429 = vld [vmem:[%s312 + $0x280] sm:$0xff]
        %v430 = vld [vmem:[%s312 + $0x288] sm:$0xff]
        %v431 = vld [vmem:[%s312 + $0x290] sm:$0xff]
        %v432 = vld [vmem:[%s312 + $0x298] sm:$0xff]
        %v433 = vld [vmem:[%s312 + $0x2a0] sm:$0xff]
        %v434 = vld [vmem:[%s312 + $0x2a8] sm:$0xff]
        %v435 = vld [vmem:[%s312 + $0x2b0] sm:$0xff]
        %v436 = vld [vmem:[%s312 + $0x2b8] sm:$0xff]
        %v437 = vld [vmem:[%s312 + $0x2c0] sm:$0xff]
        %v438 = vld [vmem:[%s312 + $0x2c8] sm:$0xff]
        %v439 = vld [vmem:[%s312 + $0x2d0] sm:$0xff]
        %v440 = vld [vmem:[%s312 + $0x2d8] sm:$0xff]
        %v441 = vld [vmem:[%s312 + $0x2e0] sm:$0xff]
        %v442 = vld [vmem:[%s312 + $0x2e8] sm:$0xff]
        %v443 = vld [vmem:[%s312 + $0x2f0] sm:$0xff]
        %v444 = vld [vmem:[%s312 + $0x2f8] sm:$0xff]
        %v445 = vld [vmem:[%s312 + $0x300] sm:$0xff]
        %v446 = vld [vmem:[%s312 + $0x308] sm:$0xff]
        %v447 = vld [vmem:[%s312 + $0x310] sm:$0xff]
        %v448 = vld [vmem:[%s312 + $0x318] sm:$0xff]
        %v449 = vld [vmem:[%s312 + $0x320] sm:$0xff]
        %v450 = vld [vmem:[%s312 + $0x328] sm:$0xff]
        %v451 = vld [vmem:[%s312 + $0x330] sm:$0xff]
        %v452 = vld [vmem:[%s312 + $0x338] sm:$0xff]
        %v453 = vld [vmem:[%s312 + $0x340] sm:$0xff]
        %v454 = vld [vmem:[%s312 + $0x348] sm:$0xff]
        %v455 = vld [vmem:[%s312 + $0x350] sm:$0xff]
        %v456 = vld [vmem:[%s312 + $0x358] sm:$0xff]
        %v457 = vld [vmem:[%s312 + $0x360] sm:$0xff]
        %v458 = vld [vmem:[%s312 + $0x368] sm:$0xff]
        %v459 = vld [vmem:[%s312 + $0x370] sm:$0xff]
        %v460 = vld [vmem:[%s312 + $0x378] sm:$0xff]
        %v461 = vld [vmem:[%s312 + $0x380] sm:$0xff]
        %v462 = vld [vmem:[%s312 + $0x388] sm:$0xff]
        %v463 = vld [vmem:[%s312 + $0x390] sm:$0xff]
        %v464 = vld [vmem:[%s312 + $0x398] sm:$0xff]
        %v465 = vld [vmem:[%s312 + $0x3a0] sm:$0xff]
        %v466 = vld [vmem:[%s312 + $0x3a8] sm:$0xff]
        %v467 = vld [vmem:[%s312 + $0x3b0] sm:$0xff]
        %v468 = vld [vmem:[%s312 + $0x3b8] sm:$0xff]
        %v469 = vld [vmem:[%s312 + $0x3c0] sm:$0xff]
        %v470 = vld [vmem:[%s312 + $0x3c8] sm:$0xff]
        %v471 = vld [vmem:[%s312 + $0x3d0] sm:$0xff]
        %v472 = vld [vmem:[%s312 + $0x3d8] sm:$0xff]
        %v473 = vld [vmem:[%s312 + $0x3e0] sm:$0xff]
        %v474 = vld [vmem:[%s312 + $0x3e8] sm:$0xff]
        %v475 = vld [vmem:[%s312 + $0x3f0] sm:$0xff]
        %v476 = vld [vmem:[%s312 + $0x3f8] sm:$0xff]
        %v477 = vld [vmem:[%s312 + $0x400] sm:$0xff]
        %v478 = vld [vmem:[%s312 + $0x408] sm:$0xff]
        %v479 = vld [vmem:[%s312 + $0x410] sm:$0xff]
        %v480 = vld [vmem:[%s312 + $0x418] sm:$0xff]
        %v481 = vld [vmem:[%s312 + $0x420] sm:$0xff]
        %v482 = vld [vmem:[%s312 + $0x428] sm:$0xff]
        %v483 = vld [vmem:[%s312 + $0x430] sm:$0xff]
        %v484 = vld [vmem:[%s312 + $0x438] sm:$0xff]
        %v485 = vld [vmem:[%s312 + $0x440] sm:$0xff]
        %v486 = vld [vmem:[%s312 + $0x448] sm:$0xff]
        %v487 = vld [vmem:[%s312 + $0x450] sm:$0xff]
        %v488 = vld [vmem:[%s312 + $0x458] sm:$0xff]
        %v489 = vld [vmem:[%s312 + $0x460] sm:$0xff]
        %v490 = vld [vmem:[%s312 + $0x468] sm:$0xff]
        %v491 = vld [vmem:[%s312 + $0x470] sm:$0xff]
        %v492 = vld [vmem:[%s312 + $0x478] sm:$0xff]
        %v493 = vld [vmem:[%s312 + $0x480] sm:$0xff]
        %v494 = vld [vmem:[%s312 + $0x488] sm:$0xff]
        %v495 = vld [vmem:[%s312 + $0x490] sm:$0xff]
        %v496 = vld [vmem:[%s312 + $0x498] sm:$0xff]
        %v497 = vld [vmem:[%s312 + $0x4a0] sm:$0xff]
        %v498 = vld [vmem:[%s312 + $0x4a8] sm:$0xff]
        %v499 = vld [vmem:[%s312 + $0x4b0] sm:$0xff]
        %v500 = vld [vmem:[%s312 + $0x4b8] sm:$0xff]
        %v501 = vld [vmem:[%s312 + $0x4c0] sm:$0xff]
        %v502 = vld [vmem:[%s312 + $0x4c8] sm:$0xff]
        %v503 = vld [vmem:[%s312 + $0x4d0] sm:$0xff]
        %v504 = vld [vmem:[%s312 + $0x4d8] sm:$0xff]
        %v505 = vld [vmem:[%s312 + $0x4e0] sm:$0xff]
        %v506 = vld [vmem:[%s312 + $0x4e8] sm:$0xff]
        %v507 = vld [vmem:[%s312 + $0x4f0] sm:$0xff]
        %v508 = vld [vmem:[%s312 + $0x4f8] sm:$0xff]
        %v509 = vld [vmem:[%s312 + $0x500] sm:$0xff]
        %v510 = vld [vmem:[%s312 + $0x508] sm:$0xff]
        %v511 = vld [vmem:[%s312 + $0x510] sm:$0xff]
        %v512 = vld [vmem:[%s312 + $0x518] sm:$0xff]
        %v513 = vld [vmem:[%s312 + $0x520] sm:$0xff]
        %v514 = vld [vmem:[%s312 + $0x528] sm:$0xff]
        %v515 = vld [vmem:[%s312 + $0x530] sm:$0xff]
        %v516 = vld [vmem:[%s312 + $0x538] sm:$0xff]
        %v517 = vld [vmem:[%s312 + $0x540] sm:$0xff]
        %v518 = vld [vmem:[%s312 + $0x548] sm:$0xff]
        %v519 = vld [vmem:[%s312 + $0x550] sm:$0xff]
        %v520 = vld [vmem:[%s312 + $0x558] sm:$0xff]
        %v521 = vld [vmem:[%s312 + $0x560] sm:$0xff]
        %v522 = vld [vmem:[%s312 + $0x568] sm:$0xff]
        %v523 = vld [vmem:[%s312 + $0x570] sm:$0xff]
        %v524 = vld [vmem:[%s312 + $0x578] sm:$0xff]
        %v525 = vld [vmem:[%s312 + $0x580] sm:$0xff]
        %v526 = vld [vmem:[%s312 + $0x588] sm:$0xff]
        %v527 = vld [vmem:[%s312 + $0x590] sm:$0xff]
        %v528 = vld [vmem:[%s312 + $0x598] sm:$0xff]
        %v529 = vld [vmem:[%s312 + $0x5a0] sm:$0xff]
        %v530 = vld [vmem:[%s312 + $0x5a8] sm:$0xff]
        %v531 = vld [vmem:[%s312 + $0x5b0] sm:$0xff]
        %v532 = vld [vmem:[%s312 + $0x5b8] sm:$0xff]
        %v533 = vld [vmem:[%s312 + $0x5c0] sm:$0xff]
        %v534 = vld [vmem:[%s312 + $0x5c8] sm:$0xff]
        %v535 = vld [vmem:[%s312 + $0x5d0] sm:$0xff]
        %v536 = vld [vmem:[%s312 + $0x5d8] sm:$0xff]
        %v537 = vld [vmem:[%s312 + $0x5e0] sm:$0xff]
        %v538 = vld [vmem:[%s312 + $0x5e8] sm:$0xff]
        %v539 = vld [vmem:[%s312 + $0x5f0] sm:$0xff]
        %v540 = vld [vmem:[%s312 + $0x5f8] sm:$0xff]
        %v541 = vld [vmem:[%s312 + $0x600] sm:$0xff]
        %v542 = vld [vmem:[%s312 + $0x608] sm:$0xff]
        %v543 = vld [vmem:[%s312 + $0x610] sm:$0xff]
        %v544 = vld [vmem:[%s312 + $0x618] sm:$0xff]
        %v545 = vld [vmem:[%s312 + $0x620] sm:$0xff]
        %v546 = vld [vmem:[%s312 + $0x628] sm:$0xff]
        %v547 = vld [vmem:[%s312 + $0x630] sm:$0xff]
        %v548 = vld [vmem:[%s312 + $0x638] sm:$0xff]
        %v549 = vld [vmem:[%s312 + $0x640] sm:$0xff]
        %v550 = vld [vmem:[%s312 + $0x648] sm:$0xff]
        %v551 = vld [vmem:[%s312 + $0x650] sm:$0xff]
        %v552 = vld [vmem:[%s312 + $0x658] sm:$0xff]
        %v553 = vld [vmem:[%s312 + $0x660] sm:$0xff]
        %v554 = vld [vmem:[%s312 + $0x668] sm:$0xff]
        %v555 = vld [vmem:[%s312 + $0x670] sm:$0xff]
        %v556 = vld [vmem:[%s312 + $0x678] sm:$0xff]
        %v557 = vld [vmem:[%s312 + $0x680] sm:$0xff]
        %v558 = vld [vmem:[%s312 + $0x688] sm:$0xff]
        %v559 = vld [vmem:[%s312 + $0x690] sm:$0xff]
        %v560 = vld [vmem:[%s312 + $0x698] sm:$0xff]
        %v561 = vld [vmem:[%s312 + $0x6a0] sm:$0xff]
        %v562 = vld [vmem:[%s312 + $0x6a8] sm:$0xff]
        %v563 = vld [vmem:[%s312 + $0x6b0] sm:$0xff]
        %v564 = vld [vmem:[%s312 + $0x6b8] sm:$0xff]
        %v565 = vld [vmem:[%s312 + $0x6c0] sm:$0xff]
        %v566 = vld [vmem:[%s312 + $0x6c8] sm:$0xff]
        %v567 = vld [vmem:[%s312 + $0x6d0] sm:$0xff]
        %v568 = vld [vmem:[%s312 + $0x6d8] sm:$0xff]
        %v569 = vld [vmem:[%s312 + $0x6e0] sm:$0xff]
        %v570 = vld [vmem:[%s312 + $0x6e8] sm:$0xff]
        %v571 = vld [vmem:[%s312 + $0x6f0] sm:$0xff]
        %v572 = vld [vmem:[%s312 + $0x6f8] sm:$0xff]
        %v573 = vld [vmem:[%s312 + $0x700] sm:$0xff]
        %v574 = vld [vmem:[%s312 + $0x708] sm:$0xff]
        %v575 = vld [vmem:[%s312 + $0x710] sm:$0xff]
        %v576 = vld [vmem:[%s312 + $0x718] sm:$0xff]
        %v577 = vld [vmem:[%s312 + $0x720] sm:$0xff]
        %v578 = vld [vmem:[%s312 + $0x728] sm:$0xff]
        %v579 = vld [vmem:[%s312 + $0x730] sm:$0xff]
        %v580 = vld [vmem:[%s312 + $0x738] sm:$0xff]
        %v581 = vld [vmem:[%s312 + $0x740] sm:$0xff]
        %v582 = vld [vmem:[%s312 + $0x748] sm:$0xff]
        %v583 = vld [vmem:[%s312 + $0x750] sm:$0xff]
        %v584 = vld [vmem:[%s312 + $0x758] sm:$0xff]
        %v585 = vld [vmem:[%s312 + $0x760] sm:$0xff]
        %v586 = vld [vmem:[%s312 + $0x768] sm:$0xff]
        %v587 = vld [vmem:[%s312 + $0x770] sm:$0xff]
        %v588 = vld [vmem:[%s312 + $0x778] sm:$0xff]
        %v589 = vld [vmem:[%s312 + $0x780] sm:$0xff]
        %v590 = vld [vmem:[%s312 + $0x788] sm:$0xff]
        %v591 = vld [vmem:[%s312 + $0x790] sm:$0xff]
        %v592 = vld [vmem:[%s312 + $0x798] sm:$0xff]
        %v593 = vld [vmem:[%s312 + $0x7a0] sm:$0xff]
        %v594 = vld [vmem:[%s312 + $0x7a8] sm:$0xff]
        %v595 = vld [vmem:[%s312 + $0x7b0] sm:$0xff]
        %v596 = vld [vmem:[%s312 + $0x7b8] sm:$0xff]
        %v597 = vld [vmem:[%s312 + $0x7c0] sm:$0xff]
        %v598 = vld [vmem:[%s312 + $0x7c8] sm:$0xff]
        %v599 = vld [vmem:[%s312 + $0x7d0] sm:$0xff]
        %v600 = vld [vmem:[%s312 + $0x7d8] sm:$0xff]
        %v601 = vld [vmem:[%s312 + $0x7e0] sm:$0xff]
        %v602 = vld [vmem:[%s312 + $0x7e8] sm:$0xff]
        %v603 = vld [vmem:[%s312 + $0x7f0] sm:$0xff]
        %v604 = vld [vmem:[%s312 + $0x7f8] sm:$0xff]
        %v621 = vunpack.c.l.b16 %v333
        %v622 = vunpack.c.h.b16 %v333
        %v623 = vunpack.c.l.b16 %v334
        %v624 = vunpack.c.h.b16 %v334
        %v625 = vunpack.c.l.b16 %v335
        %v626 = vunpack.c.h.b16 %v335
        %v627 = vunpack.c.l.b16 %v336
        %v628 = vunpack.c.h.b16 %v336
        %v629 = vunpack.c.l.b16 %v337
        %v630 = vunpack.c.h.b16 %v337
        %v631 = vunpack.c.l.b16 %v338
        %v632 = vunpack.c.h.b16 %v338
        %v633 = vunpack.c.l.b16 %v339
        %v634 = vunpack.c.h.b16 %v339
        %v635 = vunpack.c.l.b16 %v340
        %v636 = vunpack.c.h.b16 %v340
        %v637 = vunpack.c.l.b16 %v341
        %v638 = vunpack.c.h.b16 %v341
        %v639 = vunpack.c.l.b16 %v342
        %v640 = vunpack.c.h.b16 %v342
        %v641 = vunpack.c.l.b16 %v343
        %v642 = vunpack.c.h.b16 %v343
        %v643 = vunpack.c.l.b16 %v344
        %v644 = vunpack.c.h.b16 %v344
        %v645 = vunpack.c.l.b16 %v345
        %v646 = vunpack.c.h.b16 %v345
        %v647 = vunpack.c.l.b16 %v346
        %v648 = vunpack.c.h.b16 %v346
        %v649 = vunpack.c.l.b16 %v347
        %v650 = vunpack.c.h.b16 %v347
        %v651 = vunpack.c.l.b16 %v348
        %v652 = vunpack.c.h.b16 %v348
        %v653 = vpack.c.b16 %v637, %v621
        %v654 = vpack.c.b16 %v638, %v622
        %v655 = vpack.c.b16 %v639, %v623
        %v656 = vpack.c.b16 %v640, %v624
        %v657 = vpack.c.b16 %v641, %v625
        %v658 = vpack.c.b16 %v642, %v626
        %v659 = vpack.c.b16 %v643, %v627
        %v660 = vpack.c.b16 %v644, %v628
        %v661 = vpack.c.b16 %v645, %v629
        %v662 = vpack.c.b16 %v646, %v630
        %v663 = vpack.c.b16 %v647, %v631
        %v664 = vpack.c.b16 %v648, %v632
        %v665 = vpack.c.b16 %v649, %v633
        %v666 = vpack.c.b16 %v650, %v634
        %v667 = vpack.c.b16 %v651, %v635
        %v668 = vpack.c.b16 %v652, %v636
        %v941 = vunpack.c.l.b16 %v349
        %v942 = vunpack.c.h.b16 %v349
        %v943 = vunpack.c.l.b16 %v350
        %v944 = vunpack.c.h.b16 %v350
        %v945 = vunpack.c.l.b16 %v351
        %v946 = vunpack.c.h.b16 %v351
        %v947 = vunpack.c.l.b16 %v352
        %v948 = vunpack.c.h.b16 %v352
        %v949 = vunpack.c.l.b16 %v353
        %v950 = vunpack.c.h.b16 %v353
        %v951 = vunpack.c.l.b16 %v354
        %v952 = vunpack.c.h.b16 %v354
        %v953 = vunpack.c.l.b16 %v355
        %v954 = vunpack.c.h.b16 %v355
        %v955 = vunpack.c.l.b16 %v356
        %v956 = vunpack.c.h.b16 %v356
        %v957 = vunpack.c.l.b16 %v357
        %v958 = vunpack.c.h.b16 %v357
        %v959 = vunpack.c.l.b16 %v358
        %v960 = vunpack.c.h.b16 %v358
        %v961 = vunpack.c.l.b16 %v359
        %v962 = vunpack.c.h.b16 %v359
        %v963 = vunpack.c.l.b16 %v360
        %v964 = vunpack.c.h.b16 %v360
        %v965 = vunpack.c.l.b16 %v361
        %v966 = vunpack.c.h.b16 %v361
        %v967 = vunpack.c.l.b16 %v362
        %v968 = vunpack.c.h.b16 %v362
        %v969 = vunpack.c.l.b16 %v363
        %v970 = vunpack.c.h.b16 %v363
        %v971 = vunpack.c.l.b16 %v364
        %v972 = vunpack.c.h.b16 %v364
        %v973 = vunpack.c.l.b16 %v365
        %v974 = vunpack.c.h.b16 %v365
        %v975 = vunpack.c.l.b16 %v366
        %v976 = vunpack.c.h.b16 %v366
        %v977 = vunpack.c.l.b16 %v367
        %v978 = vunpack.c.h.b16 %v367
        %v979 = vunpack.c.l.b16 %v368
        %v980 = vunpack.c.h.b16 %v368
        %v981 = vunpack.c.l.b16 %v369
        %v982 = vunpack.c.h.b16 %v369
        %v983 = vunpack.c.l.b16 %v370
        %v984 = vunpack.c.h.b16 %v370
        %v985 = vunpack.c.l.b16 %v371
        %v986 = vunpack.c.h.b16 %v371
        %v987 = vunpack.c.l.b16 %v372
        %v988 = vunpack.c.h.b16 %v372
        %v989 = vunpack.c.l.b16 %v373
        %v990 = vunpack.c.h.b16 %v373
        %v991 = vunpack.c.l.b16 %v374
        %v992 = vunpack.c.h.b16 %v374
        %v993 = vunpack.c.l.b16 %v375
        %v994 = vunpack.c.h.b16 %v375
        %v995 = vunpack.c.l.b16 %v376
        %v996 = vunpack.c.h.b16 %v376
        %v997 = vunpack.c.l.b16 %v377
        %v998 = vunpack.c.h.b16 %v377
        %v999 = vunpack.c.l.b16 %v378
        %v1000 = vunpack.c.h.b16 %v378
        %v1001 = vunpack.c.l.b16 %v379
        %v1002 = vunpack.c.h.b16 %v379
        %v1003 = vunpack.c.l.b16 %v380
        %v1004 = vunpack.c.h.b16 %v380
        %v1005 = vunpack.c.l.b16 %v381
        %v1006 = vunpack.c.h.b16 %v381
        %v1007 = vunpack.c.l.b16 %v382
        %v1008 = vunpack.c.h.b16 %v382
        %v1009 = vunpack.c.l.b16 %v383
        %v1010 = vunpack.c.h.b16 %v383
        %v1011 = vunpack.c.l.b16 %v384
        %v1012 = vunpack.c.h.b16 %v384
        %v1013 = vunpack.c.l.b16 %v385
        %v1014 = vunpack.c.h.b16 %v385
        %v1015 = vunpack.c.l.b16 %v386
        %v1016 = vunpack.c.h.b16 %v386
        %v1017 = vunpack.c.l.b16 %v387
        %v1018 = vunpack.c.h.b16 %v387
        %v1019 = vunpack.c.l.b16 %v388
        %v1020 = vunpack.c.h.b16 %v388
        %v1021 = vunpack.c.l.b16 %v389
        %v1022 = vunpack.c.h.b16 %v389
        %v1023 = vunpack.c.l.b16 %v390
        %v1024 = vunpack.c.h.b16 %v390
        %v1025 = vunpack.c.l.b16 %v391
        %v1026 = vunpack.c.h.b16 %v391
        %v1027 = vunpack.c.l.b16 %v392
        %v1028 = vunpack.c.h.b16 %v392
        %v1029 = vunpack.c.l.b16 %v393
        %v1030 = vunpack.c.h.b16 %v393
        %v1031 = vunpack.c.l.b16 %v394
        %v1032 = vunpack.c.h.b16 %v394
        %v1033 = vunpack.c.l.b16 %v395
        %v1034 = vunpack.c.h.b16 %v395
        %v1035 = vunpack.c.l.b16 %v396
        %v1036 = vunpack.c.h.b16 %v396
        %v1037 = vunpack.c.l.b16 %v397
        %v1038 = vunpack.c.h.b16 %v397
        %v1039 = vunpack.c.l.b16 %v398
        %v1040 = vunpack.c.h.b16 %v398
        %v1041 = vunpack.c.l.b16 %v399
        %v1042 = vunpack.c.h.b16 %v399
        %v1043 = vunpack.c.l.b16 %v400
        %v1044 = vunpack.c.h.b16 %v400
        %v1045 = vunpack.c.l.b16 %v401
        %v1046 = vunpack.c.h.b16 %v401
        %v1047 = vunpack.c.l.b16 %v402
        %v1048 = vunpack.c.h.b16 %v402
        %v1049 = vunpack.c.l.b16 %v403
        %v1050 = vunpack.c.h.b16 %v403
        %v1051 = vunpack.c.l.b16 %v404
        %v1052 = vunpack.c.h.b16 %v404
        %v1053 = vunpack.c.l.b16 %v405
        %v1054 = vunpack.c.h.b16 %v405
        %v1055 = vunpack.c.l.b16 %v406
        %v1056 = vunpack.c.h.b16 %v406
        %v1057 = vunpack.c.l.b16 %v407
        %v1058 = vunpack.c.h.b16 %v407
        %v1059 = vunpack.c.l.b16 %v408
        %v1060 = vunpack.c.h.b16 %v408
        %v1061 = vunpack.c.l.b16 %v409
        %v1062 = vunpack.c.h.b16 %v409
        %v1063 = vunpack.c.l.b16 %v410
        %v1064 = vunpack.c.h.b16 %v410
        %v1065 = vunpack.c.l.b16 %v411
        %v1066 = vunpack.c.h.b16 %v411
        %v1067 = vunpack.c.l.b16 %v412
        %v1068 = vunpack.c.h.b16 %v412
        %v1069 = vunpack.c.l.b16 %v413
        %v1070 = vunpack.c.h.b16 %v413
        %v1071 = vunpack.c.l.b16 %v414
        %v1072 = vunpack.c.h.b16 %v414
        %v1073 = vunpack.c.l.b16 %v415
        %v1074 = vunpack.c.h.b16 %v415
        %v1075 = vunpack.c.l.b16 %v416
        %v1076 = vunpack.c.h.b16 %v416
        %v1077 = vunpack.c.l.b16 %v417
        %v1078 = vunpack.c.h.b16 %v417
        %v1079 = vunpack.c.l.b16 %v418
        %v1080 = vunpack.c.h.b16 %v418
        %v1081 = vunpack.c.l.b16 %v419
        %v1082 = vunpack.c.h.b16 %v419
        %v1083 = vunpack.c.l.b16 %v420
        %v1084 = vunpack.c.h.b16 %v420
        %v1085 = vunpack.c.l.b16 %v421
        %v1086 = vunpack.c.h.b16 %v421
        %v1087 = vunpack.c.l.b16 %v422
        %v1088 = vunpack.c.h.b16 %v422
        %v1089 = vunpack.c.l.b16 %v423
        %v1090 = vunpack.c.h.b16 %v423
        %v1091 = vunpack.c.l.b16 %v424
        %v1092 = vunpack.c.h.b16 %v424
        %v1093 = vunpack.c.l.b16 %v425
        %v1094 = vunpack.c.h.b16 %v425
        %v1095 = vunpack.c.l.b16 %v426
        %v1096 = vunpack.c.h.b16 %v426
        %v1097 = vunpack.c.l.b16 %v427
        %v1098 = vunpack.c.h.b16 %v427
        %v1099 = vunpack.c.l.b16 %v428
        %v1100 = vunpack.c.h.b16 %v428
        %v1101 = vunpack.c.l.b16 %v429
        %v1102 = vunpack.c.h.b16 %v429
        %v1103 = vunpack.c.l.b16 %v430
        %v1104 = vunpack.c.h.b16 %v430
        %v1105 = vunpack.c.l.b16 %v431
        %v1106 = vunpack.c.h.b16 %v431
        %v1107 = vunpack.c.l.b16 %v432
        %v1108 = vunpack.c.h.b16 %v432
        %v1109 = vunpack.c.l.b16 %v433
        %v1110 = vunpack.c.h.b16 %v433
        %v1111 = vunpack.c.l.b16 %v434
        %v1112 = vunpack.c.h.b16 %v434
        %v1113 = vunpack.c.l.b16 %v435
        %v1114 = vunpack.c.h.b16 %v435
        %v1115 = vunpack.c.l.b16 %v436
        %v1116 = vunpack.c.h.b16 %v436
        %v1117 = vunpack.c.l.b16 %v437
        %v1118 = vunpack.c.h.b16 %v437
        %v1119 = vunpack.c.l.b16 %v438
        %v1120 = vunpack.c.h.b16 %v438
        %v1121 = vunpack.c.l.b16 %v439
        %v1122 = vunpack.c.h.b16 %v439
        %v1123 = vunpack.c.l.b16 %v440
        %v1124 = vunpack.c.h.b16 %v440
        %v1125 = vunpack.c.l.b16 %v441
        %v1126 = vunpack.c.h.b16 %v441
        %v1127 = vunpack.c.l.b16 %v442
        %v1128 = vunpack.c.h.b16 %v442
        %v1129 = vunpack.c.l.b16 %v443
        %v1130 = vunpack.c.h.b16 %v443
        %v1131 = vunpack.c.l.b16 %v444
        %v1132 = vunpack.c.h.b16 %v444
        %v1133 = vunpack.c.l.b16 %v445
        %v1134 = vunpack.c.h.b16 %v445
        %v1135 = vunpack.c.l.b16 %v446
        %v1136 = vunpack.c.h.b16 %v446
        %v1137 = vunpack.c.l.b16 %v447
        %v1138 = vunpack.c.h.b16 %v447
        %v1139 = vunpack.c.l.b16 %v448
        %v1140 = vunpack.c.h.b16 %v448
        %v1141 = vunpack.c.l.b16 %v449
        %v1142 = vunpack.c.h.b16 %v449
        %v1143 = vunpack.c.l.b16 %v450
        %v1144 = vunpack.c.h.b16 %v450
        %v1145 = vunpack.c.l.b16 %v451
        %v1146 = vunpack.c.h.b16 %v451
        %v1147 = vunpack.c.l.b16 %v452
        %v1148 = vunpack.c.h.b16 %v452
        %v1149 = vunpack.c.l.b16 %v453
        %v1150 = vunpack.c.h.b16 %v453
        %v1151 = vunpack.c.l.b16 %v454
        %v1152 = vunpack.c.h.b16 %v454
        %v1153 = vunpack.c.l.b16 %v455
        %v1154 = vunpack.c.h.b16 %v455
        %v1155 = vunpack.c.l.b16 %v456
        %v1156 = vunpack.c.h.b16 %v456
        %v1157 = vunpack.c.l.b16 %v457
        %v1158 = vunpack.c.h.b16 %v457
        %v1159 = vunpack.c.l.b16 %v458
        %v1160 = vunpack.c.h.b16 %v458
        %v1161 = vunpack.c.l.b16 %v459
        %v1162 = vunpack.c.h.b16 %v459
        %v1163 = vunpack.c.l.b16 %v460
        %v1164 = vunpack.c.h.b16 %v460
        %v1165 = vunpack.c.l.b16 %v461
        %v1166 = vunpack.c.h.b16 %v461
        %v1167 = vunpack.c.l.b16 %v462
        %v1168 = vunpack.c.h.b16 %v462
        %v1169 = vunpack.c.l.b16 %v463
        %v1170 = vunpack.c.h.b16 %v463
        %v1171 = vunpack.c.l.b16 %v464
        %v1172 = vunpack.c.h.b16 %v464
        %v1173 = vunpack.c.l.b16 %v465
        %v1174 = vunpack.c.h.b16 %v465
        %v1175 = vunpack.c.l.b16 %v466
        %v1176 = vunpack.c.h.b16 %v466
        %v1177 = vunpack.c.l.b16 %v467
        %v1178 = vunpack.c.h.b16 %v467
        %v1179 = vunpack.c.l.b16 %v468
        %v1180 = vunpack.c.h.b16 %v468
        %v1181 = vunpack.c.l.b16 %v469
        %v1182 = vunpack.c.h.b16 %v469
        %v1183 = vunpack.c.l.b16 %v470
        %v1184 = vunpack.c.h.b16 %v470
        %v1185 = vunpack.c.l.b16 %v471
        %v1186 = vunpack.c.h.b16 %v471
        %v1187 = vunpack.c.l.b16 %v472
        %v1188 = vunpack.c.h.b16 %v472
        %v1189 = vunpack.c.l.b16 %v473
        %v1190 = vunpack.c.h.b16 %v473
        %v1191 = vunpack.c.l.b16 %v474
        %v1192 = vunpack.c.h.b16 %v474
        %v1193 = vunpack.c.l.b16 %v475
        %v1194 = vunpack.c.h.b16 %v475
        %v1195 = vunpack.c.l.b16 %v476
        %v1196 = vunpack.c.h.b16 %v476
        %v1197 = vunpack.c.l.b16 %v477
        %v1198 = vunpack.c.h.b16 %v477
        %v1199 = vunpack.c.l.b16 %v478
        %v1200 = vunpack.c.h.b16 %v478
        %v1201 = vunpack.c.l.b16 %v479
        %v1202 = vunpack.c.h.b16 %v479
        %v1203 = vunpack.c.l.b16 %v480
        %v1204 = vunpack.c.h.b16 %v480
        %v1205 = vunpack.c.l.b16 %v481
        %v1206 = vunpack.c.h.b16 %v481
        %v1207 = vunpack.c.l.b16 %v482
        %v1208 = vunpack.c.h.b16 %v482
        %v1209 = vunpack.c.l.b16 %v483
        %v1210 = vunpack.c.h.b16 %v483
        %v1211 = vunpack.c.l.b16 %v484
        %v1212 = vunpack.c.h.b16 %v484
        %v1213 = vunpack.c.l.b16 %v485
        %v1214 = vunpack.c.h.b16 %v485
        %v1215 = vunpack.c.l.b16 %v486
        %v1216 = vunpack.c.h.b16 %v486
        %v1217 = vunpack.c.l.b16 %v487
        %v1218 = vunpack.c.h.b16 %v487
        %v1219 = vunpack.c.l.b16 %v488
        %v1220 = vunpack.c.h.b16 %v488
        %v1221 = vunpack.c.l.b16 %v489
        %v1222 = vunpack.c.h.b16 %v489
        %v1223 = vunpack.c.l.b16 %v490
        %v1224 = vunpack.c.h.b16 %v490
        %v1225 = vunpack.c.l.b16 %v491
        %v1226 = vunpack.c.h.b16 %v491
        %v1227 = vunpack.c.l.b16 %v492
        %v1228 = vunpack.c.h.b16 %v492
        %v1229 = vunpack.c.l.b16 %v493
        %v1230 = vunpack.c.h.b16 %v493
        %v1231 = vunpack.c.l.b16 %v494
        %v1232 = vunpack.c.h.b16 %v494
        %v1233 = vunpack.c.l.b16 %v495
        %v1234 = vunpack.c.h.b16 %v495
        %v1235 = vunpack.c.l.b16 %v496
        %v1236 = vunpack.c.h.b16 %v496
        %v1237 = vunpack.c.l.b16 %v497
        %v1238 = vunpack.c.h.b16 %v497
        %v1239 = vunpack.c.l.b16 %v498
        %v1240 = vunpack.c.h.b16 %v498
        %v1241 = vunpack.c.l.b16 %v499
        %v1242 = vunpack.c.h.b16 %v499
        %v1243 = vunpack.c.l.b16 %v500
        %v1244 = vunpack.c.h.b16 %v500
        %v1245 = vunpack.c.l.b16 %v501
        %v1246 = vunpack.c.h.b16 %v501
        %v1247 = vunpack.c.l.b16 %v502
        %v1248 = vunpack.c.h.b16 %v502
        %v1249 = vunpack.c.l.b16 %v503
        %v1250 = vunpack.c.h.b16 %v503
        %v1251 = vunpack.c.l.b16 %v504
        %v1252 = vunpack.c.h.b16 %v504
        %v1253 = vunpack.c.l.b16 %v505
        %v1254 = vunpack.c.h.b16 %v505
        %v1255 = vunpack.c.l.b16 %v506
        %v1256 = vunpack.c.h.b16 %v506
        %v1257 = vunpack.c.l.b16 %v507
        %v1258 = vunpack.c.h.b16 %v507
        %v1259 = vunpack.c.l.b16 %v508
        %v1260 = vunpack.c.h.b16 %v508
        %v1261 = vunpack.c.l.b16 %v509
        %v1262 = vunpack.c.h.b16 %v509
        %v1263 = vunpack.c.l.b16 %v510
        %v1264 = vunpack.c.h.b16 %v510
        %v1265 = vunpack.c.l.b16 %v511
        %v1266 = vunpack.c.h.b16 %v511
        %v1267 = vunpack.c.l.b16 %v512
        %v1268 = vunpack.c.h.b16 %v512
        %v1269 = vunpack.c.l.b16 %v513
        %v1270 = vunpack.c.h.b16 %v513
        %v1271 = vunpack.c.l.b16 %v514
        %v1272 = vunpack.c.h.b16 %v514
        %v1273 = vunpack.c.l.b16 %v515
        %v1274 = vunpack.c.h.b16 %v515
        %v1275 = vunpack.c.l.b16 %v516
        %v1276 = vunpack.c.h.b16 %v516
        %v1277 = vunpack.c.l.b16 %v517
        %v1278 = vunpack.c.h.b16 %v517
        %v1279 = vunpack.c.l.b16 %v518
        %v1280 = vunpack.c.h.b16 %v518
        %v1281 = vunpack.c.l.b16 %v519
        %v1282 = vunpack.c.h.b16 %v519
        %v1283 = vunpack.c.l.b16 %v520
        %v1284 = vunpack.c.h.b16 %v520
        %v1285 = vunpack.c.l.b16 %v521
        %v1286 = vunpack.c.h.b16 %v521
        %v1287 = vunpack.c.l.b16 %v522
        %v1288 = vunpack.c.h.b16 %v522
        %v1289 = vunpack.c.l.b16 %v523
        %v1290 = vunpack.c.h.b16 %v523
        %v1291 = vunpack.c.l.b16 %v524
        %v1292 = vunpack.c.h.b16 %v524
        %v1293 = vunpack.c.l.b16 %v525
        %v1294 = vunpack.c.h.b16 %v525
        %v1295 = vunpack.c.l.b16 %v526
        %v1296 = vunpack.c.h.b16 %v526
        %v1297 = vunpack.c.l.b16 %v527
        %v1298 = vunpack.c.h.b16 %v527
        %v1299 = vunpack.c.l.b16 %v528
        %v1300 = vunpack.c.h.b16 %v528
        %v1301 = vunpack.c.l.b16 %v529
        %v1302 = vunpack.c.h.b16 %v529
        %v1303 = vunpack.c.l.b16 %v530
        %v1304 = vunpack.c.h.b16 %v530
        %v1305 = vunpack.c.l.b16 %v531
        %v1306 = vunpack.c.h.b16 %v531
        %v1307 = vunpack.c.l.b16 %v532
        %v1308 = vunpack.c.h.b16 %v532
        %v1309 = vunpack.c.l.b16 %v533
        %v1310 = vunpack.c.h.b16 %v533
        %v1311 = vunpack.c.l.b16 %v534
        %v1312 = vunpack.c.h.b16 %v534
        %v1313 = vunpack.c.l.b16 %v535
        %v1314 = vunpack.c.h.b16 %v535
        %v1315 = vunpack.c.l.b16 %v536
        %v1316 = vunpack.c.h.b16 %v536
        %v1317 = vunpack.c.l.b16 %v537
        %v1318 = vunpack.c.h.b16 %v537
        %v1319 = vunpack.c.l.b16 %v538
        %v1320 = vunpack.c.h.b16 %v538
        %v1321 = vunpack.c.l.b16 %v539
        %v1322 = vunpack.c.h.b16 %v539
        %v1323 = vunpack.c.l.b16 %v540
        %v1324 = vunpack.c.h.b16 %v540
        %v1325 = vunpack.c.l.b16 %v541
        %v1326 = vunpack.c.h.b16 %v541
        %v1327 = vunpack.c.l.b16 %v542
        %v1328 = vunpack.c.h.b16 %v542
        %v1329 = vunpack.c.l.b16 %v543
        %v1330 = vunpack.c.h.b16 %v543
        %v1331 = vunpack.c.l.b16 %v544
        %v1332 = vunpack.c.h.b16 %v544
        %v1333 = vunpack.c.l.b16 %v545
        %v1334 = vunpack.c.h.b16 %v545
        %v1335 = vunpack.c.l.b16 %v546
        %v1336 = vunpack.c.h.b16 %v546
        %v1337 = vunpack.c.l.b16 %v547
        %v1338 = vunpack.c.h.b16 %v547
        %v1339 = vunpack.c.l.b16 %v548
        %v1340 = vunpack.c.h.b16 %v548
        %v1341 = vunpack.c.l.b16 %v549
        %v1342 = vunpack.c.h.b16 %v549
        %v1343 = vunpack.c.l.b16 %v550
        %v1344 = vunpack.c.h.b16 %v550
        %v1345 = vunpack.c.l.b16 %v551
        %v1346 = vunpack.c.h.b16 %v551
        %v1347 = vunpack.c.l.b16 %v552
        %v1348 = vunpack.c.h.b16 %v552
        %v1349 = vunpack.c.l.b16 %v553
        %v1350 = vunpack.c.h.b16 %v553
        %v1351 = vunpack.c.l.b16 %v554
        %v1352 = vunpack.c.h.b16 %v554
        %v1353 = vunpack.c.l.b16 %v555
        %v1354 = vunpack.c.h.b16 %v555
        %v1355 = vunpack.c.l.b16 %v556
        %v1356 = vunpack.c.h.b16 %v556
        %v1357 = vunpack.c.l.b16 %v557
        %v1358 = vunpack.c.h.b16 %v557
        %v1359 = vunpack.c.l.b16 %v558
        %v1360 = vunpack.c.h.b16 %v558
        %v1361 = vunpack.c.l.b16 %v559
        %v1362 = vunpack.c.h.b16 %v559
        %v1363 = vunpack.c.l.b16 %v560
        %v1364 = vunpack.c.h.b16 %v560
        %v1365 = vunpack.c.l.b16 %v561
        %v1366 = vunpack.c.h.b16 %v561
        %v1367 = vunpack.c.l.b16 %v562
        %v1368 = vunpack.c.h.b16 %v562
        %v1369 = vunpack.c.l.b16 %v563
        %v1370 = vunpack.c.h.b16 %v563
        %v1371 = vunpack.c.l.b16 %v564
        %v1372 = vunpack.c.h.b16 %v564
        %v1373 = vunpack.c.l.b16 %v565
        %v1374 = vunpack.c.h.b16 %v565
        %v1375 = vunpack.c.l.b16 %v566
        %v1376 = vunpack.c.h.b16 %v566
        %v1377 = vunpack.c.l.b16 %v567
        %v1378 = vunpack.c.h.b16 %v567
        %v1379 = vunpack.c.l.b16 %v568
        %v1380 = vunpack.c.h.b16 %v568
        %v1381 = vunpack.c.l.b16 %v569
        %v1382 = vunpack.c.h.b16 %v569
        %v1383 = vunpack.c.l.b16 %v570
        %v1384 = vunpack.c.h.b16 %v570
        %v1385 = vunpack.c.l.b16 %v571
        %v1386 = vunpack.c.h.b16 %v571
        %v1387 = vunpack.c.l.b16 %v572
        %v1388 = vunpack.c.h.b16 %v572
        %v1389 = vunpack.c.l.b16 %v573
        %v1390 = vunpack.c.h.b16 %v573
        %v1391 = vunpack.c.l.b16 %v574
        %v1392 = vunpack.c.h.b16 %v574
        %v1393 = vunpack.c.l.b16 %v575
        %v1394 = vunpack.c.h.b16 %v575
        %v1395 = vunpack.c.l.b16 %v576
        %v1396 = vunpack.c.h.b16 %v576
        %v1397 = vunpack.c.l.b16 %v577
        %v1398 = vunpack.c.h.b16 %v577
        %v1399 = vunpack.c.l.b16 %v578
        %v1400 = vunpack.c.h.b16 %v578
        %v1401 = vunpack.c.l.b16 %v579
        %v1402 = vunpack.c.h.b16 %v579
        %v1403 = vunpack.c.l.b16 %v580
        %v1404 = vunpack.c.h.b16 %v580
        %v1405 = vunpack.c.l.b16 %v581
        %v1406 = vunpack.c.h.b16 %v581
        %v1407 = vunpack.c.l.b16 %v582
        %v1408 = vunpack.c.h.b16 %v582
        %v1409 = vunpack.c.l.b16 %v583
        %v1410 = vunpack.c.h.b16 %v583
        %v1411 = vunpack.c.l.b16 %v584
        %v1412 = vunpack.c.h.b16 %v584
        %v1413 = vunpack.c.l.b16 %v585
        %v1414 = vunpack.c.h.b16 %v585
        %v1415 = vunpack.c.l.b16 %v586
        %v1416 = vunpack.c.h.b16 %v586
        %v1417 = vunpack.c.l.b16 %v587
        %v1418 = vunpack.c.h.b16 %v587
        %v1419 = vunpack.c.l.b16 %v588
        %v1420 = vunpack.c.h.b16 %v588
        %v1421 = vunpack.c.l.b16 %v589
        %v1422 = vunpack.c.h.b16 %v589
        %v1423 = vunpack.c.l.b16 %v590
        %v1424 = vunpack.c.h.b16 %v590
        %v1425 = vunpack.c.l.b16 %v591
        %v1426 = vunpack.c.h.b16 %v591
        %v1427 = vunpack.c.l.b16 %v592
        %v1428 = vunpack.c.h.b16 %v592
        %v1429 = vunpack.c.l.b16 %v593
        %v1430 = vunpack.c.h.b16 %v593
        %v1431 = vunpack.c.l.b16 %v594
        %v1432 = vunpack.c.h.b16 %v594
        %v1433 = vunpack.c.l.b16 %v595
        %v1434 = vunpack.c.h.b16 %v595
        %v1435 = vunpack.c.l.b16 %v596
        %v1436 = vunpack.c.h.b16 %v596
        %v1437 = vunpack.c.l.b16 %v597
        %v1438 = vunpack.c.h.b16 %v597
        %v1439 = vunpack.c.l.b16 %v598
        %v1440 = vunpack.c.h.b16 %v598
        %v1441 = vunpack.c.l.b16 %v599
        %v1442 = vunpack.c.h.b16 %v599
        %v1443 = vunpack.c.l.b16 %v600
        %v1444 = vunpack.c.h.b16 %v600
        %v1445 = vunpack.c.l.b16 %v601
        %v1446 = vunpack.c.h.b16 %v601
        %v1447 = vunpack.c.l.b16 %v602
        %v1448 = vunpack.c.h.b16 %v602
        %v1449 = vunpack.c.l.b16 %v603
        %v1450 = vunpack.c.h.b16 %v603
        %v1451 = vunpack.c.l.b16 %v604
        %v1452 = vunpack.c.h.b16 %v604
        %v1453 = vpack.c.b16 %v943, %v941
        %v1454 = vpack.c.b16 %v944, %v942
        %v1455 = vpack.c.b16 %v947, %v945
        %v1456 = vpack.c.b16 %v948, %v946
        %v1457 = vpack.c.b16 %v951, %v949
        %v1458 = vpack.c.b16 %v952, %v950
        %v1459 = vpack.c.b16 %v955, %v953
        %v1460 = vpack.c.b16 %v956, %v954
        %v1461 = vpack.c.b16 %v959, %v957
        %v1462 = vpack.c.b16 %v960, %v958
        %v1463 = vpack.c.b16 %v963, %v961
        %v1464 = vpack.c.b16 %v964, %v962
        %v1465 = vpack.c.b16 %v967, %v965
        %v1466 = vpack.c.b16 %v968, %v966
        %v1467 = vpack.c.b16 %v971, %v969
        %v1468 = vpack.c.b16 %v972, %v970
        %v1469 = vpack.c.b16 %v975, %v973
        %v1470 = vpack.c.b16 %v976, %v974
        %v1471 = vpack.c.b16 %v979, %v977
        %v1472 = vpack.c.b16 %v980, %v978
        %v1473 = vpack.c.b16 %v983, %v981
        %v1474 = vpack.c.b16 %v984, %v982
        %v1475 = vpack.c.b16 %v987, %v985
        %v1476 = vpack.c.b16 %v988, %v986
        %v1477 = vpack.c.b16 %v991, %v989
        %v1478 = vpack.c.b16 %v992, %v990
        %v1479 = vpack.c.b16 %v995, %v993
        %v1480 = vpack.c.b16 %v996, %v994
        %v1481 = vpack.c.b16 %v999, %v997
        %v1482 = vpack.c.b16 %v1000, %v998
        %v1483 = vpack.c.b16 %v1003, %v1001
        %v1484 = vpack.c.b16 %v1004, %v1002
        %v1485 = vpack.c.b16 %v1007, %v1005
        %v1486 = vpack.c.b16 %v1008, %v1006
        %v1487 = vpack.c.b16 %v1011, %v1009
        %v1488 = vpack.c.b16 %v1012, %v1010
        %v1489 = vpack.c.b16 %v1015, %v1013
        %v1490 = vpack.c.b16 %v1016, %v1014
        %v1491 = vpack.c.b16 %v1019, %v1017
        %v1492 = vpack.c.b16 %v1020, %v1018
        %v1493 = vpack.c.b16 %v1023, %v1021
        %v1494 = vpack.c.b16 %v1024, %v1022
        %v1495 = vpack.c.b16 %v1027, %v1025
        %v1496 = vpack.c.b16 %v1028, %v1026
        %v1497 = vpack.c.b16 %v1031, %v1029
        %v1498 = vpack.c.b16 %v1032, %v1030
        %v1499 = vpack.c.b16 %v1035, %v1033
        %v1500 = vpack.c.b16 %v1036, %v1034
        %v1501 = vpack.c.b16 %v1039, %v1037
        %v1502 = vpack.c.b16 %v1040, %v1038
        %v1503 = vpack.c.b16 %v1043, %v1041
        %v1504 = vpack.c.b16 %v1044, %v1042
        %v1505 = vpack.c.b16 %v1047, %v1045
        %v1506 = vpack.c.b16 %v1048, %v1046
        %v1507 = vpack.c.b16 %v1051, %v1049
        %v1508 = vpack.c.b16 %v1052, %v1050
        %v1509 = vpack.c.b16 %v1055, %v1053
        %v1510 = vpack.c.b16 %v1056, %v1054
        %v1511 = vpack.c.b16 %v1059, %v1057
        %v1512 = vpack.c.b16 %v1060, %v1058
        %v1513 = vpack.c.b16 %v1063, %v1061
        %v1514 = vpack.c.b16 %v1064, %v1062
        %v1515 = vpack.c.b16 %v1067, %v1065
        %v1516 = vpack.c.b16 %v1068, %v1066
        %v1517 = vpack.c.b16 %v1071, %v1069
        %v1518 = vpack.c.b16 %v1072, %v1070
        %v1519 = vpack.c.b16 %v1075, %v1073
        %v1520 = vpack.c.b16 %v1076, %v1074
        %v1521 = vpack.c.b16 %v1079, %v1077
        %v1522 = vpack.c.b16 %v1080, %v1078
        %v1523 = vpack.c.b16 %v1083, %v1081
        %v1524 = vpack.c.b16 %v1084, %v1082
        %v1525 = vpack.c.b16 %v1087, %v1085
        %v1526 = vpack.c.b16 %v1088, %v1086
        %v1527 = vpack.c.b16 %v1091, %v1089
        %v1528 = vpack.c.b16 %v1092, %v1090
        %v1529 = vpack.c.b16 %v1095, %v1093
        %v1530 = vpack.c.b16 %v1096, %v1094
        %v1531 = vpack.c.b16 %v1099, %v1097
        %v1532 = vpack.c.b16 %v1100, %v1098
        %v1533 = vpack.c.b16 %v1103, %v1101
        %v1534 = vpack.c.b16 %v1104, %v1102
        %v1535 = vpack.c.b16 %v1107, %v1105
        %v1536 = vpack.c.b16 %v1108, %v1106
        %v1537 = vpack.c.b16 %v1111, %v1109
        %v1538 = vpack.c.b16 %v1112, %v1110
        %v1539 = vpack.c.b16 %v1115, %v1113
        %v1540 = vpack.c.b16 %v1116, %v1114
        %v1541 = vpack.c.b16 %v1119, %v1117
        %v1542 = vpack.c.b16 %v1120, %v1118
        %v1543 = vpack.c.b16 %v1123, %v1121
        %v1544 = vpack.c.b16 %v1124, %v1122
        %v1545 = vpack.c.b16 %v1127, %v1125
        %v1546 = vpack.c.b16 %v1128, %v1126
        %v1547 = vpack.c.b16 %v1131, %v1129
        %v1548 = vpack.c.b16 %v1132, %v1130
        %v1549 = vpack.c.b16 %v1135, %v1133
        %v1550 = vpack.c.b16 %v1136, %v1134
        %v1551 = vpack.c.b16 %v1139, %v1137
        %v1552 = vpack.c.b16 %v1140, %v1138
        %v1553 = vpack.c.b16 %v1143, %v1141
        %v1554 = vpack.c.b16 %v1144, %v1142
        %v1555 = vpack.c.b16 %v1147, %v1145
        %v1556 = vpack.c.b16 %v1148, %v1146
        %v1557 = vpack.c.b16 %v1151, %v1149
        %v1558 = vpack.c.b16 %v1152, %v1150
        %v1559 = vpack.c.b16 %v1155, %v1153
        %v1560 = vpack.c.b16 %v1156, %v1154
        %v1561 = vpack.c.b16 %v1159, %v1157
        %v1562 = vpack.c.b16 %v1160, %v1158
        %v1563 = vpack.c.b16 %v1163, %v1161
        %v1564 = vpack.c.b16 %v1164, %v1162
        %v1565 = vpack.c.b16 %v1167, %v1165
        %v1566 = vpack.c.b16 %v1168, %v1166
        %v1567 = vpack.c.b16 %v1171, %v1169
        %v1568 = vpack.c.b16 %v1172, %v1170
        %v1569 = vpack.c.b16 %v1175, %v1173
        %v1570 = vpack.c.b16 %v1176, %v1174
        %v1571 = vpack.c.b16 %v1179, %v1177
        %v1572 = vpack.c.b16 %v1180, %v1178
        %v1573 = vpack.c.b16 %v1183, %v1181
        %v1574 = vpack.c.b16 %v1184, %v1182
        %v1575 = vpack.c.b16 %v1187, %v1185
        %v1576 = vpack.c.b16 %v1188, %v1186
        %v1577 = vpack.c.b16 %v1191, %v1189
        %v1578 = vpack.c.b16 %v1192, %v1190
        %v1579 = vpack.c.b16 %v1195, %v1193
        %v1580 = vpack.c.b16 %v1196, %v1194
        %v1581 = vpack.c.b16 %v1199, %v1197
        %v1582 = vpack.c.b16 %v1200, %v1198
        %v1583 = vpack.c.b16 %v1203, %v1201
        %v1584 = vpack.c.b16 %v1204, %v1202
        %v1585 = vpack.c.b16 %v1207, %v1205
        %v1586 = vpack.c.b16 %v1208, %v1206
        %v1587 = vpack.c.b16 %v1211, %v1209
        %v1588 = vpack.c.b16 %v1212, %v1210
        %v1589 = vpack.c.b16 %v1215, %v1213
        %v1590 = vpack.c.b16 %v1216, %v1214
        %v1591 = vpack.c.b16 %v1219, %v1217
        %v1592 = vpack.c.b16 %v1220, %v1218
        %v1593 = vpack.c.b16 %v1223, %v1221
        %v1594 = vpack.c.b16 %v1224, %v1222
        %v1595 = vpack.c.b16 %v1227, %v1225
        %v1596 = vpack.c.b16 %v1228, %v1226
        %v1597 = vpack.c.b16 %v1231, %v1229
        %v1598 = vpack.c.b16 %v1232, %v1230
        %v1599 = vpack.c.b16 %v1235, %v1233
        %v1600 = vpack.c.b16 %v1236, %v1234
        %v1601 = vpack.c.b16 %v1239, %v1237
        %v1602 = vpack.c.b16 %v1240, %v1238
        %v1603 = vpack.c.b16 %v1243, %v1241
        %v1604 = vpack.c.b16 %v1244, %v1242
        %v1605 = vpack.c.b16 %v1247, %v1245
        %v1606 = vpack.c.b16 %v1248, %v1246
        %v1607 = vpack.c.b16 %v1251, %v1249
        %v1608 = vpack.c.b16 %v1252, %v1250
        %v1609 = vpack.c.b16 %v1255, %v1253
        %v1610 = vpack.c.b16 %v1256, %v1254
        %v1611 = vpack.c.b16 %v1259, %v1257
        %v1612 = vpack.c.b16 %v1260, %v1258
        %v1613 = vpack.c.b16 %v1263, %v1261
        %v1614 = vpack.c.b16 %v1264, %v1262
        %v1615 = vpack.c.b16 %v1267, %v1265
        %v1616 = vpack.c.b16 %v1268, %v1266
        %v1617 = vpack.c.b16 %v1271, %v1269
        %v1618 = vpack.c.b16 %v1272, %v1270
        %v1619 = vpack.c.b16 %v1275, %v1273
        %v1620 = vpack.c.b16 %v1276, %v1274
        %v1621 = vpack.c.b16 %v1279, %v1277
        %v1622 = vpack.c.b16 %v1280, %v1278
        %v1623 = vpack.c.b16 %v1283, %v1281
        %v1624 = vpack.c.b16 %v1284, %v1282
        %v1625 = vpack.c.b16 %v1287, %v1285
        %v1626 = vpack.c.b16 %v1288, %v1286
        %v1627 = vpack.c.b16 %v1291, %v1289
        %v1628 = vpack.c.b16 %v1292, %v1290
        %v1629 = vpack.c.b16 %v1295, %v1293
        %v1630 = vpack.c.b16 %v1296, %v1294
        %v1631 = vpack.c.b16 %v1299, %v1297
        %v1632 = vpack.c.b16 %v1300, %v1298
        %v1633 = vpack.c.b16 %v1303, %v1301
        %v1634 = vpack.c.b16 %v1304, %v1302
        %v1635 = vpack.c.b16 %v1307, %v1305
        %v1636 = vpack.c.b16 %v1308, %v1306
        %v1637 = vpack.c.b16 %v1311, %v1309
        %v1638 = vpack.c.b16 %v1312, %v1310
        %v1639 = vpack.c.b16 %v1315, %v1313
        %v1640 = vpack.c.b16 %v1316, %v1314
        %v1641 = vpack.c.b16 %v1319, %v1317
        %v1642 = vpack.c.b16 %v1320, %v1318
        %v1643 = vpack.c.b16 %v1323, %v1321
        %v1644 = vpack.c.b16 %v1324, %v1322
        %v1645 = vpack.c.b16 %v1327, %v1325
        %v1646 = vpack.c.b16 %v1328, %v1326
        %v1647 = vpack.c.b16 %v1331, %v1329
        %v1648 = vpack.c.b16 %v1332, %v1330
        %v1649 = vpack.c.b16 %v1335, %v1333
        %v1650 = vpack.c.b16 %v1336, %v1334
        %v1651 = vpack.c.b16 %v1339, %v1337
        %v1652 = vpack.c.b16 %v1340, %v1338
        %v1653 = vpack.c.b16 %v1343, %v1341
        %v1654 = vpack.c.b16 %v1344, %v1342
        %v1655 = vpack.c.b16 %v1347, %v1345
        %v1656 = vpack.c.b16 %v1348, %v1346
        %v1657 = vpack.c.b16 %v1351, %v1349
        %v1658 = vpack.c.b16 %v1352, %v1350
        %v1659 = vpack.c.b16 %v1355, %v1353
        %v1660 = vpack.c.b16 %v1356, %v1354
        %v1661 = vpack.c.b16 %v1359, %v1357
        %v1662 = vpack.c.b16 %v1360, %v1358
        %v1663 = vpack.c.b16 %v1363, %v1361
        %v1664 = vpack.c.b16 %v1364, %v1362
        %v1665 = vpack.c.b16 %v1367, %v1365
        %v1666 = vpack.c.b16 %v1368, %v1366
        %v1667 = vpack.c.b16 %v1371, %v1369
        %v1668 = vpack.c.b16 %v1372, %v1370
        %v1669 = vpack.c.b16 %v1375, %v1373
        %v1670 = vpack.c.b16 %v1376, %v1374
        %v1671 = vpack.c.b16 %v1379, %v1377
        %v1672 = vpack.c.b16 %v1380, %v1378
        %v1673 = vpack.c.b16 %v1383, %v1381
        %v1674 = vpack.c.b16 %v1384, %v1382
        %v1675 = vpack.c.b16 %v1387, %v1385
        %v1676 = vpack.c.b16 %v1388, %v1386
        %v1677 = vpack.c.b16 %v1391, %v1389
        %v1678 = vpack.c.b16 %v1392, %v1390
        %v1679 = vpack.c.b16 %v1395, %v1393
        %v1680 = vpack.c.b16 %v1396, %v1394
        %v1681 = vpack.c.b16 %v1399, %v1397
        %v1682 = vpack.c.b16 %v1400, %v1398
        %v1683 = vpack.c.b16 %v1403, %v1401
        %v1684 = vpack.c.b16 %v1404, %v1402
        %v1685 = vpack.c.b16 %v1407, %v1405
        %v1686 = vpack.c.b16 %v1408, %v1406
        %v1687 = vpack.c.b16 %v1411, %v1409
        %v1688 = vpack.c.b16 %v1412, %v1410
        %v1689 = vpack.c.b16 %v1415, %v1413
        %v1690 = vpack.c.b16 %v1416, %v1414
        %v1691 = vpack.c.b16 %v1419, %v1417
        %v1692 = vpack.c.b16 %v1420, %v1418
        %v1693 = vpack.c.b16 %v1423, %v1421
        %v1694 = vpack.c.b16 %v1424, %v1422
        %v1695 = vpack.c.b16 %v1427, %v1425
        %v1696 = vpack.c.b16 %v1428, %v1426
        %v1697 = vpack.c.b16 %v1431, %v1429
        %v1698 = vpack.c.b16 %v1432, %v1430
        %v1699 = vpack.c.b16 %v1435, %v1433
        %v1700 = vpack.c.b16 %v1436, %v1434
        %v1701 = vpack.c.b16 %v1439, %v1437
        %v1702 = vpack.c.b16 %v1440, %v1438
        %v1703 = vpack.c.b16 %v1443, %v1441
        %v1704 = vpack.c.b16 %v1444, %v1442
        %v1705 = vpack.c.b16 %v1447, %v1445
        %v1706 = vpack.c.b16 %v1448, %v1446
        %v1707 = vpack.c.b16 %v1451, %v1449
        %v1708 = vpack.c.b16 %v1452, %v1450
        %1965 = vmatprep.subr.bf16.mxu0 %v1454
        %1966 = vmatpush1.bf16.msra.mxu0 %v1453
        %1967 = vmatprep.subr.bf16.mxu0 %v1456
        %1968 = vmatpush1.bf16.msra.mxu0 %v1455
        %1969 = vmatprep.subr.bf16.mxu0 %v1458
        %1970 = vmatpush1.bf16.msra.mxu0 %v1457
        %1971 = vmatprep.subr.bf16.mxu0 %v1460
        %1972 = vmatpush1.bf16.msra.mxu0 %v1459
        %1973 = vmatprep.subr.bf16.mxu0 %v1462
        %1974 = vmatpush1.bf16.msra.mxu0 %v1461
        %1975 = vmatprep.subr.bf16.mxu0 %v1464
        %1976 = vmatpush1.bf16.msra.mxu0 %v1463
        %1977 = vmatprep.subr.bf16.mxu0 %v1466
        %1978 = vmatpush1.bf16.msra.mxu0 %v1465
        %1979 = vmatprep.subr.bf16.mxu0 %v1468
        %1980 = vmatpush1.bf16.msra.mxu0 %v1467
        %1981 = vmatprep.subr.bf16.mxu0 %v1470
        %1982 = vmatpush1.bf16.msra.mxu0 %v1469
        %1983 = vmatprep.subr.bf16.mxu0 %v1472
        %1984 = vmatpush1.bf16.msra.mxu0 %v1471
        %1985 = vmatprep.subr.bf16.mxu0 %v1474
        %1986 = vmatpush1.bf16.msra.mxu0 %v1473
        %1987 = vmatprep.subr.bf16.mxu0 %v1476
        %1988 = vmatpush1.bf16.msra.mxu0 %v1475
        %1989 = vmatprep.subr.bf16.mxu0 %v1478
        %1990 = vmatpush1.bf16.msra.mxu0 %v1477
        %1991 = vmatprep.subr.bf16.mxu0 %v1480
        %1992 = vmatpush1.bf16.msra.mxu0 %v1479
        %1993 = vmatprep.subr.bf16.mxu0 %v1482
        %1994 = vmatpush1.bf16.msra.mxu0 %v1481
        %1995 = vmatprep.subr.bf16.mxu0 %v1484
        %1996 = vmatpush1.bf16.msra.mxu0 %v1483
        %1997 = vmatprep.mubr.bf16.mxu0 %v654
        %1998 = vmatmul.mubr.bf16.gmra.mrb[0].mxu0 %v653
        %v1999 = vpop.f32.mrb[0].mxu0
        %v2000 = vadd.f32 0.0, %v1999
        %v2001 = vpop.f32.mrb[0].mxu0
        %v2002 = vadd.f32 0.0, %v2001
        %v2003 = vpop.f32.mrb[0].mxu0
        %v2004 = vadd.f32 0.0, %v2003
        %v2005 = vpop.f32.mrb[0].mxu0
        %v2006 = vadd.f32 0.0, %v2005
        %2007 = vdwg.mxu0
        %2008 = vmatprep.subr.bf16.mxu0 %v1486
        %2009 = vmatpush1.bf16.msra.mxu0 %v1485
        %2010 = vmatprep.subr.bf16.mxu0 %v1488
        %2011 = vmatpush1.bf16.msra.mxu0 %v1487
        %2012 = vmatprep.subr.bf16.mxu0 %v1490
        %2013 = vmatpush1.bf16.msra.mxu0 %v1489
        %2014 = vmatprep.subr.bf16.mxu0 %v1492
        %2015 = vmatpush1.bf16.msra.mxu0 %v1491
        %2016 = vmatprep.subr.bf16.mxu0 %v1494
        %2017 = vmatpush1.bf16.msra.mxu0 %v1493
        %2018 = vmatprep.subr.bf16.mxu0 %v1496
        %2019 = vmatpush1.bf16.msra.mxu0 %v1495
        %2020 = vmatprep.subr.bf16.mxu0 %v1498
        %2021 = vmatpush1.bf16.msra.mxu0 %v1497
        %2022 = vmatprep.subr.bf16.mxu0 %v1500
        %2023 = vmatpush1.bf16.msra.mxu0 %v1499
        %2024 = vmatprep.subr.bf16.mxu0 %v1502
        %2025 = vmatpush1.bf16.msra.mxu0 %v1501
        %2026 = vmatprep.subr.bf16.mxu0 %v1504
        %2027 = vmatpush1.bf16.msra.mxu0 %v1503
        %2028 = vmatprep.subr.bf16.mxu0 %v1506
        %2029 = vmatpush1.bf16.msra.mxu0 %v1505
        %2030 = vmatprep.subr.bf16.mxu0 %v1508
        %2031 = vmatpush1.bf16.msra.mxu0 %v1507
        %2032 = vmatprep.subr.bf16.mxu0 %v1510
        %2033 = vmatpush1.bf16.msra.mxu0 %v1509
        %2034 = vmatprep.subr.bf16.mxu0 %v1512
        %2035 = vmatpush1.bf16.msra.mxu0 %v1511
        %2036 = vmatprep.subr.bf16.mxu0 %v1514
        %2037 = vmatpush1.bf16.msra.mxu0 %v1513
        %2038 = vmatprep.subr.bf16.mxu0 %v1516
        %2039 = vmatpush1.bf16.msra.mxu0 %v1515
        %2040 = vmatprep.mubr.bf16.mxu0 %v656
        %2041 = vmatmul.mubr.bf16.gmra.mrb[0].mxu0 %v655
        %v2042 = vpop.f32.mrb[0].mxu0
        %v2043 = vadd.f32 %v2000, %v2042
        %v2044 = vpop.f32.mrb[0].mxu0
        %v2045 = vadd.f32 %v2002, %v2044
        %v2046 = vpop.f32.mrb[0].mxu0
        %v2047 = vadd.f32 %v2004, %v2046
        %v2048 = vpop.f32.mrb[0].mxu0
        %v2049 = vadd.f32 %v2006, %v2048
        %2050 = vdwg.mxu0
        %2051 = vmatprep.subr.bf16.mxu0 %v1518
        %2052 = vmatpush1.bf16.msra.mxu0 %v1517
        %2053 = vmatprep.subr.bf16.mxu0 %v1520
        %2054 = vmatpush1.bf16.msra.mxu0 %v1519
        %2055 = vmatprep.subr.bf16.mxu0 %v1522
        %2056 = vmatpush1.bf16.msra.mxu0 %v1521
        %2057 = vmatprep.subr.bf16.mxu0 %v1524
        %2058 = vmatpush1.bf16.msra.mxu0 %v1523
        %2059 = vmatprep.subr.bf16.mxu0 %v1526
        %2060 = vmatpush1.bf16.msra.mxu0 %v1525
        %2061 = vmatprep.subr.bf16.mxu0 %v1528
        %2062 = vmatpush1.bf16.msra.mxu0 %v1527
        %2063 = vmatprep.subr.bf16.mxu0 %v1530
        %2064 = vmatpush1.bf16.msra.mxu0 %v1529
        %2065 = vmatprep.subr.bf16.mxu0 %v1532
        %2066 = vmatpush1.bf16.msra.mxu0 %v1531
        %2067 = vmatprep.subr.bf16.mxu0 %v1534
        %2068 = vmatpush1.bf16.msra.mxu0 %v1533
        %2069 = vmatprep.subr.bf16.mxu0 %v1536
        %2070 = vmatpush1.bf16.msra.mxu0 %v1535
        %2071 = vmatprep.subr.bf16.mxu0 %v1538
        %2072 = vmatpush1.bf16.msra.mxu0 %v1537
        %2073 = vmatprep.subr.bf16.mxu0 %v1540
        %2074 = vmatpush1.bf16.msra.mxu0 %v1539
        %2075 = vmatprep.subr.bf16.mxu0 %v1542
        %2076 = vmatpush1.bf16.msra.mxu0 %v1541
        %2077 = vmatprep.subr.bf16.mxu0 %v1544
        %2078 = vmatpush1.bf16.msra.mxu0 %v1543
        %2079 = vmatprep.subr.bf16.mxu0 %v1546
        %2080 = vmatpush1.bf16.msra.mxu0 %v1545
        %2081 = vmatprep.subr.bf16.mxu0 %v1548
        %2082 = vmatpush1.bf16.msra.mxu0 %v1547
        %2083 = vmatprep.mubr.bf16.mxu0 %v658
        %2084 = vmatmul.mubr.bf16.gmra.mrb[0].mxu0 %v657
        %v2085 = vpop.f32.mrb[0].mxu0
        %v2086 = vadd.f32 %v2043, %v2085
        %v2087 = vpop.f32.mrb[0].mxu0
        %v2088 = vadd.f32 %v2045, %v2087
        %v2089 = vpop.f32.mrb[0].mxu0
        %v2090 = vadd.f32 %v2047, %v2089
        %v2091 = vpop.f32.mrb[0].mxu0
        %v2092 = vadd.f32 %v2049, %v2091
        %2093 = vdwg.mxu0
        %2094 = vmatprep.subr.bf16.mxu0 %v1550
        %2095 = vmatpush1.bf16.msra.mxu0 %v1549
        %2096 = vmatprep.subr.bf16.mxu0 %v1552
        %2097 = vmatpush1.bf16.msra.mxu0 %v1551
        %2098 = vmatprep.subr.bf16.mxu0 %v1554
        %2099 = vmatpush1.bf16.msra.mxu0 %v1553
        %2100 = vmatprep.subr.bf16.mxu0 %v1556
        %2101 = vmatpush1.bf16.msra.mxu0 %v1555
        %2102 = vmatprep.subr.bf16.mxu0 %v1558
        %2103 = vmatpush1.bf16.msra.mxu0 %v1557
        %2104 = vmatprep.subr.bf16.mxu0 %v1560
        %2105 = vmatpush1.bf16.msra.mxu0 %v1559
        %2106 = vmatprep.subr.bf16.mxu0 %v1562
        %2107 = vmatpush1.bf16.msra.mxu0 %v1561
        %2108 = vmatprep.subr.bf16.mxu0 %v1564
        %2109 = vmatpush1.bf16.msra.mxu0 %v1563
        %2110 = vmatprep.subr.bf16.mxu0 %v1566
        %2111 = vmatpush1.bf16.msra.mxu0 %v1565
        %2112 = vmatprep.subr.bf16.mxu0 %v1568
        %2113 = vmatpush1.bf16.msra.mxu0 %v1567
        %2114 = vmatprep.subr.bf16.mxu0 %v1570
        %2115 = vmatpush1.bf16.msra.mxu0 %v1569
        %2116 = vmatprep.subr.bf16.mxu0 %v1572
        %2117 = vmatpush1.bf16.msra.mxu0 %v1571
        %2118 = vmatprep.subr.bf16.mxu0 %v1574
        %2119 = vmatpush1.bf16.msra.mxu0 %v1573
        %2120 = vmatprep.subr.bf16.mxu0 %v1576
        %2121 = vmatpush1.bf16.msra.mxu0 %v1575
        %2122 = vmatprep.subr.bf16.mxu0 %v1578
        %2123 = vmatpush1.bf16.msra.mxu0 %v1577
        %2124 = vmatprep.subr.bf16.mxu0 %v1580
        %2125 = vmatpush1.bf16.msra.mxu0 %v1579
        %2126 = vmatprep.mubr.bf16.mxu0 %v660
        %2127 = vmatmul.mubr.bf16.gmra.mrb[0].mxu0 %v659
        %v2128 = vpop.f32.mrb[0].mxu0
        %v2129 = vadd.f32 %v2086, %v2128
        %v2130 = vpop.f32.mrb[0].mxu0
        %v2131 = vadd.f32 %v2088, %v2130
        %v2132 = vpop.f32.mrb[0].mxu0
        %v2133 = vadd.f32 %v2090, %v2132
        %v2134 = vpop.f32.mrb[0].mxu0
        %v2135 = vadd.f32 %v2092, %v2134
        %2136 = vdwg.mxu0
        %2137 = vmatprep.subr.bf16.mxu0 %v1582
        %2138 = vmatpush1.bf16.msra.mxu0 %v1581
        %2139 = vmatprep.subr.bf16.mxu0 %v1584
        %2140 = vmatpush1.bf16.msra.mxu0 %v1583
        %2141 = vmatprep.subr.bf16.mxu0 %v1586
        %2142 = vmatpush1.bf16.msra.mxu0 %v1585
        %2143 = vmatprep.subr.bf16.mxu0 %v1588
        %2144 = vmatpush1.bf16.msra.mxu0 %v1587
        %2145 = vmatprep.subr.bf16.mxu0 %v1590
        %2146 = vmatpush1.bf16.msra.mxu0 %v1589
        %2147 = vmatprep.subr.bf16.mxu0 %v1592
        %2148 = vmatpush1.bf16.msra.mxu0 %v1591
        %2149 = vmatprep.subr.bf16.mxu0 %v1594
        %2150 = vmatpush1.bf16.msra.mxu0 %v1593
        %2151 = vmatprep.subr.bf16.mxu0 %v1596
        %2152 = vmatpush1.bf16.msra.mxu0 %v1595
        %2153 = vmatprep.subr.bf16.mxu0 %v1598
        %2154 = vmatpush1.bf16.msra.mxu0 %v1597
        %2155 = vmatprep.subr.bf16.mxu0 %v1600
        %2156 = vmatpush1.bf16.msra.mxu0 %v1599
        %2157 = vmatprep.subr.bf16.mxu0 %v1602
        %2158 = vmatpush1.bf16.msra.mxu0 %v1601
        %2159 = vmatprep.subr.bf16.mxu0 %v1604
        %2160 = vmatpush1.bf16.msra.mxu0 %v1603
        %2161 = vmatprep.subr.bf16.mxu0 %v1606
        %2162 = vmatpush1.bf16.msra.mxu0 %v1605
        %2163 = vmatprep.subr.bf16.mxu0 %v1608
        %2164 = vmatpush1.bf16.msra.mxu0 %v1607
        %2165 = vmatprep.subr.bf16.mxu0 %v1610
        %2166 = vmatpush1.bf16.msra.mxu0 %v1609
        %2167 = vmatprep.subr.bf16.mxu0 %v1612
        %2168 = vmatpush1.bf16.msra.mxu0 %v1611
        %2169 = vmatprep.mubr.bf16.mxu0 %v662
        %2170 = vmatmul.mubr.bf16.gmra.mrb[0].mxu0 %v661
        %v2171 = vpop.f32.mrb[0].mxu0
        %v2172 = vadd.f32 %v2129, %v2171
        %v2173 = vpop.f32.mrb[0].mxu0
        %v2174 = vadd.f32 %v2131, %v2173
        %v2175 = vpop.f32.mrb[0].mxu0
        %v2176 = vadd.f32 %v2133, %v2175
        %v2177 = vpop.f32.mrb[0].mxu0
        %v2178 = vadd.f32 %v2135, %v2177
        %2179 = vdwg.mxu0
        %2180 = vmatprep.subr.bf16.mxu0 %v1614
        %2181 = vmatpush1.bf16.msra.mxu0 %v1613
        %2182 = vmatprep.subr.bf16.mxu0 %v1616
        %2183 = vmatpush1.bf16.msra.mxu0 %v1615
        %2184 = vmatprep.subr.bf16.mxu0 %v1618
        %2185 = vmatpush1.bf16.msra.mxu0 %v1617
        %2186 = vmatprep.subr.bf16.mxu0 %v1620
        %2187 = vmatpush1.bf16.msra.mxu0 %v1619
        %2188 = vmatprep.subr.bf16.mxu0 %v1622
        %2189 = vmatpush1.bf16.msra.mxu0 %v1621
        %2190 = vmatprep.subr.bf16.mxu0 %v1624
        %2191 = vmatpush1.bf16.msra.mxu0 %v1623
        %2192 = vmatprep.subr.bf16.mxu0 %v1626
        %2193 = vmatpush1.bf16.msra.mxu0 %v1625
        %2194 = vmatprep.subr.bf16.mxu0 %v1628
        %2195 = vmatpush1.bf16.msra.mxu0 %v1627
        %2196 = vmatprep.subr.bf16.mxu0 %v1630
        %2197 = vmatpush1.bf16.msra.mxu0 %v1629
        %2198 = vmatprep.subr.bf16.mxu0 %v1632
        %2199 = vmatpush1.bf16.msra.mxu0 %v1631
        %2200 = vmatprep.subr.bf16.mxu0 %v1634
        %2201 = vmatpush1.bf16.msra.mxu0 %v1633
        %2202 = vmatprep.subr.bf16.mxu0 %v1636
        %2203 = vmatpush1.bf16.msra.mxu0 %v1635
        %2204 = vmatprep.subr.bf16.mxu0 %v1638
        %2205 = vmatpush1.bf16.msra.mxu0 %v1637
        %2206 = vmatprep.subr.bf16.mxu0 %v1640
        %2207 = vmatpush1.bf16.msra.mxu0 %v1639
        %2208 = vmatprep.subr.bf16.mxu0 %v1642
        %2209 = vmatpush1.bf16.msra.mxu0 %v1641
        %2210 = vmatprep.subr.bf16.mxu0 %v1644
        %2211 = vmatpush1.bf16.msra.mxu0 %v1643
        %2212 = vmatprep.mubr.bf16.mxu0 %v664
        %2213 = vmatmul.mubr.bf16.gmra.mrb[0].mxu0 %v663
        %v2214 = vpop.f32.mrb[0].mxu0
        %v2215 = vadd.f32 %v2172, %v2214
        %v2216 = vpop.f32.mrb[0].mxu0
        %v2217 = vadd.f32 %v2174, %v2216
        %v2218 = vpop.f32.mrb[0].mxu0
        %v2219 = vadd.f32 %v2176, %v2218
        %v2220 = vpop.f32.mrb[0].mxu0
        %v2221 = vadd.f32 %v2178, %v2220
        %2222 = vdwg.mxu0
        %2223 = vmatprep.subr.bf16.mxu0 %v1646
        %2224 = vmatpush1.bf16.msra.mxu0 %v1645
        %2225 = vmatprep.subr.bf16.mxu0 %v1648
        %2226 = vmatpush1.bf16.msra.mxu0 %v1647
        %2227 = vmatprep.subr.bf16.mxu0 %v1650
        %2228 = vmatpush1.bf16.msra.mxu0 %v1649
        %2229 = vmatprep.subr.bf16.mxu0 %v1652
        %2230 = vmatpush1.bf16.msra.mxu0 %v1651
        %2231 = vmatprep.subr.bf16.mxu0 %v1654
        %2232 = vmatpush1.bf16.msra.mxu0 %v1653
        %2233 = vmatprep.subr.bf16.mxu0 %v1656
        %2234 = vmatpush1.bf16.msra.mxu0 %v1655
        %2235 = vmatprep.subr.bf16.mxu0 %v1658
        %2236 = vmatpush1.bf16.msra.mxu0 %v1657
        %2237 = vmatprep.subr.bf16.mxu0 %v1660
        %2238 = vmatpush1.bf16.msra.mxu0 %v1659
        %2239 = vmatprep.subr.bf16.mxu0 %v1662
        %2240 = vmatpush1.bf16.msra.mxu0 %v1661
        %2241 = vmatprep.subr.bf16.mxu0 %v1664
        %2242 = vmatpush1.bf16.msra.mxu0 %v1663
        %2243 = vmatprep.subr.bf16.mxu0 %v1666
        %2244 = vmatpush1.bf16.msra.mxu0 %v1665
        %2245 = vmatprep.subr.bf16.mxu0 %v1668
        %2246 = vmatpush1.bf16.msra.mxu0 %v1667
        %2247 = vmatprep.subr.bf16.mxu0 %v1670
        %2248 = vmatpush1.bf16.msra.mxu0 %v1669
        %2249 = vmatprep.subr.bf16.mxu0 %v1672
        %2250 = vmatpush1.bf16.msra.mxu0 %v1671
        %2251 = vmatprep.subr.bf16.mxu0 %v1674
        %2252 = vmatpush1.bf16.msra.mxu0 %v1673
        %2253 = vmatprep.subr.bf16.mxu0 %v1676
        %2254 = vmatpush1.bf16.msra.mxu0 %v1675
        %2255 = vmatprep.mubr.bf16.mxu0 %v666
        %2256 = vmatmul.mubr.bf16.gmra.mrb[0].mxu0 %v665
        %v2257 = vpop.f32.mrb[0].mxu0
        %v2258 = vadd.f32 %v2215, %v2257
        %v2259 = vpop.f32.mrb[0].mxu0
        %v2260 = vadd.f32 %v2217, %v2259
        %v2261 = vpop.f32.mrb[0].mxu0
        %v2262 = vadd.f32 %v2219, %v2261
        %v2263 = vpop.f32.mrb[0].mxu0
        %v2264 = vadd.f32 %v2221, %v2263
        %2265 = vdwg.mxu0
        %2266 = vmatprep.subr.bf16.mxu0 %v1678
        %2267 = vmatpush1.bf16.msra.mxu0 %v1677
        %2268 = vmatprep.subr.bf16.mxu0 %v1680
        %2269 = vmatpush1.bf16.msra.mxu0 %v1679
        %2270 = vmatprep.subr.bf16.mxu0 %v1682
        %2271 = vmatpush1.bf16.msra.mxu0 %v1681
        %2272 = vmatprep.subr.bf16.mxu0 %v1684
        %2273 = vmatpush1.bf16.msra.mxu0 %v1683
        %2274 = vmatprep.subr.bf16.mxu0 %v1686
        %2275 = vmatpush1.bf16.msra.mxu0 %v1685
        %2276 = vmatprep.subr.bf16.mxu0 %v1688
        %2277 = vmatpush1.bf16.msra.mxu0 %v1687
        %2278 = vmatprep.subr.bf16.mxu0 %v1690
        %2279 = vmatpush1.bf16.msra.mxu0 %v1689
        %2280 = vmatprep.subr.bf16.mxu0 %v1692
        %2281 = vmatpush1.bf16.msra.mxu0 %v1691
        %2282 = vmatprep.subr.bf16.mxu0 %v1694
        %2283 = vmatpush1.bf16.msra.mxu0 %v1693
        %2284 = vmatprep.subr.bf16.mxu0 %v1696
        %2285 = vmatpush1.bf16.msra.mxu0 %v1695
        %2286 = vmatprep.subr.bf16.mxu0 %v1698
        %2287 = vmatpush1.bf16.msra.mxu0 %v1697
        %2288 = vmatprep.subr.bf16.mxu0 %v1700
        %2289 = vmatpush1.bf16.msra.mxu0 %v1699
        %2290 = vmatprep.subr.bf16.mxu0 %v1702
        %2291 = vmatpush1.bf16.msra.mxu0 %v1701
        %2292 = vmatprep.subr.bf16.mxu0 %v1704
        %2293 = vmatpush1.bf16.msra.mxu0 %v1703
        %2294 = vmatprep.subr.bf16.mxu0 %v1706
        %2295 = vmatpush1.bf16.msra.mxu0 %v1705
        %2296 = vmatprep.subr.bf16.mxu0 %v1708
        %2297 = vmatpush1.bf16.msra.mxu0 %v1707
        %2298 = vmatprep.mubr.bf16.mxu0 %v668
        %2299 = vmatmul.mubr.bf16.gmra.mrb[0].mxu0 %v667
        %v2300 = vpop.f32.mrb[0].mxu0
        %v2301 = vadd.f32 %v2258, %v2300
        %v2302 = vpop.f32.mrb[0].mxu0
        %v2303 = vadd.f32 %v2260, %v2302
        %v2304 = vpop.f32.mrb[0].mxu0
        %v2305 = vadd.f32 %v2262, %v2304
        %v2306 = vpop.f32.mrb[0].mxu0
        %v2307 = vadd.f32 %v2264, %v2306
        %2308 = vdwg.mxu0
        %v2309 = vadd.f32 %v329, %v2301
        %v2310 = vadd.f32 %v330, %v2303
        %v2311 = vadd.f32 %v331, %v2305
        %v2312 = vadd.f32 %v332, %v2307
        %2313 = vst [vmem:[#allocation2] sm:$0xff] %v2309
        %2314 = vst [vmem:[#allocation2 + $0x8] sm:$0xff] %v2310
        %2315 = vst [vmem:[#allocation2 + $0x10] sm:$0xff] %v2311
        %2316 = vst [vmem:[#allocation2 + $0x18] sm:$0xff] %v2312
        %p2317 = scmp.eq.s32.totalorder %s21, 4
        // Predicated region
        $region68: #{cnn_xy_forward.11} parent=58 // pred_check
          %p2318 = pneg %p2317
        $region69: #{cnn_xy_forward.11} parent=58 // pred_check_branch
          %2320 = sbr.rel (%p2318) target = $region71
        $region70: #{cnn_xy_forward.11} parent=58 // pred_region
          %v2321 = vld [vmem:[#allocation2] sm:$0xff]
          %v2322 = vld [vmem:[#allocation2 + $0x8] sm:$0xff]
          %v2323 = vld [vmem:[#allocation2 + $0x10] sm:$0xff]
          %v2324 = vld [vmem:[#allocation2 + $0x18] sm:$0xff]
          %v2325 = vld [vmem:[%s2] sm:$0x3]
          %v2327 = vlaneseq
          %v2328 = vshrl.u32 %v2327, 7
          %v2329 = vsub.s32 0, %v2328
          %v2330 = vrot.slane %v2325, %v2329
          %v2331 = vlaneseq
          %v2332 = vshrl.u32 %v2331, 7
          %v2333 = vsub.s32 1, %v2332
          %v2334 = vrot.slane %v2325, %v2333
          %v2337 = vadd.f32 %v2321, %v2330
          %v2338 = vadd.f32 %v2322, %v2334
          %v2339 = vadd.f32 %v2323, %v2330
          %v2340 = vadd.f32 %v2324, %v2334
          %v2341 = vmax.f32 %v2337, 0.0
          %v2342 = vmax.f32 %v2338, 0.0
          %v2343 = vmax.f32 %v2339, 0.0
          %v2344 = vmax.f32 %v2340, 0.0
          %v2345 = vpack.c.bf16 %v2343, %v2341
          %v2346 = vpack.c.bf16 %v2344, %v2342
          %v2347 = vld [vmem:[%s3] sm:$0xf]
          %v2348 = vld [vmem:[%s3 + $0x4] sm:$0xf]
          %v2349 = vld [vmem:[%s3 + $0x8] sm:$0xf]
          %v2350 = vld [vmem:[%s3 + $0xc] sm:$0xf]
          %v2351 = vld [vmem:[%s3 + $0x10] sm:$0xf]
          %v2352 = vld [vmem:[%s3 + $0x14] sm:$0xf]
          %v2353 = vld [vmem:[%s3 + $0x18] sm:$0xf]
          %v2354 = vld [vmem:[%s3 + $0x1c] sm:$0xf]
          %v2355 = vld [vmem:[%s3 + $0x20] sm:$0xf]
          %v2356 = vld [vmem:[%s3 + $0x24] sm:$0xf]
          %v2357 = vld [vmem:[%s3 + $0x28] sm:$0xf]
          %v2358 = vld [vmem:[%s3 + $0x2c] sm:$0xf]
          %v2359 = vld [vmem:[%s3 + $0x30] sm:$0xf]
          %v2360 = vld [vmem:[%s3 + $0x34] sm:$0xf]
          %v2361 = vld [vmem:[%s3 + $0x38] sm:$0xf]
          %v2362 = vld [vmem:[%s3 + $0x3c] sm:$0xf]
          %v2363 = vld [vmem:[%s3 + $0x40] sm:$0xf]
          %v2364 = vld [vmem:[%s3 + $0x44] sm:$0xf]
          %v2365 = vld [vmem:[%s3 + $0x48] sm:$0xf]
          %v2366 = vld [vmem:[%s3 + $0x4c] sm:$0xf]
          %v2367 = vld [vmem:[%s3 + $0x50] sm:$0xf]
          %v2368 = vld [vmem:[%s3 + $0x54] sm:$0xf]
          %v2369 = vld [vmem:[%s3 + $0x58] sm:$0xf]
          %v2370 = vld [vmem:[%s3 + $0x5c] sm:$0xf]
          %v2371 = vld [vmem:[%s3 + $0x60] sm:$0xf]
          %v2372 = vld [vmem:[%s3 + $0x64] sm:$0xf]
          %v2373 = vld [vmem:[%s3 + $0x68] sm:$0xf]
          %v2374 = vld [vmem:[%s3 + $0x6c] sm:$0xf]
          %v2375 = vld [vmem:[%s3 + $0x70] sm:$0xf]
          %v2376 = vld [vmem:[%s3 + $0x74] sm:$0xf]
          %v2377 = vld [vmem:[%s3 + $0x78] sm:$0xf]
          %v2378 = vld [vmem:[%s3 + $0x7c] sm:$0xf]
          %v2379 = vld [vmem:[%s4] sm:$0x1]
          %v2381 = vlaneseq
          %v2382 = vshrl.u32 %v2381, 7
          %v2383 = vsub.s32 0, %v2382
          %v2384 = vrot.slane %v2379, %v2383
          %v2418 = vunpack.c.l.b16 %v2347
          %v2419 = vunpack.c.l.b16 %v2348
          %v2420 = vunpack.c.l.b16 %v2349
          %v2421 = vunpack.c.l.b16 %v2350
          %v2422 = vunpack.c.l.b16 %v2351
          %v2423 = vunpack.c.l.b16 %v2352
          %v2424 = vunpack.c.l.b16 %v2353
          %v2425 = vunpack.c.l.b16 %v2354
          %v2426 = vunpack.c.l.b16 %v2355
          %v2427 = vunpack.c.l.b16 %v2356
          %v2428 = vunpack.c.l.b16 %v2357
          %v2429 = vunpack.c.l.b16 %v2358
          %v2430 = vunpack.c.l.b16 %v2359
          %v2431 = vunpack.c.l.b16 %v2360
          %v2432 = vunpack.c.l.b16 %v2361
          %v2433 = vunpack.c.l.b16 %v2362
          %v2434 = vunpack.c.l.b16 %v2363
          %v2435 = vunpack.c.l.b16 %v2364
          %v2436 = vunpack.c.l.b16 %v2365
          %v2437 = vunpack.c.l.b16 %v2366
          %v2438 = vunpack.c.l.b16 %v2367
          %v2439 = vunpack.c.l.b16 %v2368
          %v2440 = vunpack.c.l.b16 %v2369
          %v2441 = vunpack.c.l.b16 %v2370
          %v2442 = vunpack.c.l.b16 %v2371
          %v2443 = vunpack.c.l.b16 %v2372
          %v2444 = vunpack.c.l.b16 %v2373
          %v2445 = vunpack.c.l.b16 %v2374
          %v2446 = vunpack.c.l.b16 %v2375
          %v2447 = vunpack.c.l.b16 %v2376
          %v2448 = vunpack.c.l.b16 %v2377
          %v2449 = vunpack.c.l.b16 %v2378
          %v2450 = vpack.c.b16 %v2419, %v2418
          %v2451 = vpack.c.b16 %v2421, %v2420
          %v2452 = vpack.c.b16 %v2423, %v2422
          %v2453 = vpack.c.b16 %v2425, %v2424
          %v2454 = vpack.c.b16 %v2427, %v2426
          %v2455 = vpack.c.b16 %v2429, %v2428
          %v2456 = vpack.c.b16 %v2431, %v2430
          %v2457 = vpack.c.b16 %v2433, %v2432
          %v2458 = vpack.c.b16 %v2435, %v2434
          %v2459 = vpack.c.b16 %v2437, %v2436
          %v2460 = vpack.c.b16 %v2439, %v2438
          %v2461 = vpack.c.b16 %v2441, %v2440
          %v2462 = vpack.c.b16 %v2443, %v2442
          %v2463 = vpack.c.b16 %v2445, %v2444
          %v2464 = vpack.c.b16 %v2447, %v2446
          %v2465 = vpack.c.b16 %v2449, %v2448
          %2482 = vmatprep.subr.bf16.mxu0 0
          %2483 = vmatpush1.bf16.msra.mxu0 %v2450
          %2484 = vmatprep.subr.bf16.mxu0 0
          %2485 = vmatpush1.bf16.msra.mxu0 %v2451
          %2486 = vmatprep.subr.bf16.mxu0 0
          %2487 = vmatpush1.bf16.msra.mxu0 %v2452
          %2488 = vmatprep.subr.bf16.mxu0 0
          %2489 = vmatpush1.bf16.msra.mxu0 %v2453
          %2490 = vmatprep.subr.bf16.mxu0 0
          %2491 = vmatpush1.bf16.msra.mxu0 %v2454
          %2492 = vmatprep.subr.bf16.mxu0 0
          %2493 = vmatpush1.bf16.msra.mxu0 %v2455
          %2494 = vmatprep.subr.bf16.mxu0 0
          %2495 = vmatpush1.bf16.msra.mxu0 %v2456
          %2496 = vmatprep.subr.bf16.mxu0 0
          %2497 = vmatpush1.bf16.msra.mxu0 %v2457
          %2498 = vmatprep.subr.bf16.mxu0 0
          %2499 = vmatpush1.bf16.msra.mxu0 %v2458
          %2500 = vmatprep.subr.bf16.mxu0 0
          %2501 = vmatpush1.bf16.msra.mxu0 %v2459
          %2502 = vmatprep.subr.bf16.mxu0 0
          %2503 = vmatpush1.bf16.msra.mxu0 %v2460
          %2504 = vmatprep.subr.bf16.mxu0 0
          %2505 = vmatpush1.bf16.msra.mxu0 %v2461
          %2506 = vmatprep.subr.bf16.mxu0 0
          %2507 = vmatpush1.bf16.msra.mxu0 %v2462
          %2508 = vmatprep.subr.bf16.mxu0 0
          %2509 = vmatpush1.bf16.msra.mxu0 %v2463
          %2510 = vmatprep.subr.bf16.mxu0 0
          %2511 = vmatpush1.bf16.msra.mxu0 %v2464
          %2512 = vmatprep.subr.bf16.mxu0 0
          %2513 = vmatpush1.bf16.msra.mxu0 %v2465
          %2514 = vmatprep.mubr.bf16.mxu0 %v2346
          %2515 = vmatmul.mubr.bf16.gmra.mrb[0].mxu0 %v2345
          %v2516 = vpop.f32.mrb[0].mxu0
          %v2517 = vadd.f32 %v2384, %v2516
          %v2518 = vpop.f32.mrb[0].mxu0
          %v2519 = vpop.f32.mrb[0].mxu0
          %v2520 = vadd.f32 %v2384, %v2519
          %v2521 = vpop.f32.mrb[0].mxu0
          %2522 = vdwg.mxu0
          %2523 = vst [vmem:[%s318] sm:$0xff] %v2517
          %2524 = vst [vmem:[%s318 + $0x8] sm:$0xff] %v2520
        $region71: #{cnn_xy_forward.11} parent=58 // pred_fallthru
          _
        %s2525 = smul.u32 2, %s20
        %p2526 = scmp.lt.s32.totalorder %s2525, 1
        %s2527 = scalar_select %p2526, %s2525, 1
        %s2528 = smul.addr %s2527, 8
        %s2529 = scalar_lea.vmem %s5, %s2528
        // Predicated region
        $region72: #{cnn_xy_forward.11} parent=58 // pred_check
          %p2530 = pneg %p163
        $region73: #{cnn_xy_forward.11} parent=58 // pred_check_branch
          %2532 = sbr.rel (%p2530) target = $region75
        $region74: #{cnn_xy_forward.11} parent=58 // pred_region
          %s2533 = smul.u32 2, %s20
        $region75: #{cnn_xy_forward.11} parent=58 // pred_fallthru
          _
        // Predicated region
        $region76: #{cnn_xy_forward.11} parent=58 // pred_check
          %p2534 = pneg %p163
        $region77: #{cnn_xy_forward.11} parent=58 // pred_check_branch
          %2536 = sbr.rel (%p2534) target = $region79
        $region78: #{cnn_xy_forward.11} parent=58 // pred_region
          %s2537 = smul.u32 2, %s20
          %p2538 = scmp.lt.s32.totalorder %s2537, 1
          %s2539 = scalar_select %p2538, %s2537, 1
          %s2540 = smul.addr %s2539, 8
          %s2541 = scalar_lea.vmem %s5, %s2540
        $region79: #{cnn_xy_forward.11} parent=58 // pred_fallthru
          _
      $region59: #{cnn_xy_forward.11} parent=5 // pred_fallthru
        _
      %p2542 = scmp.le.s32.totalorder 2, %s11
      // Predicated region
      $region80: #{cnn_xy_forward.11} parent=5 // pred_check
        %p2543 = pneg %p2542
      $region81: #{cnn_xy_forward.11} parent=5 // pred_check_branch
        %2545 = sbr.rel (%p2543) target = $region83
      $region82: #{cnn_xy_forward.11} parent=5 // pred_region
        %s2546 = ssub.s32 %s11, 2
      $region83: #{cnn_xy_forward.11} parent=5 // pred_fallthru
        _
    $region6: #{cnn_xy_forward.11} parent=1 // loop_footer
      %s15 = sadd.s32 1, %s11
    $region7: #{cnn_xy_forward.11} parent=1 // loop_footer_branch
      %10 = sbr.rel target = $region3
    $region8: #{cnn_xy_forward.11} parent=1 // loop_exit
      _

</llo_original>
